<compile_context>
chip_gen: v6e
topology: v6e:2x2x1
jax: 0.10.0
libtpu: 0.0.40
codegen_flags: <defaults>
</compile_context>

<pallas_src>
import numpy as np
import jax
import jax.numpy as jnp
from jax.experimental import pallas as pl
from jax.experimental.pallas import tpu as pltpu

IMG = 32                      # camera spatial size
CIN = 3                       # camera channels
C1 = 16                       # conv1 output channels
C2 = 32                       # conv2 output channels
OH1 = (IMG - 3) // 2 + 1      # 15
OH2 = (OH1 - 3) // 2 + 1      # 7
LANE0 = CIN * IMG             # 96   camera row lanes:  c*32 + x
LANE1 = OH1 * C1              # 240  conv1 row lanes:   ox*16 + co
LANE2 = OH2 * C2              # 224  conv2 row lanes:   ox*32 + co
FLAT = C2 * OH2 * OH2         # 1568
CONV_WEIGHT_DTYPE = jnp.bfloat16   # set to jnp.float32 for bit-exact f32 path


# ---------------------------------------------------------------------------
# Fused kernel: lidar MLP + conv1 + conv2 + camera head, one (TB, 2) store.
# ---------------------------------------------------------------------------
def _multi_critic_kernel(
    lidar_ref, action_ref, cam_ref,
    w1l_ref, w1a_ref, b1l_ref, w2l_ref, b2l_ref,
    r1_ref, cb1_ref, r2_ref, cb2_ref,
    wh1i_ref, wh1a_ref, bh1_ref,
    wfl_ref, wfc_ref, bfin_ref,
    out_ref,
    y1_scr):
  f32 = jnp.float32
  wdt = r1_ref.dtype

  # -------- lidar critic: Linear->ReLU->Linear->ReLU (split-K over inputs) ---
  h = (jnp.dot(lidar_ref[...], w1l_ref[...], preferred_element_type=f32)
       + jnp.dot(action_ref[...], w1a_ref[...], preferred_element_type=f32)
       + b1l_ref[...])
  h = jnp.maximum(h, 0.0)
  h = jnp.dot(h, w2l_ref[...], preferred_element_type=f32) + b2l_ref[...]
  h_lidar = jnp.maximum(h, 0.0)                                   # (TB, 32)

  # -------- camera critic: conv1 (3->16, k=3, s=2), 32x32 -> 15x15 -----------
  # y1[oy] (TB, 240) = relu(bias + sum_ky cam_row[2*oy+ky] @ R1[ky])
  for oy in range(OH1):
    acc = cb1_ref[...]                                            # (1, 240)
    for ky in range(3):
      row = cam_ref[2 * oy + ky].astype(wdt)                      # (TB, 96)
      acc = acc + jnp.dot(row, r1_ref[ky], preferred_element_type=f32)
    y1_scr[oy] = jnp.maximum(acc, 0.0)

  # -------- conv2 (16->32, k=3, s=2), 15x15 -> 7x7, head L1 fused ------------
  h_cam = (jnp.dot(action_ref[...], wh1a_ref[...], preferred_element_type=f32)
           + bh1_ref[...])                                        # (TB, 64)
  for oy in range(OH2):
    acc = cb2_ref[...]                                            # (1, 224)
    for ky in range(3):
      row = y1_scr[2 * oy + ky].astype(wdt)                       # (TB, 240)
      acc = acc + jnp.dot(row, r2_ref[ky], preferred_element_type=f32)
    y2_row = jnp.maximum(acc, 0.0).astype(wdt)                    # (TB, 224)
    # flatten folded into pre-permuted head weights (exact NCHW Flatten order)
    h_cam = h_cam + jnp.dot(y2_row, wh1i_ref[oy], preferred_element_type=f32)
  h_cam = jnp.maximum(h_cam, 0.0)

  # -------- packed final layer: lane 0 = lidar value, lane 1 = camera value --
  out_ref[...] = (jnp.dot(h_lidar, wfl_ref[...], preferred_element_type=f32)
                  + jnp.dot(h_cam, wfc_ref[...], preferred_element_type=f32)
                  + bfin_ref[...])


# ---------------------------------------------------------------------------
# Forward wrapper (one pallas_call; only XLA work is the tiny camera relayout)
# ---------------------------------------------------------------------------
def multi_critic_forward(params, lidar, camera, action):
  B, L = lidar.shape
  A = action.shape[1]

  # camera (B, 3*32*32) is NCHW (camera.view(-1,3,32,32)); relayout once to
  # (row=y, batch, lane=c*32+x) so conv taps are contiguous lane blocks.
  cam = camera.reshape(B, CIN, IMG, IMG).transpose(2, 0, 1, 3).reshape(IMG, B, LANE0)

  tb = B if B <= 128 else 128
  nb = (B + tb - 1) // tb
  bp = nb * tb
  if bp != B:                              # only triggers for large ragged batches
    lidar = jnp.pad(lidar, ((0, bp - B), (0, 0)))
    action = jnp.pad(action, ((0, bp - B), (0, 0)))
    cam = jnp.pad(cam, ((0, 0), (0, bp - B), (0, 0)))

  weight_args = (
      params["w1l"], params["w1a"], params["b1l"], params["w2l"], params["b2l"],
      params["r1"], params["cb1"], params["r2"], params["cb2"],
      params["wh1_img"], params["wh1_act"], params["bh1"],
      params["wfl"], params["wfc"], params["bfin"])

  def _const_spec(a):
    zeros = (0,) * a.ndim
    return pl.BlockSpec(a.shape, lambda b, _z=zeros: _z)   # resident weights

  in_specs = (
      [pl.BlockSpec((tb, L), lambda b: (b, 0)),
       pl.BlockSpec((tb, A), lambda b: (b, 0)),
       pl.BlockSpec((IMG, tb, LANE0), lambda b: (0, b, 0))]
      + [_const_spec(a) for a in weight_args])

  out = pl.pallas_call(
      _multi_critic_kernel,
      out_shape=jax.ShapeDtypeStruct((bp, 2), jnp.float32),
      grid=(nb,),
      in_specs=in_specs,
      out_specs=pl.BlockSpec((tb, 2), lambda b: (b, 0)),
      scratch_shapes=[pltpu.VMEM((OH1, tb, LANE1), jnp.float32)],
      compiler_params=pltpu.CompilerParams(dimension_semantics=("parallel",)),
  )(lidar, action, cam, *weight_args)

  out = out[:B]
  return out[:, 0:1], out[:, 1:2]


# ---------------------------------------------------------------------------
# Deterministic PyTorch-layout params + one-time packing into kernel layout
# ---------------------------------------------------------------------------
def init_torch_params(key, lidar_dim, action_dim):
  ks = jax.random.split(key, 14)

  def u(k, shape, fan_in):
    b = 1.0 / float(np.sqrt(fan_in))
    return jax.random.uniform(k, shape, jnp.float32, -b, b)

  din = lidar_dim + action_dim
  dh = FLAT + action_dim
  return {
      "l1_w": u(ks[0], (64, din), din), "l1_b": u(ks[1], (64,), din),
      "l2_w": u(ks[2], (32, 64), 64),   "l2_b": u(ks[3], (32,), 64),
      "l3_w": u(ks[4], (1, 32), 32),    "l3_b": u(ks[5], (1,), 32),
      "c1_w": u(ks[6], (C1, CIN, 3, 3), CIN * 9), "c1_b": u(ks[7], (C1,), CIN * 9),
      "c2_w": u(ks[8], (C2, C1, 3, 3), C1 * 9),   "c2_b": u(ks[9], (C2,), C1 * 9),
      "h1_w": u(ks[10], (64, dh), dh),  "h1_b": u(ks[11], (64,), dh),
      "h2_w": u(ks[12], (1, 64), 64),   "h2_b": u(ks[13], (1,), 64),
  }


def pack_params(tp, lidar_dim, action_dim):
  """One-time re-layout of PyTorch-style params into kernel form (hoisted out
  of the forward pass)."""
  L = lidar_dim
  f32 = np.float32
  c1_w = np.asarray(tp["c1_w"], f32)       # (16, 3, 3, 3)  [co, c, ky, kx]
  c2_w = np.asarray(tp["c2_w"], f32)       # (32, 16, 3, 3) [co, ci, ky, kx]
  h1_w = np.asarray(tp["h1_w"], f32)       # (64, 1568 + A)
  l1_w = np.asarray(tp["l1_w"], f32)       # (64, L + A)

  # conv1 per-row matmul: r1[ky, c*32 + x, ox*16 + co] = c1_w[co, c, ky, x-2*ox]
  r1 = np.zeros((3, LANE0, LANE1), f32)
  for ky in range(3):
    for kx in range(3):
      for ox in range(OH1):
        x = 2 * ox + kx
        r1[ky, np.arange(CIN) * IMG + x, ox * C1:(ox + 1) * C1] = c1_w[:, :, ky, kx].T
  # conv2 per-row matmul: r2[ky, x1*16 + ci, ox*32 + co] = c2_w[co, ci, ky, x1-2*ox]
  r2 = np.zeros((3, LANE1, LANE2), f32)
  for ky in range(3):
    for kx in range(3):
      for ox in range(OH2):
        x1 = 2 * ox + kx
        r2[ky, x1 * C1:(x1 + 1) * C1, ox * C2:(ox + 1) * C2] = c2_w[:, :, ky, kx].T

  # head layer-1 image weights, permuted from the NCHW nn.Flatten order
  # (co*49 + oy*7 + ox) to the kernel's per-row (oy; ox*32 + co) layout.
  himg = h1_w[:, :FLAT].reshape(64, C2, OH2, OH2)           # [o, co, oy, ox]
  wh1_img = np.transpose(himg, (2, 3, 1, 0)).reshape(OH2, LANE2, 64)

  wfl = np.zeros((32, 2), f32)
  wfl[:, 0] = np.asarray(tp["l3_w"], f32)[0]
  wfc = np.zeros((64, 2), f32)
  wfc[:, 1] = np.asarray(tp["h2_w"], f32)[0]
  bfin = np.concatenate([np.asarray(tp["l3_b"], f32),
                         np.asarray(tp["h2_b"], f32)])[None, :]

  wdt = CONV_WEIGHT_DTYPE
  return {
      "w1l": jnp.asarray(l1_w[:, :L].T),
      "w1a": jnp.asarray(l1_w[:, L:].T),
      "b1l": jnp.asarray(np.asarray(tp["l1_b"], f32)[None, :]),
      "w2l": jnp.asarray(np.asarray(tp["l2_w"], f32).T),
      "b2l": jnp.asarray(np.asarray(tp["l2_b"], f32)[None, :]),
      "r1": jnp.asarray(r1, wdt),
      "cb1": jnp.asarray(np.tile(np.asarray(tp["c1_b"], f32), OH1)[None, :]),
      "r2": jnp.asarray(r2, wdt),
      "cb2": jnp.asarray(np.tile(np.asarray(tp["c2_b"], f32), OH2)[None, :]),
      "wh1_img": jnp.asarray(wh1_img, wdt),
      "wh1_act": jnp.asarray(h1_w[:, FLAT:].T),
      "bh1": jnp.asarray(np.asarray(tp["h1_b"], f32)[None, :]),
      "wfl": jnp.asarray(wfl),
      "wfc": jnp.asarray(wfc),
      "bfin": jnp.asarray(bfin),
  }


# ---------------------------------------------------------------------------
# Plain-JAX reference of the module (for the correctness assert)
# ---------------------------------------------------------------------------
def reference_forward(tp, lidar, camera, action):
  x = jnp.concatenate([lidar, action], axis=1)
  h = jax.nn.relu(x @ tp["l1_w"].T + tp["l1_b"])
  h = jax.nn.relu(h @ tp["l2_w"].T + tp["l2_b"])
  lidar_value = h @ tp["l3_w"].T + tp["l3_b"]

  img = camera.reshape(-1, CIN, IMG, IMG)
  dn = ("NCHW", "OIHW", "NCHW")
  y = jax.lax.conv_general_dilated(img, tp["c1_w"], (2, 2), "VALID",
                                   dimension_numbers=dn)
  y = jax.nn.relu(y + tp["c1_b"][None, :, None, None])
  y = jax.lax.conv_general_dilated(y, tp["c2_w"], (2, 2), "VALID",
                                   dimension_numbers=dn)
  y = jax.nn.relu(y + tp["c2_b"][None, :, None, None])
  flat = y.reshape(y.shape[0], -1)
  z = jnp.concatenate([flat, action], axis=1)
  z = jax.nn.relu(z @ tp["h1_w"].T + tp["h1_b"])
  camera_value = z @ tp["h2_w"].T + tp["h2_b"]
  return lidar_value, camera_value


if __name__ == "__main__":
  key = jax.random.PRNGKey(0)
  k1, k2, k3, kp = jax.random.split(key, 4)
  B, lidar_dim, action_dim = 2, 16, 4
  camera_dim = CIN * IMG * IMG

  lidar = jax.random.normal(k1, (B, lidar_dim), jnp.float32)
  camera = jax.random.normal(k2, (B, camera_dim), jnp.float32)
  action = jax.random.normal(k3, (B, action_dim), jnp.float32)

  torch_params = init_torch_params(kp, lidar_dim, action_dim)
  params = pack_params(torch_params, lidar_dim, action_dim)

  fwd = jax.jit(multi_critic_forward)
  lidar_value, camera_value = fwd(params, lidar, camera, action)
  jax.block_until_ready((lidar_value, camera_value))

  assert lidar_value.shape == (B, 1) and camera_value.shape == (B, 1)
  assert lidar_value.dtype == jnp.float32 and camera_value.dtype == jnp.float32

  # Numerical check vs. the plain-JAX reference (bf16 conv/head weights give
  # ~1e-3 drift; tolerance leaves ample margin).
  ref_l, ref_c = jax.jit(reference_forward)(torch_params, lidar, camera, action)
  np.testing.assert_allclose(np.asarray(lidar_value), np.asarray(ref_l),
                             rtol=3e-2, atol=3e-2)
  np.testing.assert_allclose(np.asarray(camera_value), np.asarray(ref_c),
                             rtol=3e-2, atol=3e-2)

  print("KERNEL_OK")
</pallas_src>

<mosaic_0001>
module attributes {stable_mosaic.version = 11 : i64} {
  func.func @_multi_critic_kernel(%arg0: i32, %arg1: memref<2x16xf32, #tpu.memory_space<vmem>>, %arg2: memref<2x4xf32, #tpu.memory_space<vmem>>, %arg3: memref<32x2x96xf32, #tpu.memory_space<vmem>>, %arg4: memref<16x64xf32, #tpu.memory_space<vmem>>, %arg5: memref<4x64xf32, #tpu.memory_space<vmem>>, %arg6: memref<1x64xf32, #tpu.memory_space<vmem>>, %arg7: memref<64x32xf32, #tpu.memory_space<vmem>>, %arg8: memref<1x32xf32, #tpu.memory_space<vmem>>, %arg9: memref<3x96x240xbf16, #tpu.memory_space<vmem>>, %arg10: memref<1x240xf32, #tpu.memory_space<vmem>>, %arg11: memref<3x240x224xbf16, #tpu.memory_space<vmem>>, %arg12: memref<1x224xf32, #tpu.memory_space<vmem>>, %arg13: memref<7x224x64xbf16, #tpu.memory_space<vmem>>, %arg14: memref<4x64xf32, #tpu.memory_space<vmem>>, %arg15: memref<1x64xf32, #tpu.memory_space<vmem>>, %arg16: memref<32x2xf32, #tpu.memory_space<vmem>>, %arg17: memref<64x2xf32, #tpu.memory_space<vmem>>, %arg18: memref<1x2xf32, #tpu.memory_space<vmem>>, %arg19: memref<2x2xf32, #tpu.memory_space<vmem>>, %arg20: memref<15x2x240xf32, #tpu.memory_space<vmem>>) attributes {dimension_semantics = [#tpu.dimension_semantics<parallel>], iteration_bounds = array<i64: 1>, scalar_prefetch = 0 : i64, scratch_operands = 1 : i64, tpu.core_type = #tpu.core_type<tc>, window_params = [{transform_indices = @transform_0, window_bounds = array<i64: 2, 16>}, {transform_indices = @transform_1, window_bounds = array<i64: 2, 4>}, {transform_indices = @transform_2, window_bounds = array<i64: 32, 2, 96>}, {pipeline_mode = #tpu.pipeline_mode<synchronous>, transform_indices = @transform_3, window_bounds = array<i64: 16, 64>}, {pipeline_mode = #tpu.pipeline_mode<synchronous>, transform_indices = @transform_4, window_bounds = array<i64: 4, 64>}, {pipeline_mode = #tpu.pipeline_mode<synchronous>, transform_indices = @transform_5, window_bounds = array<i64: 1, 64>}, {pipeline_mode = #tpu.pipeline_mode<synchronous>, transform_indices = @transform_6, window_bounds = array<i64: 64, 32>}, {pipeline_mode = #tpu.pipeline_mode<synchronous>, transform_indices = @transform_7, window_bounds = array<i64: 1, 32>}, {pipeline_mode = #tpu.pipeline_mode<synchronous>, transform_indices = @transform_8, window_bounds = array<i64: 3, 96, 240>}, {pipeline_mode = #tpu.pipeline_mode<synchronous>, transform_indices = @transform_9, window_bounds = array<i64: 1, 240>}, {pipeline_mode = #tpu.pipeline_mode<synchronous>, transform_indices = @transform_10, window_bounds = array<i64: 3, 240, 224>}, {pipeline_mode = #tpu.pipeline_mode<synchronous>, transform_indices = @transform_11, window_bounds = array<i64: 1, 224>}, {pipeline_mode = #tpu.pipeline_mode<synchronous>, transform_indices = @transform_12, window_bounds = array<i64: 7, 224, 64>}, {pipeline_mode = #tpu.pipeline_mode<synchronous>, transform_indices = @transform_13, window_bounds = array<i64: 4, 64>}, {pipeline_mode = #tpu.pipeline_mode<synchronous>, transform_indices = @transform_14, window_bounds = array<i64: 1, 64>}, {pipeline_mode = #tpu.pipeline_mode<synchronous>, transform_indices = @transform_15, window_bounds = array<i64: 32, 2>}, {pipeline_mode = #tpu.pipeline_mode<synchronous>, transform_indices = @transform_16, window_bounds = array<i64: 64, 2>}, {pipeline_mode = #tpu.pipeline_mode<synchronous>, transform_indices = @transform_17, window_bounds = array<i64: 1, 2>}, {transform_indices = @transform_18, window_bounds = array<i64: 2, 2>}]} {
    %c0 = arith.constant 0 : index
    %c0_0 = arith.constant 0 : index
    %0 = vector.load %arg1[%c0, %c0_0] : memref<2x16xf32, #tpu.memory_space<vmem>>, vector<2x16xf32>
    %c0_1 = arith.constant 0 : index
    %c0_2 = arith.constant 0 : index
    %1 = vector.load %arg4[%c0_1, %c0_2] : memref<16x64xf32, #tpu.memory_space<vmem>>, vector<16x64xf32>
    %cst = arith.constant dense<0.000000e+00> : vector<2x64xf32>
    %2 = tpu.matmul %0, %1, %cst {dimension_numbers = #tpu.dot_dimension_numbers<[1], [0], [0], [1], [0, 0, 1, 1], [], []>} : vector<2x16xf32>, vector<16x64xf32>, vector<2x64xf32> -> vector<2x64xf32>
    %c0_3 = arith.constant 0 : index
    %c0_4 = arith.constant 0 : index
    %3 = vector.load %arg2[%c0_3, %c0_4] : memref<2x4xf32, #tpu.memory_space<vmem>>, vector<2x4xf32>
    %c0_5 = arith.constant 0 : index
    %c0_6 = arith.constant 0 : index
    %4 = vector.load %arg5[%c0_5, %c0_6] : memref<4x64xf32, #tpu.memory_space<vmem>>, vector<4x64xf32>
    %cst_7 = arith.constant dense<0.000000e+00> : vector<2x64xf32>
    %5 = tpu.matmul %3, %4, %cst_7 {dimension_numbers = #tpu.dot_dimension_numbers<[1], [0], [0], [1], [0, 0, 1, 1], [], []>} : vector<2x4xf32>, vector<4x64xf32>, vector<2x64xf32> -> vector<2x64xf32>
    %6 = arith.addf %2, %5 : vector<2x64xf32>
    %c0_8 = arith.constant 0 : index
    %c0_9 = arith.constant 0 : index
    %7 = vector.load %arg6[%c0_8, %c0_9] : memref<1x64xf32, #tpu.memory_space<vmem>>, vector<1x64xf32>
    %8 = vector.broadcast %7 : vector<1x64xf32> to vector<2x64xf32>
    %9 = arith.addf %6, %8 : vector<2x64xf32>
    %cst_10 = arith.constant 0.000000e+00 : f32
    %10 = vector.broadcast %cst_10 : f32 to vector<2x64xf32>
    %11 = arith.maximumf %9, %10 : vector<2x64xf32>
    %c0_11 = arith.constant 0 : index
    %c0_12 = arith.constant 0 : index
    %12 = vector.load %arg7[%c0_11, %c0_12] : memref<64x32xf32, #tpu.memory_space<vmem>>, vector<64x32xf32>
    %cst_13 = arith.constant dense<0.000000e+00> : vector<2x32xf32>
    %13 = tpu.matmul %11, %12, %cst_13 {dimension_numbers = #tpu.dot_dimension_numbers<[1], [0], [0], [1], [0, 0, 1, 1], [], []>} : vector<2x64xf32>, vector<64x32xf32>, vector<2x32xf32> -> vector<2x32xf32>
    %c0_14 = arith.constant 0 : index
    %c0_15 = arith.constant 0 : index
    %14 = vector.load %arg8[%c0_14, %c0_15] : memref<1x32xf32, #tpu.memory_space<vmem>>, vector<1x32xf32>
    %15 = vector.broadcast %14 : vector<1x32xf32> to vector<2x32xf32>
    %16 = arith.addf %13, %15 : vector<2x32xf32>
    %cst_16 = arith.constant 0.000000e+00 : f32
    %17 = vector.broadcast %cst_16 : f32 to vector<2x32xf32>
    %18 = arith.maximumf %16, %17 : vector<2x32xf32>
    %c0_17 = arith.constant 0 : index
    %c0_18 = arith.constant 0 : index
    %19 = vector.load %arg10[%c0_17, %c0_18] : memref<1x240xf32, #tpu.memory_space<vmem>>, vector<1x240xf32>
    %c0_19 = arith.constant 0 : index
    %c0_20 = arith.constant 0 : index
    %c0_21 = arith.constant 0 : index
    %20 = vector.load %arg3[%c0_19, %c0_20, %c0_21] : memref<32x2x96xf32, #tpu.memory_space<vmem>>, vector<1x2x96xf32>
    %21 = vector.shape_cast %20 : vector<1x2x96xf32> to vector<2x96xf32>
    %22 = arith.truncf %21 : vector<2x96xf32> to vector<2x96xbf16>
    %c0_22 = arith.constant 0 : index
    %c0_23 = arith.constant 0 : index
    %c0_24 = arith.constant 0 : index
    %23 = vector.load %arg9[%c0_22, %c0_23, %c0_24] : memref<3x96x240xbf16, #tpu.memory_space<vmem>>, vector<1x96x240xbf16>
    %24 = vector.shape_cast %23 : vector<1x96x240xbf16> to vector<96x240xbf16>
    %cst_25 = arith.constant dense<0.000000e+00> : vector<2x240xf32>
    %25 = tpu.matmul %22, %24, %cst_25 {dimension_numbers = #tpu.dot_dimension_numbers<[1], [0], [0], [1], [0, 0, 1, 1], [], []>} : vector<2x96xbf16>, vector<96x240xbf16>, vector<2x240xf32> -> vector<2x240xf32>
    %26 = vector.broadcast %19 : vector<1x240xf32> to vector<2x240xf32>
    %27 = arith.addf %26, %25 : vector<2x240xf32>
    %c1 = arith.constant 1 : index
    %c0_26 = arith.constant 0 : index
    %c0_27 = arith.constant 0 : index
    %28 = vector.load %arg3[%c1, %c0_26, %c0_27] : memref<32x2x96xf32, #tpu.memory_space<vmem>>, vector<1x2x96xf32>
    %29 = vector.shape_cast %28 : vector<1x2x96xf32> to vector<2x96xf32>
    %30 = arith.truncf %29 : vector<2x96xf32> to vector<2x96xbf16>
    %c1_28 = arith.constant 1 : index
    %c0_29 = arith.constant 0 : index
    %c0_30 = arith.constant 0 : index
    %31 = vector.load %arg9[%c1_28, %c0_29, %c0_30] : memref<3x96x240xbf16, #tpu.memory_space<vmem>>, vector<1x96x240xbf16>
    %32 = vector.shape_cast %31 : vector<1x96x240xbf16> to vector<96x240xbf16>
    %cst_31 = arith.constant dense<0.000000e+00> : vector<2x240xf32>
    %33 = tpu.matmul %30, %32, %cst_31 {dimension_numbers = #tpu.dot_dimension_numbers<[1], [0], [0], [1], [0, 0, 1, 1], [], []>} : vector<2x96xbf16>, vector<96x240xbf16>, vector<2x240xf32> -> vector<2x240xf32>
    %34 = arith.addf %27, %33 : vector<2x240xf32>
    %c2 = arith.constant 2 : index
    %c0_32 = arith.constant 0 : index
    %c0_33 = arith.constant 0 : index
    %35 = vector.load %arg3[%c2, %c0_32, %c0_33] : memref<32x2x96xf32, #tpu.memory_space<vmem>>, vector<1x2x96xf32>
    %36 = vector.shape_cast %35 : vector<1x2x96xf32> to vector<2x96xf32>
    %37 = arith.truncf %36 : vector<2x96xf32> to vector<2x96xbf16>
    %c2_34 = arith.constant 2 : index
    %c0_35 = arith.constant 0 : index
    %c0_36 = arith.constant 0 : index
    %38 = vector.load %arg9[%c2_34, %c0_35, %c0_36] : memref<3x96x240xbf16, #tpu.memory_space<vmem>>, vector<1x96x240xbf16>
    %39 = vector.shape_cast %38 : vector<1x96x240xbf16> to vector<96x240xbf16>
    %cst_37 = arith.constant dense<0.000000e+00> : vector<2x240xf32>
    %40 = tpu.matmul %37, %39, %cst_37 {dimension_numbers = #tpu.dot_dimension_numbers<[1], [0], [0], [1], [0, 0, 1, 1], [], []>} : vector<2x96xbf16>, vector<96x240xbf16>, vector<2x240xf32> -> vector<2x240xf32>
    %41 = arith.addf %34, %40 : vector<2x240xf32>
    %cst_38 = arith.constant 0.000000e+00 : f32
    %42 = vector.broadcast %cst_38 : f32 to vector<2x240xf32>
    %43 = arith.maximumf %41, %42 : vector<2x240xf32>
    %c0_39 = arith.constant 0 : index
    %c0_40 = arith.constant 0 : index
    %c0_41 = arith.constant 0 : index
    %44 = vector.load %arg20[%c0_39, %c0_40, %c0_41] : memref<15x2x240xf32, #tpu.memory_space<vmem>>, vector<1x2x240xf32>
    %45 = vector.shape_cast %44 : vector<1x2x240xf32> to vector<2x240xf32>
    %46 = vector.shape_cast %43 : vector<2x240xf32> to vector<1x2x240xf32>
    tpu.vector_store %arg20[%c0_39, %c0_40, %c0_41], %46 {strides = array<i32>} : memref<15x2x240xf32, #tpu.memory_space<vmem>>, vector<1x2x240xf32>,
    %c0_42 = arith.constant 0 : index
    %c0_43 = arith.constant 0 : index
    %47 = vector.load %arg10[%c0_42, %c0_43] : memref<1x240xf32, #tpu.memory_space<vmem>>, vector<1x240xf32>
    %c2_44 = arith.constant 2 : index
    %c0_45 = arith.constant 0 : index
    %c0_46 = arith.constant 0 : index
    %48 = vector.load %arg3[%c2_44, %c0_45, %c0_46] : memref<32x2x96xf32, #tpu.memory_space<vmem>>, vector<1x2x96xf32>
    %49 = vector.shape_cast %48 : vector<1x2x96xf32> to vector<2x96xf32>
    %50 = arith.truncf %49 : vector<2x96xf32> to vector<2x96xbf16>
    %c0_47 = arith.constant 0 : index
    %c0_48 = arith.constant 0 : index
    %c0_49 = arith.constant 0 : index
    %51 = vector.load %arg9[%c0_47, %c0_48, %c0_49] : memref<3x96x240xbf16, #tpu.memory_space<vmem>>, vector<1x96x240xbf16>
    %52 = vector.shape_cast %51 : vector<1x96x240xbf16> to vector<96x240xbf16>
    %cst_50 = arith.constant dense<0.000000e+00> : vector<2x240xf32>
    %53 = tpu.matmul %50, %52, %cst_50 {dimension_numbers = #tpu.dot_dimension_numbers<[1], [0], [0], [1], [0, 0, 1, 1], [], []>} : vector<2x96xbf16>, vector<96x240xbf16>, vector<2x240xf32> -> vector<2x240xf32>
    %54 = vector.broadcast %47 : vector<1x240xf32> to vector<2x240xf32>
    %55 = arith.addf %54, %53 : vector<2x240xf32>
    %c3 = arith.constant 3 : index
    %c0_51 = arith.constant 0 : index
    %c0_52 = arith.constant 0 : index
    %56 = vector.load %arg3[%c3, %c0_51, %c0_52] : memref<32x2x96xf32, #tpu.memory_space<vmem>>, vector<1x2x96xf32>
    %57 = vector.shape_cast %56 : vector<1x2x96xf32> to vector<2x96xf32>
    %58 = arith.truncf %57 : vector<2x96xf32> to vector<2x96xbf16>
    %c1_53 = arith.constant 1 : index
    %c0_54 = arith.constant 0 : index
    %c0_55 = arith.constant 0 : index
    %59 = vector.load %arg9[%c1_53, %c0_54, %c0_55] : memref<3x96x240xbf16, #tpu.memory_space<vmem>>, vector<1x96x240xbf16>
    %60 = vector.shape_cast %59 : vector<1x96x240xbf16> to vector<96x240xbf16>
    %cst_56 = arith.constant dense<0.000000e+00> : vector<2x240xf32>
    %61 = tpu.matmul %58, %60, %cst_56 {dimension_numbers = #tpu.dot_dimension_numbers<[1], [0], [0], [1], [0, 0, 1, 1], [], []>} : vector<2x96xbf16>, vector<96x240xbf16>, vector<2x240xf32> -> vector<2x240xf32>
    %62 = arith.addf %55, %61 : vector<2x240xf32>
    %c4 = arith.constant 4 : index
    %c0_57 = arith.constant 0 : index
    %c0_58 = arith.constant 0 : index
    %63 = vector.load %arg3[%c4, %c0_57, %c0_58] : memref<32x2x96xf32, #tpu.memory_space<vmem>>, vector<1x2x96xf32>
    %64 = vector.shape_cast %63 : vector<1x2x96xf32> to vector<2x96xf32>
    %65 = arith.truncf %64 : vector<2x96xf32> to vector<2x96xbf16>
    %c2_59 = arith.constant 2 : index
    %c0_60 = arith.constant 0 : index
    %c0_61 = arith.constant 0 : index
    %66 = vector.load %arg9[%c2_59, %c0_60, %c0_61] : memref<3x96x240xbf16, #tpu.memory_space<vmem>>, vector<1x96x240xbf16>
    %67 = vector.shape_cast %66 : vector<1x96x240xbf16> to vector<96x240xbf16>
    %cst_62 = arith.constant dense<0.000000e+00> : vector<2x240xf32>
    %68 = tpu.matmul %65, %67, %cst_62 {dimension_numbers = #tpu.dot_dimension_numbers<[1], [0], [0], [1], [0, 0, 1, 1], [], []>} : vector<2x96xbf16>, vector<96x240xbf16>, vector<2x240xf32> -> vector<2x240xf32>
    %69 = arith.addf %62, %68 : vector<2x240xf32>
    %cst_63 = arith.constant 0.000000e+00 : f32
    %70 = vector.broadcast %cst_63 : f32 to vector<2x240xf32>
    %71 = arith.maximumf %69, %70 : vector<2x240xf32>
    %c1_64 = arith.constant 1 : index
    %c0_65 = arith.constant 0 : index
    %c0_66 = arith.constant 0 : index
    %72 = vector.load %arg20[%c1_64, %c0_65, %c0_66] : memref<15x2x240xf32, #tpu.memory_space<vmem>>, vector<1x2x240xf32>
    %73 = vector.shape_cast %72 : vector<1x2x240xf32> to vector<2x240xf32>
    %74 = vector.shape_cast %71 : vector<2x240xf32> to vector<1x2x240xf32>
    tpu.vector_store %arg20[%c1_64, %c0_65, %c0_66], %74 {strides = array<i32>} : memref<15x2x240xf32, #tpu.memory_space<vmem>>, vector<1x2x240xf32>,
    %c0_67 = arith.constant 0 : index
    %c0_68 = arith.constant 0 : index
    %75 = vector.load %arg10[%c0_67, %c0_68] : memref<1x240xf32, #tpu.memory_space<vmem>>, vector<1x240xf32>
    %c4_69 = arith.constant 4 : index
    %c0_70 = arith.constant 0 : index
    %c0_71 = arith.constant 0 : index
    %76 = vector.load %arg3[%c4_69, %c0_70, %c0_71] : memref<32x2x96xf32, #tpu.memory_space<vmem>>, vector<1x2x96xf32>
    %77 = vector.shape_cast %76 : vector<1x2x96xf32> to vector<2x96xf32>
    %78 = arith.truncf %77 : vector<2x96xf32> to vector<2x96xbf16>
    %c0_72 = arith.constant 0 : index
    %c0_73 = arith.constant 0 : index
    %c0_74 = arith.constant 0 : index
    %79 = vector.load %arg9[%c0_72, %c0_73, %c0_74] : memref<3x96x240xbf16, #tpu.memory_space<vmem>>, vector<1x96x240xbf16>
    %80 = vector.shape_cast %79 : vector<1x96x240xbf16> to vector<96x240xbf16>
    %cst_75 = arith.constant dense<0.000000e+00> : vector<2x240xf32>
    %81 = tpu.matmul %78, %80, %cst_75 {dimension_numbers = #tpu.dot_dimension_numbers<[1], [0], [0], [1], [0, 0, 1, 1], [], []>} : vector<2x96xbf16>, vector<96x240xbf16>, vector<2x240xf32> -> vector<2x240xf32>
    %82 = vector.broadcast %75 : vector<1x240xf32> to vector<2x240xf32>
    %83 = arith.addf %82, %81 : vector<2x240xf32>
    %c5 = arith.constant 5 : index
    %c0_76 = arith.constant 0 : index
    %c0_77 = arith.constant 0 : index
    %84 = vector.load %arg3[%c5, %c0_76, %c0_77] : memref<32x2x96xf32, #tpu.memory_space<vmem>>, vector<1x2x96xf32>
    %85 = vector.shape_cast %84 : vector<1x2x96xf32> to vector<2x96xf32>
    %86 = arith.truncf %85 : vector<2x96xf32> to vector<2x96xbf16>
    %c1_78 = arith.constant 1 : index
    %c0_79 = arith.constant 0 : index
    %c0_80 = arith.constant 0 : index
    %87 = vector.load %arg9[%c1_78, %c0_79, %c0_80] : memref<3x96x240xbf16, #tpu.memory_space<vmem>>, vector<1x96x240xbf16>
    %88 = vector.shape_cast %87 : vector<1x96x240xbf16> to vector<96x240xbf16>
    %cst_81 = arith.constant dense<0.000000e+00> : vector<2x240xf32>
    %89 = tpu.matmul %86, %88, %cst_81 {dimension_numbers = #tpu.dot_dimension_numbers<[1], [0], [0], [1], [0, 0, 1, 1], [], []>} : vector<2x96xbf16>, vector<96x240xbf16>, vector<2x240xf32> -> vector<2x240xf32>
    %90 = arith.addf %83, %89 : vector<2x240xf32>
    %c6 = arith.constant 6 : index
    %c0_82 = arith.constant 0 : index
    %c0_83 = arith.constant 0 : index
    %91 = vector.load %arg3[%c6, %c0_82, %c0_83] : memref<32x2x96xf32, #tpu.memory_space<vmem>>, vector<1x2x96xf32>
    %92 = vector.shape_cast %91 : vector<1x2x96xf32> to vector<2x96xf32>
    %93 = arith.truncf %92 : vector<2x96xf32> to vector<2x96xbf16>
    %c2_84 = arith.constant 2 : index
    %c0_85 = arith.constant 0 : index
    %c0_86 = arith.constant 0 : index
    %94 = vector.load %arg9[%c2_84, %c0_85, %c0_86] : memref<3x96x240xbf16, #tpu.memory_space<vmem>>, vector<1x96x240xbf16>
    %95 = vector.shape_cast %94 : vector<1x96x240xbf16> to vector<96x240xbf16>
    %cst_87 = arith.constant dense<0.000000e+00> : vector<2x240xf32>
    %96 = tpu.matmul %93, %95, %cst_87 {dimension_numbers = #tpu.dot_dimension_numbers<[1], [0], [0], [1], [0, 0, 1, 1], [], []>} : vector<2x96xbf16>, vector<96x240xbf16>, vector<2x240xf32> -> vector<2x240xf32>
    %97 = arith.addf %90, %96 : vector<2x240xf32>
    %cst_88 = arith.constant 0.000000e+00 : f32
    %98 = vector.broadcast %cst_88 : f32 to vector<2x240xf32>
    %99 = arith.maximumf %97, %98 : vector<2x240xf32>
    %c2_89 = arith.constant 2 : index
    %c0_90 = arith.constant 0 : index
    %c0_91 = arith.constant 0 : index
    %100 = vector.load %arg20[%c2_89, %c0_90, %c0_91] : memref<15x2x240xf32, #tpu.memory_space<vmem>>, vector<1x2x240xf32>
    %101 = vector.shape_cast %100 : vector<1x2x240xf32> to vector<2x240xf32>
    %102 = vector.shape_cast %99 : vector<2x240xf32> to vector<1x2x240xf32>
    tpu.vector_store %arg20[%c2_89, %c0_90, %c0_91], %102 {strides = array<i32>} : memref<15x2x240xf32, #tpu.memory_space<vmem>>, vector<1x2x240xf32>,
    %c0_92 = arith.constant 0 : index
    %c0_93 = arith.constant 0 : index
    %103 = vector.load %arg10[%c0_92, %c0_93] : memref<1x240xf32, #tpu.memory_space<vmem>>, vector<1x240xf32>
    %c6_94 = arith.constant 6 : index
    %c0_95 = arith.constant 0 : index
    %c0_96 = arith.constant 0 : index
    %104 = vector.load %arg3[%c6_94, %c0_95, %c0_96] : memref<32x2x96xf32, #tpu.memory_space<vmem>>, vector<1x2x96xf32>
    %105 = vector.shape_cast %104 : vector<1x2x96xf32> to vector<2x96xf32>
    %106 = arith.truncf %105 : vector<2x96xf32> to vector<2x96xbf16>
    %c0_97 = arith.constant 0 : index
    %c0_98 = arith.constant 0 : index
    %c0_99 = arith.constant 0 : index
    %107 = vector.load %arg9[%c0_97, %c0_98, %c0_99] : memref<3x96x240xbf16, #tpu.memory_space<vmem>>, vector<1x96x240xbf16>
    %108 = vector.shape_cast %107 : vector<1x96x240xbf16> to vector<96x240xbf16>
    %cst_100 = arith.constant dense<0.000000e+00> : vector<2x240xf32>
    %109 = tpu.matmul %106, %108, %cst_100 {dimension_numbers = #tpu.dot_dimension_numbers<[1], [0], [0], [1], [0, 0, 1, 1], [], []>} : vector<2x96xbf16>, vector<96x240xbf16>, vector<2x240xf32> -> vector<2x240xf32>
    %110 = vector.broadcast %103 : vector<1x240xf32> to vector<2x240xf32>
    %111 = arith.addf %110, %109 : vector<2x240xf32>
    %c7 = arith.constant 7 : index
    %c0_101 = arith.constant 0 : index
    %c0_102 = arith.constant 0 : index
    %112 = vector.load %arg3[%c7, %c0_101, %c0_102] : memref<32x2x96xf32, #tpu.memory_space<vmem>>, vector<1x2x96xf32>
    %113 = vector.shape_cast %112 : vector<1x2x96xf32> to vector<2x96xf32>
    %114 = arith.truncf %113 : vector<2x96xf32> to vector<2x96xbf16>
    %c1_103 = arith.constant 1 : index
    %c0_104 = arith.constant 0 : index
    %c0_105 = arith.constant 0 : index
    %115 = vector.load %arg9[%c1_103, %c0_104, %c0_105] : memref<3x96x240xbf16, #tpu.memory_space<vmem>>, vector<1x96x240xbf16>
    %116 = vector.shape_cast %115 : vector<1x96x240xbf16> to vector<96x240xbf16>
    %cst_106 = arith.constant dense<0.000000e+00> : vector<2x240xf32>
    %117 = tpu.matmul %114, %116, %cst_106 {dimension_numbers = #tpu.dot_dimension_numbers<[1], [0], [0], [1], [0, 0, 1, 1], [], []>} : vector<2x96xbf16>, vector<96x240xbf16>, vector<2x240xf32> -> vector<2x240xf32>
    %118 = arith.addf %111, %117 : vector<2x240xf32>
    %c8 = arith.constant 8 : index
    %c0_107 = arith.constant 0 : index
    %c0_108 = arith.constant 0 : index
    %119 = vector.load %arg3[%c8, %c0_107, %c0_108] : memref<32x2x96xf32, #tpu.memory_space<vmem>>, vector<1x2x96xf32>
    %120 = vector.shape_cast %119 : vector<1x2x96xf32> to vector<2x96xf32>
    %121 = arith.truncf %120 : vector<2x96xf32> to vector<2x96xbf16>
    %c2_109 = arith.constant 2 : index
    %c0_110 = arith.constant 0 : index
    %c0_111 = arith.constant 0 : index
    %122 = vector.load %arg9[%c2_109, %c0_110, %c0_111] : memref<3x96x240xbf16, #tpu.memory_space<vmem>>, vector<1x96x240xbf16>
    %123 = vector.shape_cast %122 : vector<1x96x240xbf16> to vector<96x240xbf16>
    %cst_112 = arith.constant dense<0.000000e+00> : vector<2x240xf32>
    %124 = tpu.matmul %121, %123, %cst_112 {dimension_numbers = #tpu.dot_dimension_numbers<[1], [0], [0], [1], [0, 0, 1, 1], [], []>} : vector<2x96xbf16>, vector<96x240xbf16>, vector<2x240xf32> -> vector<2x240xf32>
    %125 = arith.addf %118, %124 : vector<2x240xf32>
    %cst_113 = arith.constant 0.000000e+00 : f32
    %126 = vector.broadcast %cst_113 : f32 to vector<2x240xf32>
    %127 = arith.maximumf %125, %126 : vector<2x240xf32>
    %c3_114 = arith.constant 3 : index
    %c0_115 = arith.constant 0 : index
    %c0_116 = arith.constant 0 : index
    %128 = vector.load %arg20[%c3_114, %c0_115, %c0_116] : memref<15x2x240xf32, #tpu.memory_space<vmem>>, vector<1x2x240xf32>
    %129 = vector.shape_cast %128 : vector<1x2x240xf32> to vector<2x240xf32>
    %130 = vector.shape_cast %127 : vector<2x240xf32> to vector<1x2x240xf32>
    tpu.vector_store %arg20[%c3_114, %c0_115, %c0_116], %130 {strides = array<i32>} : memref<15x2x240xf32, #tpu.memory_space<vmem>>, vector<1x2x240xf32>,
    %c0_117 = arith.constant 0 : index
    %c0_118 = arith.constant 0 : index
    %131 = vector.load %arg10[%c0_117, %c0_118] : memref<1x240xf32, #tpu.memory_space<vmem>>, vector<1x240xf32>
    %c8_119 = arith.constant 8 : index
    %c0_120 = arith.constant 0 : index
    %c0_121 = arith.constant 0 : index
    %132 = vector.load %arg3[%c8_119, %c0_120, %c0_121] : memref<32x2x96xf32, #tpu.memory_space<vmem>>, vector<1x2x96xf32>
    %133 = vector.shape_cast %132 : vector<1x2x96xf32> to vector<2x96xf32>
    %134 = arith.truncf %133 : vector<2x96xf32> to vector<2x96xbf16>
    %c0_122 = arith.constant 0 : index
    %c0_123 = arith.constant 0 : index
    %c0_124 = arith.constant 0 : index
    %135 = vector.load %arg9[%c0_122, %c0_123, %c0_124] : memref<3x96x240xbf16, #tpu.memory_space<vmem>>, vector<1x96x240xbf16>
    %136 = vector.shape_cast %135 : vector<1x96x240xbf16> to vector<96x240xbf16>
    %cst_125 = arith.constant dense<0.000000e+00> : vector<2x240xf32>
    %137 = tpu.matmul %134, %136, %cst_125 {dimension_numbers = #tpu.dot_dimension_numbers<[1], [0], [0], [1], [0, 0, 1, 1], [], []>} : vector<2x96xbf16>, vector<96x240xbf16>, vector<2x240xf32> -> vector<2x240xf32>
    %138 = vector.broadcast %131 : vector<1x240xf32> to vector<2x240xf32>
    %139 = arith.addf %138, %137 : vector<2x240xf32>
    %c9 = arith.constant 9 : index
    %c0_126 = arith.constant 0 : index
    %c0_127 = arith.constant 0 : index
    %140 = vector.load %arg3[%c9, %c0_126, %c0_127] : memref<32x2x96xf32, #tpu.memory_space<vmem>>, vector<1x2x96xf32>
    %141 = vector.shape_cast %140 : vector<1x2x96xf32> to vector<2x96xf32>
    %142 = arith.truncf %141 : vector<2x96xf32> to vector<2x96xbf16>
    %c1_128 = arith.constant 1 : index
    %c0_129 = arith.constant 0 : index
    %c0_130 = arith.constant 0 : index
    %143 = vector.load %arg9[%c1_128, %c0_129, %c0_130] : memref<3x96x240xbf16, #tpu.memory_space<vmem>>, vector<1x96x240xbf16>
    %144 = vector.shape_cast %143 : vector<1x96x240xbf16> to vector<96x240xbf16>
    %cst_131 = arith.constant dense<0.000000e+00> : vector<2x240xf32>
    %145 = tpu.matmul %142, %144, %cst_131 {dimension_numbers = #tpu.dot_dimension_numbers<[1], [0], [0], [1], [0, 0, 1, 1], [], []>} : vector<2x96xbf16>, vector<96x240xbf16>, vector<2x240xf32> -> vector<2x240xf32>
    %146 = arith.addf %139, %145 : vector<2x240xf32>
    %c10 = arith.constant 10 : index
    %c0_132 = arith.constant 0 : index
    %c0_133 = arith.constant 0 : index
    %147 = vector.load %arg3[%c10, %c0_132, %c0_133] : memref<32x2x96xf32, #tpu.memory_space<vmem>>, vector<1x2x96xf32>
    %148 = vector.shape_cast %147 : vector<1x2x96xf32> to vector<2x96xf32>
    %149 = arith.truncf %148 : vector<2x96xf32> to vector<2x96xbf16>
    %c2_134 = arith.constant 2 : index
    %c0_135 = arith.constant 0 : index
    %c0_136 = arith.constant 0 : index
    %150 = vector.load %arg9[%c2_134, %c0_135, %c0_136] : memref<3x96x240xbf16, #tpu.memory_space<vmem>>, vector<1x96x240xbf16>
    %151 = vector.shape_cast %150 : vector<1x96x240xbf16> to vector<96x240xbf16>
    %cst_137 = arith.constant dense<0.000000e+00> : vector<2x240xf32>
    %152 = tpu.matmul %149, %151, %cst_137 {dimension_numbers = #tpu.dot_dimension_numbers<[1], [0], [0], [1], [0, 0, 1, 1], [], []>} : vector<2x96xbf16>, vector<96x240xbf16>, vector<2x240xf32> -> vector<2x240xf32>
    %153 = arith.addf %146, %152 : vector<2x240xf32>
    %cst_138 = arith.constant 0.000000e+00 : f32
    %154 = vector.broadcast %cst_138 : f32 to vector<2x240xf32>
    %155 = arith.maximumf %153, %154 : vector<2x240xf32>
    %c4_139 = arith.constant 4 : index
    %c0_140 = arith.constant 0 : index
    %c0_141 = arith.constant 0 : index
    %156 = vector.load %arg20[%c4_139, %c0_140, %c0_141] : memref<15x2x240xf32, #tpu.memory_space<vmem>>, vector<1x2x240xf32>
    %157 = vector.shape_cast %156 : vector<1x2x240xf32> to vector<2x240xf32>
    %158 = vector.shape_cast %155 : vector<2x240xf32> to vector<1x2x240xf32>
    tpu.vector_store %arg20[%c4_139, %c0_140, %c0_141], %158 {strides = array<i32>} : memref<15x2x240xf32, #tpu.memory_space<vmem>>, vector<1x2x240xf32>,
    %c0_142 = arith.constant 0 : index
    %c0_143 = arith.constant 0 : index
    %159 = vector.load %arg10[%c0_142, %c0_143] : memref<1x240xf32, #tpu.memory_space<vmem>>, vector<1x240xf32>
    %c10_144 = arith.constant 10 : index
    %c0_145 = arith.constant 0 : index
    %c0_146 = arith.constant 0 : index
    %160 = vector.load %arg3[%c10_144, %c0_145, %c0_146] : memref<32x2x96xf32, #tpu.memory_space<vmem>>, vector<1x2x96xf32>
    %161 = vector.shape_cast %160 : vector<1x2x96xf32> to vector<2x96xf32>
    %162 = arith.truncf %161 : vector<2x96xf32> to vector<2x96xbf16>
    %c0_147 = arith.constant 0 : index
    %c0_148 = arith.constant 0 : index
    %c0_149 = arith.constant 0 : index
    %163 = vector.load %arg9[%c0_147, %c0_148, %c0_149] : memref<3x96x240xbf16, #tpu.memory_space<vmem>>, vector<1x96x240xbf16>
    %164 = vector.shape_cast %163 : vector<1x96x240xbf16> to vector<96x240xbf16>
    %cst_150 = arith.constant dense<0.000000e+00> : vector<2x240xf32>
    %165 = tpu.matmul %162, %164, %cst_150 {dimension_numbers = #tpu.dot_dimension_numbers<[1], [0], [0], [1], [0, 0, 1, 1], [], []>} : vector<2x96xbf16>, vector<96x240xbf16>, vector<2x240xf32> -> vector<2x240xf32>
    %166 = vector.broadcast %159 : vector<1x240xf32> to vector<2x240xf32>
    %167 = arith.addf %166, %165 : vector<2x240xf32>
    %c11 = arith.constant 11 : index
    %c0_151 = arith.constant 0 : index
    %c0_152 = arith.constant 0 : index
    %168 = vector.load %arg3[%c11, %c0_151, %c0_152] : memref<32x2x96xf32, #tpu.memory_space<vmem>>, vector<1x2x96xf32>
    %169 = vector.shape_cast %168 : vector<1x2x96xf32> to vector<2x96xf32>
    %170 = arith.truncf %169 : vector<2x96xf32> to vector<2x96xbf16>
    %c1_153 = arith.constant 1 : index
    %c0_154 = arith.constant 0 : index
    %c0_155 = arith.constant 0 : index
    %171 = vector.load %arg9[%c1_153, %c0_154, %c0_155] : memref<3x96x240xbf16, #tpu.memory_space<vmem>>, vector<1x96x240xbf16>
    %172 = vector.shape_cast %171 : vector<1x96x240xbf16> to vector<96x240xbf16>
    %cst_156 = arith.constant dense<0.000000e+00> : vector<2x240xf32>
    %173 = tpu.matmul %170, %172, %cst_156 {dimension_numbers = #tpu.dot_dimension_numbers<[1], [0], [0], [1], [0, 0, 1, 1], [], []>} : vector<2x96xbf16>, vector<96x240xbf16>, vector<2x240xf32> -> vector<2x240xf32>
    %174 = arith.addf %167, %173 : vector<2x240xf32>
    %c12 = arith.constant 12 : index
    %c0_157 = arith.constant 0 : index
    %c0_158 = arith.constant 0 : index
    %175 = vector.load %arg3[%c12, %c0_157, %c0_158] : memref<32x2x96xf32, #tpu.memory_space<vmem>>, vector<1x2x96xf32>
    %176 = vector.shape_cast %175 : vector<1x2x96xf32> to vector<2x96xf32>
    %177 = arith.truncf %176 : vector<2x96xf32> to vector<2x96xbf16>
    %c2_159 = arith.constant 2 : index
    %c0_160 = arith.constant 0 : index
    %c0_161 = arith.constant 0 : index
    %178 = vector.load %arg9[%c2_159, %c0_160, %c0_161] : memref<3x96x240xbf16, #tpu.memory_space<vmem>>, vector<1x96x240xbf16>
    %179 = vector.shape_cast %178 : vector<1x96x240xbf16> to vector<96x240xbf16>
    %cst_162 = arith.constant dense<0.000000e+00> : vector<2x240xf32>
    %180 = tpu.matmul %177, %179, %cst_162 {dimension_numbers = #tpu.dot_dimension_numbers<[1], [0], [0], [1], [0, 0, 1, 1], [], []>} : vector<2x96xbf16>, vector<96x240xbf16>, vector<2x240xf32> -> vector<2x240xf32>
    %181 = arith.addf %174, %180 : vector<2x240xf32>
    %cst_163 = arith.constant 0.000000e+00 : f32
    %182 = vector.broadcast %cst_163 : f32 to vector<2x240xf32>
    %183 = arith.maximumf %181, %182 : vector<2x240xf32>
    %c5_164 = arith.constant 5 : index
    %c0_165 = arith.constant 0 : index
    %c0_166 = arith.constant 0 : index
    %184 = vector.load %arg20[%c5_164, %c0_165, %c0_166] : memref<15x2x240xf32, #tpu.memory_space<vmem>>, vector<1x2x240xf32>
    %185 = vector.shape_cast %184 : vector<1x2x240xf32> to vector<2x240xf32>
    %186 = vector.shape_cast %183 : vector<2x240xf32> to vector<1x2x240xf32>
    tpu.vector_store %arg20[%c5_164, %c0_165, %c0_166], %186 {strides = array<i32>} : memref<15x2x240xf32, #tpu.memory_space<vmem>>, vector<1x2x240xf32>,
    %c0_167 = arith.constant 0 : index
    %c0_168 = arith.constant 0 : index
    %187 = vector.load %arg10[%c0_167, %c0_168] : memref<1x240xf32, #tpu.memory_space<vmem>>, vector<1x240xf32>
    %c12_169 = arith.constant 12 : index
    %c0_170 = arith.constant 0 : index
    %c0_171 = arith.constant 0 : index
    %188 = vector.load %arg3[%c12_169, %c0_170, %c0_171] : memref<32x2x96xf32, #tpu.memory_space<vmem>>, vector<1x2x96xf32>
    %189 = vector.shape_cast %188 : vector<1x2x96xf32> to vector<2x96xf32>
    %190 = arith.truncf %189 : vector<2x96xf32> to vector<2x96xbf16>
    %c0_172 = arith.constant 0 : index
    %c0_173 = arith.constant 0 : index
    %c0_174 = arith.constant 0 : index
    %191 = vector.load %arg9[%c0_172, %c0_173, %c0_174] : memref<3x96x240xbf16, #tpu.memory_space<vmem>>, vector<1x96x240xbf16>
    %192 = vector.shape_cast %191 : vector<1x96x240xbf16> to vector<96x240xbf16>
    %cst_175 = arith.constant dense<0.000000e+00> : vector<2x240xf32>
    %193 = tpu.matmul %190, %192, %cst_175 {dimension_numbers = #tpu.dot_dimension_numbers<[1], [0], [0], [1], [0, 0, 1, 1], [], []>} : vector<2x96xbf16>, vector<96x240xbf16>, vector<2x240xf32> -> vector<2x240xf32>
    %194 = vector.broadcast %187 : vector<1x240xf32> to vector<2x240xf32>
    %195 = arith.addf %194, %193 : vector<2x240xf32>
    %c13 = arith.constant 13 : index
    %c0_176 = arith.constant 0 : index
    %c0_177 = arith.constant 0 : index
    %196 = vector.load %arg3[%c13, %c0_176, %c0_177] : memref<32x2x96xf32, #tpu.memory_space<vmem>>, vector<1x2x96xf32>
    %197 = vector.shape_cast %196 : vector<1x2x96xf32> to vector<2x96xf32>
    %198 = arith.truncf %197 : vector<2x96xf32> to vector<2x96xbf16>
    %c1_178 = arith.constant 1 : index
    %c0_179 = arith.constant 0 : index
    %c0_180 = arith.constant 0 : index
    %199 = vector.load %arg9[%c1_178, %c0_179, %c0_180] : memref<3x96x240xbf16, #tpu.memory_space<vmem>>, vector<1x96x240xbf16>
    %200 = vector.shape_cast %199 : vector<1x96x240xbf16> to vector<96x240xbf16>
    %cst_181 = arith.constant dense<0.000000e+00> : vector<2x240xf32>
    %201 = tpu.matmul %198, %200, %cst_181 {dimension_numbers = #tpu.dot_dimension_numbers<[1], [0], [0], [1], [0, 0, 1, 1], [], []>} : vector<2x96xbf16>, vector<96x240xbf16>, vector<2x240xf32> -> vector<2x240xf32>
    %202 = arith.addf %195, %201 : vector<2x240xf32>
    %c14 = arith.constant 14 : index
    %c0_182 = arith.constant 0 : index
    %c0_183 = arith.constant 0 : index
    %203 = vector.load %arg3[%c14, %c0_182, %c0_183] : memref<32x2x96xf32, #tpu.memory_space<vmem>>, vector<1x2x96xf32>
    %204 = vector.shape_cast %203 : vector<1x2x96xf32> to vector<2x96xf32>
    %205 = arith.truncf %204 : vector<2x96xf32> to vector<2x96xbf16>
    %c2_184 = arith.constant 2 : index
    %c0_185 = arith.constant 0 : index
    %c0_186 = arith.constant 0 : index
    %206 = vector.load %arg9[%c2_184, %c0_185, %c0_186] : memref<3x96x240xbf16, #tpu.memory_space<vmem>>, vector<1x96x240xbf16>
    %207 = vector.shape_cast %206 : vector<1x96x240xbf16> to vector<96x240xbf16>
    %cst_187 = arith.constant dense<0.000000e+00> : vector<2x240xf32>
    %208 = tpu.matmul %205, %207, %cst_187 {dimension_numbers = #tpu.dot_dimension_numbers<[1], [0], [0], [1], [0, 0, 1, 1], [], []>} : vector<2x96xbf16>, vector<96x240xbf16>, vector<2x240xf32> -> vector<2x240xf32>
    %209 = arith.addf %202, %208 : vector<2x240xf32>
    %cst_188 = arith.constant 0.000000e+00 : f32
    %210 = vector.broadcast %cst_188 : f32 to vector<2x240xf32>
    %211 = arith.maximumf %209, %210 : vector<2x240xf32>
    %c6_189 = arith.constant 6 : index
    %c0_190 = arith.constant 0 : index
    %c0_191 = arith.constant 0 : index
    %212 = vector.load %arg20[%c6_189, %c0_190, %c0_191] : memref<15x2x240xf32, #tpu.memory_space<vmem>>, vector<1x2x240xf32>
    %213 = vector.shape_cast %212 : vector<1x2x240xf32> to vector<2x240xf32>
    %214 = vector.shape_cast %211 : vector<2x240xf32> to vector<1x2x240xf32>
    tpu.vector_store %arg20[%c6_189, %c0_190, %c0_191], %214 {strides = array<i32>} : memref<15x2x240xf32, #tpu.memory_space<vmem>>, vector<1x2x240xf32>,
    %c0_192 = arith.constant 0 : index
    %c0_193 = arith.constant 0 : index
    %215 = vector.load %arg10[%c0_192, %c0_193] : memref<1x240xf32, #tpu.memory_space<vmem>>, vector<1x240xf32>
    %c14_194 = arith.constant 14 : index
    %c0_195 = arith.constant 0 : index
    %c0_196 = arith.constant 0 : index
    %216 = vector.load %arg3[%c14_194, %c0_195, %c0_196] : memref<32x2x96xf32, #tpu.memory_space<vmem>>, vector<1x2x96xf32>
    %217 = vector.shape_cast %216 : vector<1x2x96xf32> to vector<2x96xf32>
    %218 = arith.truncf %217 : vector<2x96xf32> to vector<2x96xbf16>
    %c0_197 = arith.constant 0 : index
    %c0_198 = arith.constant 0 : index
    %c0_199 = arith.constant 0 : index
    %219 = vector.load %arg9[%c0_197, %c0_198, %c0_199] : memref<3x96x240xbf16, #tpu.memory_space<vmem>>, vector<1x96x240xbf16>
    %220 = vector.shape_cast %219 : vector<1x96x240xbf16> to vector<96x240xbf16>
    %cst_200 = arith.constant dense<0.000000e+00> : vector<2x240xf32>
    %221 = tpu.matmul %218, %220, %cst_200 {dimension_numbers = #tpu.dot_dimension_numbers<[1], [0], [0], [1], [0, 0, 1, 1], [], []>} : vector<2x96xbf16>, vector<96x240xbf16>, vector<2x240xf32> -> vector<2x240xf32>
    %222 = vector.broadcast %215 : vector<1x240xf32> to vector<2x240xf32>
    %223 = arith.addf %222, %221 : vector<2x240xf32>
    %c15 = arith.constant 15 : index
    %c0_201 = arith.constant 0 : index
    %c0_202 = arith.constant 0 : index
    %224 = vector.load %arg3[%c15, %c0_201, %c0_202] : memref<32x2x96xf32, #tpu.memory_space<vmem>>, vector<1x2x96xf32>
    %225 = vector.shape_cast %224 : vector<1x2x96xf32> to vector<2x96xf32>
    %226 = arith.truncf %225 : vector<2x96xf32> to vector<2x96xbf16>
    %c1_203 = arith.constant 1 : index
    %c0_204 = arith.constant 0 : index
    %c0_205 = arith.constant 0 : index
    %227 = vector.load %arg9[%c1_203, %c0_204, %c0_205] : memref<3x96x240xbf16, #tpu.memory_space<vmem>>, vector<1x96x240xbf16>
    %228 = vector.shape_cast %227 : vector<1x96x240xbf16> to vector<96x240xbf16>
    %cst_206 = arith.constant dense<0.000000e+00> : vector<2x240xf32>
    %229 = tpu.matmul %226, %228, %cst_206 {dimension_numbers = #tpu.dot_dimension_numbers<[1], [0], [0], [1], [0, 0, 1, 1], [], []>} : vector<2x96xbf16>, vector<96x240xbf16>, vector<2x240xf32> -> vector<2x240xf32>
    %230 = arith.addf %223, %229 : vector<2x240xf32>
    %c16 = arith.constant 16 : index
    %c0_207 = arith.constant 0 : index
    %c0_208 = arith.constant 0 : index
    %231 = vector.load %arg3[%c16, %c0_207, %c0_208] : memref<32x2x96xf32, #tpu.memory_space<vmem>>, vector<1x2x96xf32>
    %232 = vector.shape_cast %231 : vector<1x2x96xf32> to vector<2x96xf32>
    %233 = arith.truncf %232 : vector<2x96xf32> to vector<2x96xbf16>
    %c2_209 = arith.constant 2 : index
    %c0_210 = arith.constant 0 : index
    %c0_211 = arith.constant 0 : index
    %234 = vector.load %arg9[%c2_209, %c0_210, %c0_211] : memref<3x96x240xbf16, #tpu.memory_space<vmem>>, vector<1x96x240xbf16>
    %235 = vector.shape_cast %234 : vector<1x96x240xbf16> to vector<96x240xbf16>
    %cst_212 = arith.constant dense<0.000000e+00> : vector<2x240xf32>
    %236 = tpu.matmul %233, %235, %cst_212 {dimension_numbers = #tpu.dot_dimension_numbers<[1], [0], [0], [1], [0, 0, 1, 1], [], []>} : vector<2x96xbf16>, vector<96x240xbf16>, vector<2x240xf32> -> vector<2x240xf32>
    %237 = arith.addf %230, %236 : vector<2x240xf32>
    %cst_213 = arith.constant 0.000000e+00 : f32
    %238 = vector.broadcast %cst_213 : f32 to vector<2x240xf32>
    %239 = arith.maximumf %237, %238 : vector<2x240xf32>
    %c7_214 = arith.constant 7 : index
    %c0_215 = arith.constant 0 : index
    %c0_216 = arith.constant 0 : index
    %240 = vector.load %arg20[%c7_214, %c0_215, %c0_216] : memref<15x2x240xf32, #tpu.memory_space<vmem>>, vector<1x2x240xf32>
    %241 = vector.shape_cast %240 : vector<1x2x240xf32> to vector<2x240xf32>
    %242 = vector.shape_cast %239 : vector<2x240xf32> to vector<1x2x240xf32>
    tpu.vector_store %arg20[%c7_214, %c0_215, %c0_216], %242 {strides = array<i32>} : memref<15x2x240xf32, #tpu.memory_space<vmem>>, vector<1x2x240xf32>,
    %c0_217 = arith.constant 0 : index
    %c0_218 = arith.constant 0 : index
    %243 = vector.load %arg10[%c0_217, %c0_218] : memref<1x240xf32, #tpu.memory_space<vmem>>, vector<1x240xf32>
    %c16_219 = arith.constant 16 : index
    %c0_220 = arith.constant 0 : index
    %c0_221 = arith.constant 0 : index
    %244 = vector.load %arg3[%c16_219, %c0_220, %c0_221] : memref<32x2x96xf32, #tpu.memory_space<vmem>>, vector<1x2x96xf32>
    %245 = vector.shape_cast %244 : vector<1x2x96xf32> to vector<2x96xf32>
    %246 = arith.truncf %245 : vector<2x96xf32> to vector<2x96xbf16>
    %c0_222 = arith.constant 0 : index
    %c0_223 = arith.constant 0 : index
    %c0_224 = arith.constant 0 : index
    %247 = vector.load %arg9[%c0_222, %c0_223, %c0_224] : memref<3x96x240xbf16, #tpu.memory_space<vmem>>, vector<1x96x240xbf16>
    %248 = vector.shape_cast %247 : vector<1x96x240xbf16> to vector<96x240xbf16>
    %cst_225 = arith.constant dense<0.000000e+00> : vector<2x240xf32>
    %249 = tpu.matmul %246, %248, %cst_225 {dimension_numbers = #tpu.dot_dimension_numbers<[1], [0], [0], [1], [0, 0, 1, 1], [], []>} : vector<2x96xbf16>, vector<96x240xbf16>, vector<2x240xf32> -> vector<2x240xf32>
    %250 = vector.broadcast %243 : vector<1x240xf32> to vector<2x240xf32>
    %251 = arith.addf %250, %249 : vector<2x240xf32>
    %c17 = arith.constant 17 : index
    %c0_226 = arith.constant 0 : index
    %c0_227 = arith.constant 0 : index
    %252 = vector.load %arg3[%c17, %c0_226, %c0_227] : memref<32x2x96xf32, #tpu.memory_space<vmem>>, vector<1x2x96xf32>
    %253 = vector.shape_cast %252 : vector<1x2x96xf32> to vector<2x96xf32>
    %254 = arith.truncf %253 : vector<2x96xf32> to vector<2x96xbf16>
    %c1_228 = arith.constant 1 : index
    %c0_229 = arith.constant 0 : index
    %c0_230 = arith.constant 0 : index
    %255 = vector.load %arg9[%c1_228, %c0_229, %c0_230] : memref<3x96x240xbf16, #tpu.memory_space<vmem>>, vector<1x96x240xbf16>
    %256 = vector.shape_cast %255 : vector<1x96x240xbf16> to vector<96x240xbf16>
    %cst_231 = arith.constant dense<0.000000e+00> : vector<2x240xf32>
    %257 = tpu.matmul %254, %256, %cst_231 {dimension_numbers = #tpu.dot_dimension_numbers<[1], [0], [0], [1], [0, 0, 1, 1], [], []>} : vector<2x96xbf16>, vector<96x240xbf16>, vector<2x240xf32> -> vector<2x240xf32>
    %258 = arith.addf %251, %257 : vector<2x240xf32>
    %c18 = arith.constant 18 : index
    %c0_232 = arith.constant 0 : index
    %c0_233 = arith.constant 0 : index
    %259 = vector.load %arg3[%c18, %c0_232, %c0_233] : memref<32x2x96xf32, #tpu.memory_space<vmem>>, vector<1x2x96xf32>
    %260 = vector.shape_cast %259 : vector<1x2x96xf32> to vector<2x96xf32>
    %261 = arith.truncf %260 : vector<2x96xf32> to vector<2x96xbf16>
    %c2_234 = arith.constant 2 : index
    %c0_235 = arith.constant 0 : index
    %c0_236 = arith.constant 0 : index
    %262 = vector.load %arg9[%c2_234, %c0_235, %c0_236] : memref<3x96x240xbf16, #tpu.memory_space<vmem>>, vector<1x96x240xbf16>
    %263 = vector.shape_cast %262 : vector<1x96x240xbf16> to vector<96x240xbf16>
    %cst_237 = arith.constant dense<0.000000e+00> : vector<2x240xf32>
    %264 = tpu.matmul %261, %263, %cst_237 {dimension_numbers = #tpu.dot_dimension_numbers<[1], [0], [0], [1], [0, 0, 1, 1], [], []>} : vector<2x96xbf16>, vector<96x240xbf16>, vector<2x240xf32> -> vector<2x240xf32>
    %265 = arith.addf %258, %264 : vector<2x240xf32>
    %cst_238 = arith.constant 0.000000e+00 : f32
    %266 = vector.broadcast %cst_238 : f32 to vector<2x240xf32>
    %267 = arith.maximumf %265, %266 : vector<2x240xf32>
    %c8_239 = arith.constant 8 : index
    %c0_240 = arith.constant 0 : index
    %c0_241 = arith.constant 0 : index
    %268 = vector.load %arg20[%c8_239, %c0_240, %c0_241] : memref<15x2x240xf32, #tpu.memory_space<vmem>>, vector<1x2x240xf32>
    %269 = vector.shape_cast %268 : vector<1x2x240xf32> to vector<2x240xf32>
    %270 = vector.shape_cast %267 : vector<2x240xf32> to vector<1x2x240xf32>
    tpu.vector_store %arg20[%c8_239, %c0_240, %c0_241], %270 {strides = array<i32>} : memref<15x2x240xf32, #tpu.memory_space<vmem>>, vector<1x2x240xf32>,
    %c0_242 = arith.constant 0 : index
    %c0_243 = arith.constant 0 : index
    %271 = vector.load %arg10[%c0_242, %c0_243] : memref<1x240xf32, #tpu.memory_space<vmem>>, vector<1x240xf32>
    %c18_244 = arith.constant 18 : index
    %c0_245 = arith.constant 0 : index
    %c0_246 = arith.constant 0 : index
    %272 = vector.load %arg3[%c18_244, %c0_245, %c0_246] : memref<32x2x96xf32, #tpu.memory_space<vmem>>, vector<1x2x96xf32>
    %273 = vector.shape_cast %272 : vector<1x2x96xf32> to vector<2x96xf32>
    %274 = arith.truncf %273 : vector<2x96xf32> to vector<2x96xbf16>
    %c0_247 = arith.constant 0 : index
    %c0_248 = arith.constant 0 : index
    %c0_249 = arith.constant 0 : index
    %275 = vector.load %arg9[%c0_247, %c0_248, %c0_249] : memref<3x96x240xbf16, #tpu.memory_space<vmem>>, vector<1x96x240xbf16>
    %276 = vector.shape_cast %275 : vector<1x96x240xbf16> to vector<96x240xbf16>
    %cst_250 = arith.constant dense<0.000000e+00> : vector<2x240xf32>
    %277 = tpu.matmul %274, %276, %cst_250 {dimension_numbers = #tpu.dot_dimension_numbers<[1], [0], [0], [1], [0, 0, 1, 1], [], []>} : vector<2x96xbf16>, vector<96x240xbf16>, vector<2x240xf32> -> vector<2x240xf32>
    %278 = vector.broadcast %271 : vector<1x240xf32> to vector<2x240xf32>
    %279 = arith.addf %278, %277 : vector<2x240xf32>
    %c19 = arith.constant 19 : index
    %c0_251 = arith.constant 0 : index
    %c0_252 = arith.constant 0 : index
    %280 = vector.load %arg3[%c19, %c0_251, %c0_252] : memref<32x2x96xf32, #tpu.memory_space<vmem>>, vector<1x2x96xf32>
    %281 = vector.shape_cast %280 : vector<1x2x96xf32> to vector<2x96xf32>
    %282 = arith.truncf %281 : vector<2x96xf32> to vector<2x96xbf16>
    %c1_253 = arith.constant 1 : index
    %c0_254 = arith.constant 0 : index
    %c0_255 = arith.constant 0 : index
    %283 = vector.load %arg9[%c1_253, %c0_254, %c0_255] : memref<3x96x240xbf16, #tpu.memory_space<vmem>>, vector<1x96x240xbf16>
    %284 = vector.shape_cast %283 : vector<1x96x240xbf16> to vector<96x240xbf16>
    %cst_256 = arith.constant dense<0.000000e+00> : vector<2x240xf32>
    %285 = tpu.matmul %282, %284, %cst_256 {dimension_numbers = #tpu.dot_dimension_numbers<[1], [0], [0], [1], [0, 0, 1, 1], [], []>} : vector<2x96xbf16>, vector<96x240xbf16>, vector<2x240xf32> -> vector<2x240xf32>
    %286 = arith.addf %279, %285 : vector<2x240xf32>
    %c20 = arith.constant 20 : index
    %c0_257 = arith.constant 0 : index
    %c0_258 = arith.constant 0 : index
    %287 = vector.load %arg3[%c20, %c0_257, %c0_258] : memref<32x2x96xf32, #tpu.memory_space<vmem>>, vector<1x2x96xf32>
    %288 = vector.shape_cast %287 : vector<1x2x96xf32> to vector<2x96xf32>
    %289 = arith.truncf %288 : vector<2x96xf32> to vector<2x96xbf16>
    %c2_259 = arith.constant 2 : index
    %c0_260 = arith.constant 0 : index
    %c0_261 = arith.constant 0 : index
    %290 = vector.load %arg9[%c2_259, %c0_260, %c0_261] : memref<3x96x240xbf16, #tpu.memory_space<vmem>>, vector<1x96x240xbf16>
    %291 = vector.shape_cast %290 : vector<1x96x240xbf16> to vector<96x240xbf16>
    %cst_262 = arith.constant dense<0.000000e+00> : vector<2x240xf32>
    %292 = tpu.matmul %289, %291, %cst_262 {dimension_numbers = #tpu.dot_dimension_numbers<[1], [0], [0], [1], [0, 0, 1, 1], [], []>} : vector<2x96xbf16>, vector<96x240xbf16>, vector<2x240xf32> -> vector<2x240xf32>
    %293 = arith.addf %286, %292 : vector<2x240xf32>
    %cst_263 = arith.constant 0.000000e+00 : f32
    %294 = vector.broadcast %cst_263 : f32 to vector<2x240xf32>
    %295 = arith.maximumf %293, %294 : vector<2x240xf32>
    %c9_264 = arith.constant 9 : index
    %c0_265 = arith.constant 0 : index
    %c0_266 = arith.constant 0 : index
    %296 = vector.load %arg20[%c9_264, %c0_265, %c0_266] : memref<15x2x240xf32, #tpu.memory_space<vmem>>, vector<1x2x240xf32>
    %297 = vector.shape_cast %296 : vector<1x2x240xf32> to vector<2x240xf32>
    %298 = vector.shape_cast %295 : vector<2x240xf32> to vector<1x2x240xf32>
    tpu.vector_store %arg20[%c9_264, %c0_265, %c0_266], %298 {strides = array<i32>} : memref<15x2x240xf32, #tpu.memory_space<vmem>>, vector<1x2x240xf32>,
    %c0_267 = arith.constant 0 : index
    %c0_268 = arith.constant 0 : index
    %299 = vector.load %arg10[%c0_267, %c0_268] : memref<1x240xf32, #tpu.memory_space<vmem>>, vector<1x240xf32>
    %c20_269 = arith.constant 20 : index
    %c0_270 = arith.constant 0 : index
    %c0_271 = arith.constant 0 : index
    %300 = vector.load %arg3[%c20_269, %c0_270, %c0_271] : memref<32x2x96xf32, #tpu.memory_space<vmem>>, vector<1x2x96xf32>
    %301 = vector.shape_cast %300 : vector<1x2x96xf32> to vector<2x96xf32>
    %302 = arith.truncf %301 : vector<2x96xf32> to vector<2x96xbf16>
    %c0_272 = arith.constant 0 : index
    %c0_273 = arith.constant 0 : index
    %c0_274 = arith.constant 0 : index
    %303 = vector.load %arg9[%c0_272, %c0_273, %c0_274] : memref<3x96x240xbf16, #tpu.memory_space<vmem>>, vector<1x96x240xbf16>
    %304 = vector.shape_cast %303 : vector<1x96x240xbf16> to vector<96x240xbf16>
    %cst_275 = arith.constant dense<0.000000e+00> : vector<2x240xf32>
    %305 = tpu.matmul %302, %304, %cst_275 {dimension_numbers = #tpu.dot_dimension_numbers<[1], [0], [0], [1], [0, 0, 1, 1], [], []>} : vector<2x96xbf16>, vector<96x240xbf16>, vector<2x240xf32> -> vector<2x240xf32>
    %306 = vector.broadcast %299 : vector<1x240xf32> to vector<2x240xf32>
    %307 = arith.addf %306, %305 : vector<2x240xf32>
    %c21 = arith.constant 21 : index
    %c0_276 = arith.constant 0 : index
    %c0_277 = arith.constant 0 : index
    %308 = vector.load %arg3[%c21, %c0_276, %c0_277] : memref<32x2x96xf32, #tpu.memory_space<vmem>>, vector<1x2x96xf32>
    %309 = vector.shape_cast %308 : vector<1x2x96xf32> to vector<2x96xf32>
    %310 = arith.truncf %309 : vector<2x96xf32> to vector<2x96xbf16>
    %c1_278 = arith.constant 1 : index
    %c0_279 = arith.constant 0 : index
    %c0_280 = arith.constant 0 : index
    %311 = vector.load %arg9[%c1_278, %c0_279, %c0_280] : memref<3x96x240xbf16, #tpu.memory_space<vmem>>, vector<1x96x240xbf16>
    %312 = vector.shape_cast %311 : vector<1x96x240xbf16> to vector<96x240xbf16>
    %cst_281 = arith.constant dense<0.000000e+00> : vector<2x240xf32>
    %313 = tpu.matmul %310, %312, %cst_281 {dimension_numbers = #tpu.dot_dimension_numbers<[1], [0], [0], [1], [0, 0, 1, 1], [], []>} : vector<2x96xbf16>, vector<96x240xbf16>, vector<2x240xf32> -> vector<2x240xf32>
    %314 = arith.addf %307, %313 : vector<2x240xf32>
    %c22 = arith.constant 22 : index
    %c0_282 = arith.constant 0 : index
    %c0_283 = arith.constant 0 : index
    %315 = vector.load %arg3[%c22, %c0_282, %c0_283] : memref<32x2x96xf32, #tpu.memory_space<vmem>>, vector<1x2x96xf32>
    %316 = vector.shape_cast %315 : vector<1x2x96xf32> to vector<2x96xf32>
    %317 = arith.truncf %316 : vector<2x96xf32> to vector<2x96xbf16>
    %c2_284 = arith.constant 2 : index
    %c0_285 = arith.constant 0 : index
    %c0_286 = arith.constant 0 : index
    %318 = vector.load %arg9[%c2_284, %c0_285, %c0_286] : memref<3x96x240xbf16, #tpu.memory_space<vmem>>, vector<1x96x240xbf16>
    %319 = vector.shape_cast %318 : vector<1x96x240xbf16> to vector<96x240xbf16>
    %cst_287 = arith.constant dense<0.000000e+00> : vector<2x240xf32>
    %320 = tpu.matmul %317, %319, %cst_287 {dimension_numbers = #tpu.dot_dimension_numbers<[1], [0], [0], [1], [0, 0, 1, 1], [], []>} : vector<2x96xbf16>, vector<96x240xbf16>, vector<2x240xf32> -> vector<2x240xf32>
    %321 = arith.addf %314, %320 : vector<2x240xf32>
    %cst_288 = arith.constant 0.000000e+00 : f32
    %322 = vector.broadcast %cst_288 : f32 to vector<2x240xf32>
    %323 = arith.maximumf %321, %322 : vector<2x240xf32>
    %c10_289 = arith.constant 10 : index
    %c0_290 = arith.constant 0 : index
    %c0_291 = arith.constant 0 : index
    %324 = vector.load %arg20[%c10_289, %c0_290, %c0_291] : memref<15x2x240xf32, #tpu.memory_space<vmem>>, vector<1x2x240xf32>
    %325 = vector.shape_cast %324 : vector<1x2x240xf32> to vector<2x240xf32>
    %326 = vector.shape_cast %323 : vector<2x240xf32> to vector<1x2x240xf32>
    tpu.vector_store %arg20[%c10_289, %c0_290, %c0_291], %326 {strides = array<i32>} : memref<15x2x240xf32, #tpu.memory_space<vmem>>, vector<1x2x240xf32>,
    %c0_292 = arith.constant 0 : index
    %c0_293 = arith.constant 0 : index
    %327 = vector.load %arg10[%c0_292, %c0_293] : memref<1x240xf32, #tpu.memory_space<vmem>>, vector<1x240xf32>
    %c22_294 = arith.constant 22 : index
    %c0_295 = arith.constant 0 : index
    %c0_296 = arith.constant 0 : index
    %328 = vector.load %arg3[%c22_294, %c0_295, %c0_296] : memref<32x2x96xf32, #tpu.memory_space<vmem>>, vector<1x2x96xf32>
    %329 = vector.shape_cast %328 : vector<1x2x96xf32> to vector<2x96xf32>
    %330 = arith.truncf %329 : vector<2x96xf32> to vector<2x96xbf16>
    %c0_297 = arith.constant 0 : index
    %c0_298 = arith.constant 0 : index
    %c0_299 = arith.constant 0 : index
    %331 = vector.load %arg9[%c0_297, %c0_298, %c0_299] : memref<3x96x240xbf16, #tpu.memory_space<vmem>>, vector<1x96x240xbf16>
    %332 = vector.shape_cast %331 : vector<1x96x240xbf16> to vector<96x240xbf16>
    %cst_300 = arith.constant dense<0.000000e+00> : vector<2x240xf32>
    %333 = tpu.matmul %330, %332, %cst_300 {dimension_numbers = #tpu.dot_dimension_numbers<[1], [0], [0], [1], [0, 0, 1, 1], [], []>} : vector<2x96xbf16>, vector<96x240xbf16>, vector<2x240xf32> -> vector<2x240xf32>
    %334 = vector.broadcast %327 : vector<1x240xf32> to vector<2x240xf32>
    %335 = arith.addf %334, %333 : vector<2x240xf32>
    %c23 = arith.constant 23 : index
    %c0_301 = arith.constant 0 : index
    %c0_302 = arith.constant 0 : index
    %336 = vector.load %arg3[%c23, %c0_301, %c0_302] : memref<32x2x96xf32, #tpu.memory_space<vmem>>, vector<1x2x96xf32>
    %337 = vector.shape_cast %336 : vector<1x2x96xf32> to vector<2x96xf32>
    %338 = arith.truncf %337 : vector<2x96xf32> to vector<2x96xbf16>
    %c1_303 = arith.constant 1 : index
    %c0_304 = arith.constant 0 : index
    %c0_305 = arith.constant 0 : index
    %339 = vector.load %arg9[%c1_303, %c0_304, %c0_305] : memref<3x96x240xbf16, #tpu.memory_space<vmem>>, vector<1x96x240xbf16>
    %340 = vector.shape_cast %339 : vector<1x96x240xbf16> to vector<96x240xbf16>
    %cst_306 = arith.constant dense<0.000000e+00> : vector<2x240xf32>
    %341 = tpu.matmul %338, %340, %cst_306 {dimension_numbers = #tpu.dot_dimension_numbers<[1], [0], [0], [1], [0, 0, 1, 1], [], []>} : vector<2x96xbf16>, vector<96x240xbf16>, vector<2x240xf32> -> vector<2x240xf32>
    %342 = arith.addf %335, %341 : vector<2x240xf32>
    %c24 = arith.constant 24 : index
    %c0_307 = arith.constant 0 : index
    %c0_308 = arith.constant 0 : index
    %343 = vector.load %arg3[%c24, %c0_307, %c0_308] : memref<32x2x96xf32, #tpu.memory_space<vmem>>, vector<1x2x96xf32>
    %344 = vector.shape_cast %343 : vector<1x2x96xf32> to vector<2x96xf32>
    %345 = arith.truncf %344 : vector<2x96xf32> to vector<2x96xbf16>
    %c2_309 = arith.constant 2 : index
    %c0_310 = arith.constant 0 : index
    %c0_311 = arith.constant 0 : index
    %346 = vector.load %arg9[%c2_309, %c0_310, %c0_311] : memref<3x96x240xbf16, #tpu.memory_space<vmem>>, vector<1x96x240xbf16>
    %347 = vector.shape_cast %346 : vector<1x96x240xbf16> to vector<96x240xbf16>
    %cst_312 = arith.constant dense<0.000000e+00> : vector<2x240xf32>
    %348 = tpu.matmul %345, %347, %cst_312 {dimension_numbers = #tpu.dot_dimension_numbers<[1], [0], [0], [1], [0, 0, 1, 1], [], []>} : vector<2x96xbf16>, vector<96x240xbf16>, vector<2x240xf32> -> vector<2x240xf32>
    %349 = arith.addf %342, %348 : vector<2x240xf32>
    %cst_313 = arith.constant 0.000000e+00 : f32
    %350 = vector.broadcast %cst_313 : f32 to vector<2x240xf32>
    %351 = arith.maximumf %349, %350 : vector<2x240xf32>
    %c11_314 = arith.constant 11 : index
    %c0_315 = arith.constant 0 : index
    %c0_316 = arith.constant 0 : index
    %352 = vector.load %arg20[%c11_314, %c0_315, %c0_316] : memref<15x2x240xf32, #tpu.memory_space<vmem>>, vector<1x2x240xf32>
    %353 = vector.shape_cast %352 : vector<1x2x240xf32> to vector<2x240xf32>
    %354 = vector.shape_cast %351 : vector<2x240xf32> to vector<1x2x240xf32>
    tpu.vector_store %arg20[%c11_314, %c0_315, %c0_316], %354 {strides = array<i32>} : memref<15x2x240xf32, #tpu.memory_space<vmem>>, vector<1x2x240xf32>,
    %c0_317 = arith.constant 0 : index
    %c0_318 = arith.constant 0 : index
    %355 = vector.load %arg10[%c0_317, %c0_318] : memref<1x240xf32, #tpu.memory_space<vmem>>, vector<1x240xf32>
    %c24_319 = arith.constant 24 : index
    %c0_320 = arith.constant 0 : index
    %c0_321 = arith.constant 0 : index
    %356 = vector.load %arg3[%c24_319, %c0_320, %c0_321] : memref<32x2x96xf32, #tpu.memory_space<vmem>>, vector<1x2x96xf32>
    %357 = vector.shape_cast %356 : vector<1x2x96xf32> to vector<2x96xf32>
    %358 = arith.truncf %357 : vector<2x96xf32> to vector<2x96xbf16>
    %c0_322 = arith.constant 0 : index
    %c0_323 = arith.constant 0 : index
    %c0_324 = arith.constant 0 : index
    %359 = vector.load %arg9[%c0_322, %c0_323, %c0_324] : memref<3x96x240xbf16, #tpu.memory_space<vmem>>, vector<1x96x240xbf16>
    %360 = vector.shape_cast %359 : vector<1x96x240xbf16> to vector<96x240xbf16>
    %cst_325 = arith.constant dense<0.000000e+00> : vector<2x240xf32>
    %361 = tpu.matmul %358, %360, %cst_325 {dimension_numbers = #tpu.dot_dimension_numbers<[1], [0], [0], [1], [0, 0, 1, 1], [], []>} : vector<2x96xbf16>, vector<96x240xbf16>, vector<2x240xf32> -> vector<2x240xf32>
    %362 = vector.broadcast %355 : vector<1x240xf32> to vector<2x240xf32>
    %363 = arith.addf %362, %361 : vector<2x240xf32>
    %c25 = arith.constant 25 : index
    %c0_326 = arith.constant 0 : index
    %c0_327 = arith.constant 0 : index
    %364 = vector.load %arg3[%c25, %c0_326, %c0_327] : memref<32x2x96xf32, #tpu.memory_space<vmem>>, vector<1x2x96xf32>
    %365 = vector.shape_cast %364 : vector<1x2x96xf32> to vector<2x96xf32>
    %366 = arith.truncf %365 : vector<2x96xf32> to vector<2x96xbf16>
    %c1_328 = arith.constant 1 : index
    %c0_329 = arith.constant 0 : index
    %c0_330 = arith.constant 0 : index
    %367 = vector.load %arg9[%c1_328, %c0_329, %c0_330] : memref<3x96x240xbf16, #tpu.memory_space<vmem>>, vector<1x96x240xbf16>
    %368 = vector.shape_cast %367 : vector<1x96x240xbf16> to vector<96x240xbf16>
    %cst_331 = arith.constant dense<0.000000e+00> : vector<2x240xf32>
    %369 = tpu.matmul %366, %368, %cst_331 {dimension_numbers = #tpu.dot_dimension_numbers<[1], [0], [0], [1], [0, 0, 1, 1], [], []>} : vector<2x96xbf16>, vector<96x240xbf16>, vector<2x240xf32> -> vector<2x240xf32>
    %370 = arith.addf %363, %369 : vector<2x240xf32>
    %c26 = arith.constant 26 : index
    %c0_332 = arith.constant 0 : index
    %c0_333 = arith.constant 0 : index
    %371 = vector.load %arg3[%c26, %c0_332, %c0_333] : memref<32x2x96xf32, #tpu.memory_space<vmem>>, vector<1x2x96xf32>
    %372 = vector.shape_cast %371 : vector<1x2x96xf32> to vector<2x96xf32>
    %373 = arith.truncf %372 : vector<2x96xf32> to vector<2x96xbf16>
    %c2_334 = arith.constant 2 : index
    %c0_335 = arith.constant 0 : index
    %c0_336 = arith.constant 0 : index
    %374 = vector.load %arg9[%c2_334, %c0_335, %c0_336] : memref<3x96x240xbf16, #tpu.memory_space<vmem>>, vector<1x96x240xbf16>
    %375 = vector.shape_cast %374 : vector<1x96x240xbf16> to vector<96x240xbf16>
    %cst_337 = arith.constant dense<0.000000e+00> : vector<2x240xf32>
    %376 = tpu.matmul %373, %375, %cst_337 {dimension_numbers = #tpu.dot_dimension_numbers<[1], [0], [0], [1], [0, 0, 1, 1], [], []>} : vector<2x96xbf16>, vector<96x240xbf16>, vector<2x240xf32> -> vector<2x240xf32>
    %377 = arith.addf %370, %376 : vector<2x240xf32>
    %cst_338 = arith.constant 0.000000e+00 : f32
    %378 = vector.broadcast %cst_338 : f32 to vector<2x240xf32>
    %379 = arith.maximumf %377, %378 : vector<2x240xf32>
    %c12_339 = arith.constant 12 : index
    %c0_340 = arith.constant 0 : index
    %c0_341 = arith.constant 0 : index
    %380 = vector.load %arg20[%c12_339, %c0_340, %c0_341] : memref<15x2x240xf32, #tpu.memory_space<vmem>>, vector<1x2x240xf32>
    %381 = vector.shape_cast %380 : vector<1x2x240xf32> to vector<2x240xf32>
    %382 = vector.shape_cast %379 : vector<2x240xf32> to vector<1x2x240xf32>
    tpu.vector_store %arg20[%c12_339, %c0_340, %c0_341], %382 {strides = array<i32>} : memref<15x2x240xf32, #tpu.memory_space<vmem>>, vector<1x2x240xf32>,
    %c0_342 = arith.constant 0 : index
    %c0_343 = arith.constant 0 : index
    %383 = vector.load %arg10[%c0_342, %c0_343] : memref<1x240xf32, #tpu.memory_space<vmem>>, vector<1x240xf32>
    %c26_344 = arith.constant 26 : index
    %c0_345 = arith.constant 0 : index
    %c0_346 = arith.constant 0 : index
    %384 = vector.load %arg3[%c26_344, %c0_345, %c0_346] : memref<32x2x96xf32, #tpu.memory_space<vmem>>, vector<1x2x96xf32>
    %385 = vector.shape_cast %384 : vector<1x2x96xf32> to vector<2x96xf32>
    %386 = arith.truncf %385 : vector<2x96xf32> to vector<2x96xbf16>
    %c0_347 = arith.constant 0 : index
    %c0_348 = arith.constant 0 : index
    %c0_349 = arith.constant 0 : index
    %387 = vector.load %arg9[%c0_347, %c0_348, %c0_349] : memref<3x96x240xbf16, #tpu.memory_space<vmem>>, vector<1x96x240xbf16>
    %388 = vector.shape_cast %387 : vector<1x96x240xbf16> to vector<96x240xbf16>
    %cst_350 = arith.constant dense<0.000000e+00> : vector<2x240xf32>
    %389 = tpu.matmul %386, %388, %cst_350 {dimension_numbers = #tpu.dot_dimension_numbers<[1], [0], [0], [1], [0, 0, 1, 1], [], []>} : vector<2x96xbf16>, vector<96x240xbf16>, vector<2x240xf32> -> vector<2x240xf32>
    %390 = vector.broadcast %383 : vector<1x240xf32> to vector<2x240xf32>
    %391 = arith.addf %390, %389 : vector<2x240xf32>
    %c27 = arith.constant 27 : index
    %c0_351 = arith.constant 0 : index
    %c0_352 = arith.constant 0 : index
    %392 = vector.load %arg3[%c27, %c0_351, %c0_352] : memref<32x2x96xf32, #tpu.memory_space<vmem>>, vector<1x2x96xf32>
    %393 = vector.shape_cast %392 : vector<1x2x96xf32> to vector<2x96xf32>
    %394 = arith.truncf %393 : vector<2x96xf32> to vector<2x96xbf16>
    %c1_353 = arith.constant 1 : index
    %c0_354 = arith.constant 0 : index
    %c0_355 = arith.constant 0 : index
    %395 = vector.load %arg9[%c1_353, %c0_354, %c0_355] : memref<3x96x240xbf16, #tpu.memory_space<vmem>>, vector<1x96x240xbf16>
    %396 = vector.shape_cast %395 : vector<1x96x240xbf16> to vector<96x240xbf16>
    %cst_356 = arith.constant dense<0.000000e+00> : vector<2x240xf32>
    %397 = tpu.matmul %394, %396, %cst_356 {dimension_numbers = #tpu.dot_dimension_numbers<[1], [0], [0], [1], [0, 0, 1, 1], [], []>} : vector<2x96xbf16>, vector<96x240xbf16>, vector<2x240xf32> -> vector<2x240xf32>
    %398 = arith.addf %391, %397 : vector<2x240xf32>
    %c28 = arith.constant 28 : index
    %c0_357 = arith.constant 0 : index
    %c0_358 = arith.constant 0 : index
    %399 = vector.load %arg3[%c28, %c0_357, %c0_358] : memref<32x2x96xf32, #tpu.memory_space<vmem>>, vector<1x2x96xf32>
    %400 = vector.shape_cast %399 : vector<1x2x96xf32> to vector<2x96xf32>
    %401 = arith.truncf %400 : vector<2x96xf32> to vector<2x96xbf16>
    %c2_359 = arith.constant 2 : index
    %c0_360 = arith.constant 0 : index
    %c0_361 = arith.constant 0 : index
    %402 = vector.load %arg9[%c2_359, %c0_360, %c0_361] : memref<3x96x240xbf16, #tpu.memory_space<vmem>>, vector<1x96x240xbf16>
    %403 = vector.shape_cast %402 : vector<1x96x240xbf16> to vector<96x240xbf16>
    %cst_362 = arith.constant dense<0.000000e+00> : vector<2x240xf32>
    %404 = tpu.matmul %401, %403, %cst_362 {dimension_numbers = #tpu.dot_dimension_numbers<[1], [0], [0], [1], [0, 0, 1, 1], [], []>} : vector<2x96xbf16>, vector<96x240xbf16>, vector<2x240xf32> -> vector<2x240xf32>
    %405 = arith.addf %398, %404 : vector<2x240xf32>
    %cst_363 = arith.constant 0.000000e+00 : f32
    %406 = vector.broadcast %cst_363 : f32 to vector<2x240xf32>
    %407 = arith.maximumf %405, %406 : vector<2x240xf32>
    %c13_364 = arith.constant 13 : index
    %c0_365 = arith.constant 0 : index
    %c0_366 = arith.constant 0 : index
    %408 = vector.load %arg20[%c13_364, %c0_365, %c0_366] : memref<15x2x240xf32, #tpu.memory_space<vmem>>, vector<1x2x240xf32>
    %409 = vector.shape_cast %408 : vector<1x2x240xf32> to vector<2x240xf32>
    %410 = vector.shape_cast %407 : vector<2x240xf32> to vector<1x2x240xf32>
    tpu.vector_store %arg20[%c13_364, %c0_365, %c0_366], %410 {strides = array<i32>} : memref<15x2x240xf32, #tpu.memory_space<vmem>>, vector<1x2x240xf32>,
    %c0_367 = arith.constant 0 : index
    %c0_368 = arith.constant 0 : index
    %411 = vector.load %arg10[%c0_367, %c0_368] : memref<1x240xf32, #tpu.memory_space<vmem>>, vector<1x240xf32>
    %c28_369 = arith.constant 28 : index
    %c0_370 = arith.constant 0 : index
    %c0_371 = arith.constant 0 : index
    %412 = vector.load %arg3[%c28_369, %c0_370, %c0_371] : memref<32x2x96xf32, #tpu.memory_space<vmem>>, vector<1x2x96xf32>
    %413 = vector.shape_cast %412 : vector<1x2x96xf32> to vector<2x96xf32>
    %414 = arith.truncf %413 : vector<2x96xf32> to vector<2x96xbf16>
    %c0_372 = arith.constant 0 : index
    %c0_373 = arith.constant 0 : index
    %c0_374 = arith.constant 0 : index
    %415 = vector.load %arg9[%c0_372, %c0_373, %c0_374] : memref<3x96x240xbf16, #tpu.memory_space<vmem>>, vector<1x96x240xbf16>
    %416 = vector.shape_cast %415 : vector<1x96x240xbf16> to vector<96x240xbf16>
    %cst_375 = arith.constant dense<0.000000e+00> : vector<2x240xf32>
    %417 = tpu.matmul %414, %416, %cst_375 {dimension_numbers = #tpu.dot_dimension_numbers<[1], [0], [0], [1], [0, 0, 1, 1], [], []>} : vector<2x96xbf16>, vector<96x240xbf16>, vector<2x240xf32> -> vector<2x240xf32>
    %418 = vector.broadcast %411 : vector<1x240xf32> to vector<2x240xf32>
    %419 = arith.addf %418, %417 : vector<2x240xf32>
    %c29 = arith.constant 29 : index
    %c0_376 = arith.constant 0 : index
    %c0_377 = arith.constant 0 : index
    %420 = vector.load %arg3[%c29, %c0_376, %c0_377] : memref<32x2x96xf32, #tpu.memory_space<vmem>>, vector<1x2x96xf32>
    %421 = vector.shape_cast %420 : vector<1x2x96xf32> to vector<2x96xf32>
    %422 = arith.truncf %421 : vector<2x96xf32> to vector<2x96xbf16>
    %c1_378 = arith.constant 1 : index
    %c0_379 = arith.constant 0 : index
    %c0_380 = arith.constant 0 : index
    %423 = vector.load %arg9[%c1_378, %c0_379, %c0_380] : memref<3x96x240xbf16, #tpu.memory_space<vmem>>, vector<1x96x240xbf16>
    %424 = vector.shape_cast %423 : vector<1x96x240xbf16> to vector<96x240xbf16>
    %cst_381 = arith.constant dense<0.000000e+00> : vector<2x240xf32>
    %425 = tpu.matmul %422, %424, %cst_381 {dimension_numbers = #tpu.dot_dimension_numbers<[1], [0], [0], [1], [0, 0, 1, 1], [], []>} : vector<2x96xbf16>, vector<96x240xbf16>, vector<2x240xf32> -> vector<2x240xf32>
    %426 = arith.addf %419, %425 : vector<2x240xf32>
    %c30 = arith.constant 30 : index
    %c0_382 = arith.constant 0 : index
    %c0_383 = arith.constant 0 : index
    %427 = vector.load %arg3[%c30, %c0_382, %c0_383] : memref<32x2x96xf32, #tpu.memory_space<vmem>>, vector<1x2x96xf32>
    %428 = vector.shape_cast %427 : vector<1x2x96xf32> to vector<2x96xf32>
    %429 = arith.truncf %428 : vector<2x96xf32> to vector<2x96xbf16>
    %c2_384 = arith.constant 2 : index
    %c0_385 = arith.constant 0 : index
    %c0_386 = arith.constant 0 : index
    %430 = vector.load %arg9[%c2_384, %c0_385, %c0_386] : memref<3x96x240xbf16, #tpu.memory_space<vmem>>, vector<1x96x240xbf16>
    %431 = vector.shape_cast %430 : vector<1x96x240xbf16> to vector<96x240xbf16>
    %cst_387 = arith.constant dense<0.000000e+00> : vector<2x240xf32>
    %432 = tpu.matmul %429, %431, %cst_387 {dimension_numbers = #tpu.dot_dimension_numbers<[1], [0], [0], [1], [0, 0, 1, 1], [], []>} : vector<2x96xbf16>, vector<96x240xbf16>, vector<2x240xf32> -> vector<2x240xf32>
    %433 = arith.addf %426, %432 : vector<2x240xf32>
    %cst_388 = arith.constant 0.000000e+00 : f32
    %434 = vector.broadcast %cst_388 : f32 to vector<2x240xf32>
    %435 = arith.maximumf %433, %434 : vector<2x240xf32>
    %c14_389 = arith.constant 14 : index
    %c0_390 = arith.constant 0 : index
    %c0_391 = arith.constant 0 : index
    %436 = vector.load %arg20[%c14_389, %c0_390, %c0_391] : memref<15x2x240xf32, #tpu.memory_space<vmem>>, vector<1x2x240xf32>
    %437 = vector.shape_cast %436 : vector<1x2x240xf32> to vector<2x240xf32>
    %438 = vector.shape_cast %435 : vector<2x240xf32> to vector<1x2x240xf32>
    tpu.vector_store %arg20[%c14_389, %c0_390, %c0_391], %438 {strides = array<i32>} : memref<15x2x240xf32, #tpu.memory_space<vmem>>, vector<1x2x240xf32>,
    %c0_392 = arith.constant 0 : index
    %c0_393 = arith.constant 0 : index
    %439 = vector.load %arg2[%c0_392, %c0_393] : memref<2x4xf32, #tpu.memory_space<vmem>>, vector<2x4xf32>
    %c0_394 = arith.constant 0 : index
    %c0_395 = arith.constant 0 : index
    %440 = vector.load %arg14[%c0_394, %c0_395] : memref<4x64xf32, #tpu.memory_space<vmem>>, vector<4x64xf32>
    %cst_396 = arith.constant dense<0.000000e+00> : vector<2x64xf32>
    %441 = tpu.matmul %439, %440, %cst_396 {dimension_numbers = #tpu.dot_dimension_numbers<[1], [0], [0], [1], [0, 0, 1, 1], [], []>} : vector<2x4xf32>, vector<4x64xf32>, vector<2x64xf32> -> vector<2x64xf32>
    %c0_397 = arith.constant 0 : index
    %c0_398 = arith.constant 0 : index
    %442 = vector.load %arg15[%c0_397, %c0_398] : memref<1x64xf32, #tpu.memory_space<vmem>>, vector<1x64xf32>
    %443 = vector.broadcast %442 : vector<1x64xf32> to vector<2x64xf32>
    %444 = arith.addf %441, %443 : vector<2x64xf32>
    %c0_399 = arith.constant 0 : index
    %c0_400 = arith.constant 0 : index
    %445 = vector.load %arg12[%c0_399, %c0_400] : memref<1x224xf32, #tpu.memory_space<vmem>>, vector<1x224xf32>
    %c0_401 = arith.constant 0 : index
    %c0_402 = arith.constant 0 : index
    %c0_403 = arith.constant 0 : index
    %446 = vector.load %arg20[%c0_401, %c0_402, %c0_403] : memref<15x2x240xf32, #tpu.memory_space<vmem>>, vector<1x2x240xf32>
    %447 = vector.shape_cast %446 : vector<1x2x240xf32> to vector<2x240xf32>
    %448 = arith.truncf %447 : vector<2x240xf32> to vector<2x240xbf16>
    %c0_404 = arith.constant 0 : index
    %c0_405 = arith.constant 0 : index
    %c0_406 = arith.constant 0 : index
    %449 = vector.load %arg11[%c0_404, %c0_405, %c0_406] : memref<3x240x224xbf16, #tpu.memory_space<vmem>>, vector<1x240x224xbf16>
    %450 = vector.shape_cast %449 : vector<1x240x224xbf16> to vector<240x224xbf16>
    %cst_407 = arith.constant dense<0.000000e+00> : vector<2x224xf32>
    %451 = tpu.matmul %448, %450, %cst_407 {dimension_numbers = #tpu.dot_dimension_numbers<[1], [0], [0], [1], [0, 0, 1, 1], [], []>} : vector<2x240xbf16>, vector<240x224xbf16>, vector<2x224xf32> -> vector<2x224xf32>
    %452 = vector.broadcast %445 : vector<1x224xf32> to vector<2x224xf32>
    %453 = arith.addf %452, %451 : vector<2x224xf32>
    %c1_408 = arith.constant 1 : index
    %c0_409 = arith.constant 0 : index
    %c0_410 = arith.constant 0 : index
    %454 = vector.load %arg20[%c1_408, %c0_409, %c0_410] : memref<15x2x240xf32, #tpu.memory_space<vmem>>, vector<1x2x240xf32>
    %455 = vector.shape_cast %454 : vector<1x2x240xf32> to vector<2x240xf32>
    %456 = arith.truncf %455 : vector<2x240xf32> to vector<2x240xbf16>
    %c1_411 = arith.constant 1 : index
    %c0_412 = arith.constant 0 : index
    %c0_413 = arith.constant 0 : index
    %457 = vector.load %arg11[%c1_411, %c0_412, %c0_413] : memref<3x240x224xbf16, #tpu.memory_space<vmem>>, vector<1x240x224xbf16>
    %458 = vector.shape_cast %457 : vector<1x240x224xbf16> to vector<240x224xbf16>
    %cst_414 = arith.constant dense<0.000000e+00> : vector<2x224xf32>
    %459 = tpu.matmul %456, %458, %cst_414 {dimension_numbers = #tpu.dot_dimension_numbers<[1], [0], [0], [1], [0, 0, 1, 1], [], []>} : vector<2x240xbf16>, vector<240x224xbf16>, vector<2x224xf32> -> vector<2x224xf32>
    %460 = arith.addf %453, %459 : vector<2x224xf32>
    %c2_415 = arith.constant 2 : index
    %c0_416 = arith.constant 0 : index
    %c0_417 = arith.constant 0 : index
    %461 = vector.load %arg20[%c2_415, %c0_416, %c0_417] : memref<15x2x240xf32, #tpu.memory_space<vmem>>, vector<1x2x240xf32>
    %462 = vector.shape_cast %461 : vector<1x2x240xf32> to vector<2x240xf32>
    %463 = arith.truncf %462 : vector<2x240xf32> to vector<2x240xbf16>
    %c2_418 = arith.constant 2 : index
    %c0_419 = arith.constant 0 : index
    %c0_420 = arith.constant 0 : index
    %464 = vector.load %arg11[%c2_418, %c0_419, %c0_420] : memref<3x240x224xbf16, #tpu.memory_space<vmem>>, vector<1x240x224xbf16>
    %465 = vector.shape_cast %464 : vector<1x240x224xbf16> to vector<240x224xbf16>
    %cst_421 = arith.constant dense<0.000000e+00> : vector<2x224xf32>
    %466 = tpu.matmul %463, %465, %cst_421 {dimension_numbers = #tpu.dot_dimension_numbers<[1], [0], [0], [1], [0, 0, 1, 1], [], []>} : vector<2x240xbf16>, vector<240x224xbf16>, vector<2x224xf32> -> vector<2x224xf32>
    %467 = arith.addf %460, %466 : vector<2x224xf32>
    %cst_422 = arith.constant 0.000000e+00 : f32
    %468 = vector.broadcast %cst_422 : f32 to vector<2x224xf32>
    %469 = arith.maximumf %467, %468 : vector<2x224xf32>
    %470 = arith.truncf %469 : vector<2x224xf32> to vector<2x224xbf16>
    %c0_423 = arith.constant 0 : index
    %c0_424 = arith.constant 0 : index
    %c0_425 = arith.constant 0 : index
    %471 = vector.load %arg13[%c0_423, %c0_424, %c0_425] : memref<7x224x64xbf16, #tpu.memory_space<vmem>>, vector<1x224x64xbf16>
    %472 = vector.shape_cast %471 : vector<1x224x64xbf16> to vector<224x64xbf16>
    %cst_426 = arith.constant dense<0.000000e+00> : vector<2x64xf32>
    %473 = tpu.matmul %470, %472, %cst_426 {dimension_numbers = #tpu.dot_dimension_numbers<[1], [0], [0], [1], [0, 0, 1, 1], [], []>} : vector<2x224xbf16>, vector<224x64xbf16>, vector<2x64xf32> -> vector<2x64xf32>
    %474 = arith.addf %444, %473 : vector<2x64xf32>
    %c0_427 = arith.constant 0 : index
    %c0_428 = arith.constant 0 : index
    %475 = vector.load %arg12[%c0_427, %c0_428] : memref<1x224xf32, #tpu.memory_space<vmem>>, vector<1x224xf32>
    %c2_429 = arith.constant 2 : index
    %c0_430 = arith.constant 0 : index
    %c0_431 = arith.constant 0 : index
    %476 = vector.load %arg20[%c2_429, %c0_430, %c0_431] : memref<15x2x240xf32, #tpu.memory_space<vmem>>, vector<1x2x240xf32>
    %477 = vector.shape_cast %476 : vector<1x2x240xf32> to vector<2x240xf32>
    %478 = arith.truncf %477 : vector<2x240xf32> to vector<2x240xbf16>
    %c0_432 = arith.constant 0 : index
    %c0_433 = arith.constant 0 : index
    %c0_434 = arith.constant 0 : index
    %479 = vector.load %arg11[%c0_432, %c0_433, %c0_434] : memref<3x240x224xbf16, #tpu.memory_space<vmem>>, vector<1x240x224xbf16>
    %480 = vector.shape_cast %479 : vector<1x240x224xbf16> to vector<240x224xbf16>
    %cst_435 = arith.constant dense<0.000000e+00> : vector<2x224xf32>
    %481 = tpu.matmul %478, %480, %cst_435 {dimension_numbers = #tpu.dot_dimension_numbers<[1], [0], [0], [1], [0, 0, 1, 1], [], []>} : vector<2x240xbf16>, vector<240x224xbf16>, vector<2x224xf32> -> vector<2x224xf32>
    %482 = vector.broadcast %475 : vector<1x224xf32> to vector<2x224xf32>
    %483 = arith.addf %482, %481 : vector<2x224xf32>
    %c3_436 = arith.constant 3 : index
    %c0_437 = arith.constant 0 : index
    %c0_438 = arith.constant 0 : index
    %484 = vector.load %arg20[%c3_436, %c0_437, %c0_438] : memref<15x2x240xf32, #tpu.memory_space<vmem>>, vector<1x2x240xf32>
    %485 = vector.shape_cast %484 : vector<1x2x240xf32> to vector<2x240xf32>
    %486 = arith.truncf %485 : vector<2x240xf32> to vector<2x240xbf16>
    %c1_439 = arith.constant 1 : index
    %c0_440 = arith.constant 0 : index
    %c0_441 = arith.constant 0 : index
    %487 = vector.load %arg11[%c1_439, %c0_440, %c0_441] : memref<3x240x224xbf16, #tpu.memory_space<vmem>>, vector<1x240x224xbf16>
    %488 = vector.shape_cast %487 : vector<1x240x224xbf16> to vector<240x224xbf16>
    %cst_442 = arith.constant dense<0.000000e+00> : vector<2x224xf32>
    %489 = tpu.matmul %486, %488, %cst_442 {dimension_numbers = #tpu.dot_dimension_numbers<[1], [0], [0], [1], [0, 0, 1, 1], [], []>} : vector<2x240xbf16>, vector<240x224xbf16>, vector<2x224xf32> -> vector<2x224xf32>
    %490 = arith.addf %483, %489 : vector<2x224xf32>
    %c4_443 = arith.constant 4 : index
    %c0_444 = arith.constant 0 : index
    %c0_445 = arith.constant 0 : index
    %491 = vector.load %arg20[%c4_443, %c0_444, %c0_445] : memref<15x2x240xf32, #tpu.memory_space<vmem>>, vector<1x2x240xf32>
    %492 = vector.shape_cast %491 : vector<1x2x240xf32> to vector<2x240xf32>
    %493 = arith.truncf %492 : vector<2x240xf32> to vector<2x240xbf16>
    %c2_446 = arith.constant 2 : index
    %c0_447 = arith.constant 0 : index
    %c0_448 = arith.constant 0 : index
    %494 = vector.load %arg11[%c2_446, %c0_447, %c0_448] : memref<3x240x224xbf16, #tpu.memory_space<vmem>>, vector<1x240x224xbf16>
    %495 = vector.shape_cast %494 : vector<1x240x224xbf16> to vector<240x224xbf16>
    %cst_449 = arith.constant dense<0.000000e+00> : vector<2x224xf32>
    %496 = tpu.matmul %493, %495, %cst_449 {dimension_numbers = #tpu.dot_dimension_numbers<[1], [0], [0], [1], [0, 0, 1, 1], [], []>} : vector<2x240xbf16>, vector<240x224xbf16>, vector<2x224xf32> -> vector<2x224xf32>
    %497 = arith.addf %490, %496 : vector<2x224xf32>
    %cst_450 = arith.constant 0.000000e+00 : f32
    %498 = vector.broadcast %cst_450 : f32 to vector<2x224xf32>
    %499 = arith.maximumf %497, %498 : vector<2x224xf32>
    %500 = arith.truncf %499 : vector<2x224xf32> to vector<2x224xbf16>
    %c1_451 = arith.constant 1 : index
    %c0_452 = arith.constant 0 : index
    %c0_453 = arith.constant 0 : index
    %501 = vector.load %arg13[%c1_451, %c0_452, %c0_453] : memref<7x224x64xbf16, #tpu.memory_space<vmem>>, vector<1x224x64xbf16>
    %502 = vector.shape_cast %501 : vector<1x224x64xbf16> to vector<224x64xbf16>
    %cst_454 = arith.constant dense<0.000000e+00> : vector<2x64xf32>
    %503 = tpu.matmul %500, %502, %cst_454 {dimension_numbers = #tpu.dot_dimension_numbers<[1], [0], [0], [1], [0, 0, 1, 1], [], []>} : vector<2x224xbf16>, vector<224x64xbf16>, vector<2x64xf32> -> vector<2x64xf32>
    %504 = arith.addf %474, %503 : vector<2x64xf32>
    %c0_455 = arith.constant 0 : index
    %c0_456 = arith.constant 0 : index
    %505 = vector.load %arg12[%c0_455, %c0_456] : memref<1x224xf32, #tpu.memory_space<vmem>>, vector<1x224xf32>
    %c4_457 = arith.constant 4 : index
    %c0_458 = arith.constant 0 : index
    %c0_459 = arith.constant 0 : index
    %506 = vector.load %arg20[%c4_457, %c0_458, %c0_459] : memref<15x2x240xf32, #tpu.memory_space<vmem>>, vector<1x2x240xf32>
    %507 = vector.shape_cast %506 : vector<1x2x240xf32> to vector<2x240xf32>
    %508 = arith.truncf %507 : vector<2x240xf32> to vector<2x240xbf16>
    %c0_460 = arith.constant 0 : index
    %c0_461 = arith.constant 0 : index
    %c0_462 = arith.constant 0 : index
    %509 = vector.load %arg11[%c0_460, %c0_461, %c0_462] : memref<3x240x224xbf16, #tpu.memory_space<vmem>>, vector<1x240x224xbf16>
    %510 = vector.shape_cast %509 : vector<1x240x224xbf16> to vector<240x224xbf16>
    %cst_463 = arith.constant dense<0.000000e+00> : vector<2x224xf32>
    %511 = tpu.matmul %508, %510, %cst_463 {dimension_numbers = #tpu.dot_dimension_numbers<[1], [0], [0], [1], [0, 0, 1, 1], [], []>} : vector<2x240xbf16>, vector<240x224xbf16>, vector<2x224xf32> -> vector<2x224xf32>
    %512 = vector.broadcast %505 : vector<1x224xf32> to vector<2x224xf32>
    %513 = arith.addf %512, %511 : vector<2x224xf32>
    %c5_464 = arith.constant 5 : index
    %c0_465 = arith.constant 0 : index
    %c0_466 = arith.constant 0 : index
    %514 = vector.load %arg20[%c5_464, %c0_465, %c0_466] : memref<15x2x240xf32, #tpu.memory_space<vmem>>, vector<1x2x240xf32>
    %515 = vector.shape_cast %514 : vector<1x2x240xf32> to vector<2x240xf32>
    %516 = arith.truncf %515 : vector<2x240xf32> to vector<2x240xbf16>
    %c1_467 = arith.constant 1 : index
    %c0_468 = arith.constant 0 : index
    %c0_469 = arith.constant 0 : index
    %517 = vector.load %arg11[%c1_467, %c0_468, %c0_469] : memref<3x240x224xbf16, #tpu.memory_space<vmem>>, vector<1x240x224xbf16>
    %518 = vector.shape_cast %517 : vector<1x240x224xbf16> to vector<240x224xbf16>
    %cst_470 = arith.constant dense<0.000000e+00> : vector<2x224xf32>
    %519 = tpu.matmul %516, %518, %cst_470 {dimension_numbers = #tpu.dot_dimension_numbers<[1], [0], [0], [1], [0, 0, 1, 1], [], []>} : vector<2x240xbf16>, vector<240x224xbf16>, vector<2x224xf32> -> vector<2x224xf32>
    %520 = arith.addf %513, %519 : vector<2x224xf32>
    %c6_471 = arith.constant 6 : index
    %c0_472 = arith.constant 0 : index
    %c0_473 = arith.constant 0 : index
    %521 = vector.load %arg20[%c6_471, %c0_472, %c0_473] : memref<15x2x240xf32, #tpu.memory_space<vmem>>, vector<1x2x240xf32>
    %522 = vector.shape_cast %521 : vector<1x2x240xf32> to vector<2x240xf32>
    %523 = arith.truncf %522 : vector<2x240xf32> to vector<2x240xbf16>
    %c2_474 = arith.constant 2 : index
    %c0_475 = arith.constant 0 : index
    %c0_476 = arith.constant 0 : index
    %524 = vector.load %arg11[%c2_474, %c0_475, %c0_476] : memref<3x240x224xbf16, #tpu.memory_space<vmem>>, vector<1x240x224xbf16>
    %525 = vector.shape_cast %524 : vector<1x240x224xbf16> to vector<240x224xbf16>
    %cst_477 = arith.constant dense<0.000000e+00> : vector<2x224xf32>
    %526 = tpu.matmul %523, %525, %cst_477 {dimension_numbers = #tpu.dot_dimension_numbers<[1], [0], [0], [1], [0, 0, 1, 1], [], []>} : vector<2x240xbf16>, vector<240x224xbf16>, vector<2x224xf32> -> vector<2x224xf32>
    %527 = arith.addf %520, %526 : vector<2x224xf32>
    %cst_478 = arith.constant 0.000000e+00 : f32
    %528 = vector.broadcast %cst_478 : f32 to vector<2x224xf32>
    %529 = arith.maximumf %527, %528 : vector<2x224xf32>
    %530 = arith.truncf %529 : vector<2x224xf32> to vector<2x224xbf16>
    %c2_479 = arith.constant 2 : index
    %c0_480 = arith.constant 0 : index
    %c0_481 = arith.constant 0 : index
    %531 = vector.load %arg13[%c2_479, %c0_480, %c0_481] : memref<7x224x64xbf16, #tpu.memory_space<vmem>>, vector<1x224x64xbf16>
    %532 = vector.shape_cast %531 : vector<1x224x64xbf16> to vector<224x64xbf16>
    %cst_482 = arith.constant dense<0.000000e+00> : vector<2x64xf32>
    %533 = tpu.matmul %530, %532, %cst_482 {dimension_numbers = #tpu.dot_dimension_numbers<[1], [0], [0], [1], [0, 0, 1, 1], [], []>} : vector<2x224xbf16>, vector<224x64xbf16>, vector<2x64xf32> -> vector<2x64xf32>
    %534 = arith.addf %504, %533 : vector<2x64xf32>
    %c0_483 = arith.constant 0 : index
    %c0_484 = arith.constant 0 : index
    %535 = vector.load %arg12[%c0_483, %c0_484] : memref<1x224xf32, #tpu.memory_space<vmem>>, vector<1x224xf32>
    %c6_485 = arith.constant 6 : index
    %c0_486 = arith.constant 0 : index
    %c0_487 = arith.constant 0 : index
    %536 = vector.load %arg20[%c6_485, %c0_486, %c0_487] : memref<15x2x240xf32, #tpu.memory_space<vmem>>, vector<1x2x240xf32>
    %537 = vector.shape_cast %536 : vector<1x2x240xf32> to vector<2x240xf32>
    %538 = arith.truncf %537 : vector<2x240xf32> to vector<2x240xbf16>
    %c0_488 = arith.constant 0 : index
    %c0_489 = arith.constant 0 : index
    %c0_490 = arith.constant 0 : index
    %539 = vector.load %arg11[%c0_488, %c0_489, %c0_490] : memref<3x240x224xbf16, #tpu.memory_space<vmem>>, vector<1x240x224xbf16>
    %540 = vector.shape_cast %539 : vector<1x240x224xbf16> to vector<240x224xbf16>
    %cst_491 = arith.constant dense<0.000000e+00> : vector<2x224xf32>
    %541 = tpu.matmul %538, %540, %cst_491 {dimension_numbers = #tpu.dot_dimension_numbers<[1], [0], [0], [1], [0, 0, 1, 1], [], []>} : vector<2x240xbf16>, vector<240x224xbf16>, vector<2x224xf32> -> vector<2x224xf32>
    %542 = vector.broadcast %535 : vector<1x224xf32> to vector<2x224xf32>
    %543 = arith.addf %542, %541 : vector<2x224xf32>
    %c7_492 = arith.constant 7 : index
    %c0_493 = arith.constant 0 : index
    %c0_494 = arith.constant 0 : index
    %544 = vector.load %arg20[%c7_492, %c0_493, %c0_494] : memref<15x2x240xf32, #tpu.memory_space<vmem>>, vector<1x2x240xf32>
    %545 = vector.shape_cast %544 : vector<1x2x240xf32> to vector<2x240xf32>
    %546 = arith.truncf %545 : vector<2x240xf32> to vector<2x240xbf16>
    %c1_495 = arith.constant 1 : index
    %c0_496 = arith.constant 0 : index
    %c0_497 = arith.constant 0 : index
    %547 = vector.load %arg11[%c1_495, %c0_496, %c0_497] : memref<3x240x224xbf16, #tpu.memory_space<vmem>>, vector<1x240x224xbf16>
    %548 = vector.shape_cast %547 : vector<1x240x224xbf16> to vector<240x224xbf16>
    %cst_498 = arith.constant dense<0.000000e+00> : vector<2x224xf32>
    %549 = tpu.matmul %546, %548, %cst_498 {dimension_numbers = #tpu.dot_dimension_numbers<[1], [0], [0], [1], [0, 0, 1, 1], [], []>} : vector<2x240xbf16>, vector<240x224xbf16>, vector<2x224xf32> -> vector<2x224xf32>
    %550 = arith.addf %543, %549 : vector<2x224xf32>
    %c8_499 = arith.constant 8 : index
    %c0_500 = arith.constant 0 : index
    %c0_501 = arith.constant 0 : index
    %551 = vector.load %arg20[%c8_499, %c0_500, %c0_501] : memref<15x2x240xf32, #tpu.memory_space<vmem>>, vector<1x2x240xf32>
    %552 = vector.shape_cast %551 : vector<1x2x240xf32> to vector<2x240xf32>
    %553 = arith.truncf %552 : vector<2x240xf32> to vector<2x240xbf16>
    %c2_502 = arith.constant 2 : index
    %c0_503 = arith.constant 0 : index
    %c0_504 = arith.constant 0 : index
    %554 = vector.load %arg11[%c2_502, %c0_503, %c0_504] : memref<3x240x224xbf16, #tpu.memory_space<vmem>>, vector<1x240x224xbf16>
    %555 = vector.shape_cast %554 : vector<1x240x224xbf16> to vector<240x224xbf16>
    %cst_505 = arith.constant dense<0.000000e+00> : vector<2x224xf32>
    %556 = tpu.matmul %553, %555, %cst_505 {dimension_numbers = #tpu.dot_dimension_numbers<[1], [0], [0], [1], [0, 0, 1, 1], [], []>} : vector<2x240xbf16>, vector<240x224xbf16>, vector<2x224xf32> -> vector<2x224xf32>
    %557 = arith.addf %550, %556 : vector<2x224xf32>
    %cst_506 = arith.constant 0.000000e+00 : f32
    %558 = vector.broadcast %cst_506 : f32 to vector<2x224xf32>
    %559 = arith.maximumf %557, %558 : vector<2x224xf32>
    %560 = arith.truncf %559 : vector<2x224xf32> to vector<2x224xbf16>
    %c3_507 = arith.constant 3 : index
    %c0_508 = arith.constant 0 : index
    %c0_509 = arith.constant 0 : index
    %561 = vector.load %arg13[%c3_507, %c0_508, %c0_509] : memref<7x224x64xbf16, #tpu.memory_space<vmem>>, vector<1x224x64xbf16>
    %562 = vector.shape_cast %561 : vector<1x224x64xbf16> to vector<224x64xbf16>
    %cst_510 = arith.constant dense<0.000000e+00> : vector<2x64xf32>
    %563 = tpu.matmul %560, %562, %cst_510 {dimension_numbers = #tpu.dot_dimension_numbers<[1], [0], [0], [1], [0, 0, 1, 1], [], []>} : vector<2x224xbf16>, vector<224x64xbf16>, vector<2x64xf32> -> vector<2x64xf32>
    %564 = arith.addf %534, %563 : vector<2x64xf32>
    %c0_511 = arith.constant 0 : index
    %c0_512 = arith.constant 0 : index
    %565 = vector.load %arg12[%c0_511, %c0_512] : memref<1x224xf32, #tpu.memory_space<vmem>>, vector<1x224xf32>
    %c8_513 = arith.constant 8 : index
    %c0_514 = arith.constant 0 : index
    %c0_515 = arith.constant 0 : index
    %566 = vector.load %arg20[%c8_513, %c0_514, %c0_515] : memref<15x2x240xf32, #tpu.memory_space<vmem>>, vector<1x2x240xf32>
    %567 = vector.shape_cast %566 : vector<1x2x240xf32> to vector<2x240xf32>
    %568 = arith.truncf %567 : vector<2x240xf32> to vector<2x240xbf16>
    %c0_516 = arith.constant 0 : index
    %c0_517 = arith.constant 0 : index
    %c0_518 = arith.constant 0 : index
    %569 = vector.load %arg11[%c0_516, %c0_517, %c0_518] : memref<3x240x224xbf16, #tpu.memory_space<vmem>>, vector<1x240x224xbf16>
    %570 = vector.shape_cast %569 : vector<1x240x224xbf16> to vector<240x224xbf16>
    %cst_519 = arith.constant dense<0.000000e+00> : vector<2x224xf32>
    %571 = tpu.matmul %568, %570, %cst_519 {dimension_numbers = #tpu.dot_dimension_numbers<[1], [0], [0], [1], [0, 0, 1, 1], [], []>} : vector<2x240xbf16>, vector<240x224xbf16>, vector<2x224xf32> -> vector<2x224xf32>
    %572 = vector.broadcast %565 : vector<1x224xf32> to vector<2x224xf32>
    %573 = arith.addf %572, %571 : vector<2x224xf32>
    %c9_520 = arith.constant 9 : index
    %c0_521 = arith.constant 0 : index
    %c0_522 = arith.constant 0 : index
    %574 = vector.load %arg20[%c9_520, %c0_521, %c0_522] : memref<15x2x240xf32, #tpu.memory_space<vmem>>, vector<1x2x240xf32>
    %575 = vector.shape_cast %574 : vector<1x2x240xf32> to vector<2x240xf32>
    %576 = arith.truncf %575 : vector<2x240xf32> to vector<2x240xbf16>
    %c1_523 = arith.constant 1 : index
    %c0_524 = arith.constant 0 : index
    %c0_525 = arith.constant 0 : index
    %577 = vector.load %arg11[%c1_523, %c0_524, %c0_525] : memref<3x240x224xbf16, #tpu.memory_space<vmem>>, vector<1x240x224xbf16>
    %578 = vector.shape_cast %577 : vector<1x240x224xbf16> to vector<240x224xbf16>
    %cst_526 = arith.constant dense<0.000000e+00> : vector<2x224xf32>
    %579 = tpu.matmul %576, %578, %cst_526 {dimension_numbers = #tpu.dot_dimension_numbers<[1], [0], [0], [1], [0, 0, 1, 1], [], []>} : vector<2x240xbf16>, vector<240x224xbf16>, vector<2x224xf32> -> vector<2x224xf32>
    %580 = arith.addf %573, %579 : vector<2x224xf32>
    %c10_527 = arith.constant 10 : index
    %c0_528 = arith.constant 0 : index
    %c0_529 = arith.constant 0 : index
    %581 = vector.load %arg20[%c10_527, %c0_528, %c0_529] : memref<15x2x240xf32, #tpu.memory_space<vmem>>, vector<1x2x240xf32>
    %582 = vector.shape_cast %581 : vector<1x2x240xf32> to vector<2x240xf32>
    %583 = arith.truncf %582 : vector<2x240xf32> to vector<2x240xbf16>
    %c2_530 = arith.constant 2 : index
    %c0_531 = arith.constant 0 : index
    %c0_532 = arith.constant 0 : index
    %584 = vector.load %arg11[%c2_530, %c0_531, %c0_532] : memref<3x240x224xbf16, #tpu.memory_space<vmem>>, vector<1x240x224xbf16>
    %585 = vector.shape_cast %584 : vector<1x240x224xbf16> to vector<240x224xbf16>
    %cst_533 = arith.constant dense<0.000000e+00> : vector<2x224xf32>
    %586 = tpu.matmul %583, %585, %cst_533 {dimension_numbers = #tpu.dot_dimension_numbers<[1], [0], [0], [1], [0, 0, 1, 1], [], []>} : vector<2x240xbf16>, vector<240x224xbf16>, vector<2x224xf32> -> vector<2x224xf32>
    %587 = arith.addf %580, %586 : vector<2x224xf32>
    %cst_534 = arith.constant 0.000000e+00 : f32
    %588 = vector.broadcast %cst_534 : f32 to vector<2x224xf32>
    %589 = arith.maximumf %587, %588 : vector<2x224xf32>
    %590 = arith.truncf %589 : vector<2x224xf32> to vector<2x224xbf16>
    %c4_535 = arith.constant 4 : index
    %c0_536 = arith.constant 0 : index
    %c0_537 = arith.constant 0 : index
    %591 = vector.load %arg13[%c4_535, %c0_536, %c0_537] : memref<7x224x64xbf16, #tpu.memory_space<vmem>>, vector<1x224x64xbf16>
    %592 = vector.shape_cast %591 : vector<1x224x64xbf16> to vector<224x64xbf16>
    %cst_538 = arith.constant dense<0.000000e+00> : vector<2x64xf32>
    %593 = tpu.matmul %590, %592, %cst_538 {dimension_numbers = #tpu.dot_dimension_numbers<[1], [0], [0], [1], [0, 0, 1, 1], [], []>} : vector<2x224xbf16>, vector<224x64xbf16>, vector<2x64xf32> -> vector<2x64xf32>
    %594 = arith.addf %564, %593 : vector<2x64xf32>
    %c0_539 = arith.constant 0 : index
    %c0_540 = arith.constant 0 : index
    %595 = vector.load %arg12[%c0_539, %c0_540] : memref<1x224xf32, #tpu.memory_space<vmem>>, vector<1x224xf32>
    %c10_541 = arith.constant 10 : index
    %c0_542 = arith.constant 0 : index
    %c0_543 = arith.constant 0 : index
    %596 = vector.load %arg20[%c10_541, %c0_542, %c0_543] : memref<15x2x240xf32, #tpu.memory_space<vmem>>, vector<1x2x240xf32>
    %597 = vector.shape_cast %596 : vector<1x2x240xf32> to vector<2x240xf32>
    %598 = arith.truncf %597 : vector<2x240xf32> to vector<2x240xbf16>
    %c0_544 = arith.constant 0 : index
    %c0_545 = arith.constant 0 : index
    %c0_546 = arith.constant 0 : index
    %599 = vector.load %arg11[%c0_544, %c0_545, %c0_546] : memref<3x240x224xbf16, #tpu.memory_space<vmem>>, vector<1x240x224xbf16>
    %600 = vector.shape_cast %599 : vector<1x240x224xbf16> to vector<240x224xbf16>
    %cst_547 = arith.constant dense<0.000000e+00> : vector<2x224xf32>
    %601 = tpu.matmul %598, %600, %cst_547 {dimension_numbers = #tpu.dot_dimension_numbers<[1], [0], [0], [1], [0, 0, 1, 1], [], []>} : vector<2x240xbf16>, vector<240x224xbf16>, vector<2x224xf32> -> vector<2x224xf32>
    %602 = vector.broadcast %595 : vector<1x224xf32> to vector<2x224xf32>
    %603 = arith.addf %602, %601 : vector<2x224xf32>
    %c11_548 = arith.constant 11 : index
    %c0_549 = arith.constant 0 : index
    %c0_550 = arith.constant 0 : index
    %604 = vector.load %arg20[%c11_548, %c0_549, %c0_550] : memref<15x2x240xf32, #tpu.memory_space<vmem>>, vector<1x2x240xf32>
    %605 = vector.shape_cast %604 : vector<1x2x240xf32> to vector<2x240xf32>
    %606 = arith.truncf %605 : vector<2x240xf32> to vector<2x240xbf16>
    %c1_551 = arith.constant 1 : index
    %c0_552 = arith.constant 0 : index
    %c0_553 = arith.constant 0 : index
    %607 = vector.load %arg11[%c1_551, %c0_552, %c0_553] : memref<3x240x224xbf16, #tpu.memory_space<vmem>>, vector<1x240x224xbf16>
    %608 = vector.shape_cast %607 : vector<1x240x224xbf16> to vector<240x224xbf16>
    %cst_554 = arith.constant dense<0.000000e+00> : vector<2x224xf32>
    %609 = tpu.matmul %606, %608, %cst_554 {dimension_numbers = #tpu.dot_dimension_numbers<[1], [0], [0], [1], [0, 0, 1, 1], [], []>} : vector<2x240xbf16>, vector<240x224xbf16>, vector<2x224xf32> -> vector<2x224xf32>
    %610 = arith.addf %603, %609 : vector<2x224xf32>
    %c12_555 = arith.constant 12 : index
    %c0_556 = arith.constant 0 : index
    %c0_557 = arith.constant 0 : index
    %611 = vector.load %arg20[%c12_555, %c0_556, %c0_557] : memref<15x2x240xf32, #tpu.memory_space<vmem>>, vector<1x2x240xf32>
    %612 = vector.shape_cast %611 : vector<1x2x240xf32> to vector<2x240xf32>
    %613 = arith.truncf %612 : vector<2x240xf32> to vector<2x240xbf16>
    %c2_558 = arith.constant 2 : index
    %c0_559 = arith.constant 0 : index
    %c0_560 = arith.constant 0 : index
    %614 = vector.load %arg11[%c2_558, %c0_559, %c0_560] : memref<3x240x224xbf16, #tpu.memory_space<vmem>>, vector<1x240x224xbf16>
    %615 = vector.shape_cast %614 : vector<1x240x224xbf16> to vector<240x224xbf16>
    %cst_561 = arith.constant dense<0.000000e+00> : vector<2x224xf32>
    %616 = tpu.matmul %613, %615, %cst_561 {dimension_numbers = #tpu.dot_dimension_numbers<[1], [0], [0], [1], [0, 0, 1, 1], [], []>} : vector<2x240xbf16>, vector<240x224xbf16>, vector<2x224xf32> -> vector<2x224xf32>
    %617 = arith.addf %610, %616 : vector<2x224xf32>
    %cst_562 = arith.constant 0.000000e+00 : f32
    %618 = vector.broadcast %cst_562 : f32 to vector<2x224xf32>
    %619 = arith.maximumf %617, %618 : vector<2x224xf32>
    %620 = arith.truncf %619 : vector<2x224xf32> to vector<2x224xbf16>
    %c5_563 = arith.constant 5 : index
    %c0_564 = arith.constant 0 : index
    %c0_565 = arith.constant 0 : index
    %621 = vector.load %arg13[%c5_563, %c0_564, %c0_565] : memref<7x224x64xbf16, #tpu.memory_space<vmem>>, vector<1x224x64xbf16>
    %622 = vector.shape_cast %621 : vector<1x224x64xbf16> to vector<224x64xbf16>
    %cst_566 = arith.constant dense<0.000000e+00> : vector<2x64xf32>
    %623 = tpu.matmul %620, %622, %cst_566 {dimension_numbers = #tpu.dot_dimension_numbers<[1], [0], [0], [1], [0, 0, 1, 1], [], []>} : vector<2x224xbf16>, vector<224x64xbf16>, vector<2x64xf32> -> vector<2x64xf32>
    %624 = arith.addf %594, %623 : vector<2x64xf32>
    %c0_567 = arith.constant 0 : index
    %c0_568 = arith.constant 0 : index
    %625 = vector.load %arg12[%c0_567, %c0_568] : memref<1x224xf32, #tpu.memory_space<vmem>>, vector<1x224xf32>
    %c12_569 = arith.constant 12 : index
    %c0_570 = arith.constant 0 : index
    %c0_571 = arith.constant 0 : index
    %626 = vector.load %arg20[%c12_569, %c0_570, %c0_571] : memref<15x2x240xf32, #tpu.memory_space<vmem>>, vector<1x2x240xf32>
    %627 = vector.shape_cast %626 : vector<1x2x240xf32> to vector<2x240xf32>
    %628 = arith.truncf %627 : vector<2x240xf32> to vector<2x240xbf16>
    %c0_572 = arith.constant 0 : index
    %c0_573 = arith.constant 0 : index
    %c0_574 = arith.constant 0 : index
    %629 = vector.load %arg11[%c0_572, %c0_573, %c0_574] : memref<3x240x224xbf16, #tpu.memory_space<vmem>>, vector<1x240x224xbf16>
    %630 = vector.shape_cast %629 : vector<1x240x224xbf16> to vector<240x224xbf16>
    %cst_575 = arith.constant dense<0.000000e+00> : vector<2x224xf32>
    %631 = tpu.matmul %628, %630, %cst_575 {dimension_numbers = #tpu.dot_dimension_numbers<[1], [0], [0], [1], [0, 0, 1, 1], [], []>} : vector<2x240xbf16>, vector<240x224xbf16>, vector<2x224xf32> -> vector<2x224xf32>
    %632 = vector.broadcast %625 : vector<1x224xf32> to vector<2x224xf32>
    %633 = arith.addf %632, %631 : vector<2x224xf32>
    %c13_576 = arith.constant 13 : index
    %c0_577 = arith.constant 0 : index
    %c0_578 = arith.constant 0 : index
    %634 = vector.load %arg20[%c13_576, %c0_577, %c0_578] : memref<15x2x240xf32, #tpu.memory_space<vmem>>, vector<1x2x240xf32>
    %635 = vector.shape_cast %634 : vector<1x2x240xf32> to vector<2x240xf32>
    %636 = arith.truncf %635 : vector<2x240xf32> to vector<2x240xbf16>
    %c1_579 = arith.constant 1 : index
    %c0_580 = arith.constant 0 : index
    %c0_581 = arith.constant 0 : index
    %637 = vector.load %arg11[%c1_579, %c0_580, %c0_581] : memref<3x240x224xbf16, #tpu.memory_space<vmem>>, vector<1x240x224xbf16>
    %638 = vector.shape_cast %637 : vector<1x240x224xbf16> to vector<240x224xbf16>
    %cst_582 = arith.constant dense<0.000000e+00> : vector<2x224xf32>
    %639 = tpu.matmul %636, %638, %cst_582 {dimension_numbers = #tpu.dot_dimension_numbers<[1], [0], [0], [1], [0, 0, 1, 1], [], []>} : vector<2x240xbf16>, vector<240x224xbf16>, vector<2x224xf32> -> vector<2x224xf32>
    %640 = arith.addf %633, %639 : vector<2x224xf32>
    %c14_583 = arith.constant 14 : index
    %c0_584 = arith.constant 0 : index
    %c0_585 = arith.constant 0 : index
    %641 = vector.load %arg20[%c14_583, %c0_584, %c0_585] : memref<15x2x240xf32, #tpu.memory_space<vmem>>, vector<1x2x240xf32>
    %642 = vector.shape_cast %641 : vector<1x2x240xf32> to vector<2x240xf32>
    %643 = arith.truncf %642 : vector<2x240xf32> to vector<2x240xbf16>
    %c2_586 = arith.constant 2 : index
    %c0_587 = arith.constant 0 : index
    %c0_588 = arith.constant 0 : index
    %644 = vector.load %arg11[%c2_586, %c0_587, %c0_588] : memref<3x240x224xbf16, #tpu.memory_space<vmem>>, vector<1x240x224xbf16>
    %645 = vector.shape_cast %644 : vector<1x240x224xbf16> to vector<240x224xbf16>
    %cst_589 = arith.constant dense<0.000000e+00> : vector<2x224xf32>
    %646 = tpu.matmul %643, %645, %cst_589 {dimension_numbers = #tpu.dot_dimension_numbers<[1], [0], [0], [1], [0, 0, 1, 1], [], []>} : vector<2x240xbf16>, vector<240x224xbf16>, vector<2x224xf32> -> vector<2x224xf32>
    %647 = arith.addf %640, %646 : vector<2x224xf32>
    %cst_590 = arith.constant 0.000000e+00 : f32
    %648 = vector.broadcast %cst_590 : f32 to vector<2x224xf32>
    %649 = arith.maximumf %647, %648 : vector<2x224xf32>
    %650 = arith.truncf %649 : vector<2x224xf32> to vector<2x224xbf16>
    %c6_591 = arith.constant 6 : index
    %c0_592 = arith.constant 0 : index
    %c0_593 = arith.constant 0 : index
    %651 = vector.load %arg13[%c6_591, %c0_592, %c0_593] : memref<7x224x64xbf16, #tpu.memory_space<vmem>>, vector<1x224x64xbf16>
    %652 = vector.shape_cast %651 : vector<1x224x64xbf16> to vector<224x64xbf16>
    %cst_594 = arith.constant dense<0.000000e+00> : vector<2x64xf32>
    %653 = tpu.matmul %650, %652, %cst_594 {dimension_numbers = #tpu.dot_dimension_numbers<[1], [0], [0], [1], [0, 0, 1, 1], [], []>} : vector<2x224xbf16>, vector<224x64xbf16>, vector<2x64xf32> -> vector<2x64xf32>
    %654 = arith.addf %624, %653 : vector<2x64xf32>
    %cst_595 = arith.constant 0.000000e+00 : f32
    %655 = vector.broadcast %cst_595 : f32 to vector<2x64xf32>
    %656 = arith.maximumf %654, %655 : vector<2x64xf32>
    %c0_596 = arith.constant 0 : index
    %c0_597 = arith.constant 0 : index
    %657 = vector.load %arg16[%c0_596, %c0_597] : memref<32x2xf32, #tpu.memory_space<vmem>>, vector<32x2xf32>
    %cst_598 = arith.constant dense<0.000000e+00> : vector<2x2xf32>
    %658 = tpu.matmul %18, %657, %cst_598 {dimension_numbers = #tpu.dot_dimension_numbers<[1], [0], [0], [1], [0, 0, 1, 1], [], []>} : vector<2x32xf32>, vector<32x2xf32>, vector<2x2xf32> -> vector<2x2xf32>
    %c0_599 = arith.constant 0 : index
    %c0_600 = arith.constant 0 : index
    %659 = vector.load %arg17[%c0_599, %c0_600] : memref<64x2xf32, #tpu.memory_space<vmem>>, vector<64x2xf32>
    %cst_601 = arith.constant dense<0.000000e+00> : vector<2x2xf32>
    %660 = tpu.matmul %656, %659, %cst_601 {dimension_numbers = #tpu.dot_dimension_numbers<[1], [0], [0], [1], [0, 0, 1, 1], [], []>} : vector<2x64xf32>, vector<64x2xf32>, vector<2x2xf32> -> vector<2x2xf32>
    %661 = arith.addf %658, %660 : vector<2x2xf32>
    %c0_602 = arith.constant 0 : index
    %c0_603 = arith.constant 0 : index
    %662 = vector.load %arg18[%c0_602, %c0_603] : memref<1x2xf32, #tpu.memory_space<vmem>>, vector<1x2xf32>
    %663 = vector.broadcast %662 : vector<1x2xf32> to vector<2x2xf32>
    %664 = arith.addf %661, %663 : vector<2x2xf32>
    %c0_604 = arith.constant 0 : index
    %c0_605 = arith.constant 0 : index
    %665 = vector.load %arg19[%c0_604, %c0_605] : memref<2x2xf32, #tpu.memory_space<vmem>>, vector<2x2xf32>
    tpu.vector_store %arg19[%c0_604, %c0_605], %664 {strides = array<i32>} : memref<2x2xf32, #tpu.memory_space<vmem>>, vector<2x2xf32>,
    return
  }
  func.func @transform_0(%arg0: i32) -> (i32, i32) {
    %c0_i32 = arith.constant 0 : i32
    %c0_i32_0 = arith.constant 0 : i32
    return %arg0, %c0_i32 : i32, i32
  }
  func.func @transform_1(%arg0: i32) -> (i32, i32) {
    %c0_i32 = arith.constant 0 : i32
    %c0_i32_0 = arith.constant 0 : i32
    return %arg0, %c0_i32 : i32, i32
  }
  func.func @transform_2(%arg0: i32) -> (i32, i32, i32) {
    %c0_i32 = arith.constant 0 : i32
    %c0_i32_0 = arith.constant 0 : i32
    %c0_i32_1 = arith.constant 0 : i32
    return %c0_i32, %arg0, %c0_i32_0 : i32, i32, i32
  }
  func.func @transform_3(%arg0: i32) -> (i32, i32) {
    %c0_i32 = arith.constant 0 : i32
    %c0_i32_0 = arith.constant 0 : i32
    %c0_i32_1 = arith.constant 0 : i32
    return %c0_i32, %c0_i32_0 : i32, i32
  }
  func.func @transform_4(%arg0: i32) -> (i32, i32) {
    %c0_i32 = arith.constant 0 : i32
    %c0_i32_0 = arith.constant 0 : i32
    %c0_i32_1 = arith.constant 0 : i32
    return %c0_i32, %c0_i32_0 : i32, i32
  }
  func.func @transform_5(%arg0: i32) -> (i32, i32) {
    %c0_i32 = arith.constant 0 : i32
    %c0_i32_0 = arith.constant 0 : i32
    %c0_i32_1 = arith.constant 0 : i32
    return %c0_i32, %c0_i32_0 : i32, i32
  }
  func.func @transform_6(%arg0: i32) -> (i32, i32) {
    %c0_i32 = arith.constant 0 : i32
    %c0_i32_0 = arith.constant 0 : i32
    %c0_i32_1 = arith.constant 0 : i32
    return %c0_i32, %c0_i32_0 : i32, i32
  }
  func.func @transform_7(%arg0: i32) -> (i32, i32) {
    %c0_i32 = arith.constant 0 : i32
    %c0_i32_0 = arith.constant 0 : i32
    %c0_i32_1 = arith.constant 0 : i32
    return %c0_i32, %c0_i32_0 : i32, i32
  }
  func.func @transform_8(%arg0: i32) -> (i32, i32, i32) {
    %c0_i32 = arith.constant 0 : i32
    %c0_i32_0 = arith.constant 0 : i32
    %c0_i32_1 = arith.constant 0 : i32
    %c0_i32_2 = arith.constant 0 : i32
    return %c0_i32, %c0_i32_0, %c0_i32_1 : i32, i32, i32
  }
  func.func @transform_9(%arg0: i32) -> (i32, i32) {
    %c0_i32 = arith.constant 0 : i32
    %c0_i32_0 = arith.constant 0 : i32
    %c0_i32_1 = arith.constant 0 : i32
    return %c0_i32, %c0_i32_0 : i32, i32
  }
  func.func @transform_10(%arg0: i32) -> (i32, i32, i32) {
    %c0_i32 = arith.constant 0 : i32
    %c0_i32_0 = arith.constant 0 : i32
    %c0_i32_1 = arith.constant 0 : i32
    %c0_i32_2 = arith.constant 0 : i32
    return %c0_i32, %c0_i32_0, %c0_i32_1 : i32, i32, i32
  }
  func.func @transform_11(%arg0: i32) -> (i32, i32) {
    %c0_i32 = arith.constant 0 : i32
    %c0_i32_0 = arith.constant 0 : i32
    %c0_i32_1 = arith.constant 0 : i32
    return %c0_i32, %c0_i32_0 : i32, i32
  }
  func.func @transform_12(%arg0: i32) -> (i32, i32, i32) {
    %c0_i32 = arith.constant 0 : i32
    %c0_i32_0 = arith.constant 0 : i32
    %c0_i32_1 = arith.constant 0 : i32
    %c0_i32_2 = arith.constant 0 : i32
    return %c0_i32, %c0_i32_0, %c0_i32_1 : i32, i32, i32
  }
  func.func @transform_13(%arg0: i32) -> (i32, i32) {
    %c0_i32 = arith.constant 0 : i32
    %c0_i32_0 = arith.constant 0 : i32
    %c0_i32_1 = arith.constant 0 : i32
    return %c0_i32, %c0_i32_0 : i32, i32
  }
  func.func @transform_14(%arg0: i32) -> (i32, i32) {
    %c0_i32 = arith.constant 0 : i32
    %c0_i32_0 = arith.constant 0 : i32
    %c0_i32_1 = arith.constant 0 : i32
    return %c0_i32, %c0_i32_0 : i32, i32
  }
  func.func @transform_15(%arg0: i32) -> (i32, i32) {
    %c0_i32 = arith.constant 0 : i32
    %c0_i32_0 = arith.constant 0 : i32
    %c0_i32_1 = arith.constant 0 : i32
    return %c0_i32, %c0_i32_0 : i32, i32
  }
  func.func @transform_16(%arg0: i32) -> (i32, i32) {
    %c0_i32 = arith.constant 0 : i32
    %c0_i32_0 = arith.constant 0 : i32
    %c0_i32_1 = arith.constant 0 : i32
    return %c0_i32, %c0_i32_0 : i32, i32
  }
  func.func @transform_17(%arg0: i32) -> (i32, i32) {
    %c0_i32 = arith.constant 0 : i32
    %c0_i32_0 = arith.constant 0 : i32
    %c0_i32_1 = arith.constant 0 : i32
    return %c0_i32, %c0_i32_0 : i32, i32
  }
  func.func @transform_18(%arg0: i32) -> (i32, i32) {
    %c0_i32 = arith.constant 0 : i32
    %c0_i32_0 = arith.constant 0 : i32
    return %arg0, %c0_i32 : i32, i32
  }
}

</mosaic_0001>

<llo_original>
// kernel: multi_critic_forward.1
$region0: #{multi_critic_forward.1}
  #allocation0 [shape = 'u32[]', space=smem, size = 0x4, offset = 0x4, fixed_abs, tag = 'smem constant byte address 0x4 - core index']
  #allocation1 [shape = 'u32[144,128]{1,0:T(1,128)}', space=vmem, size = 0x12000, scoped, tag = 'internal scratch']
  #allocation2 [shape = 'f32[15,2,240]{2,1,0:T(2,128)}', space=vmem, size = 0x7800, scoped, tag = 'scratch operand']
  %s0 = inlined_call_operand.vmem [shape: f32[2,16], index: 0, kind: input, shape index: {}]
  %s1 = inlined_call_operand.vmem [shape: f32[2,4], index: 1, kind: input, shape index: {}]
  %s2 = inlined_call_operand.vmem [shape: f32[32,2,96], index: 2, kind: input, shape index: {}]
  %s3 = inlined_call_operand.vmem [shape: f32[16,64], index: 3, kind: input, shape index: {}]
  %s4 = inlined_call_operand.vmem [shape: f32[4,64], index: 4, kind: input, shape index: {}]
  %s5 = inlined_call_operand.vmem [shape: f32[1,64], index: 5, kind: input, shape index: {}]
  %s6 = inlined_call_operand.vmem [shape: f32[64,32], index: 6, kind: input, shape index: {}]
  %s7 = inlined_call_operand.vmem [shape: f32[1,32], index: 7, kind: input, shape index: {}]
  %s8 = inlined_call_operand.vmem [shape: bf16[3,96,240], index: 8, kind: input, shape index: {}]
  %s9 = inlined_call_operand.vmem [shape: f32[1,240], index: 9, kind: input, shape index: {}]
  %s10 = inlined_call_operand.vmem [shape: bf16[3,240,224], index: 10, kind: input, shape index: {}]
  %s11 = inlined_call_operand.vmem [shape: f32[1,224], index: 11, kind: input, shape index: {}]
  %s12 = inlined_call_operand.vmem [shape: bf16[7,224,64], index: 12, kind: input, shape index: {}]
  %s13 = inlined_call_operand.vmem [shape: f32[4,64], index: 13, kind: input, shape index: {}]
  %s14 = inlined_call_operand.vmem [shape: f32[1,64], index: 14, kind: input, shape index: {}]
  %s15 = inlined_call_operand.vmem [shape: f32[32,2], index: 15, kind: input, shape index: {}]
  %s16 = inlined_call_operand.vmem [shape: f32[64,2], index: 16, kind: input, shape index: {}]
  %s17 = inlined_call_operand.vmem [shape: f32[1,2], index: 17, kind: input, shape index: {}]
  %s18 = inlined_call_operand.vmem [shape: f32[2,2], index: 18, kind: output, shape index: {}]
  %s19 = sld [smem:[#allocation0]]
  $region82: #{multi_critic_forward.1} parent=0
    _
  %s21 = ssub.s32 1, %s19
  %s22 = scalar_select 0, %s21, %s19
  // Predicated region
  $region2: #{multi_critic_forward.1} parent=0 // pred_check
    _
  $region3: #{multi_critic_forward.1} parent=0 // pred_check_branch
    %24 = sbr.rel (0) target = $region5
  $region4: #{multi_critic_forward.1} parent=0 // pred_region
    _
  $region5: #{multi_critic_forward.1} parent=0 // pred_fallthru
    _
  // Predicated region
  $region6: #{multi_critic_forward.1} parent=0 // pred_check
    _
  $region7: #{multi_critic_forward.1} parent=0 // pred_check_branch
    %26 = sbr.rel (0) target = $region9
  $region8: #{multi_critic_forward.1} parent=0 // pred_region
    _
  $region9: #{multi_critic_forward.1} parent=0 // pred_fallthru
    _
  // Predicated region
  $region10: #{multi_critic_forward.1} parent=0 // pred_check
    _
  $region11: #{multi_critic_forward.1} parent=0 // pred_check_branch
    %28 = sbr.rel (0) target = $region13
  $region12: #{multi_critic_forward.1} parent=0 // pred_region
    _
  $region13: #{multi_critic_forward.1} parent=0 // pred_fallthru
    _
  // Predicated region
  $region14: #{multi_critic_forward.1} parent=0 // pred_check
    _
  $region15: #{multi_critic_forward.1} parent=0 // pred_check_branch
    %30 = sbr.rel (0) target = $region17
  $region16: #{multi_critic_forward.1} parent=0 // pred_region
    _
  $region17: #{multi_critic_forward.1} parent=0 // pred_fallthru
    _
  // Predicated region
  $region18: #{multi_critic_forward.1} parent=0 // pred_check
    _
  $region19: #{multi_critic_forward.1} parent=0 // pred_check_branch
    %32 = sbr.rel (0) target = $region21
  $region20: #{multi_critic_forward.1} parent=0 // pred_region
    _
  $region21: #{multi_critic_forward.1} parent=0 // pred_fallthru
    _
  // Predicated region
  $region22: #{multi_critic_forward.1} parent=0 // pred_check
    _
  $region23: #{multi_critic_forward.1} parent=0 // pred_check_branch
    %34 = sbr.rel (0) target = $region25
  $region24: #{multi_critic_forward.1} parent=0 // pred_region
    _
  $region25: #{multi_critic_forward.1} parent=0 // pred_fallthru
    _
  // Predicated region
  $region26: #{multi_critic_forward.1} parent=0 // pred_check
    _
  $region27: #{multi_critic_forward.1} parent=0 // pred_check_branch
    %36 = sbr.rel (0) target = $region29
  $region28: #{multi_critic_forward.1} parent=0 // pred_region
    _
  $region29: #{multi_critic_forward.1} parent=0 // pred_fallthru
    _
  // Predicated region
  $region30: #{multi_critic_forward.1} parent=0 // pred_check
    _
  $region31: #{multi_critic_forward.1} parent=0 // pred_check_branch
    %38 = sbr.rel (0) target = $region33
  $region32: #{multi_critic_forward.1} parent=0 // pred_region
    _
  $region33: #{multi_critic_forward.1} parent=0 // pred_fallthru
    _
  // Predicated region
  $region34: #{multi_critic_forward.1} parent=0 // pred_check
    _
  $region35: #{multi_critic_forward.1} parent=0 // pred_check_branch
    %40 = sbr.rel (0) target = $region37
  $region36: #{multi_critic_forward.1} parent=0 // pred_region
    _
  $region37: #{multi_critic_forward.1} parent=0 // pred_fallthru
    _
  // Predicated region
  $region38: #{multi_critic_forward.1} parent=0 // pred_check
    _
  $region39: #{multi_critic_forward.1} parent=0 // pred_check_branch
    %42 = sbr.rel (0) target = $region41
  $region40: #{multi_critic_forward.1} parent=0 // pred_region
    _
  $region41: #{multi_critic_forward.1} parent=0 // pred_fallthru
    _
  // Predicated region
  $region42: #{multi_critic_forward.1} parent=0 // pred_check
    _
  $region43: #{multi_critic_forward.1} parent=0 // pred_check_branch
    %44 = sbr.rel (0) target = $region45
  $region44: #{multi_critic_forward.1} parent=0 // pred_region
    _
  $region45: #{multi_critic_forward.1} parent=0 // pred_fallthru
    _
  // Predicated region
  $region46: #{multi_critic_forward.1} parent=0 // pred_check
    _
  $region47: #{multi_critic_forward.1} parent=0 // pred_check_branch
    %46 = sbr.rel (0) target = $region49
  $region48: #{multi_critic_forward.1} parent=0 // pred_region
    _
  $region49: #{multi_critic_forward.1} parent=0 // pred_fallthru
    _
  // Predicated region
  $region50: #{multi_critic_forward.1} parent=0 // pred_check
    _
  $region51: #{multi_critic_forward.1} parent=0 // pred_check_branch
    %48 = sbr.rel (0) target = $region53
  $region52: #{multi_critic_forward.1} parent=0 // pred_region
    _
  $region53: #{multi_critic_forward.1} parent=0 // pred_fallthru
    _
  // Predicated region
  $region54: #{multi_critic_forward.1} parent=0 // pred_check
    _
  $region55: #{multi_critic_forward.1} parent=0 // pred_check_branch
    %50 = sbr.rel (0) target = $region57
  $region56: #{multi_critic_forward.1} parent=0 // pred_region
    _
  $region57: #{multi_critic_forward.1} parent=0 // pred_fallthru
    _
  // Predicated region
  $region58: #{multi_critic_forward.1} parent=0 // pred_check
    _
  $region59: #{multi_critic_forward.1} parent=0 // pred_check_branch
    %52 = sbr.rel (0) target = $region61
  $region60: #{multi_critic_forward.1} parent=0 // pred_region
    _
  $region61: #{multi_critic_forward.1} parent=0 // pred_fallthru
    _
  // Predicated region
  $region62: #{multi_critic_forward.1} parent=0 // pred_check
    _
  $region63: #{multi_critic_forward.1} parent=0 // pred_check_branch
    %54 = sbr.rel (0) target = $region65
  $region64: #{multi_critic_forward.1} parent=0 // pred_region
    _
  $region65: #{multi_critic_forward.1} parent=0 // pred_fallthru
    _
  // Predicated region
  $region66: #{multi_critic_forward.1} parent=0 // pred_check
    _
  $region67: #{multi_critic_forward.1} parent=0 // pred_check_branch
    %56 = sbr.rel (0) target = $region69
  $region68: #{multi_critic_forward.1} parent=0 // pred_region
    _
  $region69: #{multi_critic_forward.1} parent=0 // pred_fallthru
    _
  // Predicated region
  $region70: #{multi_critic_forward.1} parent=0 // pred_check
    _
  $region71: #{multi_critic_forward.1} parent=0 // pred_check_branch
    %58 = sbr.rel (0) target = $region73
  $region72: #{multi_critic_forward.1} parent=0 // pred_region
    _
  $region73: #{multi_critic_forward.1} parent=0 // pred_fallthru
    _
  %v60 = vld [vmem:[%s0] sm:$0x3]
  %v61 = vld [vmem:[%s3] sm:$0xff]
  %v62 = vld [vmem:[%s3 + $0x8] sm:$0xff]
  %v63 = vld [vmem:[%s1] sm:$0x3]
  %v64 = vld [vmem:[%s4] sm:$0xf]
  %vm65 = vcmask 31744
  %v67 = vsel %vm65, %v63, 0
  %vm69 = vcmask 1043456
  %v71 = vsel %vm69, %v64, 0
  %73 = vmatprep.subr.mxu0 0.0
  %74 = vmatpush1.msra.mxu0 0.0
  %75 = vmatprep.subr.mxu0 0.0
  %76 = vmatpush1.msra.mxu0 0.0
  %77 = vmatprep.subr.mxu0 0.0
  %78 = vmatpush1.msra.mxu0 0.0
  %79 = vmatprep.subr.mxu0 0.0
  %80 = vmatpush1.msra.mxu0 0.0
  %81 = vmatprep.subr.mxu0 0.0
  %82 = vmatpush1.msra.mxu0 0.0
  %83 = vmatprep.subr.mxu0 0.0
  %84 = vmatpush1.msra.mxu0 0.0
  %85 = vmatprep.subr.mxu0 0.0
  %86 = vmatpush1.msra.mxu0 0.0
  %87 = vmatprep.subr.mxu0 0.0
  %88 = vmatpush1.msra.mxu0 0.0
  %89 = vmatprep.subr.mxu0 0.0
  %90 = vmatpush1.msra.mxu0 0.0
  %91 = vmatprep.subr.mxu0 0.0
  %92 = vmatpush1.msra.mxu0 0.0
  %93 = vmatprep.subr.mxu0 0.0
  %94 = vmatpush1.msra.mxu0 0.0
  %95 = vmatprep.subr.mxu0 0.0
  %96 = vmatpush1.msra.mxu0 0.0
  %97 = vmatprep.subr.mxu0 0.0
  %98 = vmatpush1.msra.mxu0 0.0
  %99 = vmatprep.subr.mxu0 0.0
  %100 = vmatpush1.msra.mxu0 0.0
  %101 = vmatprep.subr.mxu0 0.0
  %102 = vmatpush1.msra.mxu0 0.0
  %103 = vmatprep.subr.mxu0 0.0
  %104 = vmatpush1.msra.mxu0 %v71
  %105 = vmatprep.subr.mxu0 0.0
  %106 = vmatpush2.msra.mxu0 0.0
  %107 = vmatprep.subr.mxu0 0.0
  %108 = vmatpush2.msra.mxu0 0.0
  %109 = vmatprep.subr.mxu0 0.0
  %110 = vmatpush2.msra.mxu0 0.0
  %111 = vmatprep.subr.mxu0 0.0
  %112 = vmatpush2.msra.mxu0 0.0
  %113 = vmatprep.subr.mxu0 0.0
  %114 = vmatpush2.msra.mxu0 0.0
  %115 = vmatprep.subr.mxu0 0.0
  %116 = vmatpush2.msra.mxu0 0.0
  %117 = vmatprep.subr.mxu0 0.0
  %118 = vmatpush2.msra.mxu0 0.0
  %119 = vmatprep.subr.mxu0 0.0
  %120 = vmatpush2.msra.mxu0 0.0
  %121 = vmatprep.subr.mxu0 0.0
  %122 = vmatpush2.msra.mxu0 0.0
  %123 = vmatprep.subr.mxu0 0.0
  %124 = vmatpush2.msra.mxu0 0.0
  %125 = vmatprep.subr.mxu0 0.0
  %126 = vmatpush2.msra.mxu0 0.0
  %127 = vmatprep.subr.mxu0 0.0
  %128 = vmatpush2.msra.mxu0 0.0
  %129 = vmatprep.subr.mxu0 0.0
  %130 = vmatpush2.msra.mxu0 0.0
  %131 = vmatprep.subr.mxu0 0.0
  %132 = vmatpush2.msra.mxu0 0.0
  %133 = vmatprep.subr.mxu0 0.0
  %134 = vmatpush2.msra.mxu0 0.0
  %135 = vmatprep.subr.mxu0 0.0
  %136 = vmatpush2.msra.mxu0 0.0
  %137 = vmatprep.mubr.f32.mxu0 0.0
  %138 = vmatmul.mubr.f32.gmra.mxu0 %v67
  %v139 = vpop.f32.mrf.mxu0
  %v140 = vadd.f32 0.0, %v139
  %v141 = vpop.f32.mrf.mxu0
  %142 = vdwg.mxu0
  %vm143 = vcmask 130048
  %v145 = vsel %vm143, %v60, 0
  %147 = vmatprep.subr.mxu0 0.0
  %148 = vmatpush1.msra.mxu0 0.0
  %149 = vmatprep.subr.mxu0 0.0
  %150 = vmatpush1.msra.mxu0 0.0
  %151 = vmatprep.subr.mxu0 0.0
  %152 = vmatpush1.msra.mxu0 0.0
  %153 = vmatprep.subr.mxu0 0.0
  %154 = vmatpush1.msra.mxu0 0.0
  %155 = vmatprep.subr.mxu0 0.0
  %156 = vmatpush1.msra.mxu0 0.0
  %157 = vmatprep.subr.mxu0 0.0
  %158 = vmatpush1.msra.mxu0 0.0
  %159 = vmatprep.subr.mxu0 0.0
  %160 = vmatpush1.msra.mxu0 0.0
  %161 = vmatprep.subr.mxu0 0.0
  %162 = vmatpush1.msra.mxu0 0.0
  %163 = vmatprep.subr.mxu0 0.0
  %164 = vmatpush1.msra.mxu0 0.0
  %165 = vmatprep.subr.mxu0 0.0
  %166 = vmatpush1.msra.mxu0 0.0
  %167 = vmatprep.subr.mxu0 0.0
  %168 = vmatpush1.msra.mxu0 0.0
  %169 = vmatprep.subr.mxu0 0.0
  %170 = vmatpush1.msra.mxu0 0.0
  %171 = vmatprep.subr.mxu0 0.0
  %172 = vmatpush1.msra.mxu0 0.0
  %173 = vmatprep.subr.mxu0 0.0
  %174 = vmatpush1.msra.mxu0 0.0
  %175 = vmatprep.subr.mxu0 0.0
  %176 = vmatpush1.msra.mxu0 %v62
  %177 = vmatprep.subr.mxu0 0.0
  %178 = vmatpush1.msra.mxu0 %v61
  %179 = vmatprep.subr.mxu0 0.0
  %180 = vmatpush2.msra.mxu0 0.0
  %181 = vmatprep.subr.mxu0 0.0
  %182 = vmatpush2.msra.mxu0 0.0
  %183 = vmatprep.subr.mxu0 0.0
  %184 = vmatpush2.msra.mxu0 0.0
  %185 = vmatprep.subr.mxu0 0.0
  %186 = vmatpush2.msra.mxu0 0.0
  %187 = vmatprep.subr.mxu0 0.0
  %188 = vmatpush2.msra.mxu0 0.0
  %189 = vmatprep.subr.mxu0 0.0
  %190 = vmatpush2.msra.mxu0 0.0
  %191 = vmatprep.subr.mxu0 0.0
  %192 = vmatpush2.msra.mxu0 0.0
  %193 = vmatprep.subr.mxu0 0.0
  %194 = vmatpush2.msra.mxu0 0.0
  %195 = vmatprep.subr.mxu0 0.0
  %196 = vmatpush2.msra.mxu0 0.0
  %197 = vmatprep.subr.mxu0 0.0
  %198 = vmatpush2.msra.mxu0 0.0
  %199 = vmatprep.subr.mxu0 0.0
  %200 = vmatpush2.msra.mxu0 0.0
  %201 = vmatprep.subr.mxu0 0.0
  %202 = vmatpush2.msra.mxu0 0.0
  %203 = vmatprep.subr.mxu0 0.0
  %204 = vmatpush2.msra.mxu0 0.0
  %205 = vmatprep.subr.mxu0 0.0
  %206 = vmatpush2.msra.mxu0 0.0
  %207 = vmatprep.subr.mxu0 0.0
  %208 = vmatpush2.msra.mxu0 0.0
  %209 = vmatprep.subr.mxu0 0.0
  %210 = vmatpush2.msra.mxu0 0.0
  %211 = vmatprep.mubr.f32.mxu0 0.0
  %212 = vmatmul.mubr.f32.gmra.mxu0 %v145
  %v213 = vpop.f32.mrf.mxu0
  %v214 = vadd.f32 %v140, %v213
  %v215 = vpop.f32.mrf.mxu0
  %216 = vdwg.mxu0
  %v217 = vld [vmem:[%s5] sm:$0x1]
  %v219 = vlaneseq
  %v220 = vshrl.u32 %v219, 7
  %v221 = vsub.s32 0, %v220
  %v222 = vrot.slane %v217, %v221
  %v224 = vadd.f32 %v214, %v222
  %v225 = vmax.f32 %v224, 0.0
  %v226 = vld [vmem:[%s6] sm:$0xff]
  %v227 = vld [vmem:[%s6 + $0x8] sm:$0xff]
  %v228 = vld [vmem:[%s6 + $0x10] sm:$0xff]
  %v229 = vld [vmem:[%s6 + $0x18] sm:$0xff]
  %v230 = vld [vmem:[%s6 + $0x20] sm:$0xff]
  %v231 = vld [vmem:[%s6 + $0x28] sm:$0xff]
  %v232 = vld [vmem:[%s6 + $0x30] sm:$0xff]
  %v233 = vld [vmem:[%s6 + $0x38] sm:$0xff]
  %v234 = vld [vmem:[%s7] sm:$0x1]
  %v236 = vlaneseq
  %v237 = vshrl.u32 %v236, 7
  %v238 = vsub.s32 0, %v237
  %v239 = vrot.slane %v234, %v238
  %vm241 = vcmask 523264
  %v243 = vsel %vm241, %v225, 0
  %245 = vmatprep.subr.mxu0 0.0
  %246 = vmatpush1.msra.mxu0 0.0
  %247 = vmatprep.subr.mxu0 0.0
  %248 = vmatpush1.msra.mxu0 0.0
  %249 = vmatprep.subr.mxu0 0.0
  %250 = vmatpush1.msra.mxu0 0.0
  %251 = vmatprep.subr.mxu0 0.0
  %252 = vmatpush1.msra.mxu0 0.0
  %253 = vmatprep.subr.mxu0 0.0
  %254 = vmatpush1.msra.mxu0 0.0
  %255 = vmatprep.subr.mxu0 0.0
  %256 = vmatpush1.msra.mxu0 0.0
  %257 = vmatprep.subr.mxu0 0.0
  %258 = vmatpush1.msra.mxu0 0.0
  %259 = vmatprep.subr.mxu0 0.0
  %260 = vmatpush1.msra.mxu0 0.0
  %261 = vmatprep.subr.mxu0 0.0
  %262 = vmatpush1.msra.mxu0 %v233
  %263 = vmatprep.subr.mxu0 0.0
  %264 = vmatpush1.msra.mxu0 %v232
  %265 = vmatprep.subr.mxu0 0.0
  %266 = vmatpush1.msra.mxu0 %v231
  %267 = vmatprep.subr.mxu0 0.0
  %268 = vmatpush1.msra.mxu0 %v230
  %269 = vmatprep.subr.mxu0 0.0
  %270 = vmatpush1.msra.mxu0 %v229
  %271 = vmatprep.subr.mxu0 0.0
  %272 = vmatpush1.msra.mxu0 %v228
  %273 = vmatprep.subr.mxu0 0.0
  %274 = vmatpush1.msra.mxu0 %v227
  %275 = vmatprep.subr.mxu0 0.0
  %276 = vmatpush1.msra.mxu0 %v226
  %277 = vmatprep.subr.mxu0 0.0
  %278 = vmatpush2.msra.mxu0 0.0
  %279 = vmatprep.subr.mxu0 0.0
  %280 = vmatpush2.msra.mxu0 0.0
  %281 = vmatprep.subr.mxu0 0.0
  %282 = vmatpush2.msra.mxu0 0.0
  %283 = vmatprep.subr.mxu0 0.0
  %284 = vmatpush2.msra.mxu0 0.0
  %285 = vmatprep.subr.mxu0 0.0
  %286 = vmatpush2.msra.mxu0 0.0
  %287 = vmatprep.subr.mxu0 0.0
  %288 = vmatpush2.msra.mxu0 0.0
  %289 = vmatprep.subr.mxu0 0.0
  %290 = vmatpush2.msra.mxu0 0.0
  %291 = vmatprep.subr.mxu0 0.0
  %292 = vmatpush2.msra.mxu0 0.0
  %293 = vmatprep.subr.mxu0 0.0
  %294 = vmatpush2.msra.mxu0 0.0
  %295 = vmatprep.subr.mxu0 0.0
  %296 = vmatpush2.msra.mxu0 0.0
  %297 = vmatprep.subr.mxu0 0.0
  %298 = vmatpush2.msra.mxu0 0.0
  %299 = vmatprep.subr.mxu0 0.0
  %300 = vmatpush2.msra.mxu0 0.0
  %301 = vmatprep.subr.mxu0 0.0
  %302 = vmatpush2.msra.mxu0 0.0
  %303 = vmatprep.subr.mxu0 0.0
  %304 = vmatpush2.msra.mxu0 0.0
  %305 = vmatprep.subr.mxu0 0.0
  %306 = vmatpush2.msra.mxu0 0.0
  %307 = vmatprep.subr.mxu0 0.0
  %308 = vmatpush2.msra.mxu0 0.0
  %309 = vmatprep.mubr.f32.mxu0 0.0
  %310 = vmatmul.mubr.f32.gmra.mxu0 %v243
  %v311 = vpop.f32.mrf.mxu0
  %v312 = vadd.f32 %v239, %v311
  %v313 = vpop.f32.mrf.mxu0
  %314 = vdwg.mxu0
  %v315 = vmax.f32 %v312, 0.0
  %v316 = vld [vmem:[%s9] sm:$0x3]
  %v317 = vld [vmem:[%s2] sm:$0x3]
  %v318 = vpack.c.bf16 %v317, %v317
  %v319 = vld [vmem:[%s8] sm:$0xff]
  %v320 = vld [vmem:[%s8 + $0x8] sm:$0xff]
  %v321 = vld [vmem:[%s8 + $0x10] sm:$0xff]
  %v322 = vld [vmem:[%s8 + $0x18] sm:$0xff]
  %v323 = vld [vmem:[%s8 + $0x20] sm:$0xff]
  %v324 = vld [vmem:[%s8 + $0x28] sm:$0xff]
  %v325 = vld [vmem:[%s8 + $0x30] sm:$0xff]
  %v326 = vld [vmem:[%s8 + $0x38] sm:$0xff]
  %v327 = vld [vmem:[%s8 + $0x40] sm:$0xff]
  %v328 = vld [vmem:[%s8 + $0x48] sm:$0xff]
  %v329 = vld [vmem:[%s8 + $0x50] sm:$0xff]
  %v330 = vld [vmem:[%s8 + $0x58] sm:$0xff]
  %v343 = vunpack.c.l.b16 %v319
  %v344 = vunpack.c.h.b16 %v319
  %v345 = vunpack.c.l.b16 %v320
  %v346 = vunpack.c.h.b16 %v320
  %v347 = vunpack.c.l.b16 %v321
  %v348 = vunpack.c.h.b16 %v321
  %v349 = vunpack.c.l.b16 %v322
  %v350 = vunpack.c.h.b16 %v322
  %v351 = vunpack.c.l.b16 %v323
  %v352 = vunpack.c.h.b16 %v323
  %v353 = vunpack.c.l.b16 %v324
  %v354 = vunpack.c.h.b16 %v324
  %v355 = vunpack.c.l.b16 %v325
  %v356 = vunpack.c.h.b16 %v325
  %v357 = vunpack.c.l.b16 %v326
  %v358 = vunpack.c.h.b16 %v326
  %v359 = vunpack.c.l.b16 %v327
  %v360 = vunpack.c.h.b16 %v327
  %v361 = vunpack.c.l.b16 %v328
  %v362 = vunpack.c.h.b16 %v328
  %v363 = vunpack.c.l.b16 %v329
  %v364 = vunpack.c.h.b16 %v329
  %v365 = vunpack.c.l.b16 %v330
  %v366 = vunpack.c.h.b16 %v330
  %v367 = vpack.c.b16 %v345, %v343
  %v368 = vpack.c.b16 %v346, %v344
  %v369 = vpack.c.b16 %v349, %v347
  %v370 = vpack.c.b16 %v350, %v348
  %v371 = vpack.c.b16 %v353, %v351
  %v372 = vpack.c.b16 %v354, %v352
  %v373 = vpack.c.b16 %v357, %v355
  %v374 = vpack.c.b16 %v358, %v356
  %v375 = vpack.c.b16 %v361, %v359
  %v376 = vpack.c.b16 %v362, %v360
  %v377 = vpack.c.b16 %v365, %v363
  %v378 = vpack.c.b16 %v366, %v364
  %vm391 = vcmask 785408
  %v393 = vsel %vm391, %v318, 0
  %395 = vmatprep.subr.bf16.mxu0 0
  %396 = vmatpush1.bf16.msra.mxu0 0
  %397 = vmatprep.subr.bf16.mxu0 0
  %398 = vmatpush1.bf16.msra.mxu0 0
  %399 = vmatprep.subr.bf16.mxu0 %v378
  %400 = vmatpush1.bf16.msra.mxu0 %v377
  %401 = vmatprep.subr.bf16.mxu0 %v376
  %402 = vmatpush1.bf16.msra.mxu0 %v375
  %403 = vmatprep.subr.bf16.mxu0 %v374
  %404 = vmatpush1.bf16.msra.mxu0 %v373
  %405 = vmatprep.subr.bf16.mxu0 %v372
  %406 = vmatpush1.bf16.msra.mxu0 %v371
  %407 = vmatprep.subr.bf16.mxu0 %v370
  %408 = vmatpush1.bf16.msra.mxu0 %v369
  %409 = vmatprep.subr.bf16.mxu0 %v368
  %410 = vmatpush1.bf16.msra.mxu0 %v367
  %411 = vmatprep.subr.bf16.mxu0 0
  %412 = vmatpush2.bf16.msra.mxu0 0
  %413 = vmatprep.subr.bf16.mxu0 0
  %414 = vmatpush2.bf16.msra.mxu0 0
  %415 = vmatprep.subr.bf16.mxu0 0
  %416 = vmatpush2.bf16.msra.mxu0 0
  %417 = vmatprep.subr.bf16.mxu0 0
  %418 = vmatpush2.bf16.msra.mxu0 0
  %419 = vmatprep.subr.bf16.mxu0 0
  %420 = vmatpush2.bf16.msra.mxu0 0
  %421 = vmatprep.subr.bf16.mxu0 0
  %422 = vmatpush2.bf16.msra.mxu0 0
  %423 = vmatprep.subr.bf16.mxu0 0
  %424 = vmatpush2.bf16.msra.mxu0 0
  %425 = vmatprep.subr.bf16.mxu0 0
  %426 = vmatpush2.bf16.msra.mxu0 0
  %427 = vmatprep.mubr.bf16.mxu0 0
  %428 = vmatmul.mubr.bf16.gmra.mxu0 %v393
  %v429 = vpop.f32.mrf.mxu0
  %v430 = vadd.f32 0.0, %v429
  %v431 = vpop.f32.mrf.mxu0
  %v432 = vadd.f32 0.0, %v431
  %v433 = vpop.f32.mrf.mxu0
  %v434 = vpop.f32.mrf.mxu0
  %435 = vdwg.mxu0
  %v437 = vlaneseq
  %v438 = vshrl.u32 %v437, 7
  %v439 = vsub.s32 0, %v438
  %v440 = vrot.slane %v316, %v439
  %v441 = vlaneseq
  %v442 = vshrl.u32 %v441, 7
  %v443 = vsub.s32 1, %v442
  %v444 = vrot.slane %v316, %v443
  %v447 = vadd.f32 %v440, %v430
  %v448 = vadd.f32 %v444, %v432
  %s449 = scalar_lea.vmem %s2, 2
  %v450 = vld [vmem:[%s449] sm:$0x3]
  %v451 = vpack.c.bf16 %v450, %v450
  %s452 = scalar_lea.vmem %s8, 96
  %v453 = vld [vmem:[%s452] sm:$0xff]
  %v454 = vld [vmem:[%s452 + $0x8] sm:$0xff]
  %v455 = vld [vmem:[%s452 + $0x10] sm:$0xff]
  %v456 = vld [vmem:[%s452 + $0x18] sm:$0xff]
  %v457 = vld [vmem:[%s452 + $0x20] sm:$0xff]
  %v458 = vld [vmem:[%s452 + $0x28] sm:$0xff]
  %v459 = vld [vmem:[%s452 + $0x30] sm:$0xff]
  %v460 = vld [vmem:[%s452 + $0x38] sm:$0xff]
  %v461 = vld [vmem:[%s452 + $0x40] sm:$0xff]
  %v462 = vld [vmem:[%s452 + $0x48] sm:$0xff]
  %v463 = vld [vmem:[%s452 + $0x50] sm:$0xff]
  %v464 = vld [vmem:[%s452 + $0x58] sm:$0xff]
  %v477 = vunpack.c.l.b16 %v453
  %v478 = vunpack.c.h.b16 %v453
  %v479 = vunpack.c.l.b16 %v454
  %v480 = vunpack.c.h.b16 %v454
  %v481 = vunpack.c.l.b16 %v455
  %v482 = vunpack.c.h.b16 %v455
  %v483 = vunpack.c.l.b16 %v456
  %v484 = vunpack.c.h.b16 %v456
  %v485 = vunpack.c.l.b16 %v457
  %v486 = vunpack.c.h.b16 %v457
  %v487 = vunpack.c.l.b16 %v458
  %v488 = vunpack.c.h.b16 %v458
  %v489 = vunpack.c.l.b16 %v459
  %v490 = vunpack.c.h.b16 %v459
  %v491 = vunpack.c.l.b16 %v460
  %v492 = vunpack.c.h.b16 %v460
  %v493 = vunpack.c.l.b16 %v461
  %v494 = vunpack.c.h.b16 %v461
  %v495 = vunpack.c.l.b16 %v462
  %v496 = vunpack.c.h.b16 %v462
  %v497 = vunpack.c.l.b16 %v463
  %v498 = vunpack.c.h.b16 %v463
  %v499 = vunpack.c.l.b16 %v464
  %v500 = vunpack.c.h.b16 %v464
  %v501 = vpack.c.b16 %v479, %v477
  %v502 = vpack.c.b16 %v480, %v478
  %v503 = vpack.c.b16 %v483, %v481
  %v504 = vpack.c.b16 %v484, %v482
  %v505 = vpack.c.b16 %v487, %v485
  %v506 = vpack.c.b16 %v488, %v486
  %v507 = vpack.c.b16 %v491, %v489
  %v508 = vpack.c.b16 %v492, %v490
  %v509 = vpack.c.b16 %v495, %v493
  %v510 = vpack.c.b16 %v496, %v494
  %v511 = vpack.c.b16 %v499, %v497
  %v512 = vpack.c.b16 %v500, %v498
  %v526 = vsel %vm391, %v451, 0
  %528 = vmatprep.subr.bf16.mxu0 0
  %529 = vmatpush1.bf16.msra.mxu0 0
  %530 = vmatprep.subr.bf16.mxu0 0
  %531 = vmatpush1.bf16.msra.mxu0 0
  %532 = vmatprep.subr.bf16.mxu0 %v512
  %533 = vmatpush1.bf16.msra.mxu0 %v511
  %534 = vmatprep.subr.bf16.mxu0 %v510
  %535 = vmatpush1.bf16.msra.mxu0 %v509
  %536 = vmatprep.subr.bf16.mxu0 %v508
  %537 = vmatpush1.bf16.msra.mxu0 %v507
  %538 = vmatprep.subr.bf16.mxu0 %v506
  %539 = vmatpush1.bf16.msra.mxu0 %v505
  %540 = vmatprep.subr.bf16.mxu0 %v504
  %541 = vmatpush1.bf16.msra.mxu0 %v503
  %542 = vmatprep.subr.bf16.mxu0 %v502
  %543 = vmatpush1.bf16.msra.mxu0 %v501
  %544 = vmatprep.subr.bf16.mxu0 0
  %545 = vmatpush2.bf16.msra.mxu0 0
  %546 = vmatprep.subr.bf16.mxu0 0
  %547 = vmatpush2.bf16.msra.mxu0 0
  %548 = vmatprep.subr.bf16.mxu0 0
  %549 = vmatpush2.bf16.msra.mxu0 0
  %550 = vmatprep.subr.bf16.mxu0 0
  %551 = vmatpush2.bf16.msra.mxu0 0
  %552 = vmatprep.subr.bf16.mxu0 0
  %553 = vmatpush2.bf16.msra.mxu0 0
  %554 = vmatprep.subr.bf16.mxu0 0
  %555 = vmatpush2.bf16.msra.mxu0 0
  %556 = vmatprep.subr.bf16.mxu0 0
  %557 = vmatpush2.bf16.msra.mxu0 0
  %558 = vmatprep.subr.bf16.mxu0 0
  %559 = vmatpush2.bf16.msra.mxu0 0
  %560 = vmatprep.mubr.bf16.mxu0 0
  %561 = vmatmul.mubr.bf16.gmra.mxu0 %v526
  %v562 = vpop.f32.mrf.mxu0
  %v563 = vadd.f32 0.0, %v562
  %v564 = vpop.f32.mrf.mxu0
  %v565 = vadd.f32 0.0, %v564
  %v566 = vpop.f32.mrf.mxu0
  %v567 = vpop.f32.mrf.mxu0
  %568 = vdwg.mxu0
  %v569 = vadd.f32 %v447, %v563
  %v570 = vadd.f32 %v448, %v565
  %s571 = scalar_lea.vmem %s2, 4
  %v572 = vld [vmem:[%s571] sm:$0x3]
  %v573 = vpack.c.bf16 %v572, %v572
  %s574 = scalar_lea.vmem %s8, 192
  %v575 = vld [vmem:[%s574] sm:$0xff]
  %v576 = vld [vmem:[%s574 + $0x8] sm:$0xff]
  %v577 = vld [vmem:[%s574 + $0x10] sm:$0xff]
  %v578 = vld [vmem:[%s574 + $0x18] sm:$0xff]
  %v579 = vld [vmem:[%s574 + $0x20] sm:$0xff]
  %v580 = vld [vmem:[%s574 + $0x28] sm:$0xff]
  %v581 = vld [vmem:[%s574 + $0x30] sm:$0xff]
  %v582 = vld [vmem:[%s574 + $0x38] sm:$0xff]
  %v583 = vld [vmem:[%s574 + $0x40] sm:$0xff]
  %v584 = vld [vmem:[%s574 + $0x48] sm:$0xff]
  %v585 = vld [vmem:[%s574 + $0x50] sm:$0xff]
  %v586 = vld [vmem:[%s574 + $0x58] sm:$0xff]
  %v599 = vunpack.c.l.b16 %v575
  %v600 = vunpack.c.h.b16 %v575
  %v601 = vunpack.c.l.b16 %v576
  %v602 = vunpack.c.h.b16 %v576
  %v603 = vunpack.c.l.b16 %v577
  %v604 = vunpack.c.h.b16 %v577
  %v605 = vunpack.c.l.b16 %v578
  %v606 = vunpack.c.h.b16 %v578
  %v607 = vunpack.c.l.b16 %v579
  %v608 = vunpack.c.h.b16 %v579
  %v609 = vunpack.c.l.b16 %v580
  %v610 = vunpack.c.h.b16 %v580
  %v611 = vunpack.c.l.b16 %v581
  %v612 = vunpack.c.h.b16 %v581
  %v613 = vunpack.c.l.b16 %v582
  %v614 = vunpack.c.h.b16 %v582
  %v615 = vunpack.c.l.b16 %v583
  %v616 = vunpack.c.h.b16 %v583
  %v617 = vunpack.c.l.b16 %v584
  %v618 = vunpack.c.h.b16 %v584
  %v619 = vunpack.c.l.b16 %v585
  %v620 = vunpack.c.h.b16 %v585
  %v621 = vunpack.c.l.b16 %v586
  %v622 = vunpack.c.h.b16 %v586
  %v623 = vpack.c.b16 %v601, %v599
  %v624 = vpack.c.b16 %v602, %v600
  %v625 = vpack.c.b16 %v605, %v603
  %v626 = vpack.c.b16 %v606, %v604
  %v627 = vpack.c.b16 %v609, %v607
  %v628 = vpack.c.b16 %v610, %v608
  %v629 = vpack.c.b16 %v613, %v611
  %v630 = vpack.c.b16 %v614, %v612
  %v631 = vpack.c.b16 %v617, %v615
  %v632 = vpack.c.b16 %v618, %v616
  %v633 = vpack.c.b16 %v621, %v619
  %v634 = vpack.c.b16 %v622, %v620
  %v648 = vsel %vm391, %v573, 0
  %650 = vmatprep.subr.bf16.mxu0 0
  %651 = vmatpush1.bf16.msra.mxu0 0
  %652 = vmatprep.subr.bf16.mxu0 0
  %653 = vmatpush1.bf16.msra.mxu0 0
  %654 = vmatprep.subr.bf16.mxu0 %v634
  %655 = vmatpush1.bf16.msra.mxu0 %v633
  %656 = vmatprep.subr.bf16.mxu0 %v632
  %657 = vmatpush1.bf16.msra.mxu0 %v631
  %658 = vmatprep.subr.bf16.mxu0 %v630
  %659 = vmatpush1.bf16.msra.mxu0 %v629
  %660 = vmatprep.subr.bf16.mxu0 %v628
  %661 = vmatpush1.bf16.msra.mxu0 %v627
  %662 = vmatprep.subr.bf16.mxu0 %v626
  %663 = vmatpush1.bf16.msra.mxu0 %v625
  %664 = vmatprep.subr.bf16.mxu0 %v624
  %665 = vmatpush1.bf16.msra.mxu0 %v623
  %666 = vmatprep.subr.bf16.mxu0 0
  %667 = vmatpush2.bf16.msra.mxu0 0
  %668 = vmatprep.subr.bf16.mxu0 0
  %669 = vmatpush2.bf16.msra.mxu0 0
  %670 = vmatprep.subr.bf16.mxu0 0
  %671 = vmatpush2.bf16.msra.mxu0 0
  %672 = vmatprep.subr.bf16.mxu0 0
  %673 = vmatpush2.bf16.msra.mxu0 0
  %674 = vmatprep.subr.bf16.mxu0 0
  %675 = vmatpush2.bf16.msra.mxu0 0
  %676 = vmatprep.subr.bf16.mxu0 0
  %677 = vmatpush2.bf16.msra.mxu0 0
  %678 = vmatprep.subr.bf16.mxu0 0
  %679 = vmatpush2.bf16.msra.mxu0 0
  %680 = vmatprep.subr.bf16.mxu0 0
  %681 = vmatpush2.bf16.msra.mxu0 0
  %682 = vmatprep.mubr.bf16.mxu0 0
  %683 = vmatmul.mubr.bf16.gmra.mxu0 %v648
  %v684 = vpop.f32.mrf.mxu0
  %v685 = vadd.f32 0.0, %v684
  %v686 = vpop.f32.mrf.mxu0
  %v687 = vadd.f32 0.0, %v686
  %v688 = vpop.f32.mrf.mxu0
  %v689 = vpop.f32.mrf.mxu0
  %690 = vdwg.mxu0
  %v691 = vadd.f32 %v569, %v685
  %v692 = vadd.f32 %v570, %v687
  %v693 = vmax.f32 %v691, 0.0
  %v694 = vmax.f32 %v692, 0.0
  %v697 = vcombine.low %v693, %v694
  %v699 = vunpack.c.l.s4 1983009808
  %v700 = vunpack.c.0.s8 %v699
  %v701 = vlaneseq
  %v702 = vshrl.u32 %v701, 7
  %v703 = vsub.s32 %v700, %v702
  %v704 = vrot.slane %v697, %v703
  %vm706 = vcmask 1041408
  %vm707 = vcmask 912386
  %vm708 = vmor %vm707, %vm706
  %709 = vst.msk [vmem:[#allocation2] sm:$0xf] %vm708, %v704
  %v710 = vld [vmem:[%s9] sm:$0x3]
  %v711 = vld [vmem:[%s571] sm:$0x3]
  %v712 = vpack.c.bf16 %v711, %v711
  %v713 = vld [vmem:[%s8] sm:$0xff]
  %v714 = vld [vmem:[%s8 + $0x8] sm:$0xff]
  %v715 = vld [vmem:[%s8 + $0x10] sm:$0xff]
  %v716 = vld [vmem:[%s8 + $0x18] sm:$0xff]
  %v717 = vld [vmem:[%s8 + $0x20] sm:$0xff]
  %v718 = vld [vmem:[%s8 + $0x28] sm:$0xff]
  %v719 = vld [vmem:[%s8 + $0x30] sm:$0xff]
  %v720 = vld [vmem:[%s8 + $0x38] sm:$0xff]
  %v721 = vld [vmem:[%s8 + $0x40] sm:$0xff]
  %v722 = vld [vmem:[%s8 + $0x48] sm:$0xff]
  %v723 = vld [vmem:[%s8 + $0x50] sm:$0xff]
  %v724 = vld [vmem:[%s8 + $0x58] sm:$0xff]
  %v737 = vunpack.c.l.b16 %v713
  %v738 = vunpack.c.h.b16 %v713
  %v739 = vunpack.c.l.b16 %v714
  %v740 = vunpack.c.h.b16 %v714
  %v741 = vunpack.c.l.b16 %v715
  %v742 = vunpack.c.h.b16 %v715
  %v743 = vunpack.c.l.b16 %v716
  %v744 = vunpack.c.h.b16 %v716
  %v745 = vunpack.c.l.b16 %v717
  %v746 = vunpack.c.h.b16 %v717
  %v747 = vunpack.c.l.b16 %v718
  %v748 = vunpack.c.h.b16 %v718
  %v749 = vunpack.c.l.b16 %v719
  %v750 = vunpack.c.h.b16 %v719
  %v751 = vunpack.c.l.b16 %v720
  %v752 = vunpack.c.h.b16 %v720
  %v753 = vunpack.c.l.b16 %v721
  %v754 = vunpack.c.h.b16 %v721
  %v755 = vunpack.c.l.b16 %v722
  %v756 = vunpack.c.h.b16 %v722
  %v757 = vunpack.c.l.b16 %v723
  %v758 = vunpack.c.h.b16 %v723
  %v759 = vunpack.c.l.b16 %v724
  %v760 = vunpack.c.h.b16 %v724
  %v761 = vpack.c.b16 %v739, %v737
  %v762 = vpack.c.b16 %v740, %v738
  %v763 = vpack.c.b16 %v743, %v741
  %v764 = vpack.c.b16 %v744, %v742
  %v765 = vpack.c.b16 %v747, %v745
  %v766 = vpack.c.b16 %v748, %v746
  %v767 = vpack.c.b16 %v751, %v749
  %v768 = vpack.c.b16 %v752, %v750
  %v769 = vpack.c.b16 %v755, %v753
  %v770 = vpack.c.b16 %v756, %v754
  %v771 = vpack.c.b16 %v759, %v757
  %v772 = vpack.c.b16 %v760, %v758
  %v786 = vsel %vm391, %v712, 0
  %788 = vmatprep.subr.bf16.mxu0 0
  %789 = vmatpush1.bf16.msra.mxu0 0
  %790 = vmatprep.subr.bf16.mxu0 0
  %791 = vmatpush1.bf16.msra.mxu0 0
  %792 = vmatprep.subr.bf16.mxu0 %v772
  %793 = vmatpush1.bf16.msra.mxu0 %v771
  %794 = vmatprep.subr.bf16.mxu0 %v770
  %795 = vmatpush1.bf16.msra.mxu0 %v769
  %796 = vmatprep.subr.bf16.mxu0 %v768
  %797 = vmatpush1.bf16.msra.mxu0 %v767
  %798 = vmatprep.subr.bf16.mxu0 %v766
  %799 = vmatpush1.bf16.msra.mxu0 %v765
  %800 = vmatprep.subr.bf16.mxu0 %v764
  %801 = vmatpush1.bf16.msra.mxu0 %v763
  %802 = vmatprep.subr.bf16.mxu0 %v762
  %803 = vmatpush1.bf16.msra.mxu0 %v761
  %804 = vmatprep.subr.bf16.mxu0 0
  %805 = vmatpush2.bf16.msra.mxu0 0
  %806 = vmatprep.subr.bf16.mxu0 0
  %807 = vmatpush2.bf16.msra.mxu0 0
  %808 = vmatprep.subr.bf16.mxu0 0
  %809 = vmatpush2.bf16.msra.mxu0 0
  %810 = vmatprep.subr.bf16.mxu0 0
  %811 = vmatpush2.bf16.msra.mxu0 0
  %812 = vmatprep.subr.bf16.mxu0 0
  %813 = vmatpush2.bf16.msra.mxu0 0
  %814 = vmatprep.subr.bf16.mxu0 0
  %815 = vmatpush2.bf16.msra.mxu0 0
  %816 = vmatprep.subr.bf16.mxu0 0
  %817 = vmatpush2.bf16.msra.mxu0 0
  %818 = vmatprep.subr.bf16.mxu0 0
  %819 = vmatpush2.bf16.msra.mxu0 0
  %820 = vmatprep.mubr.bf16.mxu0 0
  %821 = vmatmul.mubr.bf16.gmra.mxu0 %v786
  %v822 = vpop.f32.mrf.mxu0
  %v823 = vadd.f32 0.0, %v822
  %v824 = vpop.f32.mrf.mxu0
  %v825 = vadd.f32 0.0, %v824
  %v826 = vpop.f32.mrf.mxu0
  %v827 = vpop.f32.mrf.mxu0
  %828 = vdwg.mxu0
  %v830 = vlaneseq
  %v831 = vshrl.u32 %v830, 7
  %v832 = vsub.s32 0, %v831
  %v833 = vrot.slane %v710, %v832
  %v834 = vlaneseq
  %v835 = vshrl.u32 %v834, 7
  %v836 = vsub.s32 1, %v835
  %v837 = vrot.slane %v710, %v836
  %v840 = vadd.f32 %v833, %v823
  %v841 = vadd.f32 %v837, %v825
  %s842 = scalar_lea.vmem %s2, 6
  %v843 = vld [vmem:[%s842] sm:$0x3]
  %v844 = vpack.c.bf16 %v843, %v843
  %v845 = vld [vmem:[%s452] sm:$0xff]
  %v846 = vld [vmem:[%s452 + $0x8] sm:$0xff]
  %v847 = vld [vmem:[%s452 + $0x10] sm:$0xff]
  %v848 = vld [vmem:[%s452 + $0x18] sm:$0xff]
  %v849 = vld [vmem:[%s452 + $0x20] sm:$0xff]
  %v850 = vld [vmem:[%s452 + $0x28] sm:$0xff]
  %v851 = vld [vmem:[%s452 + $0x30] sm:$0xff]
  %v852 = vld [vmem:[%s452 + $0x38] sm:$0xff]
  %v853 = vld [vmem:[%s452 + $0x40] sm:$0xff]
  %v854 = vld [vmem:[%s452 + $0x48] sm:$0xff]
  %v855 = vld [vmem:[%s452 + $0x50] sm:$0xff]
  %v856 = vld [vmem:[%s452 + $0x58] sm:$0xff]
  %v869 = vunpack.c.l.b16 %v845
  %v870 = vunpack.c.h.b16 %v845
  %v871 = vunpack.c.l.b16 %v846
  %v872 = vunpack.c.h.b16 %v846
  %v873 = vunpack.c.l.b16 %v847
  %v874 = vunpack.c.h.b16 %v847
  %v875 = vunpack.c.l.b16 %v848
  %v876 = vunpack.c.h.b16 %v848
  %v877 = vunpack.c.l.b16 %v849
  %v878 = vunpack.c.h.b16 %v849
  %v879 = vunpack.c.l.b16 %v850
  %v880 = vunpack.c.h.b16 %v850
  %v881 = vunpack.c.l.b16 %v851
  %v882 = vunpack.c.h.b16 %v851
  %v883 = vunpack.c.l.b16 %v852
  %v884 = vunpack.c.h.b16 %v852
  %v885 = vunpack.c.l.b16 %v853
  %v886 = vunpack.c.h.b16 %v853
  %v887 = vunpack.c.l.b16 %v854
  %v888 = vunpack.c.h.b16 %v854
  %v889 = vunpack.c.l.b16 %v855
  %v890 = vunpack.c.h.b16 %v855
  %v891 = vunpack.c.l.b16 %v856
  %v892 = vunpack.c.h.b16 %v856
  %v893 = vpack.c.b16 %v871, %v869
  %v894 = vpack.c.b16 %v872, %v870
  %v895 = vpack.c.b16 %v875, %v873
  %v896 = vpack.c.b16 %v876, %v874
  %v897 = vpack.c.b16 %v879, %v877
  %v898 = vpack.c.b16 %v880, %v878
  %v899 = vpack.c.b16 %v883, %v881
  %v900 = vpack.c.b16 %v884, %v882
  %v901 = vpack.c.b16 %v887, %v885
  %v902 = vpack.c.b16 %v888, %v886
  %v903 = vpack.c.b16 %v891, %v889
  %v904 = vpack.c.b16 %v892, %v890
  %v918 = vsel %vm391, %v844, 0
  %920 = vmatprep.subr.bf16.mxu0 0
  %921 = vmatpush1.bf16.msra.mxu0 0
  %922 = vmatprep.subr.bf16.mxu0 0
  %923 = vmatpush1.bf16.msra.mxu0 0
  %924 = vmatprep.subr.bf16.mxu0 %v904
  %925 = vmatpush1.bf16.msra.mxu0 %v903
  %926 = vmatprep.subr.bf16.mxu0 %v902
  %927 = vmatpush1.bf16.msra.mxu0 %v901
  %928 = vmatprep.subr.bf16.mxu0 %v900
  %929 = vmatpush1.bf16.msra.mxu0 %v899
  %930 = vmatprep.subr.bf16.mxu0 %v898
  %931 = vmatpush1.bf16.msra.mxu0 %v897
  %932 = vmatprep.subr.bf16.mxu0 %v896
  %933 = vmatpush1.bf16.msra.mxu0 %v895
  %934 = vmatprep.subr.bf16.mxu0 %v894
  %935 = vmatpush1.bf16.msra.mxu0 %v893
  %936 = vmatprep.subr.bf16.mxu0 0
  %937 = vmatpush2.bf16.msra.mxu0 0
  %938 = vmatprep.subr.bf16.mxu0 0
  %939 = vmatpush2.bf16.msra.mxu0 0
  %940 = vmatprep.subr.bf16.mxu0 0
  %941 = vmatpush2.bf16.msra.mxu0 0
  %942 = vmatprep.subr.bf16.mxu0 0
  %943 = vmatpush2.bf16.msra.mxu0 0
  %944 = vmatprep.subr.bf16.mxu0 0
  %945 = vmatpush2.bf16.msra.mxu0 0
  %946 = vmatprep.subr.bf16.mxu0 0
  %947 = vmatpush2.bf16.msra.mxu0 0
  %948 = vmatprep.subr.bf16.mxu0 0
  %949 = vmatpush2.bf16.msra.mxu0 0
  %950 = vmatprep.subr.bf16.mxu0 0
  %951 = vmatpush2.bf16.msra.mxu0 0
  %952 = vmatprep.mubr.bf16.mxu0 0
  %953 = vmatmul.mubr.bf16.gmra.mxu0 %v918
  %v954 = vpop.f32.mrf.mxu0
  %v955 = vadd.f32 0.0, %v954
  %v956 = vpop.f32.mrf.mxu0
  %v957 = vadd.f32 0.0, %v956
  %v958 = vpop.f32.mrf.mxu0
  %v959 = vpop.f32.mrf.mxu0
  %960 = vdwg.mxu0
  %v961 = vadd.f32 %v840, %v955
  %v962 = vadd.f32 %v841, %v957
  %s963 = scalar_lea.vmem %s2, 8
  %v964 = vld [vmem:[%s963] sm:$0x3]
  %v965 = vpack.c.bf16 %v964, %v964
  %v966 = vld [vmem:[%s574] sm:$0xff]
  %v967 = vld [vmem:[%s574 + $0x8] sm:$0xff]
  %v968 = vld [vmem:[%s574 + $0x10] sm:$0xff]
  %v969 = vld [vmem:[%s574 + $0x18] sm:$0xff]
  %v970 = vld [vmem:[%s574 + $0x20] sm:$0xff]
  %v971 = vld [vmem:[%s574 + $0x28] sm:$0xff]
  %v972 = vld [vmem:[%s574 + $0x30] sm:$0xff]
  %v973 = vld [vmem:[%s574 + $0x38] sm:$0xff]
  %v974 = vld [vmem:[%s574 + $0x40] sm:$0xff]
  %v975 = vld [vmem:[%s574 + $0x48] sm:$0xff]
  %v976 = vld [vmem:[%s574 + $0x50] sm:$0xff]
  %v977 = vld [vmem:[%s574 + $0x58] sm:$0xff]
  %v990 = vunpack.c.l.b16 %v966
  %v991 = vunpack.c.h.b16 %v966
  %v992 = vunpack.c.l.b16 %v967
  %v993 = vunpack.c.h.b16 %v967
  %v994 = vunpack.c.l.b16 %v968
  %v995 = vunpack.c.h.b16 %v968
  %v996 = vunpack.c.l.b16 %v969
  %v997 = vunpack.c.h.b16 %v969
  %v998 = vunpack.c.l.b16 %v970
  %v999 = vunpack.c.h.b16 %v970
  %v1000 = vunpack.c.l.b16 %v971
  %v1001 = vunpack.c.h.b16 %v971
  %v1002 = vunpack.c.l.b16 %v972
  %v1003 = vunpack.c.h.b16 %v972
  %v1004 = vunpack.c.l.b16 %v973
  %v1005 = vunpack.c.h.b16 %v973
  %v1006 = vunpack.c.l.b16 %v974
  %v1007 = vunpack.c.h.b16 %v974
  %v1008 = vunpack.c.l.b16 %v975
  %v1009 = vunpack.c.h.b16 %v975
  %v1010 = vunpack.c.l.b16 %v976
  %v1011 = vunpack.c.h.b16 %v976
  %v1012 = vunpack.c.l.b16 %v977
  %v1013 = vunpack.c.h.b16 %v977
  %v1014 = vpack.c.b16 %v992, %v990
  %v1015 = vpack.c.b16 %v993, %v991
  %v1016 = vpack.c.b16 %v996, %v994
  %v1017 = vpack.c.b16 %v997, %v995
  %v1018 = vpack.c.b16 %v1000, %v998
  %v1019 = vpack.c.b16 %v1001, %v999
  %v1020 = vpack.c.b16 %v1004, %v1002
  %v1021 = vpack.c.b16 %v1005, %v1003
  %v1022 = vpack.c.b16 %v1008, %v1006
  %v1023 = vpack.c.b16 %v1009, %v1007
  %v1024 = vpack.c.b16 %v1012, %v1010
  %v1025 = vpack.c.b16 %v1013, %v1011
  %v1039 = vsel %vm391, %v965, 0
  %1041 = vmatprep.subr.bf16.mxu0 0
  %1042 = vmatpush1.bf16.msra.mxu0 0
  %1043 = vmatprep.subr.bf16.mxu0 0
  %1044 = vmatpush1.bf16.msra.mxu0 0
  %1045 = vmatprep.subr.bf16.mxu0 %v1025
  %1046 = vmatpush1.bf16.msra.mxu0 %v1024
  %1047 = vmatprep.subr.bf16.mxu0 %v1023
  %1048 = vmatpush1.bf16.msra.mxu0 %v1022
  %1049 = vmatprep.subr.bf16.mxu0 %v1021
  %1050 = vmatpush1.bf16.msra.mxu0 %v1020
  %1051 = vmatprep.subr.bf16.mxu0 %v1019
  %1052 = vmatpush1.bf16.msra.mxu0 %v1018
  %1053 = vmatprep.subr.bf16.mxu0 %v1017
  %1054 = vmatpush1.bf16.msra.mxu0 %v1016
  %1055 = vmatprep.subr.bf16.mxu0 %v1015
  %1056 = vmatpush1.bf16.msra.mxu0 %v1014
  %1057 = vmatprep.subr.bf16.mxu0 0
  %1058 = vmatpush2.bf16.msra.mxu0 0
  %1059 = vmatprep.subr.bf16.mxu0 0
  %1060 = vmatpush2.bf16.msra.mxu0 0
  %1061 = vmatprep.subr.bf16.mxu0 0
  %1062 = vmatpush2.bf16.msra.mxu0 0
  %1063 = vmatprep.subr.bf16.mxu0 0
  %1064 = vmatpush2.bf16.msra.mxu0 0
  %1065 = vmatprep.subr.bf16.mxu0 0
  %1066 = vmatpush2.bf16.msra.mxu0 0
  %1067 = vmatprep.subr.bf16.mxu0 0
  %1068 = vmatpush2.bf16.msra.mxu0 0
  %1069 = vmatprep.subr.bf16.mxu0 0
  %1070 = vmatpush2.bf16.msra.mxu0 0
  %1071 = vmatprep.subr.bf16.mxu0 0
  %1072 = vmatpush2.bf16.msra.mxu0 0
  %1073 = vmatprep.mubr.bf16.mxu0 0
  %1074 = vmatmul.mubr.bf16.gmra.mxu0 %v1039
  %v1075 = vpop.f32.mrf.mxu0
  %v1076 = vadd.f32 0.0, %v1075
  %v1077 = vpop.f32.mrf.mxu0
  %v1078 = vadd.f32 0.0, %v1077
  %v1079 = vpop.f32.mrf.mxu0
  %v1080 = vpop.f32.mrf.mxu0
  %1081 = vdwg.mxu0
  %v1082 = vadd.f32 %v961, %v1076
  %v1083 = vadd.f32 %v962, %v1078
  %v1084 = vmax.f32 %v1082, 0.0
  %v1085 = vmax.f32 %v1083, 0.0
  %v1088 = vcombine.low %v1084, %v1085
  %v1090 = vunpack.c.l.s4 1983009808
  %v1091 = vunpack.c.0.s8 %v1090
  %v1092 = vlaneseq
  %v1093 = vshrl.u32 %v1092, 7
  %v1094 = vsub.s32 %v1091, %v1093
  %v1095 = vrot.slane %v1088, %v1094
  %s1097 = scalar_lea.vmem [#allocation2], 4
  %1098 = vst.msk [vmem:[%s1097] sm:$0xf] %vm708, %v1095
  %v1099 = vld [vmem:[%s9] sm:$0x3]
  %v1100 = vld [vmem:[%s963] sm:$0x3]
  %v1101 = vpack.c.bf16 %v1100, %v1100
  %v1102 = vld [vmem:[%s8] sm:$0xff]
  %v1103 = vld [vmem:[%s8 + $0x8] sm:$0xff]
  %v1104 = vld [vmem:[%s8 + $0x10] sm:$0xff]
  %v1105 = vld [vmem:[%s8 + $0x18] sm:$0xff]
  %v1106 = vld [vmem:[%s8 + $0x20] sm:$0xff]
  %v1107 = vld [vmem:[%s8 + $0x28] sm:$0xff]
  %v1108 = vld [vmem:[%s8 + $0x30] sm:$0xff]
  %v1109 = vld [vmem:[%s8 + $0x38] sm:$0xff]
  %v1110 = vld [vmem:[%s8 + $0x40] sm:$0xff]
  %v1111 = vld [vmem:[%s8 + $0x48] sm:$0xff]
  %v1112 = vld [vmem:[%s8 + $0x50] sm:$0xff]
  %v1113 = vld [vmem:[%s8 + $0x58] sm:$0xff]
  %v1126 = vunpack.c.l.b16 %v1102
  %v1127 = vunpack.c.h.b16 %v1102
  %v1128 = vunpack.c.l.b16 %v1103
  %v1129 = vunpack.c.h.b16 %v1103
  %v1130 = vunpack.c.l.b16 %v1104
  %v1131 = vunpack.c.h.b16 %v1104
  %v1132 = vunpack.c.l.b16 %v1105
  %v1133 = vunpack.c.h.b16 %v1105
  %v1134 = vunpack.c.l.b16 %v1106
  %v1135 = vunpack.c.h.b16 %v1106
  %v1136 = vunpack.c.l.b16 %v1107
  %v1137 = vunpack.c.h.b16 %v1107
  %v1138 = vunpack.c.l.b16 %v1108
  %v1139 = vunpack.c.h.b16 %v1108
  %v1140 = vunpack.c.l.b16 %v1109
  %v1141 = vunpack.c.h.b16 %v1109
  %v1142 = vunpack.c.l.b16 %v1110
  %v1143 = vunpack.c.h.b16 %v1110
  %v1144 = vunpack.c.l.b16 %v1111
  %v1145 = vunpack.c.h.b16 %v1111
  %v1146 = vunpack.c.l.b16 %v1112
  %v1147 = vunpack.c.h.b16 %v1112
  %v1148 = vunpack.c.l.b16 %v1113
  %v1149 = vunpack.c.h.b16 %v1113
  %v1150 = vpack.c.b16 %v1128, %v1126
  %v1151 = vpack.c.b16 %v1129, %v1127
  %v1152 = vpack.c.b16 %v1132, %v1130
  %v1153 = vpack.c.b16 %v1133, %v1131
  %v1154 = vpack.c.b16 %v1136, %v1134
  %v1155 = vpack.c.b16 %v1137, %v1135
  %v1156 = vpack.c.b16 %v1140, %v1138
  %v1157 = vpack.c.b16 %v1141, %v1139
  %v1158 = vpack.c.b16 %v1144, %v1142
  %v1159 = vpack.c.b16 %v1145, %v1143
  %v1160 = vpack.c.b16 %v1148, %v1146
  %v1161 = vpack.c.b16 %v1149, %v1147
  %v1175 = vsel %vm391, %v1101, 0
  %1177 = vmatprep.subr.bf16.mxu0 0
  %1178 = vmatpush1.bf16.msra.mxu0 0
  %1179 = vmatprep.subr.bf16.mxu0 0
  %1180 = vmatpush1.bf16.msra.mxu0 0
  %1181 = vmatprep.subr.bf16.mxu0 %v1161
  %1182 = vmatpush1.bf16.msra.mxu0 %v1160
  %1183 = vmatprep.subr.bf16.mxu0 %v1159
  %1184 = vmatpush1.bf16.msra.mxu0 %v1158
  %1185 = vmatprep.subr.bf16.mxu0 %v1157
  %1186 = vmatpush1.bf16.msra.mxu0 %v1156
  %1187 = vmatprep.subr.bf16.mxu0 %v1155
  %1188 = vmatpush1.bf16.msra.mxu0 %v1154
  %1189 = vmatprep.subr.bf16.mxu0 %v1153
  %1190 = vmatpush1.bf16.msra.mxu0 %v1152
  %1191 = vmatprep.subr.bf16.mxu0 %v1151
  %1192 = vmatpush1.bf16.msra.mxu0 %v1150
  %1193 = vmatprep.subr.bf16.mxu0 0
  %1194 = vmatpush2.bf16.msra.mxu0 0
  %1195 = vmatprep.subr.bf16.mxu0 0
  %1196 = vmatpush2.bf16.msra.mxu0 0
  %1197 = vmatprep.subr.bf16.mxu0 0
  %1198 = vmatpush2.bf16.msra.mxu0 0
  %1199 = vmatprep.subr.bf16.mxu0 0
  %1200 = vmatpush2.bf16.msra.mxu0 0
  %1201 = vmatprep.subr.bf16.mxu0 0
  %1202 = vmatpush2.bf16.msra.mxu0 0
  %1203 = vmatprep.subr.bf16.mxu0 0
  %1204 = vmatpush2.bf16.msra.mxu0 0
  %1205 = vmatprep.subr.bf16.mxu0 0
  %1206 = vmatpush2.bf16.msra.mxu0 0
  %1207 = vmatprep.subr.bf16.mxu0 0
  %1208 = vmatpush2.bf16.msra.mxu0 0
  %1209 = vmatprep.mubr.bf16.mxu0 0
  %1210 = vmatmul.mubr.bf16.gmra.mxu0 %v1175
  %v1211 = vpop.f32.mrf.mxu0
  %v1212 = vadd.f32 0.0, %v1211
  %v1213 = vpop.f32.mrf.mxu0
  %v1214 = vadd.f32 0.0, %v1213
  %v1215 = vpop.f32.mrf.mxu0
  %v1216 = vpop.f32.mrf.mxu0
  %1217 = vdwg.mxu0
  %v1219 = vlaneseq
  %v1220 = vshrl.u32 %v1219, 7
  %v1221 = vsub.s32 0, %v1220
  %v1222 = vrot.slane %v1099, %v1221
  %v1223 = vlaneseq
  %v1224 = vshrl.u32 %v1223, 7
  %v1225 = vsub.s32 1, %v1224
  %v1226 = vrot.slane %v1099, %v1225
  %v1229 = vadd.f32 %v1222, %v1212
  %v1230 = vadd.f32 %v1226, %v1214
  %s1231 = scalar_lea.vmem %s2, 10
  %v1232 = vld [vmem:[%s1231] sm:$0x3]
  %v1233 = vpack.c.bf16 %v1232, %v1232
  %v1234 = vld [vmem:[%s452] sm:$0xff]
  %v1235 = vld [vmem:[%s452 + $0x8] sm:$0xff]
  %v1236 = vld [vmem:[%s452 + $0x10] sm:$0xff]
  %v1237 = vld [vmem:[%s452 + $0x18] sm:$0xff]
  %v1238 = vld [vmem:[%s452 + $0x20] sm:$0xff]
  %v1239 = vld [vmem:[%s452 + $0x28] sm:$0xff]
  %v1240 = vld [vmem:[%s452 + $0x30] sm:$0xff]
  %v1241 = vld [vmem:[%s452 + $0x38] sm:$0xff]
  %v1242 = vld [vmem:[%s452 + $0x40] sm:$0xff]
  %v1243 = vld [vmem:[%s452 + $0x48] sm:$0xff]
  %v1244 = vld [vmem:[%s452 + $0x50] sm:$0xff]
  %v1245 = vld [vmem:[%s452 + $0x58] sm:$0xff]
  %v1258 = vunpack.c.l.b16 %v1234
  %v1259 = vunpack.c.h.b16 %v1234
  %v1260 = vunpack.c.l.b16 %v1235
  %v1261 = vunpack.c.h.b16 %v1235
  %v1262 = vunpack.c.l.b16 %v1236
  %v1263 = vunpack.c.h.b16 %v1236
  %v1264 = vunpack.c.l.b16 %v1237
  %v1265 = vunpack.c.h.b16 %v1237
  %v1266 = vunpack.c.l.b16 %v1238
  %v1267 = vunpack.c.h.b16 %v1238
  %v1268 = vunpack.c.l.b16 %v1239
  %v1269 = vunpack.c.h.b16 %v1239
  %v1270 = vunpack.c.l.b16 %v1240
  %v1271 = vunpack.c.h.b16 %v1240
  %v1272 = vunpack.c.l.b16 %v1241
  %v1273 = vunpack.c.h.b16 %v1241
  %v1274 = vunpack.c.l.b16 %v1242
  %v1275 = vunpack.c.h.b16 %v1242
  %v1276 = vunpack.c.l.b16 %v1243
  %v1277 = vunpack.c.h.b16 %v1243
  %v1278 = vunpack.c.l.b16 %v1244
  %v1279 = vunpack.c.h.b16 %v1244
  %v1280 = vunpack.c.l.b16 %v1245
  %v1281 = vunpack.c.h.b16 %v1245
  %v1282 = vpack.c.b16 %v1260, %v1258
  %v1283 = vpack.c.b16 %v1261, %v1259
  %v1284 = vpack.c.b16 %v1264, %v1262
  %v1285 = vpack.c.b16 %v1265, %v1263
  %v1286 = vpack.c.b16 %v1268, %v1266
  %v1287 = vpack.c.b16 %v1269, %v1267
  %v1288 = vpack.c.b16 %v1272, %v1270
  %v1289 = vpack.c.b16 %v1273, %v1271
  %v1290 = vpack.c.b16 %v1276, %v1274
  %v1291 = vpack.c.b16 %v1277, %v1275
  %v1292 = vpack.c.b16 %v1280, %v1278
  %v1293 = vpack.c.b16 %v1281, %v1279
  %v1307 = vsel %vm391, %v1233, 0
  %1309 = vmatprep.subr.bf16.mxu0 0
  %1310 = vmatpush1.bf16.msra.mxu0 0
  %1311 = vmatprep.subr.bf16.mxu0 0
  %1312 = vmatpush1.bf16.msra.mxu0 0
  %1313 = vmatprep.subr.bf16.mxu0 %v1293
  %1314 = vmatpush1.bf16.msra.mxu0 %v1292
  %1315 = vmatprep.subr.bf16.mxu0 %v1291
  %1316 = vmatpush1.bf16.msra.mxu0 %v1290
  %1317 = vmatprep.subr.bf16.mxu0 %v1289
  %1318 = vmatpush1.bf16.msra.mxu0 %v1288
  %1319 = vmatprep.subr.bf16.mxu0 %v1287
  %1320 = vmatpush1.bf16.msra.mxu0 %v1286
  %1321 = vmatprep.subr.bf16.mxu0 %v1285
  %1322 = vmatpush1.bf16.msra.mxu0 %v1284
  %1323 = vmatprep.subr.bf16.mxu0 %v1283
  %1324 = vmatpush1.bf16.msra.mxu0 %v1282
  %1325 = vmatprep.subr.bf16.mxu0 0
  %1326 = vmatpush2.bf16.msra.mxu0 0
  %1327 = vmatprep.subr.bf16.mxu0 0
  %1328 = vmatpush2.bf16.msra.mxu0 0
  %1329 = vmatprep.subr.bf16.mxu0 0
  %1330 = vmatpush2.bf16.msra.mxu0 0
  %1331 = vmatprep.subr.bf16.mxu0 0
  %1332 = vmatpush2.bf16.msra.mxu0 0
  %1333 = vmatprep.subr.bf16.mxu0 0
  %1334 = vmatpush2.bf16.msra.mxu0 0
  %1335 = vmatprep.subr.bf16.mxu0 0
  %1336 = vmatpush2.bf16.msra.mxu0 0
  %1337 = vmatprep.subr.bf16.mxu0 0
  %1338 = vmatpush2.bf16.msra.mxu0 0
  %1339 = vmatprep.subr.bf16.mxu0 0
  %1340 = vmatpush2.bf16.msra.mxu0 0
  %1341 = vmatprep.mubr.bf16.mxu0 0
  %1342 = vmatmul.mubr.bf16.gmra.mxu0 %v1307
  %v1343 = vpop.f32.mrf.mxu0
  %v1344 = vadd.f32 0.0, %v1343
  %v1345 = vpop.f32.mrf.mxu0
  %v1346 = vadd.f32 0.0, %v1345
  %v1347 = vpop.f32.mrf.mxu0
  %v1348 = vpop.f32.mrf.mxu0
  %1349 = vdwg.mxu0
  %v1350 = vadd.f32 %v1229, %v1344
  %v1351 = vadd.f32 %v1230, %v1346
  %s1352 = scalar_lea.vmem %s2, 12
  %v1353 = vld [vmem:[%s1352] sm:$0x3]
  %v1354 = vpack.c.bf16 %v1353, %v1353
  %v1355 = vld [vmem:[%s574] sm:$0xff]
  %v1356 = vld [vmem:[%s574 + $0x8] sm:$0xff]
  %v1357 = vld [vmem:[%s574 + $0x10] sm:$0xff]
  %v1358 = vld [vmem:[%s574 + $0x18] sm:$0xff]
  %v1359 = vld [vmem:[%s574 + $0x20] sm:$0xff]
  %v1360 = vld [vmem:[%s574 + $0x28] sm:$0xff]
  %v1361 = vld [vmem:[%s574 + $0x30] sm:$0xff]
  %v1362 = vld [vmem:[%s574 + $0x38] sm:$0xff]
  %v1363 = vld [vmem:[%s574 + $0x40] sm:$0xff]
  %v1364 = vld [vmem:[%s574 + $0x48] sm:$0xff]
  %v1365 = vld [vmem:[%s574 + $0x50] sm:$0xff]
  %v1366 = vld [vmem:[%s574 + $0x58] sm:$0xff]
  %v1379 = vunpack.c.l.b16 %v1355
  %v1380 = vunpack.c.h.b16 %v1355
  %v1381 = vunpack.c.l.b16 %v1356
  %v1382 = vunpack.c.h.b16 %v1356
  %v1383 = vunpack.c.l.b16 %v1357
  %v1384 = vunpack.c.h.b16 %v1357
  %v1385 = vunpack.c.l.b16 %v1358
  %v1386 = vunpack.c.h.b16 %v1358
  %v1387 = vunpack.c.l.b16 %v1359
  %v1388 = vunpack.c.h.b16 %v1359
  %v1389 = vunpack.c.l.b16 %v1360
  %v1390 = vunpack.c.h.b16 %v1360
  %v1391 = vunpack.c.l.b16 %v1361
  %v1392 = vunpack.c.h.b16 %v1361
  %v1393 = vunpack.c.l.b16 %v1362
  %v1394 = vunpack.c.h.b16 %v1362
  %v1395 = vunpack.c.l.b16 %v1363
  %v1396 = vunpack.c.h.b16 %v1363
  %v1397 = vunpack.c.l.b16 %v1364
  %v1398 = vunpack.c.h.b16 %v1364
  %v1399 = vunpack.c.l.b16 %v1365
  %v1400 = vunpack.c.h.b16 %v1365
  %v1401 = vunpack.c.l.b16 %v1366
  %v1402 = vunpack.c.h.b16 %v1366
  %v1403 = vpack.c.b16 %v1381, %v1379
  %v1404 = vpack.c.b16 %v1382, %v1380
  %v1405 = vpack.c.b16 %v1385, %v1383
  %v1406 = vpack.c.b16 %v1386, %v1384
  %v1407 = vpack.c.b16 %v1389, %v1387
  %v1408 = vpack.c.b16 %v1390, %v1388
  %v1409 = vpack.c.b16 %v1393, %v1391
  %v1410 = vpack.c.b16 %v1394, %v1392
  %v1411 = vpack.c.b16 %v1397, %v1395
  %v1412 = vpack.c.b16 %v1398, %v1396
  %v1413 = vpack.c.b16 %v1401, %v1399
  %v1414 = vpack.c.b16 %v1402, %v1400
  %v1428 = vsel %vm391, %v1354, 0
  %1430 = vmatprep.subr.bf16.mxu0 0
  %1431 = vmatpush1.bf16.msra.mxu0 0
  %1432 = vmatprep.subr.bf16.mxu0 0
  %1433 = vmatpush1.bf16.msra.mxu0 0
  %1434 = vmatprep.subr.bf16.mxu0 %v1414
  %1435 = vmatpush1.bf16.msra.mxu0 %v1413
  %1436 = vmatprep.subr.bf16.mxu0 %v1412
  %1437 = vmatpush1.bf16.msra.mxu0 %v1411
  %1438 = vmatprep.subr.bf16.mxu0 %v1410
  %1439 = vmatpush1.bf16.msra.mxu0 %v1409
  %1440 = vmatprep.subr.bf16.mxu0 %v1408
  %1441 = vmatpush1.bf16.msra.mxu0 %v1407
  %1442 = vmatprep.subr.bf16.mxu0 %v1406
  %1443 = vmatpush1.bf16.msra.mxu0 %v1405
  %1444 = vmatprep.subr.bf16.mxu0 %v1404
  %1445 = vmatpush1.bf16.msra.mxu0 %v1403
  %1446 = vmatprep.subr.bf16.mxu0 0
  %1447 = vmatpush2.bf16.msra.mxu0 0
  %1448 = vmatprep.subr.bf16.mxu0 0
  %1449 = vmatpush2.bf16.msra.mxu0 0
  %1450 = vmatprep.subr.bf16.mxu0 0
  %1451 = vmatpush2.bf16.msra.mxu0 0
  %1452 = vmatprep.subr.bf16.mxu0 0
  %1453 = vmatpush2.bf16.msra.mxu0 0
  %1454 = vmatprep.subr.bf16.mxu0 0
  %1455 = vmatpush2.bf16.msra.mxu0 0
  %1456 = vmatprep.subr.bf16.mxu0 0
  %1457 = vmatpush2.bf16.msra.mxu0 0
  %1458 = vmatprep.subr.bf16.mxu0 0
  %1459 = vmatpush2.bf16.msra.mxu0 0
  %1460 = vmatprep.subr.bf16.mxu0 0
  %1461 = vmatpush2.bf16.msra.mxu0 0
  %1462 = vmatprep.mubr.bf16.mxu0 0
  %1463 = vmatmul.mubr.bf16.gmra.mxu0 %v1428
  %v1464 = vpop.f32.mrf.mxu0
  %v1465 = vadd.f32 0.0, %v1464
  %v1466 = vpop.f32.mrf.mxu0
  %v1467 = vadd.f32 0.0, %v1466
  %v1468 = vpop.f32.mrf.mxu0
  %v1469 = vpop.f32.mrf.mxu0
  %1470 = vdwg.mxu0
  %v1471 = vadd.f32 %v1350, %v1465
  %v1472 = vadd.f32 %v1351, %v1467
  %v1473 = vmax.f32 %v1471, 0.0
  %v1474 = vmax.f32 %v1472, 0.0
  %v1477 = vcombine.low %v1473, %v1474
  %v1479 = vunpack.c.l.s4 1983009808
  %v1480 = vunpack.c.0.s8 %v1479
  %v1481 = vlaneseq
  %v1482 = vshrl.u32 %v1481, 7
  %v1483 = vsub.s32 %v1480, %v1482
  %v1484 = vrot.slane %v1477, %v1483
  %s1486 = scalar_lea.vmem [#allocation2], 8
  %1487 = vst.msk [vmem:[%s1486] sm:$0xf] %vm708, %v1484
  %v1488 = vld [vmem:[%s9] sm:$0x3]
  %v1489 = vld [vmem:[%s1352] sm:$0x3]
  %v1490 = vpack.c.bf16 %v1489, %v1489
  %v1491 = vld [vmem:[%s8] sm:$0xff]
  %v1492 = vld [vmem:[%s8 + $0x8] sm:$0xff]
  %v1493 = vld [vmem:[%s8 + $0x10] sm:$0xff]
  %v1494 = vld [vmem:[%s8 + $0x18] sm:$0xff]
  %v1495 = vld [vmem:[%s8 + $0x20] sm:$0xff]
  %v1496 = vld [vmem:[%s8 + $0x28] sm:$0xff]
  %v1497 = vld [vmem:[%s8 + $0x30] sm:$0xff]
  %v1498 = vld [vmem:[%s8 + $0x38] sm:$0xff]
  %v1499 = vld [vmem:[%s8 + $0x40] sm:$0xff]
  %v1500 = vld [vmem:[%s8 + $0x48] sm:$0xff]
  %v1501 = vld [vmem:[%s8 + $0x50] sm:$0xff]
  %v1502 = vld [vmem:[%s8 + $0x58] sm:$0xff]
  %v1515 = vunpack.c.l.b16 %v1491
  %v1516 = vunpack.c.h.b16 %v1491
  %v1517 = vunpack.c.l.b16 %v1492
  %v1518 = vunpack.c.h.b16 %v1492
  %v1519 = vunpack.c.l.b16 %v1493
  %v1520 = vunpack.c.h.b16 %v1493
  %v1521 = vunpack.c.l.b16 %v1494
  %v1522 = vunpack.c.h.b16 %v1494
  %v1523 = vunpack.c.l.b16 %v1495
  %v1524 = vunpack.c.h.b16 %v1495
  %v1525 = vunpack.c.l.b16 %v1496
  %v1526 = vunpack.c.h.b16 %v1496
  %v1527 = vunpack.c.l.b16 %v1497
  %v1528 = vunpack.c.h.b16 %v1497
  %v1529 = vunpack.c.l.b16 %v1498
  %v1530 = vunpack.c.h.b16 %v1498
  %v1531 = vunpack.c.l.b16 %v1499
  %v1532 = vunpack.c.h.b16 %v1499
  %v1533 = vunpack.c.l.b16 %v1500
  %v1534 = vunpack.c.h.b16 %v1500
  %v1535 = vunpack.c.l.b16 %v1501
  %v1536 = vunpack.c.h.b16 %v1501
  %v1537 = vunpack.c.l.b16 %v1502
  %v1538 = vunpack.c.h.b16 %v1502
  %v1539 = vpack.c.b16 %v1517, %v1515
  %v1540 = vpack.c.b16 %v1518, %v1516
  %v1541 = vpack.c.b16 %v1521, %v1519
  %v1542 = vpack.c.b16 %v1522, %v1520
  %v1543 = vpack.c.b16 %v1525, %v1523
  %v1544 = vpack.c.b16 %v1526, %v1524
  %v1545 = vpack.c.b16 %v1529, %v1527
  %v1546 = vpack.c.b16 %v1530, %v1528
  %v1547 = vpack.c.b16 %v1533, %v1531
  %v1548 = vpack.c.b16 %v1534, %v1532
  %v1549 = vpack.c.b16 %v1537, %v1535
  %v1550 = vpack.c.b16 %v1538, %v1536
  %v1564 = vsel %vm391, %v1490, 0
  %1566 = vmatprep.subr.bf16.mxu0 0
  %1567 = vmatpush1.bf16.msra.mxu0 0
  %1568 = vmatprep.subr.bf16.mxu0 0
  %1569 = vmatpush1.bf16.msra.mxu0 0
  %1570 = vmatprep.subr.bf16.mxu0 %v1550
  %1571 = vmatpush1.bf16.msra.mxu0 %v1549
  %1572 = vmatprep.subr.bf16.mxu0 %v1548
  %1573 = vmatpush1.bf16.msra.mxu0 %v1547
  %1574 = vmatprep.subr.bf16.mxu0 %v1546
  %1575 = vmatpush1.bf16.msra.mxu0 %v1545
  %1576 = vmatprep.subr.bf16.mxu0 %v1544
  %1577 = vmatpush1.bf16.msra.mxu0 %v1543
  %1578 = vmatprep.subr.bf16.mxu0 %v1542
  %1579 = vmatpush1.bf16.msra.mxu0 %v1541
  %1580 = vmatprep.subr.bf16.mxu0 %v1540
  %1581 = vmatpush1.bf16.msra.mxu0 %v1539
  %1582 = vmatprep.subr.bf16.mxu0 0
  %1583 = vmatpush2.bf16.msra.mxu0 0
  %1584 = vmatprep.subr.bf16.mxu0 0
  %1585 = vmatpush2.bf16.msra.mxu0 0
  %1586 = vmatprep.subr.bf16.mxu0 0
  %1587 = vmatpush2.bf16.msra.mxu0 0
  %1588 = vmatprep.subr.bf16.mxu0 0
  %1589 = vmatpush2.bf16.msra.mxu0 0
  %1590 = vmatprep.subr.bf16.mxu0 0
  %1591 = vmatpush2.bf16.msra.mxu0 0
  %1592 = vmatprep.subr.bf16.mxu0 0
  %1593 = vmatpush2.bf16.msra.mxu0 0
  %1594 = vmatprep.subr.bf16.mxu0 0
  %1595 = vmatpush2.bf16.msra.mxu0 0
  %1596 = vmatprep.subr.bf16.mxu0 0
  %1597 = vmatpush2.bf16.msra.mxu0 0
  %1598 = vmatprep.mubr.bf16.mxu0 0
  %1599 = vmatmul.mubr.bf16.gmra.mxu0 %v1564
  %v1600 = vpop.f32.mrf.mxu0
  %v1601 = vadd.f32 0.0, %v1600
  %v1602 = vpop.f32.mrf.mxu0
  %v1603 = vadd.f32 0.0, %v1602
  %v1604 = vpop.f32.mrf.mxu0
  %v1605 = vpop.f32.mrf.mxu0
  %1606 = vdwg.mxu0
  %v1608 = vlaneseq
  %v1609 = vshrl.u32 %v1608, 7
  %v1610 = vsub.s32 0, %v1609
  %v1611 = vrot.slane %v1488, %v1610
  %v1612 = vlaneseq
  %v1613 = vshrl.u32 %v1612, 7
  %v1614 = vsub.s32 1, %v1613
  %v1615 = vrot.slane %v1488, %v1614
  %v1618 = vadd.f32 %v1611, %v1601
  %v1619 = vadd.f32 %v1615, %v1603
  %s1620 = scalar_lea.vmem %s2, 14
  %v1621 = vld [vmem:[%s1620] sm:$0x3]
  %v1622 = vpack.c.bf16 %v1621, %v1621
  %v1623 = vld [vmem:[%s452] sm:$0xff]
  %v1624 = vld [vmem:[%s452 + $0x8] sm:$0xff]
  %v1625 = vld [vmem:[%s452 + $0x10] sm:$0xff]
  %v1626 = vld [vmem:[%s452 + $0x18] sm:$0xff]
  %v1627 = vld [vmem:[%s452 + $0x20] sm:$0xff]
  %v1628 = vld [vmem:[%s452 + $0x28] sm:$0xff]
  %v1629 = vld [vmem:[%s452 + $0x30] sm:$0xff]
  %v1630 = vld [vmem:[%s452 + $0x38] sm:$0xff]
  %v1631 = vld [vmem:[%s452 + $0x40] sm:$0xff]
  %v1632 = vld [vmem:[%s452 + $0x48] sm:$0xff]
  %v1633 = vld [vmem:[%s452 + $0x50] sm:$0xff]
  %v1634 = vld [vmem:[%s452 + $0x58] sm:$0xff]
  %v1647 = vunpack.c.l.b16 %v1623
  %v1648 = vunpack.c.h.b16 %v1623
  %v1649 = vunpack.c.l.b16 %v1624
  %v1650 = vunpack.c.h.b16 %v1624
  %v1651 = vunpack.c.l.b16 %v1625
  %v1652 = vunpack.c.h.b16 %v1625
  %v1653 = vunpack.c.l.b16 %v1626
  %v1654 = vunpack.c.h.b16 %v1626
  %v1655 = vunpack.c.l.b16 %v1627
  %v1656 = vunpack.c.h.b16 %v1627
  %v1657 = vunpack.c.l.b16 %v1628
  %v1658 = vunpack.c.h.b16 %v1628
  %v1659 = vunpack.c.l.b16 %v1629
  %v1660 = vunpack.c.h.b16 %v1629
  %v1661 = vunpack.c.l.b16 %v1630
  %v1662 = vunpack.c.h.b16 %v1630
  %v1663 = vunpack.c.l.b16 %v1631
  %v1664 = vunpack.c.h.b16 %v1631
  %v1665 = vunpack.c.l.b16 %v1632
  %v1666 = vunpack.c.h.b16 %v1632
  %v1667 = vunpack.c.l.b16 %v1633
  %v1668 = vunpack.c.h.b16 %v1633
  %v1669 = vunpack.c.l.b16 %v1634
  %v1670 = vunpack.c.h.b16 %v1634
  %v1671 = vpack.c.b16 %v1649, %v1647
  %v1672 = vpack.c.b16 %v1650, %v1648
  %v1673 = vpack.c.b16 %v1653, %v1651
  %v1674 = vpack.c.b16 %v1654, %v1652
  %v1675 = vpack.c.b16 %v1657, %v1655
  %v1676 = vpack.c.b16 %v1658, %v1656
  %v1677 = vpack.c.b16 %v1661, %v1659
  %v1678 = vpack.c.b16 %v1662, %v1660
  %v1679 = vpack.c.b16 %v1665, %v1663
  %v1680 = vpack.c.b16 %v1666, %v1664
  %v1681 = vpack.c.b16 %v1669, %v1667
  %v1682 = vpack.c.b16 %v1670, %v1668
  %v1696 = vsel %vm391, %v1622, 0
  %1698 = vmatprep.subr.bf16.mxu0 0
  %1699 = vmatpush1.bf16.msra.mxu0 0
  %1700 = vmatprep.subr.bf16.mxu0 0
  %1701 = vmatpush1.bf16.msra.mxu0 0
  %1702 = vmatprep.subr.bf16.mxu0 %v1682
  %1703 = vmatpush1.bf16.msra.mxu0 %v1681
  %1704 = vmatprep.subr.bf16.mxu0 %v1680
  %1705 = vmatpush1.bf16.msra.mxu0 %v1679
  %1706 = vmatprep.subr.bf16.mxu0 %v1678
  %1707 = vmatpush1.bf16.msra.mxu0 %v1677
  %1708 = vmatprep.subr.bf16.mxu0 %v1676
  %1709 = vmatpush1.bf16.msra.mxu0 %v1675
  %1710 = vmatprep.subr.bf16.mxu0 %v1674
  %1711 = vmatpush1.bf16.msra.mxu0 %v1673
  %1712 = vmatprep.subr.bf16.mxu0 %v1672
  %1713 = vmatpush1.bf16.msra.mxu0 %v1671
  %1714 = vmatprep.subr.bf16.mxu0 0
  %1715 = vmatpush2.bf16.msra.mxu0 0
  %1716 = vmatprep.subr.bf16.mxu0 0
  %1717 = vmatpush2.bf16.msra.mxu0 0
  %1718 = vmatprep.subr.bf16.mxu0 0
  %1719 = vmatpush2.bf16.msra.mxu0 0
  %1720 = vmatprep.subr.bf16.mxu0 0
  %1721 = vmatpush2.bf16.msra.mxu0 0
  %1722 = vmatprep.subr.bf16.mxu0 0
  %1723 = vmatpush2.bf16.msra.mxu0 0
  %1724 = vmatprep.subr.bf16.mxu0 0
  %1725 = vmatpush2.bf16.msra.mxu0 0
  %1726 = vmatprep.subr.bf16.mxu0 0
  %1727 = vmatpush2.bf16.msra.mxu0 0
  %1728 = vmatprep.subr.bf16.mxu0 0
  %1729 = vmatpush2.bf16.msra.mxu0 0
  %1730 = vmatprep.mubr.bf16.mxu0 0
  %1731 = vmatmul.mubr.bf16.gmra.mxu0 %v1696
  %v1732 = vpop.f32.mrf.mxu0
  %v1733 = vadd.f32 0.0, %v1732
  %v1734 = vpop.f32.mrf.mxu0
  %v1735 = vadd.f32 0.0, %v1734
  %v1736 = vpop.f32.mrf.mxu0
  %v1737 = vpop.f32.mrf.mxu0
  %1738 = vdwg.mxu0
  %v1739 = vadd.f32 %v1618, %v1733
  %v1740 = vadd.f32 %v1619, %v1735
  %s1741 = scalar_lea.vmem %s2, 16
  %v1742 = vld [vmem:[%s1741] sm:$0x3]
  %v1743 = vpack.c.bf16 %v1742, %v1742
  %v1744 = vld [vmem:[%s574] sm:$0xff]
  %v1745 = vld [vmem:[%s574 + $0x8] sm:$0xff]
  %v1746 = vld [vmem:[%s574 + $0x10] sm:$0xff]
  %v1747 = vld [vmem:[%s574 + $0x18] sm:$0xff]
  %v1748 = vld [vmem:[%s574 + $0x20] sm:$0xff]
  %v1749 = vld [vmem:[%s574 + $0x28] sm:$0xff]
  %v1750 = vld [vmem:[%s574 + $0x30] sm:$0xff]
  %v1751 = vld [vmem:[%s574 + $0x38] sm:$0xff]
  %v1752 = vld [vmem:[%s574 + $0x40] sm:$0xff]
  %v1753 = vld [vmem:[%s574 + $0x48] sm:$0xff]
  %v1754 = vld [vmem:[%s574 + $0x50] sm:$0xff]
  %v1755 = vld [vmem:[%s574 + $0x58] sm:$0xff]
  %v1768 = vunpack.c.l.b16 %v1744
  %v1769 = vunpack.c.h.b16 %v1744
  %v1770 = vunpack.c.l.b16 %v1745
  %v1771 = vunpack.c.h.b16 %v1745
  %v1772 = vunpack.c.l.b16 %v1746
  %v1773 = vunpack.c.h.b16 %v1746
  %v1774 = vunpack.c.l.b16 %v1747
  %v1775 = vunpack.c.h.b16 %v1747
  %v1776 = vunpack.c.l.b16 %v1748
  %v1777 = vunpack.c.h.b16 %v1748
  %v1778 = vunpack.c.l.b16 %v1749
  %v1779 = vunpack.c.h.b16 %v1749
  %v1780 = vunpack.c.l.b16 %v1750
  %v1781 = vunpack.c.h.b16 %v1750
  %v1782 = vunpack.c.l.b16 %v1751
  %v1783 = vunpack.c.h.b16 %v1751
  %v1784 = vunpack.c.l.b16 %v1752
  %v1785 = vunpack.c.h.b16 %v1752
  %v1786 = vunpack.c.l.b16 %v1753
  %v1787 = vunpack.c.h.b16 %v1753
  %v1788 = vunpack.c.l.b16 %v1754
  %v1789 = vunpack.c.h.b16 %v1754
  %v1790 = vunpack.c.l.b16 %v1755
  %v1791 = vunpack.c.h.b16 %v1755
  %v1792 = vpack.c.b16 %v1770, %v1768
  %v1793 = vpack.c.b16 %v1771, %v1769
  %v1794 = vpack.c.b16 %v1774, %v1772
  %v1795 = vpack.c.b16 %v1775, %v1773
  %v1796 = vpack.c.b16 %v1778, %v1776
  %v1797 = vpack.c.b16 %v1779, %v1777
  %v1798 = vpack.c.b16 %v1782, %v1780
  %v1799 = vpack.c.b16 %v1783, %v1781
  %v1800 = vpack.c.b16 %v1786, %v1784
  %v1801 = vpack.c.b16 %v1787, %v1785
  %v1802 = vpack.c.b16 %v1790, %v1788
  %v1803 = vpack.c.b16 %v1791, %v1789
  %v1817 = vsel %vm391, %v1743, 0
  %1819 = vmatprep.subr.bf16.mxu0 0
  %1820 = vmatpush1.bf16.msra.mxu0 0
  %1821 = vmatprep.subr.bf16.mxu0 0
  %1822 = vmatpush1.bf16.msra.mxu0 0
  %1823 = vmatprep.subr.bf16.mxu0 %v1803
  %1824 = vmatpush1.bf16.msra.mxu0 %v1802
  %1825 = vmatprep.subr.bf16.mxu0 %v1801
  %1826 = vmatpush1.bf16.msra.mxu0 %v1800
  %1827 = vmatprep.subr.bf16.mxu0 %v1799
  %1828 = vmatpush1.bf16.msra.mxu0 %v1798
  %1829 = vmatprep.subr.bf16.mxu0 %v1797
  %1830 = vmatpush1.bf16.msra.mxu0 %v1796
  %1831 = vmatprep.subr.bf16.mxu0 %v1795
  %1832 = vmatpush1.bf16.msra.mxu0 %v1794
  %1833 = vmatprep.subr.bf16.mxu0 %v1793
  %1834 = vmatpush1.bf16.msra.mxu0 %v1792
  %1835 = vmatprep.subr.bf16.mxu0 0
  %1836 = vmatpush2.bf16.msra.mxu0 0
  %1837 = vmatprep.subr.bf16.mxu0 0
  %1838 = vmatpush2.bf16.msra.mxu0 0
  %1839 = vmatprep.subr.bf16.mxu0 0
  %1840 = vmatpush2.bf16.msra.mxu0 0
  %1841 = vmatprep.subr.bf16.mxu0 0
  %1842 = vmatpush2.bf16.msra.mxu0 0
  %1843 = vmatprep.subr.bf16.mxu0 0
  %1844 = vmatpush2.bf16.msra.mxu0 0
  %1845 = vmatprep.subr.bf16.mxu0 0
  %1846 = vmatpush2.bf16.msra.mxu0 0
  %1847 = vmatprep.subr.bf16.mxu0 0
  %1848 = vmatpush2.bf16.msra.mxu0 0
  %1849 = vmatprep.subr.bf16.mxu0 0
  %1850 = vmatpush2.bf16.msra.mxu0 0
  %1851 = vmatprep.mubr.bf16.mxu0 0
  %1852 = vmatmul.mubr.bf16.gmra.mxu0 %v1817
  %v1853 = vpop.f32.mrf.mxu0
  %v1854 = vadd.f32 0.0, %v1853
  %v1855 = vpop.f32.mrf.mxu0
  %v1856 = vadd.f32 0.0, %v1855
  %v1857 = vpop.f32.mrf.mxu0
  %v1858 = vpop.f32.mrf.mxu0
  %1859 = vdwg.mxu0
  %v1860 = vadd.f32 %v1739, %v1854
  %v1861 = vadd.f32 %v1740, %v1856
  %v1862 = vmax.f32 %v1860, 0.0
  %v1863 = vmax.f32 %v1861, 0.0
  %v1866 = vcombine.low %v1862, %v1863
  %v1868 = vunpack.c.l.s4 1983009808
  %v1869 = vunpack.c.0.s8 %v1868
  %v1870 = vlaneseq
  %v1871 = vshrl.u32 %v1870, 7
  %v1872 = vsub.s32 %v1869, %v1871
  %v1873 = vrot.slane %v1866, %v1872
  %s1875 = scalar_lea.vmem [#allocation2], 12
  %1876 = vst.msk [vmem:[%s1875] sm:$0xf] %vm708, %v1873
  %v1877 = vld [vmem:[%s9] sm:$0x3]
  %v1878 = vld [vmem:[%s1741] sm:$0x3]
  %v1879 = vpack.c.bf16 %v1878, %v1878
  %v1880 = vld [vmem:[%s8] sm:$0xff]
  %v1881 = vld [vmem:[%s8 + $0x8] sm:$0xff]
  %v1882 = vld [vmem:[%s8 + $0x10] sm:$0xff]
  %v1883 = vld [vmem:[%s8 + $0x18] sm:$0xff]
  %v1884 = vld [vmem:[%s8 + $0x20] sm:$0xff]
  %v1885 = vld [vmem:[%s8 + $0x28] sm:$0xff]
  %v1886 = vld [vmem:[%s8 + $0x30] sm:$0xff]
  %v1887 = vld [vmem:[%s8 + $0x38] sm:$0xff]
  %v1888 = vld [vmem:[%s8 + $0x40] sm:$0xff]
  %v1889 = vld [vmem:[%s8 + $0x48] sm:$0xff]
  %v1890 = vld [vmem:[%s8 + $0x50] sm:$0xff]
  %v1891 = vld [vmem:[%s8 + $0x58] sm:$0xff]
  %v1904 = vunpack.c.l.b16 %v1880
  %v1905 = vunpack.c.h.b16 %v1880
  %v1906 = vunpack.c.l.b16 %v1881
  %v1907 = vunpack.c.h.b16 %v1881
  %v1908 = vunpack.c.l.b16 %v1882
  %v1909 = vunpack.c.h.b16 %v1882
  %v1910 = vunpack.c.l.b16 %v1883
  %v1911 = vunpack.c.h.b16 %v1883
  %v1912 = vunpack.c.l.b16 %v1884
  %v1913 = vunpack.c.h.b16 %v1884
  %v1914 = vunpack.c.l.b16 %v1885
  %v1915 = vunpack.c.h.b16 %v1885
  %v1916 = vunpack.c.l.b16 %v1886
  %v1917 = vunpack.c.h.b16 %v1886
  %v1918 = vunpack.c.l.b16 %v1887
  %v1919 = vunpack.c.h.b16 %v1887
  %v1920 = vunpack.c.l.b16 %v1888
  %v1921 = vunpack.c.h.b16 %v1888
  %v1922 = vunpack.c.l.b16 %v1889
  %v1923 = vunpack.c.h.b16 %v1889
  %v1924 = vunpack.c.l.b16 %v1890
  %v1925 = vunpack.c.h.b16 %v1890
  %v1926 = vunpack.c.l.b16 %v1891
  %v1927 = vunpack.c.h.b16 %v1891
  %v1928 = vpack.c.b16 %v1906, %v1904
  %v1929 = vpack.c.b16 %v1907, %v1905
  %v1930 = vpack.c.b16 %v1910, %v1908
  %v1931 = vpack.c.b16 %v1911, %v1909
  %v1932 = vpack.c.b16 %v1914, %v1912
  %v1933 = vpack.c.b16 %v1915, %v1913
  %v1934 = vpack.c.b16 %v1918, %v1916
  %v1935 = vpack.c.b16 %v1919, %v1917
  %v1936 = vpack.c.b16 %v1922, %v1920
  %v1937 = vpack.c.b16 %v1923, %v1921
  %v1938 = vpack.c.b16 %v1926, %v1924
  %v1939 = vpack.c.b16 %v1927, %v1925
  %v1953 = vsel %vm391, %v1879, 0
  %1955 = vmatprep.subr.bf16.mxu0 0
  %1956 = vmatpush1.bf16.msra.mxu0 0
  %1957 = vmatprep.subr.bf16.mxu0 0
  %1958 = vmatpush1.bf16.msra.mxu0 0
  %1959 = vmatprep.subr.bf16.mxu0 %v1939
  %1960 = vmatpush1.bf16.msra.mxu0 %v1938
  %1961 = vmatprep.subr.bf16.mxu0 %v1937
  %1962 = vmatpush1.bf16.msra.mxu0 %v1936
  %1963 = vmatprep.subr.bf16.mxu0 %v1935
  %1964 = vmatpush1.bf16.msra.mxu0 %v1934
  %1965 = vmatprep.subr.bf16.mxu0 %v1933
  %1966 = vmatpush1.bf16.msra.mxu0 %v1932
  %1967 = vmatprep.subr.bf16.mxu0 %v1931
  %1968 = vmatpush1.bf16.msra.mxu0 %v1930
  %1969 = vmatprep.subr.bf16.mxu0 %v1929
  %1970 = vmatpush1.bf16.msra.mxu0 %v1928
  %1971 = vmatprep.subr.bf16.mxu0 0
  %1972 = vmatpush2.bf16.msra.mxu0 0
  %1973 = vmatprep.subr.bf16.mxu0 0
  %1974 = vmatpush2.bf16.msra.mxu0 0
  %1975 = vmatprep.subr.bf16.mxu0 0
  %1976 = vmatpush2.bf16.msra.mxu0 0
  %1977 = vmatprep.subr.bf16.mxu0 0
  %1978 = vmatpush2.bf16.msra.mxu0 0
  %1979 = vmatprep.subr.bf16.mxu0 0
  %1980 = vmatpush2.bf16.msra.mxu0 0
  %1981 = vmatprep.subr.bf16.mxu0 0
  %1982 = vmatpush2.bf16.msra.mxu0 0
  %1983 = vmatprep.subr.bf16.mxu0 0
  %1984 = vmatpush2.bf16.msra.mxu0 0
  %1985 = vmatprep.subr.bf16.mxu0 0
  %1986 = vmatpush2.bf16.msra.mxu0 0
  %1987 = vmatprep.mubr.bf16.mxu0 0
  %1988 = vmatmul.mubr.bf16.gmra.mxu0 %v1953
  %v1989 = vpop.f32.mrf.mxu0
  %v1990 = vadd.f32 0.0, %v1989
  %v1991 = vpop.f32.mrf.mxu0
  %v1992 = vadd.f32 0.0, %v1991
  %v1993 = vpop.f32.mrf.mxu0
  %v1994 = vpop.f32.mrf.mxu0
  %1995 = vdwg.mxu0
  %v1997 = vlaneseq
  %v1998 = vshrl.u32 %v1997, 7
  %v1999 = vsub.s32 0, %v1998
  %v2000 = vrot.slane %v1877, %v1999
  %v2001 = vlaneseq
  %v2002 = vshrl.u32 %v2001, 7
  %v2003 = vsub.s32 1, %v2002
  %v2004 = vrot.slane %v1877, %v2003
  %v2007 = vadd.f32 %v2000, %v1990
  %v2008 = vadd.f32 %v2004, %v1992
  %s2009 = scalar_lea.vmem %s2, 18
  %v2010 = vld [vmem:[%s2009] sm:$0x3]
  %v2011 = vpack.c.bf16 %v2010, %v2010
  %v2012 = vld [vmem:[%s452] sm:$0xff]
  %v2013 = vld [vmem:[%s452 + $0x8] sm:$0xff]
  %v2014 = vld [vmem:[%s452 + $0x10] sm:$0xff]
  %v2015 = vld [vmem:[%s452 + $0x18] sm:$0xff]
  %v2016 = vld [vmem:[%s452 + $0x20] sm:$0xff]
  %v2017 = vld [vmem:[%s452 + $0x28] sm:$0xff]
  %v2018 = vld [vmem:[%s452 + $0x30] sm:$0xff]
  %v2019 = vld [vmem:[%s452 + $0x38] sm:$0xff]
  %v2020 = vld [vmem:[%s452 + $0x40] sm:$0xff]
  %v2021 = vld [vmem:[%s452 + $0x48] sm:$0xff]
  %v2022 = vld [vmem:[%s452 + $0x50] sm:$0xff]
  %v2023 = vld [vmem:[%s452 + $0x58] sm:$0xff]
  %v2036 = vunpack.c.l.b16 %v2012
  %v2037 = vunpack.c.h.b16 %v2012
  %v2038 = vunpack.c.l.b16 %v2013
  %v2039 = vunpack.c.h.b16 %v2013
  %v2040 = vunpack.c.l.b16 %v2014
  %v2041 = vunpack.c.h.b16 %v2014
  %v2042 = vunpack.c.l.b16 %v2015
  %v2043 = vunpack.c.h.b16 %v2015
  %v2044 = vunpack.c.l.b16 %v2016
  %v2045 = vunpack.c.h.b16 %v2016
  %v2046 = vunpack.c.l.b16 %v2017
  %v2047 = vunpack.c.h.b16 %v2017
  %v2048 = vunpack.c.l.b16 %v2018
  %v2049 = vunpack.c.h.b16 %v2018
  %v2050 = vunpack.c.l.b16 %v2019
  %v2051 = vunpack.c.h.b16 %v2019
  %v2052 = vunpack.c.l.b16 %v2020
  %v2053 = vunpack.c.h.b16 %v2020
  %v2054 = vunpack.c.l.b16 %v2021
  %v2055 = vunpack.c.h.b16 %v2021
  %v2056 = vunpack.c.l.b16 %v2022
  %v2057 = vunpack.c.h.b16 %v2022
  %v2058 = vunpack.c.l.b16 %v2023
  %v2059 = vunpack.c.h.b16 %v2023
  %v2060 = vpack.c.b16 %v2038, %v2036
  %v2061 = vpack.c.b16 %v2039, %v2037
  %v2062 = vpack.c.b16 %v2042, %v2040
  %v2063 = vpack.c.b16 %v2043, %v2041
  %v2064 = vpack.c.b16 %v2046, %v2044
  %v2065 = vpack.c.b16 %v2047, %v2045
  %v2066 = vpack.c.b16 %v2050, %v2048
  %v2067 = vpack.c.b16 %v2051, %v2049
  %v2068 = vpack.c.b16 %v2054, %v2052
  %v2069 = vpack.c.b16 %v2055, %v2053
  %v2070 = vpack.c.b16 %v2058, %v2056
  %v2071 = vpack.c.b16 %v2059, %v2057
  %v2085 = vsel %vm391, %v2011, 0
  %2087 = vmatprep.subr.bf16.mxu0 0
  %2088 = vmatpush1.bf16.msra.mxu0 0
  %2089 = vmatprep.subr.bf16.mxu0 0
  %2090 = vmatpush1.bf16.msra.mxu0 0
  %2091 = vmatprep.subr.bf16.mxu0 %v2071
  %2092 = vmatpush1.bf16.msra.mxu0 %v2070
  %2093 = vmatprep.subr.bf16.mxu0 %v2069
  %2094 = vmatpush1.bf16.msra.mxu0 %v2068
  %2095 = vmatprep.subr.bf16.mxu0 %v2067
  %2096 = vmatpush1.bf16.msra.mxu0 %v2066
  %2097 = vmatprep.subr.bf16.mxu0 %v2065
  %2098 = vmatpush1.bf16.msra.mxu0 %v2064
  %2099 = vmatprep.subr.bf16.mxu0 %v2063
  %2100 = vmatpush1.bf16.msra.mxu0 %v2062
  %2101 = vmatprep.subr.bf16.mxu0 %v2061
  %2102 = vmatpush1.bf16.msra.mxu0 %v2060
  %2103 = vmatprep.subr.bf16.mxu0 0
  %2104 = vmatpush2.bf16.msra.mxu0 0
  %2105 = vmatprep.subr.bf16.mxu0 0
  %2106 = vmatpush2.bf16.msra.mxu0 0
  %2107 = vmatprep.subr.bf16.mxu0 0
  %2108 = vmatpush2.bf16.msra.mxu0 0
  %2109 = vmatprep.subr.bf16.mxu0 0
  %2110 = vmatpush2.bf16.msra.mxu0 0
  %2111 = vmatprep.subr.bf16.mxu0 0
  %2112 = vmatpush2.bf16.msra.mxu0 0
  %2113 = vmatprep.subr.bf16.mxu0 0
  %2114 = vmatpush2.bf16.msra.mxu0 0
  %2115 = vmatprep.subr.bf16.mxu0 0
  %2116 = vmatpush2.bf16.msra.mxu0 0
  %2117 = vmatprep.subr.bf16.mxu0 0
  %2118 = vmatpush2.bf16.msra.mxu0 0
  %2119 = vmatprep.mubr.bf16.mxu0 0
  %2120 = vmatmul.mubr.bf16.gmra.mxu0 %v2085
  %v2121 = vpop.f32.mrf.mxu0
  %v2122 = vadd.f32 0.0, %v2121
  %v2123 = vpop.f32.mrf.mxu0
  %v2124 = vadd.f32 0.0, %v2123
  %v2125 = vpop.f32.mrf.mxu0
  %v2126 = vpop.f32.mrf.mxu0
  %2127 = vdwg.mxu0
  %v2128 = vadd.f32 %v2007, %v2122
  %v2129 = vadd.f32 %v2008, %v2124
  %s2130 = scalar_lea.vmem %s2, 20
  %v2131 = vld [vmem:[%s2130] sm:$0x3]
  %v2132 = vpack.c.bf16 %v2131, %v2131
  %v2133 = vld [vmem:[%s574] sm:$0xff]
  %v2134 = vld [vmem:[%s574 + $0x8] sm:$0xff]
  %v2135 = vld [vmem:[%s574 + $0x10] sm:$0xff]
  %v2136 = vld [vmem:[%s574 + $0x18] sm:$0xff]
  %v2137 = vld [vmem:[%s574 + $0x20] sm:$0xff]
  %v2138 = vld [vmem:[%s574 + $0x28] sm:$0xff]
  %v2139 = vld [vmem:[%s574 + $0x30] sm:$0xff]
  %v2140 = vld [vmem:[%s574 + $0x38] sm:$0xff]
  %v2141 = vld [vmem:[%s574 + $0x40] sm:$0xff]
  %v2142 = vld [vmem:[%s574 + $0x48] sm:$0xff]
  %v2143 = vld [vmem:[%s574 + $0x50] sm:$0xff]
  %v2144 = vld [vmem:[%s574 + $0x58] sm:$0xff]
  %v2157 = vunpack.c.l.b16 %v2133
  %v2158 = vunpack.c.h.b16 %v2133
  %v2159 = vunpack.c.l.b16 %v2134
  %v2160 = vunpack.c.h.b16 %v2134
  %v2161 = vunpack.c.l.b16 %v2135
  %v2162 = vunpack.c.h.b16 %v2135
  %v2163 = vunpack.c.l.b16 %v2136
  %v2164 = vunpack.c.h.b16 %v2136
  %v2165 = vunpack.c.l.b16 %v2137
  %v2166 = vunpack.c.h.b16 %v2137
  %v2167 = vunpack.c.l.b16 %v2138
  %v2168 = vunpack.c.h.b16 %v2138
  %v2169 = vunpack.c.l.b16 %v2139
  %v2170 = vunpack.c.h.b16 %v2139
  %v2171 = vunpack.c.l.b16 %v2140
  %v2172 = vunpack.c.h.b16 %v2140
  %v2173 = vunpack.c.l.b16 %v2141
  %v2174 = vunpack.c.h.b16 %v2141
  %v2175 = vunpack.c.l.b16 %v2142
  %v2176 = vunpack.c.h.b16 %v2142
  %v2177 = vunpack.c.l.b16 %v2143
  %v2178 = vunpack.c.h.b16 %v2143
  %v2179 = vunpack.c.l.b16 %v2144
  %v2180 = vunpack.c.h.b16 %v2144
  %v2181 = vpack.c.b16 %v2159, %v2157
  %v2182 = vpack.c.b16 %v2160, %v2158
  %v2183 = vpack.c.b16 %v2163, %v2161
  %v2184 = vpack.c.b16 %v2164, %v2162
  %v2185 = vpack.c.b16 %v2167, %v2165
  %v2186 = vpack.c.b16 %v2168, %v2166
  %v2187 = vpack.c.b16 %v2171, %v2169
  %v2188 = vpack.c.b16 %v2172, %v2170
  %v2189 = vpack.c.b16 %v2175, %v2173
  %v2190 = vpack.c.b16 %v2176, %v2174
  %v2191 = vpack.c.b16 %v2179, %v2177
  %v2192 = vpack.c.b16 %v2180, %v2178
  %v2206 = vsel %vm391, %v2132, 0
  %2208 = vmatprep.subr.bf16.mxu0 0
  %2209 = vmatpush1.bf16.msra.mxu0 0
  %2210 = vmatprep.subr.bf16.mxu0 0
  %2211 = vmatpush1.bf16.msra.mxu0 0
  %2212 = vmatprep.subr.bf16.mxu0 %v2192
  %2213 = vmatpush1.bf16.msra.mxu0 %v2191
  %2214 = vmatprep.subr.bf16.mxu0 %v2190
  %2215 = vmatpush1.bf16.msra.mxu0 %v2189
  %2216 = vmatprep.subr.bf16.mxu0 %v2188
  %2217 = vmatpush1.bf16.msra.mxu0 %v2187
  %2218 = vmatprep.subr.bf16.mxu0 %v2186
  %2219 = vmatpush1.bf16.msra.mxu0 %v2185
  %2220 = vmatprep.subr.bf16.mxu0 %v2184
  %2221 = vmatpush1.bf16.msra.mxu0 %v2183
  %2222 = vmatprep.subr.bf16.mxu0 %v2182
  %2223 = vmatpush1.bf16.msra.mxu0 %v2181
  %2224 = vmatprep.subr.bf16.mxu0 0
  %2225 = vmatpush2.bf16.msra.mxu0 0
  %2226 = vmatprep.subr.bf16.mxu0 0
  %2227 = vmatpush2.bf16.msra.mxu0 0
  %2228 = vmatprep.subr.bf16.mxu0 0
  %2229 = vmatpush2.bf16.msra.mxu0 0
  %2230 = vmatprep.subr.bf16.mxu0 0
  %2231 = vmatpush2.bf16.msra.mxu0 0
  %2232 = vmatprep.subr.bf16.mxu0 0
  %2233 = vmatpush2.bf16.msra.mxu0 0
  %2234 = vmatprep.subr.bf16.mxu0 0
  %2235 = vmatpush2.bf16.msra.mxu0 0
  %2236 = vmatprep.subr.bf16.mxu0 0
  %2237 = vmatpush2.bf16.msra.mxu0 0
  %2238 = vmatprep.subr.bf16.mxu0 0
  %2239 = vmatpush2.bf16.msra.mxu0 0
  %2240 = vmatprep.mubr.bf16.mxu0 0
  %2241 = vmatmul.mubr.bf16.gmra.mxu0 %v2206
  %v2242 = vpop.f32.mrf.mxu0
  %v2243 = vadd.f32 0.0, %v2242
  %v2244 = vpop.f32.mrf.mxu0
  %v2245 = vadd.f32 0.0, %v2244
  %v2246 = vpop.f32.mrf.mxu0
  %v2247 = vpop.f32.mrf.mxu0
  %2248 = vdwg.mxu0
  %v2249 = vadd.f32 %v2128, %v2243
  %v2250 = vadd.f32 %v2129, %v2245
  %v2251 = vmax.f32 %v2249, 0.0
  %v2252 = vmax.f32 %v2250, 0.0
  %v2255 = vcombine.low %v2251, %v2252
  %v2257 = vunpack.c.l.s4 1983009808
  %v2258 = vunpack.c.0.s8 %v2257
  %v2259 = vlaneseq
  %v2260 = vshrl.u32 %v2259, 7
  %v2261 = vsub.s32 %v2258, %v2260
  %v2262 = vrot.slane %v2255, %v2261
  %s2264 = scalar_lea.vmem [#allocation2], 16
  %2265 = vst.msk [vmem:[%s2264] sm:$0xf] %vm708, %v2262
  %v2266 = vld [vmem:[%s9] sm:$0x3]
  %v2267 = vld [vmem:[%s2130] sm:$0x3]
  %v2268 = vpack.c.bf16 %v2267, %v2267
  %v2269 = vld [vmem:[%s8] sm:$0xff]
  %v2270 = vld [vmem:[%s8 + $0x8] sm:$0xff]
  %v2271 = vld [vmem:[%s8 + $0x10] sm:$0xff]
  %v2272 = vld [vmem:[%s8 + $0x18] sm:$0xff]
  %v2273 = vld [vmem:[%s8 + $0x20] sm:$0xff]
  %v2274 = vld [vmem:[%s8 + $0x28] sm:$0xff]
  %v2275 = vld [vmem:[%s8 + $0x30] sm:$0xff]
  %v2276 = vld [vmem:[%s8 + $0x38] sm:$0xff]
  %v2277 = vld [vmem:[%s8 + $0x40] sm:$0xff]
  %v2278 = vld [vmem:[%s8 + $0x48] sm:$0xff]
  %v2279 = vld [vmem:[%s8 + $0x50] sm:$0xff]
  %v2280 = vld [vmem:[%s8 + $0x58] sm:$0xff]
  %v2293 = vunpack.c.l.b16 %v2269
  %v2294 = vunpack.c.h.b16 %v2269
  %v2295 = vunpack.c.l.b16 %v2270
  %v2296 = vunpack.c.h.b16 %v2270
  %v2297 = vunpack.c.l.b16 %v2271
  %v2298 = vunpack.c.h.b16 %v2271
  %v2299 = vunpack.c.l.b16 %v2272
  %v2300 = vunpack.c.h.b16 %v2272
  %v2301 = vunpack.c.l.b16 %v2273
  %v2302 = vunpack.c.h.b16 %v2273
  %v2303 = vunpack.c.l.b16 %v2274
  %v2304 = vunpack.c.h.b16 %v2274
  %v2305 = vunpack.c.l.b16 %v2275
  %v2306 = vunpack.c.h.b16 %v2275
  %v2307 = vunpack.c.l.b16 %v2276
  %v2308 = vunpack.c.h.b16 %v2276
  %v2309 = vunpack.c.l.b16 %v2277
  %v2310 = vunpack.c.h.b16 %v2277
  %v2311 = vunpack.c.l.b16 %v2278
  %v2312 = vunpack.c.h.b16 %v2278
  %v2313 = vunpack.c.l.b16 %v2279
  %v2314 = vunpack.c.h.b16 %v2279
  %v2315 = vunpack.c.l.b16 %v2280
  %v2316 = vunpack.c.h.b16 %v2280
  %v2317 = vpack.c.b16 %v2295, %v2293
  %v2318 = vpack.c.b16 %v2296, %v2294
  %v2319 = vpack.c.b16 %v2299, %v2297
  %v2320 = vpack.c.b16 %v2300, %v2298
  %v2321 = vpack.c.b16 %v2303, %v2301
  %v2322 = vpack.c.b16 %v2304, %v2302
  %v2323 = vpack.c.b16 %v2307, %v2305
  %v2324 = vpack.c.b16 %v2308, %v2306
  %v2325 = vpack.c.b16 %v2311, %v2309
  %v2326 = vpack.c.b16 %v2312, %v2310
  %v2327 = vpack.c.b16 %v2315, %v2313
  %v2328 = vpack.c.b16 %v2316, %v2314
  %v2342 = vsel %vm391, %v2268, 0
  %2344 = vmatprep.subr.bf16.mxu0 0
  %2345 = vmatpush1.bf16.msra.mxu0 0
  %2346 = vmatprep.subr.bf16.mxu0 0
  %2347 = vmatpush1.bf16.msra.mxu0 0
  %2348 = vmatprep.subr.bf16.mxu0 %v2328
  %2349 = vmatpush1.bf16.msra.mxu0 %v2327
  %2350 = vmatprep.subr.bf16.mxu0 %v2326
  %2351 = vmatpush1.bf16.msra.mxu0 %v2325
  %2352 = vmatprep.subr.bf16.mxu0 %v2324
  %2353 = vmatpush1.bf16.msra.mxu0 %v2323
  %2354 = vmatprep.subr.bf16.mxu0 %v2322
  %2355 = vmatpush1.bf16.msra.mxu0 %v2321
  %2356 = vmatprep.subr.bf16.mxu0 %v2320
  %2357 = vmatpush1.bf16.msra.mxu0 %v2319
  %2358 = vmatprep.subr.bf16.mxu0 %v2318
  %2359 = vmatpush1.bf16.msra.mxu0 %v2317
  %2360 = vmatprep.subr.bf16.mxu0 0
  %2361 = vmatpush2.bf16.msra.mxu0 0
  %2362 = vmatprep.subr.bf16.mxu0 0
  %2363 = vmatpush2.bf16.msra.mxu0 0
  %2364 = vmatprep.subr.bf16.mxu0 0
  %2365 = vmatpush2.bf16.msra.mxu0 0
  %2366 = vmatprep.subr.bf16.mxu0 0
  %2367 = vmatpush2.bf16.msra.mxu0 0
  %2368 = vmatprep.subr.bf16.mxu0 0
  %2369 = vmatpush2.bf16.msra.mxu0 0
  %2370 = vmatprep.subr.bf16.mxu0 0
  %2371 = vmatpush2.bf16.msra.mxu0 0
  %2372 = vmatprep.subr.bf16.mxu0 0
  %2373 = vmatpush2.bf16.msra.mxu0 0
  %2374 = vmatprep.subr.bf16.mxu0 0
  %2375 = vmatpush2.bf16.msra.mxu0 0
  %2376 = vmatprep.mubr.bf16.mxu0 0
  %2377 = vmatmul.mubr.bf16.gmra.mxu0 %v2342
  %v2378 = vpop.f32.mrf.mxu0
  %v2379 = vadd.f32 0.0, %v2378
  %v2380 = vpop.f32.mrf.mxu0
  %v2381 = vadd.f32 0.0, %v2380
  %v2382 = vpop.f32.mrf.mxu0
  %v2383 = vpop.f32.mrf.mxu0
  %2384 = vdwg.mxu0
  %v2386 = vlaneseq
  %v2387 = vshrl.u32 %v2386, 7
  %v2388 = vsub.s32 0, %v2387
  %v2389 = vrot.slane %v2266, %v2388
  %v2390 = vlaneseq
  %v2391 = vshrl.u32 %v2390, 7
  %v2392 = vsub.s32 1, %v2391
  %v2393 = vrot.slane %v2266, %v2392
  %v2396 = vadd.f32 %v2389, %v2379
  %v2397 = vadd.f32 %v2393, %v2381
  %s2398 = scalar_lea.vmem %s2, 22
  %v2399 = vld [vmem:[%s2398] sm:$0x3]
  %v2400 = vpack.c.bf16 %v2399, %v2399
  %v2401 = vld [vmem:[%s452] sm:$0xff]
  %v2402 = vld [vmem:[%s452 + $0x8] sm:$0xff]
  %v2403 = vld [vmem:[%s452 + $0x10] sm:$0xff]
  %v2404 = vld [vmem:[%s452 + $0x18] sm:$0xff]
  %v2405 = vld [vmem:[%s452 + $0x20] sm:$0xff]
  %v2406 = vld [vmem:[%s452 + $0x28] sm:$0xff]
  %v2407 = vld [vmem:[%s452 + $0x30] sm:$0xff]
  %v2408 = vld [vmem:[%s452 + $0x38] sm:$0xff]
  %v2409 = vld [vmem:[%s452 + $0x40] sm:$0xff]
  %v2410 = vld [vmem:[%s452 + $0x48] sm:$0xff]
  %v2411 = vld [vmem:[%s452 + $0x50] sm:$0xff]
  %v2412 = vld [vmem:[%s452 + $0x58] sm:$0xff]
  %v2425 = vunpack.c.l.b16 %v2401
  %v2426 = vunpack.c.h.b16 %v2401
  %v2427 = vunpack.c.l.b16 %v2402
  %v2428 = vunpack.c.h.b16 %v2402
  %v2429 = vunpack.c.l.b16 %v2403
  %v2430 = vunpack.c.h.b16 %v2403
  %v2431 = vunpack.c.l.b16 %v2404
  %v2432 = vunpack.c.h.b16 %v2404
  %v2433 = vunpack.c.l.b16 %v2405
  %v2434 = vunpack.c.h.b16 %v2405
  %v2435 = vunpack.c.l.b16 %v2406
  %v2436 = vunpack.c.h.b16 %v2406
  %v2437 = vunpack.c.l.b16 %v2407
  %v2438 = vunpack.c.h.b16 %v2407
  %v2439 = vunpack.c.l.b16 %v2408
  %v2440 = vunpack.c.h.b16 %v2408
  %v2441 = vunpack.c.l.b16 %v2409
  %v2442 = vunpack.c.h.b16 %v2409
  %v2443 = vunpack.c.l.b16 %v2410
  %v2444 = vunpack.c.h.b16 %v2410
  %v2445 = vunpack.c.l.b16 %v2411
  %v2446 = vunpack.c.h.b16 %v2411
  %v2447 = vunpack.c.l.b16 %v2412
  %v2448 = vunpack.c.h.b16 %v2412
  %v2449 = vpack.c.b16 %v2427, %v2425
  %v2450 = vpack.c.b16 %v2428, %v2426
  %v2451 = vpack.c.b16 %v2431, %v2429
  %v2452 = vpack.c.b16 %v2432, %v2430
  %v2453 = vpack.c.b16 %v2435, %v2433
  %v2454 = vpack.c.b16 %v2436, %v2434
  %v2455 = vpack.c.b16 %v2439, %v2437
  %v2456 = vpack.c.b16 %v2440, %v2438
  %v2457 = vpack.c.b16 %v2443, %v2441
  %v2458 = vpack.c.b16 %v2444, %v2442
  %v2459 = vpack.c.b16 %v2447, %v2445
  %v2460 = vpack.c.b16 %v2448, %v2446
  %v2474 = vsel %vm391, %v2400, 0
  %2476 = vmatprep.subr.bf16.mxu0 0
  %2477 = vmatpush1.bf16.msra.mxu0 0
  %2478 = vmatprep.subr.bf16.mxu0 0
  %2479 = vmatpush1.bf16.msra.mxu0 0
  %2480 = vmatprep.subr.bf16.mxu0 %v2460
  %2481 = vmatpush1.bf16.msra.mxu0 %v2459
  %2482 = vmatprep.subr.bf16.mxu0 %v2458
  %2483 = vmatpush1.bf16.msra.mxu0 %v2457
  %2484 = vmatprep.subr.bf16.mxu0 %v2456
  %2485 = vmatpush1.bf16.msra.mxu0 %v2455
  %2486 = vmatprep.subr.bf16.mxu0 %v2454
  %2487 = vmatpush1.bf16.msra.mxu0 %v2453
  %2488 = vmatprep.subr.bf16.mxu0 %v2452
  %2489 = vmatpush1.bf16.msra.mxu0 %v2451
  %2490 = vmatprep.subr.bf16.mxu0 %v2450
  %2491 = vmatpush1.bf16.msra.mxu0 %v2449
  %2492 = vmatprep.subr.bf16.mxu0 0
  %2493 = vmatpush2.bf16.msra.mxu0 0
  %2494 = vmatprep.subr.bf16.mxu0 0
  %2495 = vmatpush2.bf16.msra.mxu0 0
  %2496 = vmatprep.subr.bf16.mxu0 0
  %2497 = vmatpush2.bf16.msra.mxu0 0
  %2498 = vmatprep.subr.bf16.mxu0 0
  %2499 = vmatpush2.bf16.msra.mxu0 0
  %2500 = vmatprep.subr.bf16.mxu0 0
  %2501 = vmatpush2.bf16.msra.mxu0 0
  %2502 = vmatprep.subr.bf16.mxu0 0
  %2503 = vmatpush2.bf16.msra.mxu0 0
  %2504 = vmatprep.subr.bf16.mxu0 0
  %2505 = vmatpush2.bf16.msra.mxu0 0
  %2506 = vmatprep.subr.bf16.mxu0 0
  %2507 = vmatpush2.bf16.msra.mxu0 0
  %2508 = vmatprep.mubr.bf16.mxu0 0
  %2509 = vmatmul.mubr.bf16.gmra.mxu0 %v2474
  %v2510 = vpop.f32.mrf.mxu0
  %v2511 = vadd.f32 0.0, %v2510
  %v2512 = vpop.f32.mrf.mxu0
  %v2513 = vadd.f32 0.0, %v2512
  %v2514 = vpop.f32.mrf.mxu0
  %v2515 = vpop.f32.mrf.mxu0
  %2516 = vdwg.mxu0
  %v2517 = vadd.f32 %v2396, %v2511
  %v2518 = vadd.f32 %v2397, %v2513
  %s2519 = scalar_lea.vmem %s2, 24
  %v2520 = vld [vmem:[%s2519] sm:$0x3]
  %v2521 = vpack.c.bf16 %v2520, %v2520
  %v2522 = vld [vmem:[%s574] sm:$0xff]
  %v2523 = vld [vmem:[%s574 + $0x8] sm:$0xff]
  %v2524 = vld [vmem:[%s574 + $0x10] sm:$0xff]
  %v2525 = vld [vmem:[%s574 + $0x18] sm:$0xff]
  %v2526 = vld [vmem:[%s574 + $0x20] sm:$0xff]
  %v2527 = vld [vmem:[%s574 + $0x28] sm:$0xff]
  %v2528 = vld [vmem:[%s574 + $0x30] sm:$0xff]
  %v2529 = vld [vmem:[%s574 + $0x38] sm:$0xff]
  %v2530 = vld [vmem:[%s574 + $0x40] sm:$0xff]
  %v2531 = vld [vmem:[%s574 + $0x48] sm:$0xff]
  %v2532 = vld [vmem:[%s574 + $0x50] sm:$0xff]
  %v2533 = vld [vmem:[%s574 + $0x58] sm:$0xff]
  %v2546 = vunpack.c.l.b16 %v2522
  %v2547 = vunpack.c.h.b16 %v2522
  %v2548 = vunpack.c.l.b16 %v2523
  %v2549 = vunpack.c.h.b16 %v2523
  %v2550 = vunpack.c.l.b16 %v2524
  %v2551 = vunpack.c.h.b16 %v2524
  %v2552 = vunpack.c.l.b16 %v2525
  %v2553 = vunpack.c.h.b16 %v2525
  %v2554 = vunpack.c.l.b16 %v2526
  %v2555 = vunpack.c.h.b16 %v2526
  %v2556 = vunpack.c.l.b16 %v2527
  %v2557 = vunpack.c.h.b16 %v2527
  %v2558 = vunpack.c.l.b16 %v2528
  %v2559 = vunpack.c.h.b16 %v2528
  %v2560 = vunpack.c.l.b16 %v2529
  %v2561 = vunpack.c.h.b16 %v2529
  %v2562 = vunpack.c.l.b16 %v2530
  %v2563 = vunpack.c.h.b16 %v2530
  %v2564 = vunpack.c.l.b16 %v2531
  %v2565 = vunpack.c.h.b16 %v2531
  %v2566 = vunpack.c.l.b16 %v2532
  %v2567 = vunpack.c.h.b16 %v2532
  %v2568 = vunpack.c.l.b16 %v2533
  %v2569 = vunpack.c.h.b16 %v2533
  %v2570 = vpack.c.b16 %v2548, %v2546
  %v2571 = vpack.c.b16 %v2549, %v2547
  %v2572 = vpack.c.b16 %v2552, %v2550
  %v2573 = vpack.c.b16 %v2553, %v2551
  %v2574 = vpack.c.b16 %v2556, %v2554
  %v2575 = vpack.c.b16 %v2557, %v2555
  %v2576 = vpack.c.b16 %v2560, %v2558
  %v2577 = vpack.c.b16 %v2561, %v2559
  %v2578 = vpack.c.b16 %v2564, %v2562
  %v2579 = vpack.c.b16 %v2565, %v2563
  %v2580 = vpack.c.b16 %v2568, %v2566
  %v2581 = vpack.c.b16 %v2569, %v2567
  %v2595 = vsel %vm391, %v2521, 0
  %2597 = vmatprep.subr.bf16.mxu0 0
  %2598 = vmatpush1.bf16.msra.mxu0 0
  %2599 = vmatprep.subr.bf16.mxu0 0
  %2600 = vmatpush1.bf16.msra.mxu0 0
  %2601 = vmatprep.subr.bf16.mxu0 %v2581
  %2602 = vmatpush1.bf16.msra.mxu0 %v2580
  %2603 = vmatprep.subr.bf16.mxu0 %v2579
  %2604 = vmatpush1.bf16.msra.mxu0 %v2578
  %2605 = vmatprep.subr.bf16.mxu0 %v2577
  %2606 = vmatpush1.bf16.msra.mxu0 %v2576
  %2607 = vmatprep.subr.bf16.mxu0 %v2575
  %2608 = vmatpush1.bf16.msra.mxu0 %v2574
  %2609 = vmatprep.subr.bf16.mxu0 %v2573
  %2610 = vmatpush1.bf16.msra.mxu0 %v2572
  %2611 = vmatprep.subr.bf16.mxu0 %v2571
  %2612 = vmatpush1.bf16.msra.mxu0 %v2570
  %2613 = vmatprep.subr.bf16.mxu0 0
  %2614 = vmatpush2.bf16.msra.mxu0 0
  %2615 = vmatprep.subr.bf16.mxu0 0
  %2616 = vmatpush2.bf16.msra.mxu0 0
  %2617 = vmatprep.subr.bf16.mxu0 0
  %2618 = vmatpush2.bf16.msra.mxu0 0
  %2619 = vmatprep.subr.bf16.mxu0 0
  %2620 = vmatpush2.bf16.msra.mxu0 0
  %2621 = vmatprep.subr.bf16.mxu0 0
  %2622 = vmatpush2.bf16.msra.mxu0 0
  %2623 = vmatprep.subr.bf16.mxu0 0
  %2624 = vmatpush2.bf16.msra.mxu0 0
  %2625 = vmatprep.subr.bf16.mxu0 0
  %2626 = vmatpush2.bf16.msra.mxu0 0
  %2627 = vmatprep.subr.bf16.mxu0 0
  %2628 = vmatpush2.bf16.msra.mxu0 0
  %2629 = vmatprep.mubr.bf16.mxu0 0
  %2630 = vmatmul.mubr.bf16.gmra.mxu0 %v2595
  %v2631 = vpop.f32.mrf.mxu0
  %v2632 = vadd.f32 0.0, %v2631
  %v2633 = vpop.f32.mrf.mxu0
  %v2634 = vadd.f32 0.0, %v2633
  %v2635 = vpop.f32.mrf.mxu0
  %v2636 = vpop.f32.mrf.mxu0
  %2637 = vdwg.mxu0
  %v2638 = vadd.f32 %v2517, %v2632
  %v2639 = vadd.f32 %v2518, %v2634
  %v2640 = vmax.f32 %v2638, 0.0
  %v2641 = vmax.f32 %v2639, 0.0
  %v2644 = vcombine.low %v2640, %v2641
  %v2646 = vunpack.c.l.s4 1983009808
  %v2647 = vunpack.c.0.s8 %v2646
  %v2648 = vlaneseq
  %v2649 = vshrl.u32 %v2648, 7
  %v2650 = vsub.s32 %v2647, %v2649
  %v2651 = vrot.slane %v2644, %v2650
  %s2653 = scalar_lea.vmem [#allocation2], 20
  %2654 = vst.msk [vmem:[%s2653] sm:$0xf] %vm708, %v2651
  %v2655 = vld [vmem:[%s9] sm:$0x3]
  %v2656 = vld [vmem:[%s2519] sm:$0x3]
  %v2657 = vpack.c.bf16 %v2656, %v2656
  %v2658 = vld [vmem:[%s8] sm:$0xff]
  %v2659 = vld [vmem:[%s8 + $0x8] sm:$0xff]
  %v2660 = vld [vmem:[%s8 + $0x10] sm:$0xff]
  %v2661 = vld [vmem:[%s8 + $0x18] sm:$0xff]
  %v2662 = vld [vmem:[%s8 + $0x20] sm:$0xff]
  %v2663 = vld [vmem:[%s8 + $0x28] sm:$0xff]
  %v2664 = vld [vmem:[%s8 + $0x30] sm:$0xff]
  %v2665 = vld [vmem:[%s8 + $0x38] sm:$0xff]
  %v2666 = vld [vmem:[%s8 + $0x40] sm:$0xff]
  %v2667 = vld [vmem:[%s8 + $0x48] sm:$0xff]
  %v2668 = vld [vmem:[%s8 + $0x50] sm:$0xff]
  %v2669 = vld [vmem:[%s8 + $0x58] sm:$0xff]
  %v2682 = vunpack.c.l.b16 %v2658
  %v2683 = vunpack.c.h.b16 %v2658
  %v2684 = vunpack.c.l.b16 %v2659
  %v2685 = vunpack.c.h.b16 %v2659
  %v2686 = vunpack.c.l.b16 %v2660
  %v2687 = vunpack.c.h.b16 %v2660
  %v2688 = vunpack.c.l.b16 %v2661
  %v2689 = vunpack.c.h.b16 %v2661
  %v2690 = vunpack.c.l.b16 %v2662
  %v2691 = vunpack.c.h.b16 %v2662
  %v2692 = vunpack.c.l.b16 %v2663
  %v2693 = vunpack.c.h.b16 %v2663
  %v2694 = vunpack.c.l.b16 %v2664
  %v2695 = vunpack.c.h.b16 %v2664
  %v2696 = vunpack.c.l.b16 %v2665
  %v2697 = vunpack.c.h.b16 %v2665
  %v2698 = vunpack.c.l.b16 %v2666
  %v2699 = vunpack.c.h.b16 %v2666
  %v2700 = vunpack.c.l.b16 %v2667
  %v2701 = vunpack.c.h.b16 %v2667
  %v2702 = vunpack.c.l.b16 %v2668
  %v2703 = vunpack.c.h.b16 %v2668
  %v2704 = vunpack.c.l.b16 %v2669
  %v2705 = vunpack.c.h.b16 %v2669
  %v2706 = vpack.c.b16 %v2684, %v2682
  %v2707 = vpack.c.b16 %v2685, %v2683
  %v2708 = vpack.c.b16 %v2688, %v2686
  %v2709 = vpack.c.b16 %v2689, %v2687
  %v2710 = vpack.c.b16 %v2692, %v2690
  %v2711 = vpack.c.b16 %v2693, %v2691
  %v2712 = vpack.c.b16 %v2696, %v2694
  %v2713 = vpack.c.b16 %v2697, %v2695
  %v2714 = vpack.c.b16 %v2700, %v2698
  %v2715 = vpack.c.b16 %v2701, %v2699
  %v2716 = vpack.c.b16 %v2704, %v2702
  %v2717 = vpack.c.b16 %v2705, %v2703
  %v2731 = vsel %vm391, %v2657, 0
  %2733 = vmatprep.subr.bf16.mxu0 0
  %2734 = vmatpush1.bf16.msra.mxu0 0
  %2735 = vmatprep.subr.bf16.mxu0 0
  %2736 = vmatpush1.bf16.msra.mxu0 0
  %2737 = vmatprep.subr.bf16.mxu0 %v2717
  %2738 = vmatpush1.bf16.msra.mxu0 %v2716
  %2739 = vmatprep.subr.bf16.mxu0 %v2715
  %2740 = vmatpush1.bf16.msra.mxu0 %v2714
  %2741 = vmatprep.subr.bf16.mxu0 %v2713
  %2742 = vmatpush1.bf16.msra.mxu0 %v2712
  %2743 = vmatprep.subr.bf16.mxu0 %v2711
  %2744 = vmatpush1.bf16.msra.mxu0 %v2710
  %2745 = vmatprep.subr.bf16.mxu0 %v2709
  %2746 = vmatpush1.bf16.msra.mxu0 %v2708
  %2747 = vmatprep.subr.bf16.mxu0 %v2707
  %2748 = vmatpush1.bf16.msra.mxu0 %v2706
  %2749 = vmatprep.subr.bf16.mxu0 0
  %2750 = vmatpush2.bf16.msra.mxu0 0
  %2751 = vmatprep.subr.bf16.mxu0 0
  %2752 = vmatpush2.bf16.msra.mxu0 0
  %2753 = vmatprep.subr.bf16.mxu0 0
  %2754 = vmatpush2.bf16.msra.mxu0 0
  %2755 = vmatprep.subr.bf16.mxu0 0
  %2756 = vmatpush2.bf16.msra.mxu0 0
  %2757 = vmatprep.subr.bf16.mxu0 0
  %2758 = vmatpush2.bf16.msra.mxu0 0
  %2759 = vmatprep.subr.bf16.mxu0 0
  %2760 = vmatpush2.bf16.msra.mxu0 0
  %2761 = vmatprep.subr.bf16.mxu0 0
  %2762 = vmatpush2.bf16.msra.mxu0 0
  %2763 = vmatprep.subr.bf16.mxu0 0
  %2764 = vmatpush2.bf16.msra.mxu0 0
  %2765 = vmatprep.mubr.bf16.mxu0 0
  %2766 = vmatmul.mubr.bf16.gmra.mxu0 %v2731
  %v2767 = vpop.f32.mrf.mxu0
  %v2768 = vadd.f32 0.0, %v2767
  %v2769 = vpop.f32.mrf.mxu0
  %v2770 = vadd.f32 0.0, %v2769
  %v2771 = vpop.f32.mrf.mxu0
  %v2772 = vpop.f32.mrf.mxu0
  %2773 = vdwg.mxu0
  %v2775 = vlaneseq
  %v2776 = vshrl.u32 %v2775, 7
  %v2777 = vsub.s32 0, %v2776
  %v2778 = vrot.slane %v2655, %v2777
  %v2779 = vlaneseq
  %v2780 = vshrl.u32 %v2779, 7
  %v2781 = vsub.s32 1, %v2780
  %v2782 = vrot.slane %v2655, %v2781
  %v2785 = vadd.f32 %v2778, %v2768
  %v2786 = vadd.f32 %v2782, %v2770
  %s2787 = scalar_lea.vmem %s2, 26
  %v2788 = vld [vmem:[%s2787] sm:$0x3]
  %v2789 = vpack.c.bf16 %v2788, %v2788
  %v2790 = vld [vmem:[%s452] sm:$0xff]
  %v2791 = vld [vmem:[%s452 + $0x8] sm:$0xff]
  %v2792 = vld [vmem:[%s452 + $0x10] sm:$0xff]
  %v2793 = vld [vmem:[%s452 + $0x18] sm:$0xff]
  %v2794 = vld [vmem:[%s452 + $0x20] sm:$0xff]
  %v2795 = vld [vmem:[%s452 + $0x28] sm:$0xff]
  %v2796 = vld [vmem:[%s452 + $0x30] sm:$0xff]
  %v2797 = vld [vmem:[%s452 + $0x38] sm:$0xff]
  %v2798 = vld [vmem:[%s452 + $0x40] sm:$0xff]
  %v2799 = vld [vmem:[%s452 + $0x48] sm:$0xff]
  %v2800 = vld [vmem:[%s452 + $0x50] sm:$0xff]
  %v2801 = vld [vmem:[%s452 + $0x58] sm:$0xff]
  %v2814 = vunpack.c.l.b16 %v2790
  %v2815 = vunpack.c.h.b16 %v2790
  %v2816 = vunpack.c.l.b16 %v2791
  %v2817 = vunpack.c.h.b16 %v2791
  %v2818 = vunpack.c.l.b16 %v2792
  %v2819 = vunpack.c.h.b16 %v2792
  %v2820 = vunpack.c.l.b16 %v2793
  %v2821 = vunpack.c.h.b16 %v2793
  %v2822 = vunpack.c.l.b16 %v2794
  %v2823 = vunpack.c.h.b16 %v2794
  %v2824 = vunpack.c.l.b16 %v2795
  %v2825 = vunpack.c.h.b16 %v2795
  %v2826 = vunpack.c.l.b16 %v2796
  %v2827 = vunpack.c.h.b16 %v2796
  %v2828 = vunpack.c.l.b16 %v2797
  %v2829 = vunpack.c.h.b16 %v2797
  %v2830 = vunpack.c.l.b16 %v2798
  %v2831 = vunpack.c.h.b16 %v2798
  %v2832 = vunpack.c.l.b16 %v2799
  %v2833 = vunpack.c.h.b16 %v2799
  %v2834 = vunpack.c.l.b16 %v2800
  %v2835 = vunpack.c.h.b16 %v2800
  %v2836 = vunpack.c.l.b16 %v2801
  %v2837 = vunpack.c.h.b16 %v2801
  %v2838 = vpack.c.b16 %v2816, %v2814
  %v2839 = vpack.c.b16 %v2817, %v2815
  %v2840 = vpack.c.b16 %v2820, %v2818
  %v2841 = vpack.c.b16 %v2821, %v2819
  %v2842 = vpack.c.b16 %v2824, %v2822
  %v2843 = vpack.c.b16 %v2825, %v2823
  %v2844 = vpack.c.b16 %v2828, %v2826
  %v2845 = vpack.c.b16 %v2829, %v2827
  %v2846 = vpack.c.b16 %v2832, %v2830
  %v2847 = vpack.c.b16 %v2833, %v2831
  %v2848 = vpack.c.b16 %v2836, %v2834
  %v2849 = vpack.c.b16 %v2837, %v2835
  %v2863 = vsel %vm391, %v2789, 0
  %2865 = vmatprep.subr.bf16.mxu0 0
  %2866 = vmatpush1.bf16.msra.mxu0 0
  %2867 = vmatprep.subr.bf16.mxu0 0
  %2868 = vmatpush1.bf16.msra.mxu0 0
  %2869 = vmatprep.subr.bf16.mxu0 %v2849
  %2870 = vmatpush1.bf16.msra.mxu0 %v2848
  %2871 = vmatprep.subr.bf16.mxu0 %v2847
  %2872 = vmatpush1.bf16.msra.mxu0 %v2846
  %2873 = vmatprep.subr.bf16.mxu0 %v2845
  %2874 = vmatpush1.bf16.msra.mxu0 %v2844
  %2875 = vmatprep.subr.bf16.mxu0 %v2843
  %2876 = vmatpush1.bf16.msra.mxu0 %v2842
  %2877 = vmatprep.subr.bf16.mxu0 %v2841
  %2878 = vmatpush1.bf16.msra.mxu0 %v2840
  %2879 = vmatprep.subr.bf16.mxu0 %v2839
  %2880 = vmatpush1.bf16.msra.mxu0 %v2838
  %2881 = vmatprep.subr.bf16.mxu0 0
  %2882 = vmatpush2.bf16.msra.mxu0 0
  %2883 = vmatprep.subr.bf16.mxu0 0
  %2884 = vmatpush2.bf16.msra.mxu0 0
  %2885 = vmatprep.subr.bf16.mxu0 0
  %2886 = vmatpush2.bf16.msra.mxu0 0
  %2887 = vmatprep.subr.bf16.mxu0 0
  %2888 = vmatpush2.bf16.msra.mxu0 0
  %2889 = vmatprep.subr.bf16.mxu0 0
  %2890 = vmatpush2.bf16.msra.mxu0 0
  %2891 = vmatprep.subr.bf16.mxu0 0
  %2892 = vmatpush2.bf16.msra.mxu0 0
  %2893 = vmatprep.subr.bf16.mxu0 0
  %2894 = vmatpush2.bf16.msra.mxu0 0
  %2895 = vmatprep.subr.bf16.mxu0 0
  %2896 = vmatpush2.bf16.msra.mxu0 0
  %2897 = vmatprep.mubr.bf16.mxu0 0
  %2898 = vmatmul.mubr.bf16.gmra.mxu0 %v2863
  %v2899 = vpop.f32.mrf.mxu0
  %v2900 = vadd.f32 0.0, %v2899
  %v2901 = vpop.f32.mrf.mxu0
  %v2902 = vadd.f32 0.0, %v2901
  %v2903 = vpop.f32.mrf.mxu0
  %v2904 = vpop.f32.mrf.mxu0
  %2905 = vdwg.mxu0
  %v2906 = vadd.f32 %v2785, %v2900
  %v2907 = vadd.f32 %v2786, %v2902
  %s2908 = scalar_lea.vmem %s2, 28
  %v2909 = vld [vmem:[%s2908] sm:$0x3]
  %v2910 = vpack.c.bf16 %v2909, %v2909
  %v2911 = vld [vmem:[%s574] sm:$0xff]
  %v2912 = vld [vmem:[%s574 + $0x8] sm:$0xff]
  %v2913 = vld [vmem:[%s574 + $0x10] sm:$0xff]
  %v2914 = vld [vmem:[%s574 + $0x18] sm:$0xff]
  %v2915 = vld [vmem:[%s574 + $0x20] sm:$0xff]
  %v2916 = vld [vmem:[%s574 + $0x28] sm:$0xff]
  %v2917 = vld [vmem:[%s574 + $0x30] sm:$0xff]
  %v2918 = vld [vmem:[%s574 + $0x38] sm:$0xff]
  %v2919 = vld [vmem:[%s574 + $0x40] sm:$0xff]
  %v2920 = vld [vmem:[%s574 + $0x48] sm:$0xff]
  %v2921 = vld [vmem:[%s574 + $0x50] sm:$0xff]
  %v2922 = vld [vmem:[%s574 + $0x58] sm:$0xff]
  %v2935 = vunpack.c.l.b16 %v2911
  %v2936 = vunpack.c.h.b16 %v2911
  %v2937 = vunpack.c.l.b16 %v2912
  %v2938 = vunpack.c.h.b16 %v2912
  %v2939 = vunpack.c.l.b16 %v2913
  %v2940 = vunpack.c.h.b16 %v2913
  %v2941 = vunpack.c.l.b16 %v2914
  %v2942 = vunpack.c.h.b16 %v2914
  %v2943 = vunpack.c.l.b16 %v2915
  %v2944 = vunpack.c.h.b16 %v2915
  %v2945 = vunpack.c.l.b16 %v2916
  %v2946 = vunpack.c.h.b16 %v2916
  %v2947 = vunpack.c.l.b16 %v2917
  %v2948 = vunpack.c.h.b16 %v2917
  %v2949 = vunpack.c.l.b16 %v2918
  %v2950 = vunpack.c.h.b16 %v2918
  %v2951 = vunpack.c.l.b16 %v2919
  %v2952 = vunpack.c.h.b16 %v2919
  %v2953 = vunpack.c.l.b16 %v2920
  %v2954 = vunpack.c.h.b16 %v2920
  %v2955 = vunpack.c.l.b16 %v2921
  %v2956 = vunpack.c.h.b16 %v2921
  %v2957 = vunpack.c.l.b16 %v2922
  %v2958 = vunpack.c.h.b16 %v2922
  %v2959 = vpack.c.b16 %v2937, %v2935
  %v2960 = vpack.c.b16 %v2938, %v2936
  %v2961 = vpack.c.b16 %v2941, %v2939
  %v2962 = vpack.c.b16 %v2942, %v2940
  %v2963 = vpack.c.b16 %v2945, %v2943
  %v2964 = vpack.c.b16 %v2946, %v2944
  %v2965 = vpack.c.b16 %v2949, %v2947
  %v2966 = vpack.c.b16 %v2950, %v2948
  %v2967 = vpack.c.b16 %v2953, %v2951
  %v2968 = vpack.c.b16 %v2954, %v2952
  %v2969 = vpack.c.b16 %v2957, %v2955
  %v2970 = vpack.c.b16 %v2958, %v2956
  %v2984 = vsel %vm391, %v2910, 0
  %2986 = vmatprep.subr.bf16.mxu0 0
  %2987 = vmatpush1.bf16.msra.mxu0 0
  %2988 = vmatprep.subr.bf16.mxu0 0
  %2989 = vmatpush1.bf16.msra.mxu0 0
  %2990 = vmatprep.subr.bf16.mxu0 %v2970
  %2991 = vmatpush1.bf16.msra.mxu0 %v2969
  %2992 = vmatprep.subr.bf16.mxu0 %v2968
  %2993 = vmatpush1.bf16.msra.mxu0 %v2967
  %2994 = vmatprep.subr.bf16.mxu0 %v2966
  %2995 = vmatpush1.bf16.msra.mxu0 %v2965
  %2996 = vmatprep.subr.bf16.mxu0 %v2964
  %2997 = vmatpush1.bf16.msra.mxu0 %v2963
  %2998 = vmatprep.subr.bf16.mxu0 %v2962
  %2999 = vmatpush1.bf16.msra.mxu0 %v2961
  %3000 = vmatprep.subr.bf16.mxu0 %v2960
  %3001 = vmatpush1.bf16.msra.mxu0 %v2959
  %3002 = vmatprep.subr.bf16.mxu0 0
  %3003 = vmatpush2.bf16.msra.mxu0 0
  %3004 = vmatprep.subr.bf16.mxu0 0
  %3005 = vmatpush2.bf16.msra.mxu0 0
  %3006 = vmatprep.subr.bf16.mxu0 0
  %3007 = vmatpush2.bf16.msra.mxu0 0
  %3008 = vmatprep.subr.bf16.mxu0 0
  %3009 = vmatpush2.bf16.msra.mxu0 0
  %3010 = vmatprep.subr.bf16.mxu0 0
  %3011 = vmatpush2.bf16.msra.mxu0 0
  %3012 = vmatprep.subr.bf16.mxu0 0
  %3013 = vmatpush2.bf16.msra.mxu0 0
  %3014 = vmatprep.subr.bf16.mxu0 0
  %3015 = vmatpush2.bf16.msra.mxu0 0
  %3016 = vmatprep.subr.bf16.mxu0 0
  %3017 = vmatpush2.bf16.msra.mxu0 0
  %3018 = vmatprep.mubr.bf16.mxu0 0
  %3019 = vmatmul.mubr.bf16.gmra.mxu0 %v2984
  %v3020 = vpop.f32.mrf.mxu0
  %v3021 = vadd.f32 0.0, %v3020
  %v3022 = vpop.f32.mrf.mxu0
  %v3023 = vadd.f32 0.0, %v3022
  %v3024 = vpop.f32.mrf.mxu0
  %v3025 = vpop.f32.mrf.mxu0
  %3026 = vdwg.mxu0
  %v3027 = vadd.f32 %v2906, %v3021
  %v3028 = vadd.f32 %v2907, %v3023
  %v3029 = vmax.f32 %v3027, 0.0
  %v3030 = vmax.f32 %v3028, 0.0
  %v3033 = vcombine.low %v3029, %v3030
  %v3035 = vunpack.c.l.s4 1983009808
  %v3036 = vunpack.c.0.s8 %v3035
  %v3037 = vlaneseq
  %v3038 = vshrl.u32 %v3037, 7
  %v3039 = vsub.s32 %v3036, %v3038
  %v3040 = vrot.slane %v3033, %v3039
  %s3042 = scalar_lea.vmem [#allocation2], 24
  %3043 = vst.msk [vmem:[%s3042] sm:$0xf] %vm708, %v3040
  %v3044 = vld [vmem:[%s9] sm:$0x3]
  %v3045 = vld [vmem:[%s2908] sm:$0x3]
  %v3046 = vpack.c.bf16 %v3045, %v3045
  %v3047 = vld [vmem:[%s8] sm:$0xff]
  %v3048 = vld [vmem:[%s8 + $0x8] sm:$0xff]
  %v3049 = vld [vmem:[%s8 + $0x10] sm:$0xff]
  %v3050 = vld [vmem:[%s8 + $0x18] sm:$0xff]
  %v3051 = vld [vmem:[%s8 + $0x20] sm:$0xff]
  %v3052 = vld [vmem:[%s8 + $0x28] sm:$0xff]
  %v3053 = vld [vmem:[%s8 + $0x30] sm:$0xff]
  %v3054 = vld [vmem:[%s8 + $0x38] sm:$0xff]
  %v3055 = vld [vmem:[%s8 + $0x40] sm:$0xff]
  %v3056 = vld [vmem:[%s8 + $0x48] sm:$0xff]
  %v3057 = vld [vmem:[%s8 + $0x50] sm:$0xff]
  %v3058 = vld [vmem:[%s8 + $0x58] sm:$0xff]
  %v3071 = vunpack.c.l.b16 %v3047
  %v3072 = vunpack.c.h.b16 %v3047
  %v3073 = vunpack.c.l.b16 %v3048
  %v3074 = vunpack.c.h.b16 %v3048
  %v3075 = vunpack.c.l.b16 %v3049
  %v3076 = vunpack.c.h.b16 %v3049
  %v3077 = vunpack.c.l.b16 %v3050
  %v3078 = vunpack.c.h.b16 %v3050
  %v3079 = vunpack.c.l.b16 %v3051
  %v3080 = vunpack.c.h.b16 %v3051
  %v3081 = vunpack.c.l.b16 %v3052
  %v3082 = vunpack.c.h.b16 %v3052
  %v3083 = vunpack.c.l.b16 %v3053
  %v3084 = vunpack.c.h.b16 %v3053
  %v3085 = vunpack.c.l.b16 %v3054
  %v3086 = vunpack.c.h.b16 %v3054
  %v3087 = vunpack.c.l.b16 %v3055
  %v3088 = vunpack.c.h.b16 %v3055
  %v3089 = vunpack.c.l.b16 %v3056
  %v3090 = vunpack.c.h.b16 %v3056
  %v3091 = vunpack.c.l.b16 %v3057
  %v3092 = vunpack.c.h.b16 %v3057
  %v3093 = vunpack.c.l.b16 %v3058
  %v3094 = vunpack.c.h.b16 %v3058
  %v3095 = vpack.c.b16 %v3073, %v3071
  %v3096 = vpack.c.b16 %v3074, %v3072
  %v3097 = vpack.c.b16 %v3077, %v3075
  %v3098 = vpack.c.b16 %v3078, %v3076
  %v3099 = vpack.c.b16 %v3081, %v3079
  %v3100 = vpack.c.b16 %v3082, %v3080
  %v3101 = vpack.c.b16 %v3085, %v3083
  %v3102 = vpack.c.b16 %v3086, %v3084
  %v3103 = vpack.c.b16 %v3089, %v3087
  %v3104 = vpack.c.b16 %v3090, %v3088
  %v3105 = vpack.c.b16 %v3093, %v3091
  %v3106 = vpack.c.b16 %v3094, %v3092
  %v3120 = vsel %vm391, %v3046, 0
  %3122 = vmatprep.subr.bf16.mxu0 0
  %3123 = vmatpush1.bf16.msra.mxu0 0
  %3124 = vmatprep.subr.bf16.mxu0 0
  %3125 = vmatpush1.bf16.msra.mxu0 0
  %3126 = vmatprep.subr.bf16.mxu0 %v3106
  %3127 = vmatpush1.bf16.msra.mxu0 %v3105
  %3128 = vmatprep.subr.bf16.mxu0 %v3104
  %3129 = vmatpush1.bf16.msra.mxu0 %v3103
  %3130 = vmatprep.subr.bf16.mxu0 %v3102
  %3131 = vmatpush1.bf16.msra.mxu0 %v3101
  %3132 = vmatprep.subr.bf16.mxu0 %v3100
  %3133 = vmatpush1.bf16.msra.mxu0 %v3099
  %3134 = vmatprep.subr.bf16.mxu0 %v3098
  %3135 = vmatpush1.bf16.msra.mxu0 %v3097
  %3136 = vmatprep.subr.bf16.mxu0 %v3096
  %3137 = vmatpush1.bf16.msra.mxu0 %v3095
  %3138 = vmatprep.subr.bf16.mxu0 0
  %3139 = vmatpush2.bf16.msra.mxu0 0
  %3140 = vmatprep.subr.bf16.mxu0 0
  %3141 = vmatpush2.bf16.msra.mxu0 0
  %3142 = vmatprep.subr.bf16.mxu0 0
  %3143 = vmatpush2.bf16.msra.mxu0 0
  %3144 = vmatprep.subr.bf16.mxu0 0
  %3145 = vmatpush2.bf16.msra.mxu0 0
  %3146 = vmatprep.subr.bf16.mxu0 0
  %3147 = vmatpush2.bf16.msra.mxu0 0
  %3148 = vmatprep.subr.bf16.mxu0 0
  %3149 = vmatpush2.bf16.msra.mxu0 0
  %3150 = vmatprep.subr.bf16.mxu0 0
  %3151 = vmatpush2.bf16.msra.mxu0 0
  %3152 = vmatprep.subr.bf16.mxu0 0
  %3153 = vmatpush2.bf16.msra.mxu0 0
  %3154 = vmatprep.mubr.bf16.mxu0 0
  %3155 = vmatmul.mubr.bf16.gmra.mxu0 %v3120
  %v3156 = vpop.f32.mrf.mxu0
  %v3157 = vadd.f32 0.0, %v3156
  %v3158 = vpop.f32.mrf.mxu0
  %v3159 = vadd.f32 0.0, %v3158
  %v3160 = vpop.f32.mrf.mxu0
  %v3161 = vpop.f32.mrf.mxu0
  %3162 = vdwg.mxu0
  %v3164 = vlaneseq
  %v3165 = vshrl.u32 %v3164, 7
  %v3166 = vsub.s32 0, %v3165
  %v3167 = vrot.slane %v3044, %v3166
  %v3168 = vlaneseq
  %v3169 = vshrl.u32 %v3168, 7
  %v3170 = vsub.s32 1, %v3169
  %v3171 = vrot.slane %v3044, %v3170
  %v3174 = vadd.f32 %v3167, %v3157
  %v3175 = vadd.f32 %v3171, %v3159
  %s3176 = scalar_lea.vmem %s2, 30
  %v3177 = vld [vmem:[%s3176] sm:$0x3]
  %v3178 = vpack.c.bf16 %v3177, %v3177
  %v3179 = vld [vmem:[%s452] sm:$0xff]
  %v3180 = vld [vmem:[%s452 + $0x8] sm:$0xff]
  %v3181 = vld [vmem:[%s452 + $0x10] sm:$0xff]
  %v3182 = vld [vmem:[%s452 + $0x18] sm:$0xff]
  %v3183 = vld [vmem:[%s452 + $0x20] sm:$0xff]
  %v3184 = vld [vmem:[%s452 + $0x28] sm:$0xff]
  %v3185 = vld [vmem:[%s452 + $0x30] sm:$0xff]
  %v3186 = vld [vmem:[%s452 + $0x38] sm:$0xff]
  %v3187 = vld [vmem:[%s452 + $0x40] sm:$0xff]
  %v3188 = vld [vmem:[%s452 + $0x48] sm:$0xff]
  %v3189 = vld [vmem:[%s452 + $0x50] sm:$0xff]
  %v3190 = vld [vmem:[%s452 + $0x58] sm:$0xff]
  %v3203 = vunpack.c.l.b16 %v3179
  %v3204 = vunpack.c.h.b16 %v3179
  %v3205 = vunpack.c.l.b16 %v3180
  %v3206 = vunpack.c.h.b16 %v3180
  %v3207 = vunpack.c.l.b16 %v3181
  %v3208 = vunpack.c.h.b16 %v3181
  %v3209 = vunpack.c.l.b16 %v3182
  %v3210 = vunpack.c.h.b16 %v3182
  %v3211 = vunpack.c.l.b16 %v3183
  %v3212 = vunpack.c.h.b16 %v3183
  %v3213 = vunpack.c.l.b16 %v3184
  %v3214 = vunpack.c.h.b16 %v3184
  %v3215 = vunpack.c.l.b16 %v3185
  %v3216 = vunpack.c.h.b16 %v3185
  %v3217 = vunpack.c.l.b16 %v3186
  %v3218 = vunpack.c.h.b16 %v3186
  %v3219 = vunpack.c.l.b16 %v3187
  %v3220 = vunpack.c.h.b16 %v3187
  %v3221 = vunpack.c.l.b16 %v3188
  %v3222 = vunpack.c.h.b16 %v3188
  %v3223 = vunpack.c.l.b16 %v3189
  %v3224 = vunpack.c.h.b16 %v3189
  %v3225 = vunpack.c.l.b16 %v3190
  %v3226 = vunpack.c.h.b16 %v3190
  %v3227 = vpack.c.b16 %v3205, %v3203
  %v3228 = vpack.c.b16 %v3206, %v3204
  %v3229 = vpack.c.b16 %v3209, %v3207
  %v3230 = vpack.c.b16 %v3210, %v3208
  %v3231 = vpack.c.b16 %v3213, %v3211
  %v3232 = vpack.c.b16 %v3214, %v3212
  %v3233 = vpack.c.b16 %v3217, %v3215
  %v3234 = vpack.c.b16 %v3218, %v3216
  %v3235 = vpack.c.b16 %v3221, %v3219
  %v3236 = vpack.c.b16 %v3222, %v3220
  %v3237 = vpack.c.b16 %v3225, %v3223
  %v3238 = vpack.c.b16 %v3226, %v3224
  %v3252 = vsel %vm391, %v3178, 0
  %3254 = vmatprep.subr.bf16.mxu0 0
  %3255 = vmatpush1.bf16.msra.mxu0 0
  %3256 = vmatprep.subr.bf16.mxu0 0
  %3257 = vmatpush1.bf16.msra.mxu0 0
  %3258 = vmatprep.subr.bf16.mxu0 %v3238
  %3259 = vmatpush1.bf16.msra.mxu0 %v3237
  %3260 = vmatprep.subr.bf16.mxu0 %v3236
  %3261 = vmatpush1.bf16.msra.mxu0 %v3235
  %3262 = vmatprep.subr.bf16.mxu0 %v3234
  %3263 = vmatpush1.bf16.msra.mxu0 %v3233
  %3264 = vmatprep.subr.bf16.mxu0 %v3232
  %3265 = vmatpush1.bf16.msra.mxu0 %v3231
  %3266 = vmatprep.subr.bf16.mxu0 %v3230
  %3267 = vmatpush1.bf16.msra.mxu0 %v3229
  %3268 = vmatprep.subr.bf16.mxu0 %v3228
  %3269 = vmatpush1.bf16.msra.mxu0 %v3227
  %3270 = vmatprep.subr.bf16.mxu0 0
  %3271 = vmatpush2.bf16.msra.mxu0 0
  %3272 = vmatprep.subr.bf16.mxu0 0
  %3273 = vmatpush2.bf16.msra.mxu0 0
  %3274 = vmatprep.subr.bf16.mxu0 0
  %3275 = vmatpush2.bf16.msra.mxu0 0
  %3276 = vmatprep.subr.bf16.mxu0 0
  %3277 = vmatpush2.bf16.msra.mxu0 0
  %3278 = vmatprep.subr.bf16.mxu0 0
  %3279 = vmatpush2.bf16.msra.mxu0 0
  %3280 = vmatprep.subr.bf16.mxu0 0
  %3281 = vmatpush2.bf16.msra.mxu0 0
  %3282 = vmatprep.subr.bf16.mxu0 0
  %3283 = vmatpush2.bf16.msra.mxu0 0
  %3284 = vmatprep.subr.bf16.mxu0 0
  %3285 = vmatpush2.bf16.msra.mxu0 0
  %3286 = vmatprep.mubr.bf16.mxu0 0
  %3287 = vmatmul.mubr.bf16.gmra.mxu0 %v3252
  %v3288 = vpop.f32.mrf.mxu0
  %v3289 = vadd.f32 0.0, %v3288
  %v3290 = vpop.f32.mrf.mxu0
  %v3291 = vadd.f32 0.0, %v3290
  %v3292 = vpop.f32.mrf.mxu0
  %v3293 = vpop.f32.mrf.mxu0
  %3294 = vdwg.mxu0
  %v3295 = vadd.f32 %v3174, %v3289
  %v3296 = vadd.f32 %v3175, %v3291
  %s3297 = scalar_lea.vmem %s2, 32
  %v3298 = vld [vmem:[%s3297] sm:$0x3]
  %v3299 = vpack.c.bf16 %v3298, %v3298
  %v3300 = vld [vmem:[%s574] sm:$0xff]
  %v3301 = vld [vmem:[%s574 + $0x8] sm:$0xff]
  %v3302 = vld [vmem:[%s574 + $0x10] sm:$0xff]
  %v3303 = vld [vmem:[%s574 + $0x18] sm:$0xff]
  %v3304 = vld [vmem:[%s574 + $0x20] sm:$0xff]
  %v3305 = vld [vmem:[%s574 + $0x28] sm:$0xff]
  %v3306 = vld [vmem:[%s574 + $0x30] sm:$0xff]
  %v3307 = vld [vmem:[%s574 + $0x38] sm:$0xff]
  %v3308 = vld [vmem:[%s574 + $0x40] sm:$0xff]
  %v3309 = vld [vmem:[%s574 + $0x48] sm:$0xff]
  %v3310 = vld [vmem:[%s574 + $0x50] sm:$0xff]
  %v3311 = vld [vmem:[%s574 + $0x58] sm:$0xff]
  %v3324 = vunpack.c.l.b16 %v3300
  %v3325 = vunpack.c.h.b16 %v3300
  %v3326 = vunpack.c.l.b16 %v3301
  %v3327 = vunpack.c.h.b16 %v3301
  %v3328 = vunpack.c.l.b16 %v3302
  %v3329 = vunpack.c.h.b16 %v3302
  %v3330 = vunpack.c.l.b16 %v3303
  %v3331 = vunpack.c.h.b16 %v3303
  %v3332 = vunpack.c.l.b16 %v3304
  %v3333 = vunpack.c.h.b16 %v3304
  %v3334 = vunpack.c.l.b16 %v3305
  %v3335 = vunpack.c.h.b16 %v3305
  %v3336 = vunpack.c.l.b16 %v3306
  %v3337 = vunpack.c.h.b16 %v3306
  %v3338 = vunpack.c.l.b16 %v3307
  %v3339 = vunpack.c.h.b16 %v3307
  %v3340 = vunpack.c.l.b16 %v3308
  %v3341 = vunpack.c.h.b16 %v3308
  %v3342 = vunpack.c.l.b16 %v3309
  %v3343 = vunpack.c.h.b16 %v3309
  %v3344 = vunpack.c.l.b16 %v3310
  %v3345 = vunpack.c.h.b16 %v3310
  %v3346 = vunpack.c.l.b16 %v3311
  %v3347 = vunpack.c.h.b16 %v3311
  %v3348 = vpack.c.b16 %v3326, %v3324
  %v3349 = vpack.c.b16 %v3327, %v3325
  %v3350 = vpack.c.b16 %v3330, %v3328
  %v3351 = vpack.c.b16 %v3331, %v3329
  %v3352 = vpack.c.b16 %v3334, %v3332
  %v3353 = vpack.c.b16 %v3335, %v3333
  %v3354 = vpack.c.b16 %v3338, %v3336
  %v3355 = vpack.c.b16 %v3339, %v3337
  %v3356 = vpack.c.b16 %v3342, %v3340
  %v3357 = vpack.c.b16 %v3343, %v3341
  %v3358 = vpack.c.b16 %v3346, %v3344
  %v3359 = vpack.c.b16 %v3347, %v3345
  %v3373 = vsel %vm391, %v3299, 0
  %3375 = vmatprep.subr.bf16.mxu0 0
  %3376 = vmatpush1.bf16.msra.mxu0 0
  %3377 = vmatprep.subr.bf16.mxu0 0
  %3378 = vmatpush1.bf16.msra.mxu0 0
  %3379 = vmatprep.subr.bf16.mxu0 %v3359
  %3380 = vmatpush1.bf16.msra.mxu0 %v3358
  %3381 = vmatprep.subr.bf16.mxu0 %v3357
  %3382 = vmatpush1.bf16.msra.mxu0 %v3356
  %3383 = vmatprep.subr.bf16.mxu0 %v3355
  %3384 = vmatpush1.bf16.msra.mxu0 %v3354
  %3385 = vmatprep.subr.bf16.mxu0 %v3353
  %3386 = vmatpush1.bf16.msra.mxu0 %v3352
  %3387 = vmatprep.subr.bf16.mxu0 %v3351
  %3388 = vmatpush1.bf16.msra.mxu0 %v3350
  %3389 = vmatprep.subr.bf16.mxu0 %v3349
  %3390 = vmatpush1.bf16.msra.mxu0 %v3348
  %3391 = vmatprep.subr.bf16.mxu0 0
  %3392 = vmatpush2.bf16.msra.mxu0 0
  %3393 = vmatprep.subr.bf16.mxu0 0
  %3394 = vmatpush2.bf16.msra.mxu0 0
  %3395 = vmatprep.subr.bf16.mxu0 0
  %3396 = vmatpush2.bf16.msra.mxu0 0
  %3397 = vmatprep.subr.bf16.mxu0 0
  %3398 = vmatpush2.bf16.msra.mxu0 0
  %3399 = vmatprep.subr.bf16.mxu0 0
  %3400 = vmatpush2.bf16.msra.mxu0 0
  %3401 = vmatprep.subr.bf16.mxu0 0
  %3402 = vmatpush2.bf16.msra.mxu0 0
  %3403 = vmatprep.subr.bf16.mxu0 0
  %3404 = vmatpush2.bf16.msra.mxu0 0
  %3405 = vmatprep.subr.bf16.mxu0 0
  %3406 = vmatpush2.bf16.msra.mxu0 0
  %3407 = vmatprep.mubr.bf16.mxu0 0
  %3408 = vmatmul.mubr.bf16.gmra.mxu0 %v3373
  %v3409 = vpop.f32.mrf.mxu0
  %v3410 = vadd.f32 0.0, %v3409
  %v3411 = vpop.f32.mrf.mxu0
  %v3412 = vadd.f32 0.0, %v3411
  %v3413 = vpop.f32.mrf.mxu0
  %v3414 = vpop.f32.mrf.mxu0
  %3415 = vdwg.mxu0
  %v3416 = vadd.f32 %v3295, %v3410
  %v3417 = vadd.f32 %v3296, %v3412
  %v3418 = vmax.f32 %v3416, 0.0
  %v3419 = vmax.f32 %v3417, 0.0
  %v3422 = vcombine.low %v3418, %v3419
  %v3424 = vunpack.c.l.s4 1983009808
  %v3425 = vunpack.c.0.s8 %v3424
  %v3426 = vlaneseq
  %v3427 = vshrl.u32 %v3426, 7
  %v3428 = vsub.s32 %v3425, %v3427
  %v3429 = vrot.slane %v3422, %v3428
  %s3431 = scalar_lea.vmem [#allocation2], 28
  %3432 = vst.msk [vmem:[%s3431] sm:$0xf] %vm708, %v3429
  %v3433 = vld [vmem:[%s9] sm:$0x3]
  %v3434 = vld [vmem:[%s3297] sm:$0x3]
  %v3435 = vpack.c.bf16 %v3434, %v3434
  %v3436 = vld [vmem:[%s8] sm:$0xff]
  %v3437 = vld [vmem:[%s8 + $0x8] sm:$0xff]
  %v3438 = vld [vmem:[%s8 + $0x10] sm:$0xff]
  %v3439 = vld [vmem:[%s8 + $0x18] sm:$0xff]
  %v3440 = vld [vmem:[%s8 + $0x20] sm:$0xff]
  %v3441 = vld [vmem:[%s8 + $0x28] sm:$0xff]
  %v3442 = vld [vmem:[%s8 + $0x30] sm:$0xff]
  %v3443 = vld [vmem:[%s8 + $0x38] sm:$0xff]
  %v3444 = vld [vmem:[%s8 + $0x40] sm:$0xff]
  %v3445 = vld [vmem:[%s8 + $0x48] sm:$0xff]
  %v3446 = vld [vmem:[%s8 + $0x50] sm:$0xff]
  %v3447 = vld [vmem:[%s8 + $0x58] sm:$0xff]
  %v3460 = vunpack.c.l.b16 %v3436
  %v3461 = vunpack.c.h.b16 %v3436
  %v3462 = vunpack.c.l.b16 %v3437
  %v3463 = vunpack.c.h.b16 %v3437
  %v3464 = vunpack.c.l.b16 %v3438
  %v3465 = vunpack.c.h.b16 %v3438
  %v3466 = vunpack.c.l.b16 %v3439
  %v3467 = vunpack.c.h.b16 %v3439
  %v3468 = vunpack.c.l.b16 %v3440
  %v3469 = vunpack.c.h.b16 %v3440
  %v3470 = vunpack.c.l.b16 %v3441
  %v3471 = vunpack.c.h.b16 %v3441
  %v3472 = vunpack.c.l.b16 %v3442
  %v3473 = vunpack.c.h.b16 %v3442
  %v3474 = vunpack.c.l.b16 %v3443
  %v3475 = vunpack.c.h.b16 %v3443
  %v3476 = vunpack.c.l.b16 %v3444
  %v3477 = vunpack.c.h.b16 %v3444
  %v3478 = vunpack.c.l.b16 %v3445
  %v3479 = vunpack.c.h.b16 %v3445
  %v3480 = vunpack.c.l.b16 %v3446
  %v3481 = vunpack.c.h.b16 %v3446
  %v3482 = vunpack.c.l.b16 %v3447
  %v3483 = vunpack.c.h.b16 %v3447
  %v3484 = vpack.c.b16 %v3462, %v3460
  %v3485 = vpack.c.b16 %v3463, %v3461
  %v3486 = vpack.c.b16 %v3466, %v3464
  %v3487 = vpack.c.b16 %v3467, %v3465
  %v3488 = vpack.c.b16 %v3470, %v3468
  %v3489 = vpack.c.b16 %v3471, %v3469
  %v3490 = vpack.c.b16 %v3474, %v3472
  %v3491 = vpack.c.b16 %v3475, %v3473
  %v3492 = vpack.c.b16 %v3478, %v3476
  %v3493 = vpack.c.b16 %v3479, %v3477
  %v3494 = vpack.c.b16 %v3482, %v3480
  %v3495 = vpack.c.b16 %v3483, %v3481
  %v3509 = vsel %vm391, %v3435, 0
  %3511 = vmatprep.subr.bf16.mxu0 0
  %3512 = vmatpush1.bf16.msra.mxu0 0
  %3513 = vmatprep.subr.bf16.mxu0 0
  %3514 = vmatpush1.bf16.msra.mxu0 0
  %3515 = vmatprep.subr.bf16.mxu0 %v3495
  %3516 = vmatpush1.bf16.msra.mxu0 %v3494
  %3517 = vmatprep.subr.bf16.mxu0 %v3493
  %3518 = vmatpush1.bf16.msra.mxu0 %v3492
  %3519 = vmatprep.subr.bf16.mxu0 %v3491
  %3520 = vmatpush1.bf16.msra.mxu0 %v3490
  %3521 = vmatprep.subr.bf16.mxu0 %v3489
  %3522 = vmatpush1.bf16.msra.mxu0 %v3488
  %3523 = vmatprep.subr.bf16.mxu0 %v3487
  %3524 = vmatpush1.bf16.msra.mxu0 %v3486
  %3525 = vmatprep.subr.bf16.mxu0 %v3485
  %3526 = vmatpush1.bf16.msra.mxu0 %v3484
  %3527 = vmatprep.subr.bf16.mxu0 0
  %3528 = vmatpush2.bf16.msra.mxu0 0
  %3529 = vmatprep.subr.bf16.mxu0 0
  %3530 = vmatpush2.bf16.msra.mxu0 0
  %3531 = vmatprep.subr.bf16.mxu0 0
  %3532 = vmatpush2.bf16.msra.mxu0 0
  %3533 = vmatprep.subr.bf16.mxu0 0
  %3534 = vmatpush2.bf16.msra.mxu0 0
  %3535 = vmatprep.subr.bf16.mxu0 0
  %3536 = vmatpush2.bf16.msra.mxu0 0
  %3537 = vmatprep.subr.bf16.mxu0 0
  %3538 = vmatpush2.bf16.msra.mxu0 0
  %3539 = vmatprep.subr.bf16.mxu0 0
  %3540 = vmatpush2.bf16.msra.mxu0 0
  %3541 = vmatprep.subr.bf16.mxu0 0
  %3542 = vmatpush2.bf16.msra.mxu0 0
  %3543 = vmatprep.mubr.bf16.mxu0 0
  %3544 = vmatmul.mubr.bf16.gmra.mxu0 %v3509
  %v3545 = vpop.f32.mrf.mxu0
  %v3546 = vadd.f32 0.0, %v3545
  %v3547 = vpop.f32.mrf.mxu0
  %v3548 = vadd.f32 0.0, %v3547
  %v3549 = vpop.f32.mrf.mxu0
  %v3550 = vpop.f32.mrf.mxu0
  %3551 = vdwg.mxu0
  %v3553 = vlaneseq
  %v3554 = vshrl.u32 %v3553, 7
  %v3555 = vsub.s32 0, %v3554
  %v3556 = vrot.slane %v3433, %v3555
  %v3557 = vlaneseq
  %v3558 = vshrl.u32 %v3557, 7
  %v3559 = vsub.s32 1, %v3558
  %v3560 = vrot.slane %v3433, %v3559
  %v3563 = vadd.f32 %v3556, %v3546
  %v3564 = vadd.f32 %v3560, %v3548
  %s3565 = scalar_lea.vmem %s2, 34
  %v3566 = vld [vmem:[%s3565] sm:$0x3]
  %v3567 = vpack.c.bf16 %v3566, %v3566
  %v3568 = vld [vmem:[%s452] sm:$0xff]
  %v3569 = vld [vmem:[%s452 + $0x8] sm:$0xff]
  %v3570 = vld [vmem:[%s452 + $0x10] sm:$0xff]
  %v3571 = vld [vmem:[%s452 + $0x18] sm:$0xff]
  %v3572 = vld [vmem:[%s452 + $0x20] sm:$0xff]
  %v3573 = vld [vmem:[%s452 + $0x28] sm:$0xff]
  %v3574 = vld [vmem:[%s452 + $0x30] sm:$0xff]
  %v3575 = vld [vmem:[%s452 + $0x38] sm:$0xff]
  %v3576 = vld [vmem:[%s452 + $0x40] sm:$0xff]
  %v3577 = vld [vmem:[%s452 + $0x48] sm:$0xff]
  %v3578 = vld [vmem:[%s452 + $0x50] sm:$0xff]
  %v3579 = vld [vmem:[%s452 + $0x58] sm:$0xff]
  %v3592 = vunpack.c.l.b16 %v3568
  %v3593 = vunpack.c.h.b16 %v3568
  %v3594 = vunpack.c.l.b16 %v3569
  %v3595 = vunpack.c.h.b16 %v3569
  %v3596 = vunpack.c.l.b16 %v3570
  %v3597 = vunpack.c.h.b16 %v3570
  %v3598 = vunpack.c.l.b16 %v3571
  %v3599 = vunpack.c.h.b16 %v3571
  %v3600 = vunpack.c.l.b16 %v3572
  %v3601 = vunpack.c.h.b16 %v3572
  %v3602 = vunpack.c.l.b16 %v3573
  %v3603 = vunpack.c.h.b16 %v3573
  %v3604 = vunpack.c.l.b16 %v3574
  %v3605 = vunpack.c.h.b16 %v3574
  %v3606 = vunpack.c.l.b16 %v3575
  %v3607 = vunpack.c.h.b16 %v3575
  %v3608 = vunpack.c.l.b16 %v3576
  %v3609 = vunpack.c.h.b16 %v3576
  %v3610 = vunpack.c.l.b16 %v3577
  %v3611 = vunpack.c.h.b16 %v3577
  %v3612 = vunpack.c.l.b16 %v3578
  %v3613 = vunpack.c.h.b16 %v3578
  %v3614 = vunpack.c.l.b16 %v3579
  %v3615 = vunpack.c.h.b16 %v3579
  %v3616 = vpack.c.b16 %v3594, %v3592
  %v3617 = vpack.c.b16 %v3595, %v3593
  %v3618 = vpack.c.b16 %v3598, %v3596
  %v3619 = vpack.c.b16 %v3599, %v3597
  %v3620 = vpack.c.b16 %v3602, %v3600
  %v3621 = vpack.c.b16 %v3603, %v3601
  %v3622 = vpack.c.b16 %v3606, %v3604
  %v3623 = vpack.c.b16 %v3607, %v3605
  %v3624 = vpack.c.b16 %v3610, %v3608
  %v3625 = vpack.c.b16 %v3611, %v3609
  %v3626 = vpack.c.b16 %v3614, %v3612
  %v3627 = vpack.c.b16 %v3615, %v3613
  %v3641 = vsel %vm391, %v3567, 0
  %3643 = vmatprep.subr.bf16.mxu0 0
  %3644 = vmatpush1.bf16.msra.mxu0 0
  %3645 = vmatprep.subr.bf16.mxu0 0
  %3646 = vmatpush1.bf16.msra.mxu0 0
  %3647 = vmatprep.subr.bf16.mxu0 %v3627
  %3648 = vmatpush1.bf16.msra.mxu0 %v3626
  %3649 = vmatprep.subr.bf16.mxu0 %v3625
  %3650 = vmatpush1.bf16.msra.mxu0 %v3624
  %3651 = vmatprep.subr.bf16.mxu0 %v3623
  %3652 = vmatpush1.bf16.msra.mxu0 %v3622
  %3653 = vmatprep.subr.bf16.mxu0 %v3621
  %3654 = vmatpush1.bf16.msra.mxu0 %v3620
  %3655 = vmatprep.subr.bf16.mxu0 %v3619
  %3656 = vmatpush1.bf16.msra.mxu0 %v3618
  %3657 = vmatprep.subr.bf16.mxu0 %v3617
  %3658 = vmatpush1.bf16.msra.mxu0 %v3616
  %3659 = vmatprep.subr.bf16.mxu0 0
  %3660 = vmatpush2.bf16.msra.mxu0 0
  %3661 = vmatprep.subr.bf16.mxu0 0
  %3662 = vmatpush2.bf16.msra.mxu0 0
  %3663 = vmatprep.subr.bf16.mxu0 0
  %3664 = vmatpush2.bf16.msra.mxu0 0
  %3665 = vmatprep.subr.bf16.mxu0 0
  %3666 = vmatpush2.bf16.msra.mxu0 0
  %3667 = vmatprep.subr.bf16.mxu0 0
  %3668 = vmatpush2.bf16.msra.mxu0 0
  %3669 = vmatprep.subr.bf16.mxu0 0
  %3670 = vmatpush2.bf16.msra.mxu0 0
  %3671 = vmatprep.subr.bf16.mxu0 0
  %3672 = vmatpush2.bf16.msra.mxu0 0
  %3673 = vmatprep.subr.bf16.mxu0 0
  %3674 = vmatpush2.bf16.msra.mxu0 0
  %3675 = vmatprep.mubr.bf16.mxu0 0
  %3676 = vmatmul.mubr.bf16.gmra.mxu0 %v3641
  %v3677 = vpop.f32.mrf.mxu0
  %v3678 = vadd.f32 0.0, %v3677
  %v3679 = vpop.f32.mrf.mxu0
  %v3680 = vadd.f32 0.0, %v3679
  %v3681 = vpop.f32.mrf.mxu0
  %v3682 = vpop.f32.mrf.mxu0
  %3683 = vdwg.mxu0
  %v3684 = vadd.f32 %v3563, %v3678
  %v3685 = vadd.f32 %v3564, %v3680
  %s3686 = scalar_lea.vmem %s2, 36
  %v3687 = vld [vmem:[%s3686] sm:$0x3]
  %v3688 = vpack.c.bf16 %v3687, %v3687
  %v3689 = vld [vmem:[%s574] sm:$0xff]
  %v3690 = vld [vmem:[%s574 + $0x8] sm:$0xff]
  %v3691 = vld [vmem:[%s574 + $0x10] sm:$0xff]
  %v3692 = vld [vmem:[%s574 + $0x18] sm:$0xff]
  %v3693 = vld [vmem:[%s574 + $0x20] sm:$0xff]
  %v3694 = vld [vmem:[%s574 + $0x28] sm:$0xff]
  %v3695 = vld [vmem:[%s574 + $0x30] sm:$0xff]
  %v3696 = vld [vmem:[%s574 + $0x38] sm:$0xff]
  %v3697 = vld [vmem:[%s574 + $0x40] sm:$0xff]
  %v3698 = vld [vmem:[%s574 + $0x48] sm:$0xff]
  %v3699 = vld [vmem:[%s574 + $0x50] sm:$0xff]
  %v3700 = vld [vmem:[%s574 + $0x58] sm:$0xff]
  %v3713 = vunpack.c.l.b16 %v3689
  %v3714 = vunpack.c.h.b16 %v3689
  %v3715 = vunpack.c.l.b16 %v3690
  %v3716 = vunpack.c.h.b16 %v3690
  %v3717 = vunpack.c.l.b16 %v3691
  %v3718 = vunpack.c.h.b16 %v3691
  %v3719 = vunpack.c.l.b16 %v3692
  %v3720 = vunpack.c.h.b16 %v3692
  %v3721 = vunpack.c.l.b16 %v3693
  %v3722 = vunpack.c.h.b16 %v3693
  %v3723 = vunpack.c.l.b16 %v3694
  %v3724 = vunpack.c.h.b16 %v3694
  %v3725 = vunpack.c.l.b16 %v3695
  %v3726 = vunpack.c.h.b16 %v3695
  %v3727 = vunpack.c.l.b16 %v3696
  %v3728 = vunpack.c.h.b16 %v3696
  %v3729 = vunpack.c.l.b16 %v3697
  %v3730 = vunpack.c.h.b16 %v3697
  %v3731 = vunpack.c.l.b16 %v3698
  %v3732 = vunpack.c.h.b16 %v3698
  %v3733 = vunpack.c.l.b16 %v3699
  %v3734 = vunpack.c.h.b16 %v3699
  %v3735 = vunpack.c.l.b16 %v3700
  %v3736 = vunpack.c.h.b16 %v3700
  %v3737 = vpack.c.b16 %v3715, %v3713
  %v3738 = vpack.c.b16 %v3716, %v3714
  %v3739 = vpack.c.b16 %v3719, %v3717
  %v3740 = vpack.c.b16 %v3720, %v3718
  %v3741 = vpack.c.b16 %v3723, %v3721
  %v3742 = vpack.c.b16 %v3724, %v3722
  %v3743 = vpack.c.b16 %v3727, %v3725
  %v3744 = vpack.c.b16 %v3728, %v3726
  %v3745 = vpack.c.b16 %v3731, %v3729
  %v3746 = vpack.c.b16 %v3732, %v3730
  %v3747 = vpack.c.b16 %v3735, %v3733
  %v3748 = vpack.c.b16 %v3736, %v3734
  %v3762 = vsel %vm391, %v3688, 0
  %3764 = vmatprep.subr.bf16.mxu0 0
  %3765 = vmatpush1.bf16.msra.mxu0 0
  %3766 = vmatprep.subr.bf16.mxu0 0
  %3767 = vmatpush1.bf16.msra.mxu0 0
  %3768 = vmatprep.subr.bf16.mxu0 %v3748
  %3769 = vmatpush1.bf16.msra.mxu0 %v3747
  %3770 = vmatprep.subr.bf16.mxu0 %v3746
  %3771 = vmatpush1.bf16.msra.mxu0 %v3745
  %3772 = vmatprep.subr.bf16.mxu0 %v3744
  %3773 = vmatpush1.bf16.msra.mxu0 %v3743
  %3774 = vmatprep.subr.bf16.mxu0 %v3742
  %3775 = vmatpush1.bf16.msra.mxu0 %v3741
  %3776 = vmatprep.subr.bf16.mxu0 %v3740
  %3777 = vmatpush1.bf16.msra.mxu0 %v3739
  %3778 = vmatprep.subr.bf16.mxu0 %v3738
  %3779 = vmatpush1.bf16.msra.mxu0 %v3737
  %3780 = vmatprep.subr.bf16.mxu0 0
  %3781 = vmatpush2.bf16.msra.mxu0 0
  %3782 = vmatprep.subr.bf16.mxu0 0
  %3783 = vmatpush2.bf16.msra.mxu0 0
  %3784 = vmatprep.subr.bf16.mxu0 0
  %3785 = vmatpush2.bf16.msra.mxu0 0
  %3786 = vmatprep.subr.bf16.mxu0 0
  %3787 = vmatpush2.bf16.msra.mxu0 0
  %3788 = vmatprep.subr.bf16.mxu0 0
  %3789 = vmatpush2.bf16.msra.mxu0 0
  %3790 = vmatprep.subr.bf16.mxu0 0
  %3791 = vmatpush2.bf16.msra.mxu0 0
  %3792 = vmatprep.subr.bf16.mxu0 0
  %3793 = vmatpush2.bf16.msra.mxu0 0
  %3794 = vmatprep.subr.bf16.mxu0 0
  %3795 = vmatpush2.bf16.msra.mxu0 0
  %3796 = vmatprep.mubr.bf16.mxu0 0
  %3797 = vmatmul.mubr.bf16.gmra.mxu0 %v3762
  %v3798 = vpop.f32.mrf.mxu0
  %v3799 = vadd.f32 0.0, %v3798
  %v3800 = vpop.f32.mrf.mxu0
  %v3801 = vadd.f32 0.0, %v3800
  %v3802 = vpop.f32.mrf.mxu0
  %v3803 = vpop.f32.mrf.mxu0
  %3804 = vdwg.mxu0
  %v3805 = vadd.f32 %v3684, %v3799
  %v3806 = vadd.f32 %v3685, %v3801
  %v3807 = vmax.f32 %v3805, 0.0
  %v3808 = vmax.f32 %v3806, 0.0
  %v3811 = vcombine.low %v3807, %v3808
  %v3813 = vunpack.c.l.s4 1983009808
  %v3814 = vunpack.c.0.s8 %v3813
  %v3815 = vlaneseq
  %v3816 = vshrl.u32 %v3815, 7
  %v3817 = vsub.s32 %v3814, %v3816
  %v3818 = vrot.slane %v3811, %v3817
  %s3820 = scalar_lea.vmem [#allocation2], 32
  %3821 = vst.msk [vmem:[%s3820] sm:$0xf] %vm708, %v3818
  %v3822 = vld [vmem:[%s9] sm:$0x3]
  %v3823 = vld [vmem:[%s3686] sm:$0x3]
  %v3824 = vpack.c.bf16 %v3823, %v3823
  %v3825 = vld [vmem:[%s8] sm:$0xff]
  %v3826 = vld [vmem:[%s8 + $0x8] sm:$0xff]
  %v3827 = vld [vmem:[%s8 + $0x10] sm:$0xff]
  %v3828 = vld [vmem:[%s8 + $0x18] sm:$0xff]
  %v3829 = vld [vmem:[%s8 + $0x20] sm:$0xff]
  %v3830 = vld [vmem:[%s8 + $0x28] sm:$0xff]
  %v3831 = vld [vmem:[%s8 + $0x30] sm:$0xff]
  %v3832 = vld [vmem:[%s8 + $0x38] sm:$0xff]
  %v3833 = vld [vmem:[%s8 + $0x40] sm:$0xff]
  %v3834 = vld [vmem:[%s8 + $0x48] sm:$0xff]
  %v3835 = vld [vmem:[%s8 + $0x50] sm:$0xff]
  %v3836 = vld [vmem:[%s8 + $0x58] sm:$0xff]
  %v3849 = vunpack.c.l.b16 %v3825
  %v3850 = vunpack.c.h.b16 %v3825
  %v3851 = vunpack.c.l.b16 %v3826
  %v3852 = vunpack.c.h.b16 %v3826
  %v3853 = vunpack.c.l.b16 %v3827
  %v3854 = vunpack.c.h.b16 %v3827
  %v3855 = vunpack.c.l.b16 %v3828
  %v3856 = vunpack.c.h.b16 %v3828
  %v3857 = vunpack.c.l.b16 %v3829
  %v3858 = vunpack.c.h.b16 %v3829
  %v3859 = vunpack.c.l.b16 %v3830
  %v3860 = vunpack.c.h.b16 %v3830
  %v3861 = vunpack.c.l.b16 %v3831
  %v3862 = vunpack.c.h.b16 %v3831
  %v3863 = vunpack.c.l.b16 %v3832
  %v3864 = vunpack.c.h.b16 %v3832
  %v3865 = vunpack.c.l.b16 %v3833
  %v3866 = vunpack.c.h.b16 %v3833
  %v3867 = vunpack.c.l.b16 %v3834
  %v3868 = vunpack.c.h.b16 %v3834
  %v3869 = vunpack.c.l.b16 %v3835
  %v3870 = vunpack.c.h.b16 %v3835
  %v3871 = vunpack.c.l.b16 %v3836
  %v3872 = vunpack.c.h.b16 %v3836
  %v3873 = vpack.c.b16 %v3851, %v3849
  %v3874 = vpack.c.b16 %v3852, %v3850
  %v3875 = vpack.c.b16 %v3855, %v3853
  %v3876 = vpack.c.b16 %v3856, %v3854
  %v3877 = vpack.c.b16 %v3859, %v3857
  %v3878 = vpack.c.b16 %v3860, %v3858
  %v3879 = vpack.c.b16 %v3863, %v3861
  %v3880 = vpack.c.b16 %v3864, %v3862
  %v3881 = vpack.c.b16 %v3867, %v3865
  %v3882 = vpack.c.b16 %v3868, %v3866
  %v3883 = vpack.c.b16 %v3871, %v3869
  %v3884 = vpack.c.b16 %v3872, %v3870
  %v3898 = vsel %vm391, %v3824, 0
  %3900 = vmatprep.subr.bf16.mxu0 0
  %3901 = vmatpush1.bf16.msra.mxu0 0
  %3902 = vmatprep.subr.bf16.mxu0 0
  %3903 = vmatpush1.bf16.msra.mxu0 0
  %3904 = vmatprep.subr.bf16.mxu0 %v3884
  %3905 = vmatpush1.bf16.msra.mxu0 %v3883
  %3906 = vmatprep.subr.bf16.mxu0 %v3882
  %3907 = vmatpush1.bf16.msra.mxu0 %v3881
  %3908 = vmatprep.subr.bf16.mxu0 %v3880
  %3909 = vmatpush1.bf16.msra.mxu0 %v3879
  %3910 = vmatprep.subr.bf16.mxu0 %v3878
  %3911 = vmatpush1.bf16.msra.mxu0 %v3877
  %3912 = vmatprep.subr.bf16.mxu0 %v3876
  %3913 = vmatpush1.bf16.msra.mxu0 %v3875
  %3914 = vmatprep.subr.bf16.mxu0 %v3874
  %3915 = vmatpush1.bf16.msra.mxu0 %v3873
  %3916 = vmatprep.subr.bf16.mxu0 0
  %3917 = vmatpush2.bf16.msra.mxu0 0
  %3918 = vmatprep.subr.bf16.mxu0 0
  %3919 = vmatpush2.bf16.msra.mxu0 0
  %3920 = vmatprep.subr.bf16.mxu0 0
  %3921 = vmatpush2.bf16.msra.mxu0 0
  %3922 = vmatprep.subr.bf16.mxu0 0
  %3923 = vmatpush2.bf16.msra.mxu0 0
  %3924 = vmatprep.subr.bf16.mxu0 0
  %3925 = vmatpush2.bf16.msra.mxu0 0
  %3926 = vmatprep.subr.bf16.mxu0 0
  %3927 = vmatpush2.bf16.msra.mxu0 0
  %3928 = vmatprep.subr.bf16.mxu0 0
  %3929 = vmatpush2.bf16.msra.mxu0 0
  %3930 = vmatprep.subr.bf16.mxu0 0
  %3931 = vmatpush2.bf16.msra.mxu0 0
  %3932 = vmatprep.mubr.bf16.mxu0 0
  %3933 = vmatmul.mubr.bf16.gmra.mxu0 %v3898
  %v3934 = vpop.f32.mrf.mxu0
  %v3935 = vadd.f32 0.0, %v3934
  %v3936 = vpop.f32.mrf.mxu0
  %v3937 = vadd.f32 0.0, %v3936
  %v3938 = vpop.f32.mrf.mxu0
  %v3939 = vpop.f32.mrf.mxu0
  %3940 = vdwg.mxu0
  %v3942 = vlaneseq
  %v3943 = vshrl.u32 %v3942, 7
  %v3944 = vsub.s32 0, %v3943
  %v3945 = vrot.slane %v3822, %v3944
  %v3946 = vlaneseq
  %v3947 = vshrl.u32 %v3946, 7
  %v3948 = vsub.s32 1, %v3947
  %v3949 = vrot.slane %v3822, %v3948
  %v3952 = vadd.f32 %v3945, %v3935
  %v3953 = vadd.f32 %v3949, %v3937
  %s3954 = scalar_lea.vmem %s2, 38
  %v3955 = vld [vmem:[%s3954] sm:$0x3]
  %v3956 = vpack.c.bf16 %v3955, %v3955
  %v3957 = vld [vmem:[%s452] sm:$0xff]
  %v3958 = vld [vmem:[%s452 + $0x8] sm:$0xff]
  %v3959 = vld [vmem:[%s452 + $0x10] sm:$0xff]
  %v3960 = vld [vmem:[%s452 + $0x18] sm:$0xff]
  %v3961 = vld [vmem:[%s452 + $0x20] sm:$0xff]
  %v3962 = vld [vmem:[%s452 + $0x28] sm:$0xff]
  %v3963 = vld [vmem:[%s452 + $0x30] sm:$0xff]
  %v3964 = vld [vmem:[%s452 + $0x38] sm:$0xff]
  %v3965 = vld [vmem:[%s452 + $0x40] sm:$0xff]
  %v3966 = vld [vmem:[%s452 + $0x48] sm:$0xff]
  %v3967 = vld [vmem:[%s452 + $0x50] sm:$0xff]
  %v3968 = vld [vmem:[%s452 + $0x58] sm:$0xff]
  %v3981 = vunpack.c.l.b16 %v3957
  %v3982 = vunpack.c.h.b16 %v3957
  %v3983 = vunpack.c.l.b16 %v3958
  %v3984 = vunpack.c.h.b16 %v3958
  %v3985 = vunpack.c.l.b16 %v3959
  %v3986 = vunpack.c.h.b16 %v3959
  %v3987 = vunpack.c.l.b16 %v3960
  %v3988 = vunpack.c.h.b16 %v3960
  %v3989 = vunpack.c.l.b16 %v3961
  %v3990 = vunpack.c.h.b16 %v3961
  %v3991 = vunpack.c.l.b16 %v3962
  %v3992 = vunpack.c.h.b16 %v3962
  %v3993 = vunpack.c.l.b16 %v3963
  %v3994 = vunpack.c.h.b16 %v3963
  %v3995 = vunpack.c.l.b16 %v3964
  %v3996 = vunpack.c.h.b16 %v3964
  %v3997 = vunpack.c.l.b16 %v3965
  %v3998 = vunpack.c.h.b16 %v3965
  %v3999 = vunpack.c.l.b16 %v3966
  %v4000 = vunpack.c.h.b16 %v3966
  %v4001 = vunpack.c.l.b16 %v3967
  %v4002 = vunpack.c.h.b16 %v3967
  %v4003 = vunpack.c.l.b16 %v3968
  %v4004 = vunpack.c.h.b16 %v3968
  %v4005 = vpack.c.b16 %v3983, %v3981
  %v4006 = vpack.c.b16 %v3984, %v3982
  %v4007 = vpack.c.b16 %v3987, %v3985
  %v4008 = vpack.c.b16 %v3988, %v3986
  %v4009 = vpack.c.b16 %v3991, %v3989
  %v4010 = vpack.c.b16 %v3992, %v3990
  %v4011 = vpack.c.b16 %v3995, %v3993
  %v4012 = vpack.c.b16 %v3996, %v3994
  %v4013 = vpack.c.b16 %v3999, %v3997
  %v4014 = vpack.c.b16 %v4000, %v3998
  %v4015 = vpack.c.b16 %v4003, %v4001
  %v4016 = vpack.c.b16 %v4004, %v4002
  %v4030 = vsel %vm391, %v3956, 0
  %4032 = vmatprep.subr.bf16.mxu0 0
  %4033 = vmatpush1.bf16.msra.mxu0 0
  %4034 = vmatprep.subr.bf16.mxu0 0
  %4035 = vmatpush1.bf16.msra.mxu0 0
  %4036 = vmatprep.subr.bf16.mxu0 %v4016
  %4037 = vmatpush1.bf16.msra.mxu0 %v4015
  %4038 = vmatprep.subr.bf16.mxu0 %v4014
  %4039 = vmatpush1.bf16.msra.mxu0 %v4013
  %4040 = vmatprep.subr.bf16.mxu0 %v4012
  %4041 = vmatpush1.bf16.msra.mxu0 %v4011
  %4042 = vmatprep.subr.bf16.mxu0 %v4010
  %4043 = vmatpush1.bf16.msra.mxu0 %v4009
  %4044 = vmatprep.subr.bf16.mxu0 %v4008
  %4045 = vmatpush1.bf16.msra.mxu0 %v4007
  %4046 = vmatprep.subr.bf16.mxu0 %v4006
  %4047 = vmatpush1.bf16.msra.mxu0 %v4005
  %4048 = vmatprep.subr.bf16.mxu0 0
  %4049 = vmatpush2.bf16.msra.mxu0 0
  %4050 = vmatprep.subr.bf16.mxu0 0
  %4051 = vmatpush2.bf16.msra.mxu0 0
  %4052 = vmatprep.subr.bf16.mxu0 0
  %4053 = vmatpush2.bf16.msra.mxu0 0
  %4054 = vmatprep.subr.bf16.mxu0 0
  %4055 = vmatpush2.bf16.msra.mxu0 0
  %4056 = vmatprep.subr.bf16.mxu0 0
  %4057 = vmatpush2.bf16.msra.mxu0 0
  %4058 = vmatprep.subr.bf16.mxu0 0
  %4059 = vmatpush2.bf16.msra.mxu0 0
  %4060 = vmatprep.subr.bf16.mxu0 0
  %4061 = vmatpush2.bf16.msra.mxu0 0
  %4062 = vmatprep.subr.bf16.mxu0 0
  %4063 = vmatpush2.bf16.msra.mxu0 0
  %4064 = vmatprep.mubr.bf16.mxu0 0
  %4065 = vmatmul.mubr.bf16.gmra.mxu0 %v4030
  %v4066 = vpop.f32.mrf.mxu0
  %v4067 = vadd.f32 0.0, %v4066
  %v4068 = vpop.f32.mrf.mxu0
  %v4069 = vadd.f32 0.0, %v4068
  %v4070 = vpop.f32.mrf.mxu0
  %v4071 = vpop.f32.mrf.mxu0
  %4072 = vdwg.mxu0
  %v4073 = vadd.f32 %v3952, %v4067
  %v4074 = vadd.f32 %v3953, %v4069
  %s4075 = scalar_lea.vmem %s2, 40
  %v4076 = vld [vmem:[%s4075] sm:$0x3]
  %v4077 = vpack.c.bf16 %v4076, %v4076
  %v4078 = vld [vmem:[%s574] sm:$0xff]
  %v4079 = vld [vmem:[%s574 + $0x8] sm:$0xff]
  %v4080 = vld [vmem:[%s574 + $0x10] sm:$0xff]
  %v4081 = vld [vmem:[%s574 + $0x18] sm:$0xff]
  %v4082 = vld [vmem:[%s574 + $0x20] sm:$0xff]
  %v4083 = vld [vmem:[%s574 + $0x28] sm:$0xff]
  %v4084 = vld [vmem:[%s574 + $0x30] sm:$0xff]
  %v4085 = vld [vmem:[%s574 + $0x38] sm:$0xff]
  %v4086 = vld [vmem:[%s574 + $0x40] sm:$0xff]
  %v4087 = vld [vmem:[%s574 + $0x48] sm:$0xff]
  %v4088 = vld [vmem:[%s574 + $0x50] sm:$0xff]
  %v4089 = vld [vmem:[%s574 + $0x58] sm:$0xff]
  %v4102 = vunpack.c.l.b16 %v4078
  %v4103 = vunpack.c.h.b16 %v4078
  %v4104 = vunpack.c.l.b16 %v4079
  %v4105 = vunpack.c.h.b16 %v4079
  %v4106 = vunpack.c.l.b16 %v4080
  %v4107 = vunpack.c.h.b16 %v4080
  %v4108 = vunpack.c.l.b16 %v4081
  %v4109 = vunpack.c.h.b16 %v4081
  %v4110 = vunpack.c.l.b16 %v4082
  %v4111 = vunpack.c.h.b16 %v4082
  %v4112 = vunpack.c.l.b16 %v4083
  %v4113 = vunpack.c.h.b16 %v4083
  %v4114 = vunpack.c.l.b16 %v4084
  %v4115 = vunpack.c.h.b16 %v4084
  %v4116 = vunpack.c.l.b16 %v4085
  %v4117 = vunpack.c.h.b16 %v4085
  %v4118 = vunpack.c.l.b16 %v4086
  %v4119 = vunpack.c.h.b16 %v4086
  %v4120 = vunpack.c.l.b16 %v4087
  %v4121 = vunpack.c.h.b16 %v4087
  %v4122 = vunpack.c.l.b16 %v4088
  %v4123 = vunpack.c.h.b16 %v4088
  %v4124 = vunpack.c.l.b16 %v4089
  %v4125 = vunpack.c.h.b16 %v4089
  %v4126 = vpack.c.b16 %v4104, %v4102
  %v4127 = vpack.c.b16 %v4105, %v4103
  %v4128 = vpack.c.b16 %v4108, %v4106
  %v4129 = vpack.c.b16 %v4109, %v4107
  %v4130 = vpack.c.b16 %v4112, %v4110
  %v4131 = vpack.c.b16 %v4113, %v4111
  %v4132 = vpack.c.b16 %v4116, %v4114
  %v4133 = vpack.c.b16 %v4117, %v4115
  %v4134 = vpack.c.b16 %v4120, %v4118
  %v4135 = vpack.c.b16 %v4121, %v4119
  %v4136 = vpack.c.b16 %v4124, %v4122
  %v4137 = vpack.c.b16 %v4125, %v4123
  %v4151 = vsel %vm391, %v4077, 0
  %4153 = vmatprep.subr.bf16.mxu0 0
  %4154 = vmatpush1.bf16.msra.mxu0 0
  %4155 = vmatprep.subr.bf16.mxu0 0
  %4156 = vmatpush1.bf16.msra.mxu0 0
  %4157 = vmatprep.subr.bf16.mxu0 %v4137
  %4158 = vmatpush1.bf16.msra.mxu0 %v4136
  %4159 = vmatprep.subr.bf16.mxu0 %v4135
  %4160 = vmatpush1.bf16.msra.mxu0 %v4134
  %4161 = vmatprep.subr.bf16.mxu0 %v4133
  %4162 = vmatpush1.bf16.msra.mxu0 %v4132
  %4163 = vmatprep.subr.bf16.mxu0 %v4131
  %4164 = vmatpush1.bf16.msra.mxu0 %v4130
  %4165 = vmatprep.subr.bf16.mxu0 %v4129
  %4166 = vmatpush1.bf16.msra.mxu0 %v4128
  %4167 = vmatprep.subr.bf16.mxu0 %v4127
  %4168 = vmatpush1.bf16.msra.mxu0 %v4126
  %4169 = vmatprep.subr.bf16.mxu0 0
  %4170 = vmatpush2.bf16.msra.mxu0 0
  %4171 = vmatprep.subr.bf16.mxu0 0
  %4172 = vmatpush2.bf16.msra.mxu0 0
  %4173 = vmatprep.subr.bf16.mxu0 0
  %4174 = vmatpush2.bf16.msra.mxu0 0
  %4175 = vmatprep.subr.bf16.mxu0 0
  %4176 = vmatpush2.bf16.msra.mxu0 0
  %4177 = vmatprep.subr.bf16.mxu0 0
  %4178 = vmatpush2.bf16.msra.mxu0 0
  %4179 = vmatprep.subr.bf16.mxu0 0
  %4180 = vmatpush2.bf16.msra.mxu0 0
  %4181 = vmatprep.subr.bf16.mxu0 0
  %4182 = vmatpush2.bf16.msra.mxu0 0
  %4183 = vmatprep.subr.bf16.mxu0 0
  %4184 = vmatpush2.bf16.msra.mxu0 0
  %4185 = vmatprep.mubr.bf16.mxu0 0
  %4186 = vmatmul.mubr.bf16.gmra.mxu0 %v4151
  %v4187 = vpop.f32.mrf.mxu0
  %v4188 = vadd.f32 0.0, %v4187
  %v4189 = vpop.f32.mrf.mxu0
  %v4190 = vadd.f32 0.0, %v4189
  %v4191 = vpop.f32.mrf.mxu0
  %v4192 = vpop.f32.mrf.mxu0
  %4193 = vdwg.mxu0
  %v4194 = vadd.f32 %v4073, %v4188
  %v4195 = vadd.f32 %v4074, %v4190
  %v4196 = vmax.f32 %v4194, 0.0
  %v4197 = vmax.f32 %v4195, 0.0
  %v4200 = vcombine.low %v4196, %v4197
  %v4202 = vunpack.c.l.s4 1983009808
  %v4203 = vunpack.c.0.s8 %v4202
  %v4204 = vlaneseq
  %v4205 = vshrl.u32 %v4204, 7
  %v4206 = vsub.s32 %v4203, %v4205
  %v4207 = vrot.slane %v4200, %v4206
  %s4209 = scalar_lea.vmem [#allocation2], 36
  %4210 = vst.msk [vmem:[%s4209] sm:$0xf] %vm708, %v4207
  %v4211 = vld [vmem:[%s9] sm:$0x3]
  %v4212 = vld [vmem:[%s4075] sm:$0x3]
  %v4213 = vpack.c.bf16 %v4212, %v4212
  %v4214 = vld [vmem:[%s8] sm:$0xff]
  %v4215 = vld [vmem:[%s8 + $0x8] sm:$0xff]
  %v4216 = vld [vmem:[%s8 + $0x10] sm:$0xff]
  %v4217 = vld [vmem:[%s8 + $0x18] sm:$0xff]
  %v4218 = vld [vmem:[%s8 + $0x20] sm:$0xff]
  %v4219 = vld [vmem:[%s8 + $0x28] sm:$0xff]
  %v4220 = vld [vmem:[%s8 + $0x30] sm:$0xff]
  %v4221 = vld [vmem:[%s8 + $0x38] sm:$0xff]
  %v4222 = vld [vmem:[%s8 + $0x40] sm:$0xff]
  %v4223 = vld [vmem:[%s8 + $0x48] sm:$0xff]
  %v4224 = vld [vmem:[%s8 + $0x50] sm:$0xff]
  %v4225 = vld [vmem:[%s8 + $0x58] sm:$0xff]
  %v4238 = vunpack.c.l.b16 %v4214
  %v4239 = vunpack.c.h.b16 %v4214
  %v4240 = vunpack.c.l.b16 %v4215
  %v4241 = vunpack.c.h.b16 %v4215
  %v4242 = vunpack.c.l.b16 %v4216
  %v4243 = vunpack.c.h.b16 %v4216
  %v4244 = vunpack.c.l.b16 %v4217
  %v4245 = vunpack.c.h.b16 %v4217
  %v4246 = vunpack.c.l.b16 %v4218
  %v4247 = vunpack.c.h.b16 %v4218
  %v4248 = vunpack.c.l.b16 %v4219
  %v4249 = vunpack.c.h.b16 %v4219
  %v4250 = vunpack.c.l.b16 %v4220
  %v4251 = vunpack.c.h.b16 %v4220
  %v4252 = vunpack.c.l.b16 %v4221
  %v4253 = vunpack.c.h.b16 %v4221
  %v4254 = vunpack.c.l.b16 %v4222
  %v4255 = vunpack.c.h.b16 %v4222
  %v4256 = vunpack.c.l.b16 %v4223
  %v4257 = vunpack.c.h.b16 %v4223
  %v4258 = vunpack.c.l.b16 %v4224
  %v4259 = vunpack.c.h.b16 %v4224
  %v4260 = vunpack.c.l.b16 %v4225
  %v4261 = vunpack.c.h.b16 %v4225
  %v4262 = vpack.c.b16 %v4240, %v4238
  %v4263 = vpack.c.b16 %v4241, %v4239
  %v4264 = vpack.c.b16 %v4244, %v4242
  %v4265 = vpack.c.b16 %v4245, %v4243
  %v4266 = vpack.c.b16 %v4248, %v4246
  %v4267 = vpack.c.b16 %v4249, %v4247
  %v4268 = vpack.c.b16 %v4252, %v4250
  %v4269 = vpack.c.b16 %v4253, %v4251
  %v4270 = vpack.c.b16 %v4256, %v4254
  %v4271 = vpack.c.b16 %v4257, %v4255
  %v4272 = vpack.c.b16 %v4260, %v4258
  %v4273 = vpack.c.b16 %v4261, %v4259
  %v4287 = vsel %vm391, %v4213, 0
  %4289 = vmatprep.subr.bf16.mxu0 0
  %4290 = vmatpush1.bf16.msra.mxu0 0
  %4291 = vmatprep.subr.bf16.mxu0 0
  %4292 = vmatpush1.bf16.msra.mxu0 0
  %4293 = vmatprep.subr.bf16.mxu0 %v4273
  %4294 = vmatpush1.bf16.msra.mxu0 %v4272
  %4295 = vmatprep.subr.bf16.mxu0 %v4271
  %4296 = vmatpush1.bf16.msra.mxu0 %v4270
  %4297 = vmatprep.subr.bf16.mxu0 %v4269
  %4298 = vmatpush1.bf16.msra.mxu0 %v4268
  %4299 = vmatprep.subr.bf16.mxu0 %v4267
  %4300 = vmatpush1.bf16.msra.mxu0 %v4266
  %4301 = vmatprep.subr.bf16.mxu0 %v4265
  %4302 = vmatpush1.bf16.msra.mxu0 %v4264
  %4303 = vmatprep.subr.bf16.mxu0 %v4263
  %4304 = vmatpush1.bf16.msra.mxu0 %v4262
  %4305 = vmatprep.subr.bf16.mxu0 0
  %4306 = vmatpush2.bf16.msra.mxu0 0
  %4307 = vmatprep.subr.bf16.mxu0 0
  %4308 = vmatpush2.bf16.msra.mxu0 0
  %4309 = vmatprep.subr.bf16.mxu0 0
  %4310 = vmatpush2.bf16.msra.mxu0 0
  %4311 = vmatprep.subr.bf16.mxu0 0
  %4312 = vmatpush2.bf16.msra.mxu0 0
  %4313 = vmatprep.subr.bf16.mxu0 0
  %4314 = vmatpush2.bf16.msra.mxu0 0
  %4315 = vmatprep.subr.bf16.mxu0 0
  %4316 = vmatpush2.bf16.msra.mxu0 0
  %4317 = vmatprep.subr.bf16.mxu0 0
  %4318 = vmatpush2.bf16.msra.mxu0 0
  %4319 = vmatprep.subr.bf16.mxu0 0
  %4320 = vmatpush2.bf16.msra.mxu0 0
  %4321 = vmatprep.mubr.bf16.mxu0 0
  %4322 = vmatmul.mubr.bf16.gmra.mxu0 %v4287
  %v4323 = vpop.f32.mrf.mxu0
  %v4324 = vadd.f32 0.0, %v4323
  %v4325 = vpop.f32.mrf.mxu0
  %v4326 = vadd.f32 0.0, %v4325
  %v4327 = vpop.f32.mrf.mxu0
  %v4328 = vpop.f32.mrf.mxu0
  %4329 = vdwg.mxu0
  %v4331 = vlaneseq
  %v4332 = vshrl.u32 %v4331, 7
  %v4333 = vsub.s32 0, %v4332
  %v4334 = vrot.slane %v4211, %v4333
  %v4335 = vlaneseq
  %v4336 = vshrl.u32 %v4335, 7
  %v4337 = vsub.s32 1, %v4336
  %v4338 = vrot.slane %v4211, %v4337
  %v4341 = vadd.f32 %v4334, %v4324
  %v4342 = vadd.f32 %v4338, %v4326
  %s4343 = scalar_lea.vmem %s2, 42
  %v4344 = vld [vmem:[%s4343] sm:$0x3]
  %v4345 = vpack.c.bf16 %v4344, %v4344
  %v4346 = vld [vmem:[%s452] sm:$0xff]
  %v4347 = vld [vmem:[%s452 + $0x8] sm:$0xff]
  %v4348 = vld [vmem:[%s452 + $0x10] sm:$0xff]
  %v4349 = vld [vmem:[%s452 + $0x18] sm:$0xff]
  %v4350 = vld [vmem:[%s452 + $0x20] sm:$0xff]
  %v4351 = vld [vmem:[%s452 + $0x28] sm:$0xff]
  %v4352 = vld [vmem:[%s452 + $0x30] sm:$0xff]
  %v4353 = vld [vmem:[%s452 + $0x38] sm:$0xff]
  %v4354 = vld [vmem:[%s452 + $0x40] sm:$0xff]
  %v4355 = vld [vmem:[%s452 + $0x48] sm:$0xff]
  %v4356 = vld [vmem:[%s452 + $0x50] sm:$0xff]
  %v4357 = vld [vmem:[%s452 + $0x58] sm:$0xff]
  %v4370 = vunpack.c.l.b16 %v4346
  %v4371 = vunpack.c.h.b16 %v4346
  %v4372 = vunpack.c.l.b16 %v4347
  %v4373 = vunpack.c.h.b16 %v4347
  %v4374 = vunpack.c.l.b16 %v4348
  %v4375 = vunpack.c.h.b16 %v4348
  %v4376 = vunpack.c.l.b16 %v4349
  %v4377 = vunpack.c.h.b16 %v4349
  %v4378 = vunpack.c.l.b16 %v4350
  %v4379 = vunpack.c.h.b16 %v4350
  %v4380 = vunpack.c.l.b16 %v4351
  %v4381 = vunpack.c.h.b16 %v4351
  %v4382 = vunpack.c.l.b16 %v4352
  %v4383 = vunpack.c.h.b16 %v4352
  %v4384 = vunpack.c.l.b16 %v4353
  %v4385 = vunpack.c.h.b16 %v4353
  %v4386 = vunpack.c.l.b16 %v4354
  %v4387 = vunpack.c.h.b16 %v4354
  %v4388 = vunpack.c.l.b16 %v4355
  %v4389 = vunpack.c.h.b16 %v4355
  %v4390 = vunpack.c.l.b16 %v4356
  %v4391 = vunpack.c.h.b16 %v4356
  %v4392 = vunpack.c.l.b16 %v4357
  %v4393 = vunpack.c.h.b16 %v4357
  %v4394 = vpack.c.b16 %v4372, %v4370
  %v4395 = vpack.c.b16 %v4373, %v4371
  %v4396 = vpack.c.b16 %v4376, %v4374
  %v4397 = vpack.c.b16 %v4377, %v4375
  %v4398 = vpack.c.b16 %v4380, %v4378
  %v4399 = vpack.c.b16 %v4381, %v4379
  %v4400 = vpack.c.b16 %v4384, %v4382
  %v4401 = vpack.c.b16 %v4385, %v4383
  %v4402 = vpack.c.b16 %v4388, %v4386
  %v4403 = vpack.c.b16 %v4389, %v4387
  %v4404 = vpack.c.b16 %v4392, %v4390
  %v4405 = vpack.c.b16 %v4393, %v4391
  %v4419 = vsel %vm391, %v4345, 0
  %4421 = vmatprep.subr.bf16.mxu0 0
  %4422 = vmatpush1.bf16.msra.mxu0 0
  %4423 = vmatprep.subr.bf16.mxu0 0
  %4424 = vmatpush1.bf16.msra.mxu0 0
  %4425 = vmatprep.subr.bf16.mxu0 %v4405
  %4426 = vmatpush1.bf16.msra.mxu0 %v4404
  %4427 = vmatprep.subr.bf16.mxu0 %v4403
  %4428 = vmatpush1.bf16.msra.mxu0 %v4402
  %4429 = vmatprep.subr.bf16.mxu0 %v4401
  %4430 = vmatpush1.bf16.msra.mxu0 %v4400
  %4431 = vmatprep.subr.bf16.mxu0 %v4399
  %4432 = vmatpush1.bf16.msra.mxu0 %v4398
  %4433 = vmatprep.subr.bf16.mxu0 %v4397
  %4434 = vmatpush1.bf16.msra.mxu0 %v4396
  %4435 = vmatprep.subr.bf16.mxu0 %v4395
  %4436 = vmatpush1.bf16.msra.mxu0 %v4394
  %4437 = vmatprep.subr.bf16.mxu0 0
  %4438 = vmatpush2.bf16.msra.mxu0 0
  %4439 = vmatprep.subr.bf16.mxu0 0
  %4440 = vmatpush2.bf16.msra.mxu0 0
  %4441 = vmatprep.subr.bf16.mxu0 0
  %4442 = vmatpush2.bf16.msra.mxu0 0
  %4443 = vmatprep.subr.bf16.mxu0 0
  %4444 = vmatpush2.bf16.msra.mxu0 0
  %4445 = vmatprep.subr.bf16.mxu0 0
  %4446 = vmatpush2.bf16.msra.mxu0 0
  %4447 = vmatprep.subr.bf16.mxu0 0
  %4448 = vmatpush2.bf16.msra.mxu0 0
  %4449 = vmatprep.subr.bf16.mxu0 0
  %4450 = vmatpush2.bf16.msra.mxu0 0
  %4451 = vmatprep.subr.bf16.mxu0 0
  %4452 = vmatpush2.bf16.msra.mxu0 0
  %4453 = vmatprep.mubr.bf16.mxu0 0
  %4454 = vmatmul.mubr.bf16.gmra.mxu0 %v4419
  %v4455 = vpop.f32.mrf.mxu0
  %v4456 = vadd.f32 0.0, %v4455
  %v4457 = vpop.f32.mrf.mxu0
  %v4458 = vadd.f32 0.0, %v4457
  %v4459 = vpop.f32.mrf.mxu0
  %v4460 = vpop.f32.mrf.mxu0
  %4461 = vdwg.mxu0
  %v4462 = vadd.f32 %v4341, %v4456
  %v4463 = vadd.f32 %v4342, %v4458
  %s4464 = scalar_lea.vmem %s2, 44
  %v4465 = vld [vmem:[%s4464] sm:$0x3]
  %v4466 = vpack.c.bf16 %v4465, %v4465
  %v4467 = vld [vmem:[%s574] sm:$0xff]
  %v4468 = vld [vmem:[%s574 + $0x8] sm:$0xff]
  %v4469 = vld [vmem:[%s574 + $0x10] sm:$0xff]
  %v4470 = vld [vmem:[%s574 + $0x18] sm:$0xff]
  %v4471 = vld [vmem:[%s574 + $0x20] sm:$0xff]
  %v4472 = vld [vmem:[%s574 + $0x28] sm:$0xff]
  %v4473 = vld [vmem:[%s574 + $0x30] sm:$0xff]
  %v4474 = vld [vmem:[%s574 + $0x38] sm:$0xff]
  %v4475 = vld [vmem:[%s574 + $0x40] sm:$0xff]
  %v4476 = vld [vmem:[%s574 + $0x48] sm:$0xff]
  %v4477 = vld [vmem:[%s574 + $0x50] sm:$0xff]
  %v4478 = vld [vmem:[%s574 + $0x58] sm:$0xff]
  %v4491 = vunpack.c.l.b16 %v4467
  %v4492 = vunpack.c.h.b16 %v4467
  %v4493 = vunpack.c.l.b16 %v4468
  %v4494 = vunpack.c.h.b16 %v4468
  %v4495 = vunpack.c.l.b16 %v4469
  %v4496 = vunpack.c.h.b16 %v4469
  %v4497 = vunpack.c.l.b16 %v4470
  %v4498 = vunpack.c.h.b16 %v4470
  %v4499 = vunpack.c.l.b16 %v4471
  %v4500 = vunpack.c.h.b16 %v4471
  %v4501 = vunpack.c.l.b16 %v4472
  %v4502 = vunpack.c.h.b16 %v4472
  %v4503 = vunpack.c.l.b16 %v4473
  %v4504 = vunpack.c.h.b16 %v4473
  %v4505 = vunpack.c.l.b16 %v4474
  %v4506 = vunpack.c.h.b16 %v4474
  %v4507 = vunpack.c.l.b16 %v4475
  %v4508 = vunpack.c.h.b16 %v4475
  %v4509 = vunpack.c.l.b16 %v4476
  %v4510 = vunpack.c.h.b16 %v4476
  %v4511 = vunpack.c.l.b16 %v4477
  %v4512 = vunpack.c.h.b16 %v4477
  %v4513 = vunpack.c.l.b16 %v4478
  %v4514 = vunpack.c.h.b16 %v4478
  %v4515 = vpack.c.b16 %v4493, %v4491
  %v4516 = vpack.c.b16 %v4494, %v4492
  %v4517 = vpack.c.b16 %v4497, %v4495
  %v4518 = vpack.c.b16 %v4498, %v4496
  %v4519 = vpack.c.b16 %v4501, %v4499
  %v4520 = vpack.c.b16 %v4502, %v4500
  %v4521 = vpack.c.b16 %v4505, %v4503
  %v4522 = vpack.c.b16 %v4506, %v4504
  %v4523 = vpack.c.b16 %v4509, %v4507
  %v4524 = vpack.c.b16 %v4510, %v4508
  %v4525 = vpack.c.b16 %v4513, %v4511
  %v4526 = vpack.c.b16 %v4514, %v4512
  %v4540 = vsel %vm391, %v4466, 0
  %4542 = vmatprep.subr.bf16.mxu0 0
  %4543 = vmatpush1.bf16.msra.mxu0 0
  %4544 = vmatprep.subr.bf16.mxu0 0
  %4545 = vmatpush1.bf16.msra.mxu0 0
  %4546 = vmatprep.subr.bf16.mxu0 %v4526
  %4547 = vmatpush1.bf16.msra.mxu0 %v4525
  %4548 = vmatprep.subr.bf16.mxu0 %v4524
  %4549 = vmatpush1.bf16.msra.mxu0 %v4523
  %4550 = vmatprep.subr.bf16.mxu0 %v4522
  %4551 = vmatpush1.bf16.msra.mxu0 %v4521
  %4552 = vmatprep.subr.bf16.mxu0 %v4520
  %4553 = vmatpush1.bf16.msra.mxu0 %v4519
  %4554 = vmatprep.subr.bf16.mxu0 %v4518
  %4555 = vmatpush1.bf16.msra.mxu0 %v4517
  %4556 = vmatprep.subr.bf16.mxu0 %v4516
  %4557 = vmatpush1.bf16.msra.mxu0 %v4515
  %4558 = vmatprep.subr.bf16.mxu0 0
  %4559 = vmatpush2.bf16.msra.mxu0 0
  %4560 = vmatprep.subr.bf16.mxu0 0
  %4561 = vmatpush2.bf16.msra.mxu0 0
  %4562 = vmatprep.subr.bf16.mxu0 0
  %4563 = vmatpush2.bf16.msra.mxu0 0
  %4564 = vmatprep.subr.bf16.mxu0 0
  %4565 = vmatpush2.bf16.msra.mxu0 0
  %4566 = vmatprep.subr.bf16.mxu0 0
  %4567 = vmatpush2.bf16.msra.mxu0 0
  %4568 = vmatprep.subr.bf16.mxu0 0
  %4569 = vmatpush2.bf16.msra.mxu0 0
  %4570 = vmatprep.subr.bf16.mxu0 0
  %4571 = vmatpush2.bf16.msra.mxu0 0
  %4572 = vmatprep.subr.bf16.mxu0 0
  %4573 = vmatpush2.bf16.msra.mxu0 0
  %4574 = vmatprep.mubr.bf16.mxu0 0
  %4575 = vmatmul.mubr.bf16.gmra.mxu0 %v4540
  %v4576 = vpop.f32.mrf.mxu0
  %v4577 = vadd.f32 0.0, %v4576
  %v4578 = vpop.f32.mrf.mxu0
  %v4579 = vadd.f32 0.0, %v4578
  %v4580 = vpop.f32.mrf.mxu0
  %v4581 = vpop.f32.mrf.mxu0
  %4582 = vdwg.mxu0
  %v4583 = vadd.f32 %v4462, %v4577
  %v4584 = vadd.f32 %v4463, %v4579
  %v4585 = vmax.f32 %v4583, 0.0
  %v4586 = vmax.f32 %v4584, 0.0
  %v4589 = vcombine.low %v4585, %v4586
  %v4591 = vunpack.c.l.s4 1983009808
  %v4592 = vunpack.c.0.s8 %v4591
  %v4593 = vlaneseq
  %v4594 = vshrl.u32 %v4593, 7
  %v4595 = vsub.s32 %v4592, %v4594
  %v4596 = vrot.slane %v4589, %v4595
  %s4598 = scalar_lea.vmem [#allocation2], 40
  %4599 = vst.msk [vmem:[%s4598] sm:$0xf] %vm708, %v4596
  %v4600 = vld [vmem:[%s9] sm:$0x3]
  %v4601 = vld [vmem:[%s4464] sm:$0x3]
  %v4602 = vpack.c.bf16 %v4601, %v4601
  %v4603 = vld [vmem:[%s8] sm:$0xff]
  %v4604 = vld [vmem:[%s8 + $0x8] sm:$0xff]
  %v4605 = vld [vmem:[%s8 + $0x10] sm:$0xff]
  %v4606 = vld [vmem:[%s8 + $0x18] sm:$0xff]
  %v4607 = vld [vmem:[%s8 + $0x20] sm:$0xff]
  %v4608 = vld [vmem:[%s8 + $0x28] sm:$0xff]
  %v4609 = vld [vmem:[%s8 + $0x30] sm:$0xff]
  %v4610 = vld [vmem:[%s8 + $0x38] sm:$0xff]
  %v4611 = vld [vmem:[%s8 + $0x40] sm:$0xff]
  %v4612 = vld [vmem:[%s8 + $0x48] sm:$0xff]
  %v4613 = vld [vmem:[%s8 + $0x50] sm:$0xff]
  %v4614 = vld [vmem:[%s8 + $0x58] sm:$0xff]
  %v4627 = vunpack.c.l.b16 %v4603
  %v4628 = vunpack.c.h.b16 %v4603
  %v4629 = vunpack.c.l.b16 %v4604
  %v4630 = vunpack.c.h.b16 %v4604
  %v4631 = vunpack.c.l.b16 %v4605
  %v4632 = vunpack.c.h.b16 %v4605
  %v4633 = vunpack.c.l.b16 %v4606
  %v4634 = vunpack.c.h.b16 %v4606
  %v4635 = vunpack.c.l.b16 %v4607
  %v4636 = vunpack.c.h.b16 %v4607
  %v4637 = vunpack.c.l.b16 %v4608
  %v4638 = vunpack.c.h.b16 %v4608
  %v4639 = vunpack.c.l.b16 %v4609
  %v4640 = vunpack.c.h.b16 %v4609
  %v4641 = vunpack.c.l.b16 %v4610
  %v4642 = vunpack.c.h.b16 %v4610
  %v4643 = vunpack.c.l.b16 %v4611
  %v4644 = vunpack.c.h.b16 %v4611
  %v4645 = vunpack.c.l.b16 %v4612
  %v4646 = vunpack.c.h.b16 %v4612
  %v4647 = vunpack.c.l.b16 %v4613
  %v4648 = vunpack.c.h.b16 %v4613
  %v4649 = vunpack.c.l.b16 %v4614
  %v4650 = vunpack.c.h.b16 %v4614
  %v4651 = vpack.c.b16 %v4629, %v4627
  %v4652 = vpack.c.b16 %v4630, %v4628
  %v4653 = vpack.c.b16 %v4633, %v4631
  %v4654 = vpack.c.b16 %v4634, %v4632
  %v4655 = vpack.c.b16 %v4637, %v4635
  %v4656 = vpack.c.b16 %v4638, %v4636
  %v4657 = vpack.c.b16 %v4641, %v4639
  %v4658 = vpack.c.b16 %v4642, %v4640
  %v4659 = vpack.c.b16 %v4645, %v4643
  %v4660 = vpack.c.b16 %v4646, %v4644
  %v4661 = vpack.c.b16 %v4649, %v4647
  %v4662 = vpack.c.b16 %v4650, %v4648
  %v4676 = vsel %vm391, %v4602, 0
  %4678 = vmatprep.subr.bf16.mxu0 0
  %4679 = vmatpush1.bf16.msra.mxu0 0
  %4680 = vmatprep.subr.bf16.mxu0 0
  %4681 = vmatpush1.bf16.msra.mxu0 0
  %4682 = vmatprep.subr.bf16.mxu0 %v4662
  %4683 = vmatpush1.bf16.msra.mxu0 %v4661
  %4684 = vmatprep.subr.bf16.mxu0 %v4660
  %4685 = vmatpush1.bf16.msra.mxu0 %v4659
  %4686 = vmatprep.subr.bf16.mxu0 %v4658
  %4687 = vmatpush1.bf16.msra.mxu0 %v4657
  %4688 = vmatprep.subr.bf16.mxu0 %v4656
  %4689 = vmatpush1.bf16.msra.mxu0 %v4655
  %4690 = vmatprep.subr.bf16.mxu0 %v4654
  %4691 = vmatpush1.bf16.msra.mxu0 %v4653
  %4692 = vmatprep.subr.bf16.mxu0 %v4652
  %4693 = vmatpush1.bf16.msra.mxu0 %v4651
  %4694 = vmatprep.subr.bf16.mxu0 0
  %4695 = vmatpush2.bf16.msra.mxu0 0
  %4696 = vmatprep.subr.bf16.mxu0 0
  %4697 = vmatpush2.bf16.msra.mxu0 0
  %4698 = vmatprep.subr.bf16.mxu0 0
  %4699 = vmatpush2.bf16.msra.mxu0 0
  %4700 = vmatprep.subr.bf16.mxu0 0
  %4701 = vmatpush2.bf16.msra.mxu0 0
  %4702 = vmatprep.subr.bf16.mxu0 0
  %4703 = vmatpush2.bf16.msra.mxu0 0
  %4704 = vmatprep.subr.bf16.mxu0 0
  %4705 = vmatpush2.bf16.msra.mxu0 0
  %4706 = vmatprep.subr.bf16.mxu0 0
  %4707 = vmatpush2.bf16.msra.mxu0 0
  %4708 = vmatprep.subr.bf16.mxu0 0
  %4709 = vmatpush2.bf16.msra.mxu0 0
  %4710 = vmatprep.mubr.bf16.mxu0 0
  %4711 = vmatmul.mubr.bf16.gmra.mxu0 %v4676
  %v4712 = vpop.f32.mrf.mxu0
  %v4713 = vadd.f32 0.0, %v4712
  %v4714 = vpop.f32.mrf.mxu0
  %v4715 = vadd.f32 0.0, %v4714
  %v4716 = vpop.f32.mrf.mxu0
  %v4717 = vpop.f32.mrf.mxu0
  %4718 = vdwg.mxu0
  %v4720 = vlaneseq
  %v4721 = vshrl.u32 %v4720, 7
  %v4722 = vsub.s32 0, %v4721
  %v4723 = vrot.slane %v4600, %v4722
  %v4724 = vlaneseq
  %v4725 = vshrl.u32 %v4724, 7
  %v4726 = vsub.s32 1, %v4725
  %v4727 = vrot.slane %v4600, %v4726
  %v4730 = vadd.f32 %v4723, %v4713
  %v4731 = vadd.f32 %v4727, %v4715
  %s4732 = scalar_lea.vmem %s2, 46
  %v4733 = vld [vmem:[%s4732] sm:$0x3]
  %v4734 = vpack.c.bf16 %v4733, %v4733
  %v4735 = vld [vmem:[%s452] sm:$0xff]
  %v4736 = vld [vmem:[%s452 + $0x8] sm:$0xff]
  %v4737 = vld [vmem:[%s452 + $0x10] sm:$0xff]
  %v4738 = vld [vmem:[%s452 + $0x18] sm:$0xff]
  %v4739 = vld [vmem:[%s452 + $0x20] sm:$0xff]
  %v4740 = vld [vmem:[%s452 + $0x28] sm:$0xff]
  %v4741 = vld [vmem:[%s452 + $0x30] sm:$0xff]
  %v4742 = vld [vmem:[%s452 + $0x38] sm:$0xff]
  %v4743 = vld [vmem:[%s452 + $0x40] sm:$0xff]
  %v4744 = vld [vmem:[%s452 + $0x48] sm:$0xff]
  %v4745 = vld [vmem:[%s452 + $0x50] sm:$0xff]
  %v4746 = vld [vmem:[%s452 + $0x58] sm:$0xff]
  %v4759 = vunpack.c.l.b16 %v4735
  %v4760 = vunpack.c.h.b16 %v4735
  %v4761 = vunpack.c.l.b16 %v4736
  %v4762 = vunpack.c.h.b16 %v4736
  %v4763 = vunpack.c.l.b16 %v4737
  %v4764 = vunpack.c.h.b16 %v4737
  %v4765 = vunpack.c.l.b16 %v4738
  %v4766 = vunpack.c.h.b16 %v4738
  %v4767 = vunpack.c.l.b16 %v4739
  %v4768 = vunpack.c.h.b16 %v4739
  %v4769 = vunpack.c.l.b16 %v4740
  %v4770 = vunpack.c.h.b16 %v4740
  %v4771 = vunpack.c.l.b16 %v4741
  %v4772 = vunpack.c.h.b16 %v4741
  %v4773 = vunpack.c.l.b16 %v4742
  %v4774 = vunpack.c.h.b16 %v4742
  %v4775 = vunpack.c.l.b16 %v4743
  %v4776 = vunpack.c.h.b16 %v4743
  %v4777 = vunpack.c.l.b16 %v4744
  %v4778 = vunpack.c.h.b16 %v4744
  %v4779 = vunpack.c.l.b16 %v4745
  %v4780 = vunpack.c.h.b16 %v4745
  %v4781 = vunpack.c.l.b16 %v4746
  %v4782 = vunpack.c.h.b16 %v4746
  %v4783 = vpack.c.b16 %v4761, %v4759
  %v4784 = vpack.c.b16 %v4762, %v4760
  %v4785 = vpack.c.b16 %v4765, %v4763
  %v4786 = vpack.c.b16 %v4766, %v4764
  %v4787 = vpack.c.b16 %v4769, %v4767
  %v4788 = vpack.c.b16 %v4770, %v4768
  %v4789 = vpack.c.b16 %v4773, %v4771
  %v4790 = vpack.c.b16 %v4774, %v4772
  %v4791 = vpack.c.b16 %v4777, %v4775
  %v4792 = vpack.c.b16 %v4778, %v4776
  %v4793 = vpack.c.b16 %v4781, %v4779
  %v4794 = vpack.c.b16 %v4782, %v4780
  %v4808 = vsel %vm391, %v4734, 0
  %4810 = vmatprep.subr.bf16.mxu0 0
  %4811 = vmatpush1.bf16.msra.mxu0 0
  %4812 = vmatprep.subr.bf16.mxu0 0
  %4813 = vmatpush1.bf16.msra.mxu0 0
  %4814 = vmatprep.subr.bf16.mxu0 %v4794
  %4815 = vmatpush1.bf16.msra.mxu0 %v4793
  %4816 = vmatprep.subr.bf16.mxu0 %v4792
  %4817 = vmatpush1.bf16.msra.mxu0 %v4791
  %4818 = vmatprep.subr.bf16.mxu0 %v4790
  %4819 = vmatpush1.bf16.msra.mxu0 %v4789
  %4820 = vmatprep.subr.bf16.mxu0 %v4788
  %4821 = vmatpush1.bf16.msra.mxu0 %v4787
  %4822 = vmatprep.subr.bf16.mxu0 %v4786
  %4823 = vmatpush1.bf16.msra.mxu0 %v4785
  %4824 = vmatprep.subr.bf16.mxu0 %v4784
  %4825 = vmatpush1.bf16.msra.mxu0 %v4783
  %4826 = vmatprep.subr.bf16.mxu0 0
  %4827 = vmatpush2.bf16.msra.mxu0 0
  %4828 = vmatprep.subr.bf16.mxu0 0
  %4829 = vmatpush2.bf16.msra.mxu0 0
  %4830 = vmatprep.subr.bf16.mxu0 0
  %4831 = vmatpush2.bf16.msra.mxu0 0
  %4832 = vmatprep.subr.bf16.mxu0 0
  %4833 = vmatpush2.bf16.msra.mxu0 0
  %4834 = vmatprep.subr.bf16.mxu0 0
  %4835 = vmatpush2.bf16.msra.mxu0 0
  %4836 = vmatprep.subr.bf16.mxu0 0
  %4837 = vmatpush2.bf16.msra.mxu0 0
  %4838 = vmatprep.subr.bf16.mxu0 0
  %4839 = vmatpush2.bf16.msra.mxu0 0
  %4840 = vmatprep.subr.bf16.mxu0 0
  %4841 = vmatpush2.bf16.msra.mxu0 0
  %4842 = vmatprep.mubr.bf16.mxu0 0
  %4843 = vmatmul.mubr.bf16.gmra.mxu0 %v4808
  %v4844 = vpop.f32.mrf.mxu0
  %v4845 = vadd.f32 0.0, %v4844
  %v4846 = vpop.f32.mrf.mxu0
  %v4847 = vadd.f32 0.0, %v4846
  %v4848 = vpop.f32.mrf.mxu0
  %v4849 = vpop.f32.mrf.mxu0
  %4850 = vdwg.mxu0
  %v4851 = vadd.f32 %v4730, %v4845
  %v4852 = vadd.f32 %v4731, %v4847
  %s4853 = scalar_lea.vmem %s2, 48
  %v4854 = vld [vmem:[%s4853] sm:$0x3]
  %v4855 = vpack.c.bf16 %v4854, %v4854
  %v4856 = vld [vmem:[%s574] sm:$0xff]
  %v4857 = vld [vmem:[%s574 + $0x8] sm:$0xff]
  %v4858 = vld [vmem:[%s574 + $0x10] sm:$0xff]
  %v4859 = vld [vmem:[%s574 + $0x18] sm:$0xff]
  %v4860 = vld [vmem:[%s574 + $0x20] sm:$0xff]
  %v4861 = vld [vmem:[%s574 + $0x28] sm:$0xff]
  %v4862 = vld [vmem:[%s574 + $0x30] sm:$0xff]
  %v4863 = vld [vmem:[%s574 + $0x38] sm:$0xff]
  %v4864 = vld [vmem:[%s574 + $0x40] sm:$0xff]
  %v4865 = vld [vmem:[%s574 + $0x48] sm:$0xff]
  %v4866 = vld [vmem:[%s574 + $0x50] sm:$0xff]
  %v4867 = vld [vmem:[%s574 + $0x58] sm:$0xff]
  %v4880 = vunpack.c.l.b16 %v4856
  %v4881 = vunpack.c.h.b16 %v4856
  %v4882 = vunpack.c.l.b16 %v4857
  %v4883 = vunpack.c.h.b16 %v4857
  %v4884 = vunpack.c.l.b16 %v4858
  %v4885 = vunpack.c.h.b16 %v4858
  %v4886 = vunpack.c.l.b16 %v4859
  %v4887 = vunpack.c.h.b16 %v4859
  %v4888 = vunpack.c.l.b16 %v4860
  %v4889 = vunpack.c.h.b16 %v4860
  %v4890 = vunpack.c.l.b16 %v4861
  %v4891 = vunpack.c.h.b16 %v4861
  %v4892 = vunpack.c.l.b16 %v4862
  %v4893 = vunpack.c.h.b16 %v4862
  %v4894 = vunpack.c.l.b16 %v4863
  %v4895 = vunpack.c.h.b16 %v4863
  %v4896 = vunpack.c.l.b16 %v4864
  %v4897 = vunpack.c.h.b16 %v4864
  %v4898 = vunpack.c.l.b16 %v4865
  %v4899 = vunpack.c.h.b16 %v4865
  %v4900 = vunpack.c.l.b16 %v4866
  %v4901 = vunpack.c.h.b16 %v4866
  %v4902 = vunpack.c.l.b16 %v4867
  %v4903 = vunpack.c.h.b16 %v4867
  %v4904 = vpack.c.b16 %v4882, %v4880
  %v4905 = vpack.c.b16 %v4883, %v4881
  %v4906 = vpack.c.b16 %v4886, %v4884
  %v4907 = vpack.c.b16 %v4887, %v4885
  %v4908 = vpack.c.b16 %v4890, %v4888
  %v4909 = vpack.c.b16 %v4891, %v4889
  %v4910 = vpack.c.b16 %v4894, %v4892
  %v4911 = vpack.c.b16 %v4895, %v4893
  %v4912 = vpack.c.b16 %v4898, %v4896
  %v4913 = vpack.c.b16 %v4899, %v4897
  %v4914 = vpack.c.b16 %v4902, %v4900
  %v4915 = vpack.c.b16 %v4903, %v4901
  %v4929 = vsel %vm391, %v4855, 0
  %4931 = vmatprep.subr.bf16.mxu0 0
  %4932 = vmatpush1.bf16.msra.mxu0 0
  %4933 = vmatprep.subr.bf16.mxu0 0
  %4934 = vmatpush1.bf16.msra.mxu0 0
  %4935 = vmatprep.subr.bf16.mxu0 %v4915
  %4936 = vmatpush1.bf16.msra.mxu0 %v4914
  %4937 = vmatprep.subr.bf16.mxu0 %v4913
  %4938 = vmatpush1.bf16.msra.mxu0 %v4912
  %4939 = vmatprep.subr.bf16.mxu0 %v4911
  %4940 = vmatpush1.bf16.msra.mxu0 %v4910
  %4941 = vmatprep.subr.bf16.mxu0 %v4909
  %4942 = vmatpush1.bf16.msra.mxu0 %v4908
  %4943 = vmatprep.subr.bf16.mxu0 %v4907
  %4944 = vmatpush1.bf16.msra.mxu0 %v4906
  %4945 = vmatprep.subr.bf16.mxu0 %v4905
  %4946 = vmatpush1.bf16.msra.mxu0 %v4904
  %4947 = vmatprep.subr.bf16.mxu0 0
  %4948 = vmatpush2.bf16.msra.mxu0 0
  %4949 = vmatprep.subr.bf16.mxu0 0
  %4950 = vmatpush2.bf16.msra.mxu0 0
  %4951 = vmatprep.subr.bf16.mxu0 0
  %4952 = vmatpush2.bf16.msra.mxu0 0
  %4953 = vmatprep.subr.bf16.mxu0 0
  %4954 = vmatpush2.bf16.msra.mxu0 0
  %4955 = vmatprep.subr.bf16.mxu0 0
  %4956 = vmatpush2.bf16.msra.mxu0 0
  %4957 = vmatprep.subr.bf16.mxu0 0
  %4958 = vmatpush2.bf16.msra.mxu0 0
  %4959 = vmatprep.subr.bf16.mxu0 0
  %4960 = vmatpush2.bf16.msra.mxu0 0
  %4961 = vmatprep.subr.bf16.mxu0 0
  %4962 = vmatpush2.bf16.msra.mxu0 0
  %4963 = vmatprep.mubr.bf16.mxu0 0
  %4964 = vmatmul.mubr.bf16.gmra.mxu0 %v4929
  %v4965 = vpop.f32.mrf.mxu0
  %v4966 = vadd.f32 0.0, %v4965
  %v4967 = vpop.f32.mrf.mxu0
  %v4968 = vadd.f32 0.0, %v4967
  %v4969 = vpop.f32.mrf.mxu0
  %v4970 = vpop.f32.mrf.mxu0
  %4971 = vdwg.mxu0
  %v4972 = vadd.f32 %v4851, %v4966
  %v4973 = vadd.f32 %v4852, %v4968
  %v4974 = vmax.f32 %v4972, 0.0
  %v4975 = vmax.f32 %v4973, 0.0
  %v4978 = vcombine.low %v4974, %v4975
  %v4980 = vunpack.c.l.s4 1983009808
  %v4981 = vunpack.c.0.s8 %v4980
  %v4982 = vlaneseq
  %v4983 = vshrl.u32 %v4982, 7
  %v4984 = vsub.s32 %v4981, %v4983
  %v4985 = vrot.slane %v4978, %v4984
  %s4987 = scalar_lea.vmem [#allocation2], 44
  %4988 = vst.msk [vmem:[%s4987] sm:$0xf] %vm708, %v4985
  %v4989 = vld [vmem:[%s9] sm:$0x3]
  %v4990 = vld [vmem:[%s4853] sm:$0x3]
  %v4991 = vpack.c.bf16 %v4990, %v4990
  %v4992 = vld [vmem:[%s8] sm:$0xff]
  %v4993 = vld [vmem:[%s8 + $0x8] sm:$0xff]
  %v4994 = vld [vmem:[%s8 + $0x10] sm:$0xff]
  %v4995 = vld [vmem:[%s8 + $0x18] sm:$0xff]
  %v4996 = vld [vmem:[%s8 + $0x20] sm:$0xff]
  %v4997 = vld [vmem:[%s8 + $0x28] sm:$0xff]
  %v4998 = vld [vmem:[%s8 + $0x30] sm:$0xff]
  %v4999 = vld [vmem:[%s8 + $0x38] sm:$0xff]
  %v5000 = vld [vmem:[%s8 + $0x40] sm:$0xff]
  %v5001 = vld [vmem:[%s8 + $0x48] sm:$0xff]
  %v5002 = vld [vmem:[%s8 + $0x50] sm:$0xff]
  %v5003 = vld [vmem:[%s8 + $0x58] sm:$0xff]
  %v5016 = vunpack.c.l.b16 %v4992
  %v5017 = vunpack.c.h.b16 %v4992
  %v5018 = vunpack.c.l.b16 %v4993
  %v5019 = vunpack.c.h.b16 %v4993
  %v5020 = vunpack.c.l.b16 %v4994
  %v5021 = vunpack.c.h.b16 %v4994
  %v5022 = vunpack.c.l.b16 %v4995
  %v5023 = vunpack.c.h.b16 %v4995
  %v5024 = vunpack.c.l.b16 %v4996
  %v5025 = vunpack.c.h.b16 %v4996
  %v5026 = vunpack.c.l.b16 %v4997
  %v5027 = vunpack.c.h.b16 %v4997
  %v5028 = vunpack.c.l.b16 %v4998
  %v5029 = vunpack.c.h.b16 %v4998
  %v5030 = vunpack.c.l.b16 %v4999
  %v5031 = vunpack.c.h.b16 %v4999
  %v5032 = vunpack.c.l.b16 %v5000
  %v5033 = vunpack.c.h.b16 %v5000
  %v5034 = vunpack.c.l.b16 %v5001
  %v5035 = vunpack.c.h.b16 %v5001
  %v5036 = vunpack.c.l.b16 %v5002
  %v5037 = vunpack.c.h.b16 %v5002
  %v5038 = vunpack.c.l.b16 %v5003
  %v5039 = vunpack.c.h.b16 %v5003
  %v5040 = vpack.c.b16 %v5018, %v5016
  %v5041 = vpack.c.b16 %v5019, %v5017
  %v5042 = vpack.c.b16 %v5022, %v5020
  %v5043 = vpack.c.b16 %v5023, %v5021
  %v5044 = vpack.c.b16 %v5026, %v5024
  %v5045 = vpack.c.b16 %v5027, %v5025
  %v5046 = vpack.c.b16 %v5030, %v5028
  %v5047 = vpack.c.b16 %v5031, %v5029
  %v5048 = vpack.c.b16 %v5034, %v5032
  %v5049 = vpack.c.b16 %v5035, %v5033
  %v5050 = vpack.c.b16 %v5038, %v5036
  %v5051 = vpack.c.b16 %v5039, %v5037
  %v5065 = vsel %vm391, %v4991, 0
  %5067 = vmatprep.subr.bf16.mxu0 0
  %5068 = vmatpush1.bf16.msra.mxu0 0
  %5069 = vmatprep.subr.bf16.mxu0 0
  %5070 = vmatpush1.bf16.msra.mxu0 0
  %5071 = vmatprep.subr.bf16.mxu0 %v5051
  %5072 = vmatpush1.bf16.msra.mxu0 %v5050
  %5073 = vmatprep.subr.bf16.mxu0 %v5049
  %5074 = vmatpush1.bf16.msra.mxu0 %v5048
  %5075 = vmatprep.subr.bf16.mxu0 %v5047
  %5076 = vmatpush1.bf16.msra.mxu0 %v5046
  %5077 = vmatprep.subr.bf16.mxu0 %v5045
  %5078 = vmatpush1.bf16.msra.mxu0 %v5044
  %5079 = vmatprep.subr.bf16.mxu0 %v5043
  %5080 = vmatpush1.bf16.msra.mxu0 %v5042
  %5081 = vmatprep.subr.bf16.mxu0 %v5041
  %5082 = vmatpush1.bf16.msra.mxu0 %v5040
  %5083 = vmatprep.subr.bf16.mxu0 0
  %5084 = vmatpush2.bf16.msra.mxu0 0
  %5085 = vmatprep.subr.bf16.mxu0 0
  %5086 = vmatpush2.bf16.msra.mxu0 0
  %5087 = vmatprep.subr.bf16.mxu0 0
  %5088 = vmatpush2.bf16.msra.mxu0 0
  %5089 = vmatprep.subr.bf16.mxu0 0
  %5090 = vmatpush2.bf16.msra.mxu0 0
  %5091 = vmatprep.subr.bf16.mxu0 0
  %5092 = vmatpush2.bf16.msra.mxu0 0
  %5093 = vmatprep.subr.bf16.mxu0 0
  %5094 = vmatpush2.bf16.msra.mxu0 0
  %5095 = vmatprep.subr.bf16.mxu0 0
  %5096 = vmatpush2.bf16.msra.mxu0 0
  %5097 = vmatprep.subr.bf16.mxu0 0
  %5098 = vmatpush2.bf16.msra.mxu0 0
  %5099 = vmatprep.mubr.bf16.mxu0 0
  %5100 = vmatmul.mubr.bf16.gmra.mxu0 %v5065
  %v5101 = vpop.f32.mrf.mxu0
  %v5102 = vadd.f32 0.0, %v5101
  %v5103 = vpop.f32.mrf.mxu0
  %v5104 = vadd.f32 0.0, %v5103
  %v5105 = vpop.f32.mrf.mxu0
  %v5106 = vpop.f32.mrf.mxu0
  %5107 = vdwg.mxu0
  %v5109 = vlaneseq
  %v5110 = vshrl.u32 %v5109, 7
  %v5111 = vsub.s32 0, %v5110
  %v5112 = vrot.slane %v4989, %v5111
  %v5113 = vlaneseq
  %v5114 = vshrl.u32 %v5113, 7
  %v5115 = vsub.s32 1, %v5114
  %v5116 = vrot.slane %v4989, %v5115
  %v5119 = vadd.f32 %v5112, %v5102
  %v5120 = vadd.f32 %v5116, %v5104
  %s5121 = scalar_lea.vmem %s2, 50
  %v5122 = vld [vmem:[%s5121] sm:$0x3]
  %v5123 = vpack.c.bf16 %v5122, %v5122
  %v5124 = vld [vmem:[%s452] sm:$0xff]
  %v5125 = vld [vmem:[%s452 + $0x8] sm:$0xff]
  %v5126 = vld [vmem:[%s452 + $0x10] sm:$0xff]
  %v5127 = vld [vmem:[%s452 + $0x18] sm:$0xff]
  %v5128 = vld [vmem:[%s452 + $0x20] sm:$0xff]
  %v5129 = vld [vmem:[%s452 + $0x28] sm:$0xff]
  %v5130 = vld [vmem:[%s452 + $0x30] sm:$0xff]
  %v5131 = vld [vmem:[%s452 + $0x38] sm:$0xff]
  %v5132 = vld [vmem:[%s452 + $0x40] sm:$0xff]
  %v5133 = vld [vmem:[%s452 + $0x48] sm:$0xff]
  %v5134 = vld [vmem:[%s452 + $0x50] sm:$0xff]
  %v5135 = vld [vmem:[%s452 + $0x58] sm:$0xff]
  %v5148 = vunpack.c.l.b16 %v5124
  %v5149 = vunpack.c.h.b16 %v5124
  %v5150 = vunpack.c.l.b16 %v5125
  %v5151 = vunpack.c.h.b16 %v5125
  %v5152 = vunpack.c.l.b16 %v5126
  %v5153 = vunpack.c.h.b16 %v5126
  %v5154 = vunpack.c.l.b16 %v5127
  %v5155 = vunpack.c.h.b16 %v5127
  %v5156 = vunpack.c.l.b16 %v5128
  %v5157 = vunpack.c.h.b16 %v5128
  %v5158 = vunpack.c.l.b16 %v5129
  %v5159 = vunpack.c.h.b16 %v5129
  %v5160 = vunpack.c.l.b16 %v5130
  %v5161 = vunpack.c.h.b16 %v5130
  %v5162 = vunpack.c.l.b16 %v5131
  %v5163 = vunpack.c.h.b16 %v5131
  %v5164 = vunpack.c.l.b16 %v5132
  %v5165 = vunpack.c.h.b16 %v5132
  %v5166 = vunpack.c.l.b16 %v5133
  %v5167 = vunpack.c.h.b16 %v5133
  %v5168 = vunpack.c.l.b16 %v5134
  %v5169 = vunpack.c.h.b16 %v5134
  %v5170 = vunpack.c.l.b16 %v5135
  %v5171 = vunpack.c.h.b16 %v5135
  %v5172 = vpack.c.b16 %v5150, %v5148
  %v5173 = vpack.c.b16 %v5151, %v5149
  %v5174 = vpack.c.b16 %v5154, %v5152
  %v5175 = vpack.c.b16 %v5155, %v5153
  %v5176 = vpack.c.b16 %v5158, %v5156
  %v5177 = vpack.c.b16 %v5159, %v5157
  %v5178 = vpack.c.b16 %v5162, %v5160
  %v5179 = vpack.c.b16 %v5163, %v5161
  %v5180 = vpack.c.b16 %v5166, %v5164
  %v5181 = vpack.c.b16 %v5167, %v5165
  %v5182 = vpack.c.b16 %v5170, %v5168
  %v5183 = vpack.c.b16 %v5171, %v5169
  %v5197 = vsel %vm391, %v5123, 0
  %5199 = vmatprep.subr.bf16.mxu0 0
  %5200 = vmatpush1.bf16.msra.mxu0 0
  %5201 = vmatprep.subr.bf16.mxu0 0
  %5202 = vmatpush1.bf16.msra.mxu0 0
  %5203 = vmatprep.subr.bf16.mxu0 %v5183
  %5204 = vmatpush1.bf16.msra.mxu0 %v5182
  %5205 = vmatprep.subr.bf16.mxu0 %v5181
  %5206 = vmatpush1.bf16.msra.mxu0 %v5180
  %5207 = vmatprep.subr.bf16.mxu0 %v5179
  %5208 = vmatpush1.bf16.msra.mxu0 %v5178
  %5209 = vmatprep.subr.bf16.mxu0 %v5177
  %5210 = vmatpush1.bf16.msra.mxu0 %v5176
  %5211 = vmatprep.subr.bf16.mxu0 %v5175
  %5212 = vmatpush1.bf16.msra.mxu0 %v5174
  %5213 = vmatprep.subr.bf16.mxu0 %v5173
  %5214 = vmatpush1.bf16.msra.mxu0 %v5172
  %5215 = vmatprep.subr.bf16.mxu0 0
  %5216 = vmatpush2.bf16.msra.mxu0 0
  %5217 = vmatprep.subr.bf16.mxu0 0
  %5218 = vmatpush2.bf16.msra.mxu0 0
  %5219 = vmatprep.subr.bf16.mxu0 0
  %5220 = vmatpush2.bf16.msra.mxu0 0
  %5221 = vmatprep.subr.bf16.mxu0 0
  %5222 = vmatpush2.bf16.msra.mxu0 0
  %5223 = vmatprep.subr.bf16.mxu0 0
  %5224 = vmatpush2.bf16.msra.mxu0 0
  %5225 = vmatprep.subr.bf16.mxu0 0
  %5226 = vmatpush2.bf16.msra.mxu0 0
  %5227 = vmatprep.subr.bf16.mxu0 0
  %5228 = vmatpush2.bf16.msra.mxu0 0
  %5229 = vmatprep.subr.bf16.mxu0 0
  %5230 = vmatpush2.bf16.msra.mxu0 0
  %5231 = vmatprep.mubr.bf16.mxu0 0
  %5232 = vmatmul.mubr.bf16.gmra.mxu0 %v5197
  %v5233 = vpop.f32.mrf.mxu0
  %v5234 = vadd.f32 0.0, %v5233
  %v5235 = vpop.f32.mrf.mxu0
  %v5236 = vadd.f32 0.0, %v5235
  %v5237 = vpop.f32.mrf.mxu0
  %v5238 = vpop.f32.mrf.mxu0
  %5239 = vdwg.mxu0
  %v5240 = vadd.f32 %v5119, %v5234
  %v5241 = vadd.f32 %v5120, %v5236
  %s5242 = scalar_lea.vmem %s2, 52
  %v5243 = vld [vmem:[%s5242] sm:$0x3]
  %v5244 = vpack.c.bf16 %v5243, %v5243
  %v5245 = vld [vmem:[%s574] sm:$0xff]
  %v5246 = vld [vmem:[%s574 + $0x8] sm:$0xff]
  %v5247 = vld [vmem:[%s574 + $0x10] sm:$0xff]
  %v5248 = vld [vmem:[%s574 + $0x18] sm:$0xff]
  %v5249 = vld [vmem:[%s574 + $0x20] sm:$0xff]
  %v5250 = vld [vmem:[%s574 + $0x28] sm:$0xff]
  %v5251 = vld [vmem:[%s574 + $0x30] sm:$0xff]
  %v5252 = vld [vmem:[%s574 + $0x38] sm:$0xff]
  %v5253 = vld [vmem:[%s574 + $0x40] sm:$0xff]
  %v5254 = vld [vmem:[%s574 + $0x48] sm:$0xff]
  %v5255 = vld [vmem:[%s574 + $0x50] sm:$0xff]
  %v5256 = vld [vmem:[%s574 + $0x58] sm:$0xff]
  %v5269 = vunpack.c.l.b16 %v5245
  %v5270 = vunpack.c.h.b16 %v5245
  %v5271 = vunpack.c.l.b16 %v5246
  %v5272 = vunpack.c.h.b16 %v5246
  %v5273 = vunpack.c.l.b16 %v5247
  %v5274 = vunpack.c.h.b16 %v5247
  %v5275 = vunpack.c.l.b16 %v5248
  %v5276 = vunpack.c.h.b16 %v5248
  %v5277 = vunpack.c.l.b16 %v5249
  %v5278 = vunpack.c.h.b16 %v5249
  %v5279 = vunpack.c.l.b16 %v5250
  %v5280 = vunpack.c.h.b16 %v5250
  %v5281 = vunpack.c.l.b16 %v5251
  %v5282 = vunpack.c.h.b16 %v5251
  %v5283 = vunpack.c.l.b16 %v5252
  %v5284 = vunpack.c.h.b16 %v5252
  %v5285 = vunpack.c.l.b16 %v5253
  %v5286 = vunpack.c.h.b16 %v5253
  %v5287 = vunpack.c.l.b16 %v5254
  %v5288 = vunpack.c.h.b16 %v5254
  %v5289 = vunpack.c.l.b16 %v5255
  %v5290 = vunpack.c.h.b16 %v5255
  %v5291 = vunpack.c.l.b16 %v5256
  %v5292 = vunpack.c.h.b16 %v5256
  %v5293 = vpack.c.b16 %v5271, %v5269
  %v5294 = vpack.c.b16 %v5272, %v5270
  %v5295 = vpack.c.b16 %v5275, %v5273
  %v5296 = vpack.c.b16 %v5276, %v5274
  %v5297 = vpack.c.b16 %v5279, %v5277
  %v5298 = vpack.c.b16 %v5280, %v5278
  %v5299 = vpack.c.b16 %v5283, %v5281
  %v5300 = vpack.c.b16 %v5284, %v5282
  %v5301 = vpack.c.b16 %v5287, %v5285
  %v5302 = vpack.c.b16 %v5288, %v5286
  %v5303 = vpack.c.b16 %v5291, %v5289
  %v5304 = vpack.c.b16 %v5292, %v5290
  %v5318 = vsel %vm391, %v5244, 0
  %5320 = vmatprep.subr.bf16.mxu0 0
  %5321 = vmatpush1.bf16.msra.mxu0 0
  %5322 = vmatprep.subr.bf16.mxu0 0
  %5323 = vmatpush1.bf16.msra.mxu0 0
  %5324 = vmatprep.subr.bf16.mxu0 %v5304
  %5325 = vmatpush1.bf16.msra.mxu0 %v5303
  %5326 = vmatprep.subr.bf16.mxu0 %v5302
  %5327 = vmatpush1.bf16.msra.mxu0 %v5301
  %5328 = vmatprep.subr.bf16.mxu0 %v5300
  %5329 = vmatpush1.bf16.msra.mxu0 %v5299
  %5330 = vmatprep.subr.bf16.mxu0 %v5298
  %5331 = vmatpush1.bf16.msra.mxu0 %v5297
  %5332 = vmatprep.subr.bf16.mxu0 %v5296
  %5333 = vmatpush1.bf16.msra.mxu0 %v5295
  %5334 = vmatprep.subr.bf16.mxu0 %v5294
  %5335 = vmatpush1.bf16.msra.mxu0 %v5293
  %5336 = vmatprep.subr.bf16.mxu0 0
  %5337 = vmatpush2.bf16.msra.mxu0 0
  %5338 = vmatprep.subr.bf16.mxu0 0
  %5339 = vmatpush2.bf16.msra.mxu0 0
  %5340 = vmatprep.subr.bf16.mxu0 0
  %5341 = vmatpush2.bf16.msra.mxu0 0
  %5342 = vmatprep.subr.bf16.mxu0 0
  %5343 = vmatpush2.bf16.msra.mxu0 0
  %5344 = vmatprep.subr.bf16.mxu0 0
  %5345 = vmatpush2.bf16.msra.mxu0 0
  %5346 = vmatprep.subr.bf16.mxu0 0
  %5347 = vmatpush2.bf16.msra.mxu0 0
  %5348 = vmatprep.subr.bf16.mxu0 0
  %5349 = vmatpush2.bf16.msra.mxu0 0
  %5350 = vmatprep.subr.bf16.mxu0 0
  %5351 = vmatpush2.bf16.msra.mxu0 0
  %5352 = vmatprep.mubr.bf16.mxu0 0
  %5353 = vmatmul.mubr.bf16.gmra.mxu0 %v5318
  %v5354 = vpop.f32.mrf.mxu0
  %v5355 = vadd.f32 0.0, %v5354
  %v5356 = vpop.f32.mrf.mxu0
  %v5357 = vadd.f32 0.0, %v5356
  %v5358 = vpop.f32.mrf.mxu0
  %v5359 = vpop.f32.mrf.mxu0
  %5360 = vdwg.mxu0
  %v5361 = vadd.f32 %v5240, %v5355
  %v5362 = vadd.f32 %v5241, %v5357
  %v5363 = vmax.f32 %v5361, 0.0
  %v5364 = vmax.f32 %v5362, 0.0
  %v5367 = vcombine.low %v5363, %v5364
  %v5369 = vunpack.c.l.s4 1983009808
  %v5370 = vunpack.c.0.s8 %v5369
  %v5371 = vlaneseq
  %v5372 = vshrl.u32 %v5371, 7
  %v5373 = vsub.s32 %v5370, %v5372
  %v5374 = vrot.slane %v5367, %v5373
  %s5376 = scalar_lea.vmem [#allocation2], 48
  %5377 = vst.msk [vmem:[%s5376] sm:$0xf] %vm708, %v5374
  %v5378 = vld [vmem:[%s9] sm:$0x3]
  %v5379 = vld [vmem:[%s5242] sm:$0x3]
  %v5380 = vpack.c.bf16 %v5379, %v5379
  %v5381 = vld [vmem:[%s8] sm:$0xff]
  %v5382 = vld [vmem:[%s8 + $0x8] sm:$0xff]
  %v5383 = vld [vmem:[%s8 + $0x10] sm:$0xff]
  %v5384 = vld [vmem:[%s8 + $0x18] sm:$0xff]
  %v5385 = vld [vmem:[%s8 + $0x20] sm:$0xff]
  %v5386 = vld [vmem:[%s8 + $0x28] sm:$0xff]
  %v5387 = vld [vmem:[%s8 + $0x30] sm:$0xff]
  %v5388 = vld [vmem:[%s8 + $0x38] sm:$0xff]
  %v5389 = vld [vmem:[%s8 + $0x40] sm:$0xff]
  %v5390 = vld [vmem:[%s8 + $0x48] sm:$0xff]
  %v5391 = vld [vmem:[%s8 + $0x50] sm:$0xff]
  %v5392 = vld [vmem:[%s8 + $0x58] sm:$0xff]
  %v5405 = vunpack.c.l.b16 %v5381
  %v5406 = vunpack.c.h.b16 %v5381
  %v5407 = vunpack.c.l.b16 %v5382
  %v5408 = vunpack.c.h.b16 %v5382
  %v5409 = vunpack.c.l.b16 %v5383
  %v5410 = vunpack.c.h.b16 %v5383
  %v5411 = vunpack.c.l.b16 %v5384
  %v5412 = vunpack.c.h.b16 %v5384
  %v5413 = vunpack.c.l.b16 %v5385
  %v5414 = vunpack.c.h.b16 %v5385
  %v5415 = vunpack.c.l.b16 %v5386
  %v5416 = vunpack.c.h.b16 %v5386
  %v5417 = vunpack.c.l.b16 %v5387
  %v5418 = vunpack.c.h.b16 %v5387
  %v5419 = vunpack.c.l.b16 %v5388
  %v5420 = vunpack.c.h.b16 %v5388
  %v5421 = vunpack.c.l.b16 %v5389
  %v5422 = vunpack.c.h.b16 %v5389
  %v5423 = vunpack.c.l.b16 %v5390
  %v5424 = vunpack.c.h.b16 %v5390
  %v5425 = vunpack.c.l.b16 %v5391
  %v5426 = vunpack.c.h.b16 %v5391
  %v5427 = vunpack.c.l.b16 %v5392
  %v5428 = vunpack.c.h.b16 %v5392
  %v5429 = vpack.c.b16 %v5407, %v5405
  %v5430 = vpack.c.b16 %v5408, %v5406
  %v5431 = vpack.c.b16 %v5411, %v5409
  %v5432 = vpack.c.b16 %v5412, %v5410
  %v5433 = vpack.c.b16 %v5415, %v5413
  %v5434 = vpack.c.b16 %v5416, %v5414
  %v5435 = vpack.c.b16 %v5419, %v5417
  %v5436 = vpack.c.b16 %v5420, %v5418
  %v5437 = vpack.c.b16 %v5423, %v5421
  %v5438 = vpack.c.b16 %v5424, %v5422
  %v5439 = vpack.c.b16 %v5427, %v5425
  %v5440 = vpack.c.b16 %v5428, %v5426
  %v5454 = vsel %vm391, %v5380, 0
  %5456 = vmatprep.subr.bf16.mxu0 0
  %5457 = vmatpush1.bf16.msra.mxu0 0
  %5458 = vmatprep.subr.bf16.mxu0 0
  %5459 = vmatpush1.bf16.msra.mxu0 0
  %5460 = vmatprep.subr.bf16.mxu0 %v5440
  %5461 = vmatpush1.bf16.msra.mxu0 %v5439
  %5462 = vmatprep.subr.bf16.mxu0 %v5438
  %5463 = vmatpush1.bf16.msra.mxu0 %v5437
  %5464 = vmatprep.subr.bf16.mxu0 %v5436
  %5465 = vmatpush1.bf16.msra.mxu0 %v5435
  %5466 = vmatprep.subr.bf16.mxu0 %v5434
  %5467 = vmatpush1.bf16.msra.mxu0 %v5433
  %5468 = vmatprep.subr.bf16.mxu0 %v5432
  %5469 = vmatpush1.bf16.msra.mxu0 %v5431
  %5470 = vmatprep.subr.bf16.mxu0 %v5430
  %5471 = vmatpush1.bf16.msra.mxu0 %v5429
  %5472 = vmatprep.subr.bf16.mxu0 0
  %5473 = vmatpush2.bf16.msra.mxu0 0
  %5474 = vmatprep.subr.bf16.mxu0 0
  %5475 = vmatpush2.bf16.msra.mxu0 0
  %5476 = vmatprep.subr.bf16.mxu0 0
  %5477 = vmatpush2.bf16.msra.mxu0 0
  %5478 = vmatprep.subr.bf16.mxu0 0
  %5479 = vmatpush2.bf16.msra.mxu0 0
  %5480 = vmatprep.subr.bf16.mxu0 0
  %5481 = vmatpush2.bf16.msra.mxu0 0
  %5482 = vmatprep.subr.bf16.mxu0 0
  %5483 = vmatpush2.bf16.msra.mxu0 0
  %5484 = vmatprep.subr.bf16.mxu0 0
  %5485 = vmatpush2.bf16.msra.mxu0 0
  %5486 = vmatprep.subr.bf16.mxu0 0
  %5487 = vmatpush2.bf16.msra.mxu0 0
  %5488 = vmatprep.mubr.bf16.mxu0 0
  %5489 = vmatmul.mubr.bf16.gmra.mxu0 %v5454
  %v5490 = vpop.f32.mrf.mxu0
  %v5491 = vadd.f32 0.0, %v5490
  %v5492 = vpop.f32.mrf.mxu0
  %v5493 = vadd.f32 0.0, %v5492
  %v5494 = vpop.f32.mrf.mxu0
  %v5495 = vpop.f32.mrf.mxu0
  %5496 = vdwg.mxu0
  %v5498 = vlaneseq
  %v5499 = vshrl.u32 %v5498, 7
  %v5500 = vsub.s32 0, %v5499
  %v5501 = vrot.slane %v5378, %v5500
  %v5502 = vlaneseq
  %v5503 = vshrl.u32 %v5502, 7
  %v5504 = vsub.s32 1, %v5503
  %v5505 = vrot.slane %v5378, %v5504
  %v5508 = vadd.f32 %v5501, %v5491
  %v5509 = vadd.f32 %v5505, %v5493
  %s5510 = scalar_lea.vmem %s2, 54
  %v5511 = vld [vmem:[%s5510] sm:$0x3]
  %v5512 = vpack.c.bf16 %v5511, %v5511
  %v5513 = vld [vmem:[%s452] sm:$0xff]
  %v5514 = vld [vmem:[%s452 + $0x8] sm:$0xff]
  %v5515 = vld [vmem:[%s452 + $0x10] sm:$0xff]
  %v5516 = vld [vmem:[%s452 + $0x18] sm:$0xff]
  %v5517 = vld [vmem:[%s452 + $0x20] sm:$0xff]
  %v5518 = vld [vmem:[%s452 + $0x28] sm:$0xff]
  %v5519 = vld [vmem:[%s452 + $0x30] sm:$0xff]
  %v5520 = vld [vmem:[%s452 + $0x38] sm:$0xff]
  %v5521 = vld [vmem:[%s452 + $0x40] sm:$0xff]
  %v5522 = vld [vmem:[%s452 + $0x48] sm:$0xff]
  %v5523 = vld [vmem:[%s452 + $0x50] sm:$0xff]
  %v5524 = vld [vmem:[%s452 + $0x58] sm:$0xff]
  %v5537 = vunpack.c.l.b16 %v5513
  %v5538 = vunpack.c.h.b16 %v5513
  %v5539 = vunpack.c.l.b16 %v5514
  %v5540 = vunpack.c.h.b16 %v5514
  %v5541 = vunpack.c.l.b16 %v5515
  %v5542 = vunpack.c.h.b16 %v5515
  %v5543 = vunpack.c.l.b16 %v5516
  %v5544 = vunpack.c.h.b16 %v5516
  %v5545 = vunpack.c.l.b16 %v5517
  %v5546 = vunpack.c.h.b16 %v5517
  %v5547 = vunpack.c.l.b16 %v5518
  %v5548 = vunpack.c.h.b16 %v5518
  %v5549 = vunpack.c.l.b16 %v5519
  %v5550 = vunpack.c.h.b16 %v5519
  %v5551 = vunpack.c.l.b16 %v5520
  %v5552 = vunpack.c.h.b16 %v5520
  %v5553 = vunpack.c.l.b16 %v5521
  %v5554 = vunpack.c.h.b16 %v5521
  %v5555 = vunpack.c.l.b16 %v5522
  %v5556 = vunpack.c.h.b16 %v5522
  %v5557 = vunpack.c.l.b16 %v5523
  %v5558 = vunpack.c.h.b16 %v5523
  %v5559 = vunpack.c.l.b16 %v5524
  %v5560 = vunpack.c.h.b16 %v5524
  %v5561 = vpack.c.b16 %v5539, %v5537
  %v5562 = vpack.c.b16 %v5540, %v5538
  %v5563 = vpack.c.b16 %v5543, %v5541
  %v5564 = vpack.c.b16 %v5544, %v5542
  %v5565 = vpack.c.b16 %v5547, %v5545
  %v5566 = vpack.c.b16 %v5548, %v5546
  %v5567 = vpack.c.b16 %v5551, %v5549
  %v5568 = vpack.c.b16 %v5552, %v5550
  %v5569 = vpack.c.b16 %v5555, %v5553
  %v5570 = vpack.c.b16 %v5556, %v5554
  %v5571 = vpack.c.b16 %v5559, %v5557
  %v5572 = vpack.c.b16 %v5560, %v5558
  %v5586 = vsel %vm391, %v5512, 0
  %5588 = vmatprep.subr.bf16.mxu0 0
  %5589 = vmatpush1.bf16.msra.mxu0 0
  %5590 = vmatprep.subr.bf16.mxu0 0
  %5591 = vmatpush1.bf16.msra.mxu0 0
  %5592 = vmatprep.subr.bf16.mxu0 %v5572
  %5593 = vmatpush1.bf16.msra.mxu0 %v5571
  %5594 = vmatprep.subr.bf16.mxu0 %v5570
  %5595 = vmatpush1.bf16.msra.mxu0 %v5569
  %5596 = vmatprep.subr.bf16.mxu0 %v5568
  %5597 = vmatpush1.bf16.msra.mxu0 %v5567
  %5598 = vmatprep.subr.bf16.mxu0 %v5566
  %5599 = vmatpush1.bf16.msra.mxu0 %v5565
  %5600 = vmatprep.subr.bf16.mxu0 %v5564
  %5601 = vmatpush1.bf16.msra.mxu0 %v5563
  %5602 = vmatprep.subr.bf16.mxu0 %v5562
  %5603 = vmatpush1.bf16.msra.mxu0 %v5561
  %5604 = vmatprep.subr.bf16.mxu0 0
  %5605 = vmatpush2.bf16.msra.mxu0 0
  %5606 = vmatprep.subr.bf16.mxu0 0
  %5607 = vmatpush2.bf16.msra.mxu0 0
  %5608 = vmatprep.subr.bf16.mxu0 0
  %5609 = vmatpush2.bf16.msra.mxu0 0
  %5610 = vmatprep.subr.bf16.mxu0 0
  %5611 = vmatpush2.bf16.msra.mxu0 0
  %5612 = vmatprep.subr.bf16.mxu0 0
  %5613 = vmatpush2.bf16.msra.mxu0 0
  %5614 = vmatprep.subr.bf16.mxu0 0
  %5615 = vmatpush2.bf16.msra.mxu0 0
  %5616 = vmatprep.subr.bf16.mxu0 0
  %5617 = vmatpush2.bf16.msra.mxu0 0
  %5618 = vmatprep.subr.bf16.mxu0 0
  %5619 = vmatpush2.bf16.msra.mxu0 0
  %5620 = vmatprep.mubr.bf16.mxu0 0
  %5621 = vmatmul.mubr.bf16.gmra.mxu0 %v5586
  %v5622 = vpop.f32.mrf.mxu0
  %v5623 = vadd.f32 0.0, %v5622
  %v5624 = vpop.f32.mrf.mxu0
  %v5625 = vadd.f32 0.0, %v5624
  %v5626 = vpop.f32.mrf.mxu0
  %v5627 = vpop.f32.mrf.mxu0
  %5628 = vdwg.mxu0
  %v5629 = vadd.f32 %v5508, %v5623
  %v5630 = vadd.f32 %v5509, %v5625
  %s5631 = scalar_lea.vmem %s2, 56
  %v5632 = vld [vmem:[%s5631] sm:$0x3]
  %v5633 = vpack.c.bf16 %v5632, %v5632
  %v5634 = vld [vmem:[%s574] sm:$0xff]
  %v5635 = vld [vmem:[%s574 + $0x8] sm:$0xff]
  %v5636 = vld [vmem:[%s574 + $0x10] sm:$0xff]
  %v5637 = vld [vmem:[%s574 + $0x18] sm:$0xff]
  %v5638 = vld [vmem:[%s574 + $0x20] sm:$0xff]
  %v5639 = vld [vmem:[%s574 + $0x28] sm:$0xff]
  %v5640 = vld [vmem:[%s574 + $0x30] sm:$0xff]
  %v5641 = vld [vmem:[%s574 + $0x38] sm:$0xff]
  %v5642 = vld [vmem:[%s574 + $0x40] sm:$0xff]
  %v5643 = vld [vmem:[%s574 + $0x48] sm:$0xff]
  %v5644 = vld [vmem:[%s574 + $0x50] sm:$0xff]
  %v5645 = vld [vmem:[%s574 + $0x58] sm:$0xff]
  %v5658 = vunpack.c.l.b16 %v5634
  %v5659 = vunpack.c.h.b16 %v5634
  %v5660 = vunpack.c.l.b16 %v5635
  %v5661 = vunpack.c.h.b16 %v5635
  %v5662 = vunpack.c.l.b16 %v5636
  %v5663 = vunpack.c.h.b16 %v5636
  %v5664 = vunpack.c.l.b16 %v5637
  %v5665 = vunpack.c.h.b16 %v5637
  %v5666 = vunpack.c.l.b16 %v5638
  %v5667 = vunpack.c.h.b16 %v5638
  %v5668 = vunpack.c.l.b16 %v5639
  %v5669 = vunpack.c.h.b16 %v5639
  %v5670 = vunpack.c.l.b16 %v5640
  %v5671 = vunpack.c.h.b16 %v5640
  %v5672 = vunpack.c.l.b16 %v5641
  %v5673 = vunpack.c.h.b16 %v5641
  %v5674 = vunpack.c.l.b16 %v5642
  %v5675 = vunpack.c.h.b16 %v5642
  %v5676 = vunpack.c.l.b16 %v5643
  %v5677 = vunpack.c.h.b16 %v5643
  %v5678 = vunpack.c.l.b16 %v5644
  %v5679 = vunpack.c.h.b16 %v5644
  %v5680 = vunpack.c.l.b16 %v5645
  %v5681 = vunpack.c.h.b16 %v5645
  %v5682 = vpack.c.b16 %v5660, %v5658
  %v5683 = vpack.c.b16 %v5661, %v5659
  %v5684 = vpack.c.b16 %v5664, %v5662
  %v5685 = vpack.c.b16 %v5665, %v5663
  %v5686 = vpack.c.b16 %v5668, %v5666
  %v5687 = vpack.c.b16 %v5669, %v5667
  %v5688 = vpack.c.b16 %v5672, %v5670
  %v5689 = vpack.c.b16 %v5673, %v5671
  %v5690 = vpack.c.b16 %v5676, %v5674
  %v5691 = vpack.c.b16 %v5677, %v5675
  %v5692 = vpack.c.b16 %v5680, %v5678
  %v5693 = vpack.c.b16 %v5681, %v5679
  %v5707 = vsel %vm391, %v5633, 0
  %5709 = vmatprep.subr.bf16.mxu0 0
  %5710 = vmatpush1.bf16.msra.mxu0 0
  %5711 = vmatprep.subr.bf16.mxu0 0
  %5712 = vmatpush1.bf16.msra.mxu0 0
  %5713 = vmatprep.subr.bf16.mxu0 %v5693
  %5714 = vmatpush1.bf16.msra.mxu0 %v5692
  %5715 = vmatprep.subr.bf16.mxu0 %v5691
  %5716 = vmatpush1.bf16.msra.mxu0 %v5690
  %5717 = vmatprep.subr.bf16.mxu0 %v5689
  %5718 = vmatpush1.bf16.msra.mxu0 %v5688
  %5719 = vmatprep.subr.bf16.mxu0 %v5687
  %5720 = vmatpush1.bf16.msra.mxu0 %v5686
  %5721 = vmatprep.subr.bf16.mxu0 %v5685
  %5722 = vmatpush1.bf16.msra.mxu0 %v5684
  %5723 = vmatprep.subr.bf16.mxu0 %v5683
  %5724 = vmatpush1.bf16.msra.mxu0 %v5682
  %5725 = vmatprep.subr.bf16.mxu0 0
  %5726 = vmatpush2.bf16.msra.mxu0 0
  %5727 = vmatprep.subr.bf16.mxu0 0
  %5728 = vmatpush2.bf16.msra.mxu0 0
  %5729 = vmatprep.subr.bf16.mxu0 0
  %5730 = vmatpush2.bf16.msra.mxu0 0
  %5731 = vmatprep.subr.bf16.mxu0 0
  %5732 = vmatpush2.bf16.msra.mxu0 0
  %5733 = vmatprep.subr.bf16.mxu0 0
  %5734 = vmatpush2.bf16.msra.mxu0 0
  %5735 = vmatprep.subr.bf16.mxu0 0
  %5736 = vmatpush2.bf16.msra.mxu0 0
  %5737 = vmatprep.subr.bf16.mxu0 0
  %5738 = vmatpush2.bf16.msra.mxu0 0
  %5739 = vmatprep.subr.bf16.mxu0 0
  %5740 = vmatpush2.bf16.msra.mxu0 0
  %5741 = vmatprep.mubr.bf16.mxu0 0
  %5742 = vmatmul.mubr.bf16.gmra.mxu0 %v5707
  %v5743 = vpop.f32.mrf.mxu0
  %v5744 = vadd.f32 0.0, %v5743
  %v5745 = vpop.f32.mrf.mxu0
  %v5746 = vadd.f32 0.0, %v5745
  %v5747 = vpop.f32.mrf.mxu0
  %v5748 = vpop.f32.mrf.mxu0
  %5749 = vdwg.mxu0
  %v5750 = vadd.f32 %v5629, %v5744
  %v5751 = vadd.f32 %v5630, %v5746
  %v5752 = vmax.f32 %v5750, 0.0
  %v5753 = vmax.f32 %v5751, 0.0
  %v5756 = vcombine.low %v5752, %v5753
  %v5758 = vunpack.c.l.s4 1983009808
  %v5759 = vunpack.c.0.s8 %v5758
  %v5760 = vlaneseq
  %v5761 = vshrl.u32 %v5760, 7
  %v5762 = vsub.s32 %v5759, %v5761
  %v5763 = vrot.slane %v5756, %v5762
  %s5765 = scalar_lea.vmem [#allocation2], 52
  %5766 = vst.msk [vmem:[%s5765] sm:$0xf] %vm708, %v5763
  %v5767 = vld [vmem:[%s9] sm:$0x3]
  %v5768 = vld [vmem:[%s5631] sm:$0x3]
  %v5769 = vpack.c.bf16 %v5768, %v5768
  %v5770 = vld [vmem:[%s8] sm:$0xff]
  %v5771 = vld [vmem:[%s8 + $0x8] sm:$0xff]
  %v5772 = vld [vmem:[%s8 + $0x10] sm:$0xff]
  %v5773 = vld [vmem:[%s8 + $0x18] sm:$0xff]
  %v5774 = vld [vmem:[%s8 + $0x20] sm:$0xff]
  %v5775 = vld [vmem:[%s8 + $0x28] sm:$0xff]
  %v5776 = vld [vmem:[%s8 + $0x30] sm:$0xff]
  %v5777 = vld [vmem:[%s8 + $0x38] sm:$0xff]
  %v5778 = vld [vmem:[%s8 + $0x40] sm:$0xff]
  %v5779 = vld [vmem:[%s8 + $0x48] sm:$0xff]
  %v5780 = vld [vmem:[%s8 + $0x50] sm:$0xff]
  %v5781 = vld [vmem:[%s8 + $0x58] sm:$0xff]
  %v5794 = vunpack.c.l.b16 %v5770
  %v5795 = vunpack.c.h.b16 %v5770
  %v5796 = vunpack.c.l.b16 %v5771
  %v5797 = vunpack.c.h.b16 %v5771
  %v5798 = vunpack.c.l.b16 %v5772
  %v5799 = vunpack.c.h.b16 %v5772
  %v5800 = vunpack.c.l.b16 %v5773
  %v5801 = vunpack.c.h.b16 %v5773
  %v5802 = vunpack.c.l.b16 %v5774
  %v5803 = vunpack.c.h.b16 %v5774
  %v5804 = vunpack.c.l.b16 %v5775
  %v5805 = vunpack.c.h.b16 %v5775
  %v5806 = vunpack.c.l.b16 %v5776
  %v5807 = vunpack.c.h.b16 %v5776
  %v5808 = vunpack.c.l.b16 %v5777
  %v5809 = vunpack.c.h.b16 %v5777
  %v5810 = vunpack.c.l.b16 %v5778
  %v5811 = vunpack.c.h.b16 %v5778
  %v5812 = vunpack.c.l.b16 %v5779
  %v5813 = vunpack.c.h.b16 %v5779
  %v5814 = vunpack.c.l.b16 %v5780
  %v5815 = vunpack.c.h.b16 %v5780
  %v5816 = vunpack.c.l.b16 %v5781
  %v5817 = vunpack.c.h.b16 %v5781
  %v5818 = vpack.c.b16 %v5796, %v5794
  %v5819 = vpack.c.b16 %v5797, %v5795
  %v5820 = vpack.c.b16 %v5800, %v5798
  %v5821 = vpack.c.b16 %v5801, %v5799
  %v5822 = vpack.c.b16 %v5804, %v5802
  %v5823 = vpack.c.b16 %v5805, %v5803
  %v5824 = vpack.c.b16 %v5808, %v5806
  %v5825 = vpack.c.b16 %v5809, %v5807
  %v5826 = vpack.c.b16 %v5812, %v5810
  %v5827 = vpack.c.b16 %v5813, %v5811
  %v5828 = vpack.c.b16 %v5816, %v5814
  %v5829 = vpack.c.b16 %v5817, %v5815
  %v5843 = vsel %vm391, %v5769, 0
  %5845 = vmatprep.subr.bf16.mxu0 0
  %5846 = vmatpush1.bf16.msra.mxu0 0
  %5847 = vmatprep.subr.bf16.mxu0 0
  %5848 = vmatpush1.bf16.msra.mxu0 0
  %5849 = vmatprep.subr.bf16.mxu0 %v5829
  %5850 = vmatpush1.bf16.msra.mxu0 %v5828
  %5851 = vmatprep.subr.bf16.mxu0 %v5827
  %5852 = vmatpush1.bf16.msra.mxu0 %v5826
  %5853 = vmatprep.subr.bf16.mxu0 %v5825
  %5854 = vmatpush1.bf16.msra.mxu0 %v5824
  %5855 = vmatprep.subr.bf16.mxu0 %v5823
  %5856 = vmatpush1.bf16.msra.mxu0 %v5822
  %5857 = vmatprep.subr.bf16.mxu0 %v5821
  %5858 = vmatpush1.bf16.msra.mxu0 %v5820
  %5859 = vmatprep.subr.bf16.mxu0 %v5819
  %5860 = vmatpush1.bf16.msra.mxu0 %v5818
  %5861 = vmatprep.subr.bf16.mxu0 0
  %5862 = vmatpush2.bf16.msra.mxu0 0
  %5863 = vmatprep.subr.bf16.mxu0 0
  %5864 = vmatpush2.bf16.msra.mxu0 0
  %5865 = vmatprep.subr.bf16.mxu0 0
  %5866 = vmatpush2.bf16.msra.mxu0 0
  %5867 = vmatprep.subr.bf16.mxu0 0
  %5868 = vmatpush2.bf16.msra.mxu0 0
  %5869 = vmatprep.subr.bf16.mxu0 0
  %5870 = vmatpush2.bf16.msra.mxu0 0
  %5871 = vmatprep.subr.bf16.mxu0 0
  %5872 = vmatpush2.bf16.msra.mxu0 0
  %5873 = vmatprep.subr.bf16.mxu0 0
  %5874 = vmatpush2.bf16.msra.mxu0 0
  %5875 = vmatprep.subr.bf16.mxu0 0
  %5876 = vmatpush2.bf16.msra.mxu0 0
  %5877 = vmatprep.mubr.bf16.mxu0 0
  %5878 = vmatmul.mubr.bf16.gmra.mxu0 %v5843
  %v5879 = vpop.f32.mrf.mxu0
  %v5880 = vadd.f32 0.0, %v5879
  %v5881 = vpop.f32.mrf.mxu0
  %v5882 = vadd.f32 0.0, %v5881
  %v5883 = vpop.f32.mrf.mxu0
  %v5884 = vpop.f32.mrf.mxu0
  %5885 = vdwg.mxu0
  %v5887 = vlaneseq
  %v5888 = vshrl.u32 %v5887, 7
  %v5889 = vsub.s32 0, %v5888
  %v5890 = vrot.slane %v5767, %v5889
  %v5891 = vlaneseq
  %v5892 = vshrl.u32 %v5891, 7
  %v5893 = vsub.s32 1, %v5892
  %v5894 = vrot.slane %v5767, %v5893
  %v5897 = vadd.f32 %v5890, %v5880
  %v5898 = vadd.f32 %v5894, %v5882
  %s5899 = scalar_lea.vmem %s2, 58
  %v5900 = vld [vmem:[%s5899] sm:$0x3]
  %v5901 = vpack.c.bf16 %v5900, %v5900
  %v5902 = vld [vmem:[%s452] sm:$0xff]
  %v5903 = vld [vmem:[%s452 + $0x8] sm:$0xff]
  %v5904 = vld [vmem:[%s452 + $0x10] sm:$0xff]
  %v5905 = vld [vmem:[%s452 + $0x18] sm:$0xff]
  %v5906 = vld [vmem:[%s452 + $0x20] sm:$0xff]
  %v5907 = vld [vmem:[%s452 + $0x28] sm:$0xff]
  %v5908 = vld [vmem:[%s452 + $0x30] sm:$0xff]
  %v5909 = vld [vmem:[%s452 + $0x38] sm:$0xff]
  %v5910 = vld [vmem:[%s452 + $0x40] sm:$0xff]
  %v5911 = vld [vmem:[%s452 + $0x48] sm:$0xff]
  %v5912 = vld [vmem:[%s452 + $0x50] sm:$0xff]
  %v5913 = vld [vmem:[%s452 + $0x58] sm:$0xff]
  %v5926 = vunpack.c.l.b16 %v5902
  %v5927 = vunpack.c.h.b16 %v5902
  %v5928 = vunpack.c.l.b16 %v5903
  %v5929 = vunpack.c.h.b16 %v5903
  %v5930 = vunpack.c.l.b16 %v5904
  %v5931 = vunpack.c.h.b16 %v5904
  %v5932 = vunpack.c.l.b16 %v5905
  %v5933 = vunpack.c.h.b16 %v5905
  %v5934 = vunpack.c.l.b16 %v5906
  %v5935 = vunpack.c.h.b16 %v5906
  %v5936 = vunpack.c.l.b16 %v5907
  %v5937 = vunpack.c.h.b16 %v5907
  %v5938 = vunpack.c.l.b16 %v5908
  %v5939 = vunpack.c.h.b16 %v5908
  %v5940 = vunpack.c.l.b16 %v5909
  %v5941 = vunpack.c.h.b16 %v5909
  %v5942 = vunpack.c.l.b16 %v5910
  %v5943 = vunpack.c.h.b16 %v5910
  %v5944 = vunpack.c.l.b16 %v5911
  %v5945 = vunpack.c.h.b16 %v5911
  %v5946 = vunpack.c.l.b16 %v5912
  %v5947 = vunpack.c.h.b16 %v5912
  %v5948 = vunpack.c.l.b16 %v5913
  %v5949 = vunpack.c.h.b16 %v5913
  %v5950 = vpack.c.b16 %v5928, %v5926
  %v5951 = vpack.c.b16 %v5929, %v5927
  %v5952 = vpack.c.b16 %v5932, %v5930
  %v5953 = vpack.c.b16 %v5933, %v5931
  %v5954 = vpack.c.b16 %v5936, %v5934
  %v5955 = vpack.c.b16 %v5937, %v5935
  %v5956 = vpack.c.b16 %v5940, %v5938
  %v5957 = vpack.c.b16 %v5941, %v5939
  %v5958 = vpack.c.b16 %v5944, %v5942
  %v5959 = vpack.c.b16 %v5945, %v5943
  %v5960 = vpack.c.b16 %v5948, %v5946
  %v5961 = vpack.c.b16 %v5949, %v5947
  %v5975 = vsel %vm391, %v5901, 0
  %5977 = vmatprep.subr.bf16.mxu0 0
  %5978 = vmatpush1.bf16.msra.mxu0 0
  %5979 = vmatprep.subr.bf16.mxu0 0
  %5980 = vmatpush1.bf16.msra.mxu0 0
  %5981 = vmatprep.subr.bf16.mxu0 %v5961
  %5982 = vmatpush1.bf16.msra.mxu0 %v5960
  %5983 = vmatprep.subr.bf16.mxu0 %v5959
  %5984 = vmatpush1.bf16.msra.mxu0 %v5958
  %5985 = vmatprep.subr.bf16.mxu0 %v5957
  %5986 = vmatpush1.bf16.msra.mxu0 %v5956
  %5987 = vmatprep.subr.bf16.mxu0 %v5955
  %5988 = vmatpush1.bf16.msra.mxu0 %v5954
  %5989 = vmatprep.subr.bf16.mxu0 %v5953
  %5990 = vmatpush1.bf16.msra.mxu0 %v5952
  %5991 = vmatprep.subr.bf16.mxu0 %v5951
  %5992 = vmatpush1.bf16.msra.mxu0 %v5950
  %5993 = vmatprep.subr.bf16.mxu0 0
  %5994 = vmatpush2.bf16.msra.mxu0 0
  %5995 = vmatprep.subr.bf16.mxu0 0
  %5996 = vmatpush2.bf16.msra.mxu0 0
  %5997 = vmatprep.subr.bf16.mxu0 0
  %5998 = vmatpush2.bf16.msra.mxu0 0
  %5999 = vmatprep.subr.bf16.mxu0 0
  %6000 = vmatpush2.bf16.msra.mxu0 0
  %6001 = vmatprep.subr.bf16.mxu0 0
  %6002 = vmatpush2.bf16.msra.mxu0 0
  %6003 = vmatprep.subr.bf16.mxu0 0
  %6004 = vmatpush2.bf16.msra.mxu0 0
  %6005 = vmatprep.subr.bf16.mxu0 0
  %6006 = vmatpush2.bf16.msra.mxu0 0
  %6007 = vmatprep.subr.bf16.mxu0 0
  %6008 = vmatpush2.bf16.msra.mxu0 0
  %6009 = vmatprep.mubr.bf16.mxu0 0
  %6010 = vmatmul.mubr.bf16.gmra.mxu0 %v5975
  %v6011 = vpop.f32.mrf.mxu0
  %v6012 = vadd.f32 0.0, %v6011
  %v6013 = vpop.f32.mrf.mxu0
  %v6014 = vadd.f32 0.0, %v6013
  %v6015 = vpop.f32.mrf.mxu0
  %v6016 = vpop.f32.mrf.mxu0
  %6017 = vdwg.mxu0
  %v6018 = vadd.f32 %v5897, %v6012
  %v6019 = vadd.f32 %v5898, %v6014
  %s6020 = scalar_lea.vmem %s2, 60
  %v6021 = vld [vmem:[%s6020] sm:$0x3]
  %v6022 = vpack.c.bf16 %v6021, %v6021
  %v6023 = vld [vmem:[%s574] sm:$0xff]
  %v6024 = vld [vmem:[%s574 + $0x8] sm:$0xff]
  %v6025 = vld [vmem:[%s574 + $0x10] sm:$0xff]
  %v6026 = vld [vmem:[%s574 + $0x18] sm:$0xff]
  %v6027 = vld [vmem:[%s574 + $0x20] sm:$0xff]
  %v6028 = vld [vmem:[%s574 + $0x28] sm:$0xff]
  %v6029 = vld [vmem:[%s574 + $0x30] sm:$0xff]
  %v6030 = vld [vmem:[%s574 + $0x38] sm:$0xff]
  %v6031 = vld [vmem:[%s574 + $0x40] sm:$0xff]
  %v6032 = vld [vmem:[%s574 + $0x48] sm:$0xff]
  %v6033 = vld [vmem:[%s574 + $0x50] sm:$0xff]
  %v6034 = vld [vmem:[%s574 + $0x58] sm:$0xff]
  %v6047 = vunpack.c.l.b16 %v6023
  %v6048 = vunpack.c.h.b16 %v6023
  %v6049 = vunpack.c.l.b16 %v6024
  %v6050 = vunpack.c.h.b16 %v6024
  %v6051 = vunpack.c.l.b16 %v6025
  %v6052 = vunpack.c.h.b16 %v6025
  %v6053 = vunpack.c.l.b16 %v6026
  %v6054 = vunpack.c.h.b16 %v6026
  %v6055 = vunpack.c.l.b16 %v6027
  %v6056 = vunpack.c.h.b16 %v6027
  %v6057 = vunpack.c.l.b16 %v6028
  %v6058 = vunpack.c.h.b16 %v6028
  %v6059 = vunpack.c.l.b16 %v6029
  %v6060 = vunpack.c.h.b16 %v6029
  %v6061 = vunpack.c.l.b16 %v6030
  %v6062 = vunpack.c.h.b16 %v6030
  %v6063 = vunpack.c.l.b16 %v6031
  %v6064 = vunpack.c.h.b16 %v6031
  %v6065 = vunpack.c.l.b16 %v6032
  %v6066 = vunpack.c.h.b16 %v6032
  %v6067 = vunpack.c.l.b16 %v6033
  %v6068 = vunpack.c.h.b16 %v6033
  %v6069 = vunpack.c.l.b16 %v6034
  %v6070 = vunpack.c.h.b16 %v6034
  %v6071 = vpack.c.b16 %v6049, %v6047
  %v6072 = vpack.c.b16 %v6050, %v6048
  %v6073 = vpack.c.b16 %v6053, %v6051
  %v6074 = vpack.c.b16 %v6054, %v6052
  %v6075 = vpack.c.b16 %v6057, %v6055
  %v6076 = vpack.c.b16 %v6058, %v6056
  %v6077 = vpack.c.b16 %v6061, %v6059
  %v6078 = vpack.c.b16 %v6062, %v6060
  %v6079 = vpack.c.b16 %v6065, %v6063
  %v6080 = vpack.c.b16 %v6066, %v6064
  %v6081 = vpack.c.b16 %v6069, %v6067
  %v6082 = vpack.c.b16 %v6070, %v6068
  %v6096 = vsel %vm391, %v6022, 0
  %6098 = vmatprep.subr.bf16.mxu0 0
  %6099 = vmatpush1.bf16.msra.mxu0 0
  %6100 = vmatprep.subr.bf16.mxu0 0
  %6101 = vmatpush1.bf16.msra.mxu0 0
  %6102 = vmatprep.subr.bf16.mxu0 %v6082
  %6103 = vmatpush1.bf16.msra.mxu0 %v6081
  %6104 = vmatprep.subr.bf16.mxu0 %v6080
  %6105 = vmatpush1.bf16.msra.mxu0 %v6079
  %6106 = vmatprep.subr.bf16.mxu0 %v6078
  %6107 = vmatpush1.bf16.msra.mxu0 %v6077
  %6108 = vmatprep.subr.bf16.mxu0 %v6076
  %6109 = vmatpush1.bf16.msra.mxu0 %v6075
  %6110 = vmatprep.subr.bf16.mxu0 %v6074
  %6111 = vmatpush1.bf16.msra.mxu0 %v6073
  %6112 = vmatprep.subr.bf16.mxu0 %v6072
  %6113 = vmatpush1.bf16.msra.mxu0 %v6071
  %6114 = vmatprep.subr.bf16.mxu0 0
  %6115 = vmatpush2.bf16.msra.mxu0 0
  %6116 = vmatprep.subr.bf16.mxu0 0
  %6117 = vmatpush2.bf16.msra.mxu0 0
  %6118 = vmatprep.subr.bf16.mxu0 0
  %6119 = vmatpush2.bf16.msra.mxu0 0
  %6120 = vmatprep.subr.bf16.mxu0 0
  %6121 = vmatpush2.bf16.msra.mxu0 0
  %6122 = vmatprep.subr.bf16.mxu0 0
  %6123 = vmatpush2.bf16.msra.mxu0 0
  %6124 = vmatprep.subr.bf16.mxu0 0
  %6125 = vmatpush2.bf16.msra.mxu0 0
  %6126 = vmatprep.subr.bf16.mxu0 0
  %6127 = vmatpush2.bf16.msra.mxu0 0
  %6128 = vmatprep.subr.bf16.mxu0 0
  %6129 = vmatpush2.bf16.msra.mxu0 0
  %6130 = vmatprep.mubr.bf16.mxu0 0
  %6131 = vmatmul.mubr.bf16.gmra.mxu0 %v6096
  %v6132 = vpop.f32.mrf.mxu0
  %v6133 = vadd.f32 0.0, %v6132
  %v6134 = vpop.f32.mrf.mxu0
  %v6135 = vadd.f32 0.0, %v6134
  %v6136 = vpop.f32.mrf.mxu0
  %v6137 = vpop.f32.mrf.mxu0
  %6138 = vdwg.mxu0
  %v6139 = vadd.f32 %v6018, %v6133
  %v6140 = vadd.f32 %v6019, %v6135
  %v6141 = vmax.f32 %v6139, 0.0
  %v6142 = vmax.f32 %v6140, 0.0
  %v6145 = vcombine.low %v6141, %v6142
  %v6147 = vunpack.c.l.s4 1983009808
  %v6148 = vunpack.c.0.s8 %v6147
  %v6149 = vlaneseq
  %v6150 = vshrl.u32 %v6149, 7
  %v6151 = vsub.s32 %v6148, %v6150
  %v6152 = vrot.slane %v6145, %v6151
  %s6154 = scalar_lea.vmem [#allocation2], 56
  %6155 = vst.msk [vmem:[%s6154] sm:$0xf] %vm708, %v6152
  %v6156 = vld [vmem:[%s1] sm:$0x3]
  %v6157 = vld [vmem:[%s13] sm:$0xf]
  %v6158 = vld [vmem:[%s14] sm:$0x1]
  %v6160 = vlaneseq
  %v6161 = vshrl.u32 %v6160, 7
  %v6162 = vsub.s32 0, %v6161
  %v6163 = vrot.slane %v6158, %v6162
  %v6166 = vsel %vm65, %v6156, 0
  %v6169 = vsel %vm69, %v6157, 0
  %6171 = vmatprep.subr.mxu0 0.0
  %6172 = vmatpush1.msra.mxu0 0.0
  %6173 = vmatprep.subr.mxu0 0.0
  %6174 = vmatpush1.msra.mxu0 0.0
  %6175 = vmatprep.subr.mxu0 0.0
  %6176 = vmatpush1.msra.mxu0 0.0
  %6177 = vmatprep.subr.mxu0 0.0
  %6178 = vmatpush1.msra.mxu0 0.0
  %6179 = vmatprep.subr.mxu0 0.0
  %6180 = vmatpush1.msra.mxu0 0.0
  %6181 = vmatprep.subr.mxu0 0.0
  %6182 = vmatpush1.msra.mxu0 0.0
  %6183 = vmatprep.subr.mxu0 0.0
  %6184 = vmatpush1.msra.mxu0 0.0
  %6185 = vmatprep.subr.mxu0 0.0
  %6186 = vmatpush1.msra.mxu0 0.0
  %6187 = vmatprep.subr.mxu0 0.0
  %6188 = vmatpush1.msra.mxu0 0.0
  %6189 = vmatprep.subr.mxu0 0.0
  %6190 = vmatpush1.msra.mxu0 0.0
  %6191 = vmatprep.subr.mxu0 0.0
  %6192 = vmatpush1.msra.mxu0 0.0
  %6193 = vmatprep.subr.mxu0 0.0
  %6194 = vmatpush1.msra.mxu0 0.0
  %6195 = vmatprep.subr.mxu0 0.0
  %6196 = vmatpush1.msra.mxu0 0.0
  %6197 = vmatprep.subr.mxu0 0.0
  %6198 = vmatpush1.msra.mxu0 0.0
  %6199 = vmatprep.subr.mxu0 0.0
  %6200 = vmatpush1.msra.mxu0 0.0
  %6201 = vmatprep.subr.mxu0 0.0
  %6202 = vmatpush1.msra.mxu0 %v6169
  %6203 = vmatprep.subr.mxu0 0.0
  %6204 = vmatpush2.msra.mxu0 0.0
  %6205 = vmatprep.subr.mxu0 0.0
  %6206 = vmatpush2.msra.mxu0 0.0
  %6207 = vmatprep.subr.mxu0 0.0
  %6208 = vmatpush2.msra.mxu0 0.0
  %6209 = vmatprep.subr.mxu0 0.0
  %6210 = vmatpush2.msra.mxu0 0.0
  %6211 = vmatprep.subr.mxu0 0.0
  %6212 = vmatpush2.msra.mxu0 0.0
  %6213 = vmatprep.subr.mxu0 0.0
  %6214 = vmatpush2.msra.mxu0 0.0
  %6215 = vmatprep.subr.mxu0 0.0
  %6216 = vmatpush2.msra.mxu0 0.0
  %6217 = vmatprep.subr.mxu0 0.0
  %6218 = vmatpush2.msra.mxu0 0.0
  %6219 = vmatprep.subr.mxu0 0.0
  %6220 = vmatpush2.msra.mxu0 0.0
  %6221 = vmatprep.subr.mxu0 0.0
  %6222 = vmatpush2.msra.mxu0 0.0
  %6223 = vmatprep.subr.mxu0 0.0
  %6224 = vmatpush2.msra.mxu0 0.0
  %6225 = vmatprep.subr.mxu0 0.0
  %6226 = vmatpush2.msra.mxu0 0.0
  %6227 = vmatprep.subr.mxu0 0.0
  %6228 = vmatpush2.msra.mxu0 0.0
  %6229 = vmatprep.subr.mxu0 0.0
  %6230 = vmatpush2.msra.mxu0 0.0
  %6231 = vmatprep.subr.mxu0 0.0
  %6232 = vmatpush2.msra.mxu0 0.0
  %6233 = vmatprep.subr.mxu0 0.0
  %6234 = vmatpush2.msra.mxu0 0.0
  %6235 = vmatprep.mubr.f32.mxu0 0.0
  %6236 = vmatmul.mubr.f32.gmra.mxu0 %v6166
  %v6237 = vpop.f32.mrf.mxu0
  %v6238 = vadd.f32 %v6163, %v6237
  %v6239 = vpop.f32.mrf.mxu0
  %6240 = vdwg.mxu0
  %v6241 = vld [vmem:[%s11] sm:$0x3]
  %v6242 = vld [vmem:[#allocation2] sm:$0xf]
  %v6245 = vunpack.c.l.s4 1983009808
  %v6246 = vunpack.c.0.s8 %v6245
  %v6247 = vlaneseq
  %v6248 = vshrl.u32 %v6247, 7
  %v6249 = vsub.s32 %v6246, %v6248
  %v6250 = vrot.slane %v6242, %v6249
  %v6251 = vcombine.high %v6250, %v6250
  %v6254 = vpack.c.bf16 %v6250, %v6250
  %v6255 = vpack.c.bf16 %v6251, %v6251
  %v6256 = vld [vmem:[%s10] sm:$0xff]
  %v6257 = vld [vmem:[%s10 + $0x8] sm:$0xff]
  %v6258 = vld [vmem:[%s10 + $0x10] sm:$0xff]
  %v6259 = vld [vmem:[%s10 + $0x18] sm:$0xff]
  %v6260 = vld [vmem:[%s10 + $0x20] sm:$0xff]
  %v6261 = vld [vmem:[%s10 + $0x28] sm:$0xff]
  %v6262 = vld [vmem:[%s10 + $0x30] sm:$0xff]
  %v6263 = vld [vmem:[%s10 + $0x38] sm:$0xff]
  %v6264 = vld [vmem:[%s10 + $0x40] sm:$0xff]
  %v6265 = vld [vmem:[%s10 + $0x48] sm:$0xff]
  %v6266 = vld [vmem:[%s10 + $0x50] sm:$0xff]
  %v6267 = vld [vmem:[%s10 + $0x58] sm:$0xff]
  %v6268 = vld [vmem:[%s10 + $0x60] sm:$0xff]
  %v6269 = vld [vmem:[%s10 + $0x68] sm:$0xff]
  %v6270 = vld [vmem:[%s10 + $0x70] sm:$0xff]
  %v6271 = vld [vmem:[%s10 + $0x78] sm:$0xff]
  %v6272 = vld [vmem:[%s10 + $0x80] sm:$0xff]
  %v6273 = vld [vmem:[%s10 + $0x88] sm:$0xff]
  %v6274 = vld [vmem:[%s10 + $0x90] sm:$0xff]
  %v6275 = vld [vmem:[%s10 + $0x98] sm:$0xff]
  %v6276 = vld [vmem:[%s10 + $0xa0] sm:$0xff]
  %v6277 = vld [vmem:[%s10 + $0xa8] sm:$0xff]
  %v6278 = vld [vmem:[%s10 + $0xb0] sm:$0xff]
  %v6279 = vld [vmem:[%s10 + $0xb8] sm:$0xff]
  %v6280 = vld [vmem:[%s10 + $0xc0] sm:$0xff]
  %v6281 = vld [vmem:[%s10 + $0xc8] sm:$0xff]
  %v6282 = vld [vmem:[%s10 + $0xd0] sm:$0xff]
  %v6283 = vld [vmem:[%s10 + $0xd8] sm:$0xff]
  %v6284 = vld [vmem:[%s10 + $0xe0] sm:$0xff]
  %v6285 = vld [vmem:[%s10 + $0xe8] sm:$0xff]
  %v6316 = vunpack.c.l.b16 %v6256
  %v6317 = vunpack.c.h.b16 %v6256
  %v6318 = vunpack.c.l.b16 %v6257
  %v6319 = vunpack.c.h.b16 %v6257
  %v6320 = vunpack.c.l.b16 %v6258
  %v6321 = vunpack.c.h.b16 %v6258
  %v6322 = vunpack.c.l.b16 %v6259
  %v6323 = vunpack.c.h.b16 %v6259
  %v6324 = vunpack.c.l.b16 %v6260
  %v6325 = vunpack.c.h.b16 %v6260
  %v6326 = vunpack.c.l.b16 %v6261
  %v6327 = vunpack.c.h.b16 %v6261
  %v6328 = vunpack.c.l.b16 %v6262
  %v6329 = vunpack.c.h.b16 %v6262
  %v6330 = vunpack.c.l.b16 %v6263
  %v6331 = vunpack.c.h.b16 %v6263
  %v6332 = vunpack.c.l.b16 %v6264
  %v6333 = vunpack.c.h.b16 %v6264
  %v6334 = vunpack.c.l.b16 %v6265
  %v6335 = vunpack.c.h.b16 %v6265
  %v6336 = vunpack.c.l.b16 %v6266
  %v6337 = vunpack.c.h.b16 %v6266
  %v6338 = vunpack.c.l.b16 %v6267
  %v6339 = vunpack.c.h.b16 %v6267
  %v6340 = vunpack.c.l.b16 %v6268
  %v6341 = vunpack.c.h.b16 %v6268
  %v6342 = vunpack.c.l.b16 %v6269
  %v6343 = vunpack.c.h.b16 %v6269
  %v6344 = vunpack.c.l.b16 %v6270
  %v6345 = vunpack.c.h.b16 %v6270
  %v6346 = vunpack.c.l.b16 %v6271
  %v6347 = vunpack.c.h.b16 %v6271
  %v6348 = vunpack.c.l.b16 %v6272
  %v6349 = vunpack.c.h.b16 %v6272
  %v6350 = vunpack.c.l.b16 %v6273
  %v6351 = vunpack.c.h.b16 %v6273
  %v6352 = vunpack.c.l.b16 %v6274
  %v6353 = vunpack.c.h.b16 %v6274
  %v6354 = vunpack.c.l.b16 %v6275
  %v6355 = vunpack.c.h.b16 %v6275
  %v6356 = vunpack.c.l.b16 %v6276
  %v6357 = vunpack.c.h.b16 %v6276
  %v6358 = vunpack.c.l.b16 %v6277
  %v6359 = vunpack.c.h.b16 %v6277
  %v6360 = vunpack.c.l.b16 %v6278
  %v6361 = vunpack.c.h.b16 %v6278
  %v6362 = vunpack.c.l.b16 %v6279
  %v6363 = vunpack.c.h.b16 %v6279
  %v6364 = vunpack.c.l.b16 %v6280
  %v6365 = vunpack.c.h.b16 %v6280
  %v6366 = vunpack.c.l.b16 %v6281
  %v6367 = vunpack.c.h.b16 %v6281
  %v6368 = vunpack.c.l.b16 %v6282
  %v6369 = vunpack.c.h.b16 %v6282
  %v6370 = vunpack.c.l.b16 %v6283
  %v6371 = vunpack.c.h.b16 %v6283
  %v6372 = vunpack.c.l.b16 %v6284
  %v6373 = vunpack.c.h.b16 %v6284
  %v6374 = vunpack.c.l.b16 %v6285
  %v6375 = vunpack.c.h.b16 %v6285
  %v6376 = vpack.c.b16 %v6318, %v6316
  %v6377 = vpack.c.b16 %v6319, %v6317
  %v6378 = vpack.c.b16 %v6322, %v6320
  %v6379 = vpack.c.b16 %v6323, %v6321
  %v6380 = vpack.c.b16 %v6326, %v6324
  %v6381 = vpack.c.b16 %v6327, %v6325
  %v6382 = vpack.c.b16 %v6330, %v6328
  %v6383 = vpack.c.b16 %v6331, %v6329
  %v6384 = vpack.c.b16 %v6334, %v6332
  %v6385 = vpack.c.b16 %v6335, %v6333
  %v6386 = vpack.c.b16 %v6338, %v6336
  %v6387 = vpack.c.b16 %v6339, %v6337
  %v6388 = vpack.c.b16 %v6342, %v6340
  %v6389 = vpack.c.b16 %v6343, %v6341
  %v6390 = vpack.c.b16 %v6346, %v6344
  %v6391 = vpack.c.b16 %v6347, %v6345
  %v6392 = vpack.c.b16 %v6350, %v6348
  %v6393 = vpack.c.b16 %v6351, %v6349
  %v6394 = vpack.c.b16 %v6354, %v6352
  %v6395 = vpack.c.b16 %v6355, %v6353
  %v6396 = vpack.c.b16 %v6358, %v6356
  %v6397 = vpack.c.b16 %v6359, %v6357
  %v6398 = vpack.c.b16 %v6362, %v6360
  %v6399 = vpack.c.b16 %v6363, %v6361
  %v6400 = vpack.c.b16 %v6366, %v6364
  %v6401 = vpack.c.b16 %v6367, %v6365
  %v6402 = vpack.c.b16 %v6370, %v6368
  %v6403 = vpack.c.b16 %v6371, %v6369
  %v6404 = vpack.c.b16 %v6374, %v6372
  %v6405 = vpack.c.b16 %v6375, %v6373
  %vm6436 = vcmask 916480
  %v6438 = vsel %vm6436, %v6255, 0
  %6440 = vmatprep.subr.bf16.mxu0 %v6391
  %6441 = vmatpush1.bf16.msra.mxu0 %v6390
  %6442 = vmatprep.subr.bf16.mxu0 %v6389
  %6443 = vmatpush1.bf16.msra.mxu0 %v6388
  %6444 = vmatprep.subr.bf16.mxu0 %v6387
  %6445 = vmatpush1.bf16.msra.mxu0 %v6386
  %6446 = vmatprep.subr.bf16.mxu0 %v6385
  %6447 = vmatpush1.bf16.msra.mxu0 %v6384
  %6448 = vmatprep.subr.bf16.mxu0 %v6383
  %6449 = vmatpush1.bf16.msra.mxu0 %v6382
  %6450 = vmatprep.subr.bf16.mxu0 %v6381
  %6451 = vmatpush1.bf16.msra.mxu0 %v6380
  %6452 = vmatprep.subr.bf16.mxu0 %v6379
  %6453 = vmatpush1.bf16.msra.mxu0 %v6378
  %6454 = vmatprep.subr.bf16.mxu0 %v6377
  %6455 = vmatpush1.bf16.msra.mxu0 %v6376
  %6456 = vmatprep.subr.bf16.mxu0 0
  %6457 = vmatpush2.bf16.msra.mxu0 0
  %6458 = vmatprep.subr.bf16.mxu0 %v6405
  %6459 = vmatpush2.bf16.msra.mxu0 %v6404
  %6460 = vmatprep.subr.bf16.mxu0 %v6403
  %6461 = vmatpush2.bf16.msra.mxu0 %v6402
  %6462 = vmatprep.subr.bf16.mxu0 %v6401
  %6463 = vmatpush2.bf16.msra.mxu0 %v6400
  %6464 = vmatprep.subr.bf16.mxu0 %v6399
  %6465 = vmatpush2.bf16.msra.mxu0 %v6398
  %6466 = vmatprep.subr.bf16.mxu0 %v6397
  %6467 = vmatpush2.bf16.msra.mxu0 %v6396
  %6468 = vmatprep.subr.bf16.mxu0 %v6395
  %6469 = vmatpush2.bf16.msra.mxu0 %v6394
  %6470 = vmatprep.subr.bf16.mxu0 %v6393
  %6471 = vmatpush2.bf16.msra.mxu0 %v6392
  %6472 = vmatprep.mubr.bf16.mxu0 %v6438
  %6473 = vmatmul.mubr.bf16.gmra.mxu0 %v6254
  %v6474 = vpop.f32.mrf.mxu0
  %v6475 = vadd.f32 0.0, %v6474
  %v6476 = vpop.f32.mrf.mxu0
  %v6477 = vadd.f32 0.0, %v6476
  %v6478 = vpop.f32.mrf.mxu0
  %v6479 = vpop.f32.mrf.mxu0
  %6480 = vdwg.mxu0
  %v6482 = vlaneseq
  %v6483 = vshrl.u32 %v6482, 7
  %v6484 = vsub.s32 0, %v6483
  %v6485 = vrot.slane %v6241, %v6484
  %v6486 = vlaneseq
  %v6487 = vshrl.u32 %v6486, 7
  %v6488 = vsub.s32 1, %v6487
  %v6489 = vrot.slane %v6241, %v6488
  %v6492 = vadd.f32 %v6485, %v6475
  %v6493 = vadd.f32 %v6489, %v6477
  %v6494 = vld [vmem:[%s1097] sm:$0xf]
  %v6497 = vunpack.c.l.s4 1983009808
  %v6498 = vunpack.c.0.s8 %v6497
  %v6499 = vlaneseq
  %v6500 = vshrl.u32 %v6499, 7
  %v6501 = vsub.s32 %v6498, %v6500
  %v6502 = vrot.slane %v6494, %v6501
  %v6503 = vcombine.high %v6502, %v6502
  %v6506 = vpack.c.bf16 %v6502, %v6502
  %v6507 = vpack.c.bf16 %v6503, %v6503
  %s6508 = scalar_lea.vmem %s10, 240
  %v6509 = vld [vmem:[%s6508] sm:$0xff]
  %v6510 = vld [vmem:[%s6508 + $0x8] sm:$0xff]
  %v6511 = vld [vmem:[%s6508 + $0x10] sm:$0xff]
  %v6512 = vld [vmem:[%s6508 + $0x18] sm:$0xff]
  %v6513 = vld [vmem:[%s6508 + $0x20] sm:$0xff]
  %v6514 = vld [vmem:[%s6508 + $0x28] sm:$0xff]
  %v6515 = vld [vmem:[%s6508 + $0x30] sm:$0xff]
  %v6516 = vld [vmem:[%s6508 + $0x38] sm:$0xff]
  %v6517 = vld [vmem:[%s6508 + $0x40] sm:$0xff]
  %v6518 = vld [vmem:[%s6508 + $0x48] sm:$0xff]
  %v6519 = vld [vmem:[%s6508 + $0x50] sm:$0xff]
  %v6520 = vld [vmem:[%s6508 + $0x58] sm:$0xff]
  %v6521 = vld [vmem:[%s6508 + $0x60] sm:$0xff]
  %v6522 = vld [vmem:[%s6508 + $0x68] sm:$0xff]
  %v6523 = vld [vmem:[%s6508 + $0x70] sm:$0xff]
  %v6524 = vld [vmem:[%s6508 + $0x78] sm:$0xff]
  %v6525 = vld [vmem:[%s6508 + $0x80] sm:$0xff]
  %v6526 = vld [vmem:[%s6508 + $0x88] sm:$0xff]
  %v6527 = vld [vmem:[%s6508 + $0x90] sm:$0xff]
  %v6528 = vld [vmem:[%s6508 + $0x98] sm:$0xff]
  %v6529 = vld [vmem:[%s6508 + $0xa0] sm:$0xff]
  %v6530 = vld [vmem:[%s6508 + $0xa8] sm:$0xff]
  %v6531 = vld [vmem:[%s6508 + $0xb0] sm:$0xff]
  %v6532 = vld [vmem:[%s6508 + $0xb8] sm:$0xff]
  %v6533 = vld [vmem:[%s6508 + $0xc0] sm:$0xff]
  %v6534 = vld [vmem:[%s6508 + $0xc8] sm:$0xff]
  %v6535 = vld [vmem:[%s6508 + $0xd0] sm:$0xff]
  %v6536 = vld [vmem:[%s6508 + $0xd8] sm:$0xff]
  %v6537 = vld [vmem:[%s6508 + $0xe0] sm:$0xff]
  %v6538 = vld [vmem:[%s6508 + $0xe8] sm:$0xff]
  %v6569 = vunpack.c.l.b16 %v6509
  %v6570 = vunpack.c.h.b16 %v6509
  %v6571 = vunpack.c.l.b16 %v6510
  %v6572 = vunpack.c.h.b16 %v6510
  %v6573 = vunpack.c.l.b16 %v6511
  %v6574 = vunpack.c.h.b16 %v6511
  %v6575 = vunpack.c.l.b16 %v6512
  %v6576 = vunpack.c.h.b16 %v6512
  %v6577 = vunpack.c.l.b16 %v6513
  %v6578 = vunpack.c.h.b16 %v6513
  %v6579 = vunpack.c.l.b16 %v6514
  %v6580 = vunpack.c.h.b16 %v6514
  %v6581 = vunpack.c.l.b16 %v6515
  %v6582 = vunpack.c.h.b16 %v6515
  %v6583 = vunpack.c.l.b16 %v6516
  %v6584 = vunpack.c.h.b16 %v6516
  %v6585 = vunpack.c.l.b16 %v6517
  %v6586 = vunpack.c.h.b16 %v6517
  %v6587 = vunpack.c.l.b16 %v6518
  %v6588 = vunpack.c.h.b16 %v6518
  %v6589 = vunpack.c.l.b16 %v6519
  %v6590 = vunpack.c.h.b16 %v6519
  %v6591 = vunpack.c.l.b16 %v6520
  %v6592 = vunpack.c.h.b16 %v6520
  %v6593 = vunpack.c.l.b16 %v6521
  %v6594 = vunpack.c.h.b16 %v6521
  %v6595 = vunpack.c.l.b16 %v6522
  %v6596 = vunpack.c.h.b16 %v6522
  %v6597 = vunpack.c.l.b16 %v6523
  %v6598 = vunpack.c.h.b16 %v6523
  %v6599 = vunpack.c.l.b16 %v6524
  %v6600 = vunpack.c.h.b16 %v6524
  %v6601 = vunpack.c.l.b16 %v6525
  %v6602 = vunpack.c.h.b16 %v6525
  %v6603 = vunpack.c.l.b16 %v6526
  %v6604 = vunpack.c.h.b16 %v6526
  %v6605 = vunpack.c.l.b16 %v6527
  %v6606 = vunpack.c.h.b16 %v6527
  %v6607 = vunpack.c.l.b16 %v6528
  %v6608 = vunpack.c.h.b16 %v6528
  %v6609 = vunpack.c.l.b16 %v6529
  %v6610 = vunpack.c.h.b16 %v6529
  %v6611 = vunpack.c.l.b16 %v6530
  %v6612 = vunpack.c.h.b16 %v6530
  %v6613 = vunpack.c.l.b16 %v6531
  %v6614 = vunpack.c.h.b16 %v6531
  %v6615 = vunpack.c.l.b16 %v6532
  %v6616 = vunpack.c.h.b16 %v6532
  %v6617 = vunpack.c.l.b16 %v6533
  %v6618 = vunpack.c.h.b16 %v6533
  %v6619 = vunpack.c.l.b16 %v6534
  %v6620 = vunpack.c.h.b16 %v6534
  %v6621 = vunpack.c.l.b16 %v6535
  %v6622 = vunpack.c.h.b16 %v6535
  %v6623 = vunpack.c.l.b16 %v6536
  %v6624 = vunpack.c.h.b16 %v6536
  %v6625 = vunpack.c.l.b16 %v6537
  %v6626 = vunpack.c.h.b16 %v6537
  %v6627 = vunpack.c.l.b16 %v6538
  %v6628 = vunpack.c.h.b16 %v6538
  %v6629 = vpack.c.b16 %v6571, %v6569
  %v6630 = vpack.c.b16 %v6572, %v6570
  %v6631 = vpack.c.b16 %v6575, %v6573
  %v6632 = vpack.c.b16 %v6576, %v6574
  %v6633 = vpack.c.b16 %v6579, %v6577
  %v6634 = vpack.c.b16 %v6580, %v6578
  %v6635 = vpack.c.b16 %v6583, %v6581
  %v6636 = vpack.c.b16 %v6584, %v6582
  %v6637 = vpack.c.b16 %v6587, %v6585
  %v6638 = vpack.c.b16 %v6588, %v6586
  %v6639 = vpack.c.b16 %v6591, %v6589
  %v6640 = vpack.c.b16 %v6592, %v6590
  %v6641 = vpack.c.b16 %v6595, %v6593
  %v6642 = vpack.c.b16 %v6596, %v6594
  %v6643 = vpack.c.b16 %v6599, %v6597
  %v6644 = vpack.c.b16 %v6600, %v6598
  %v6645 = vpack.c.b16 %v6603, %v6601
  %v6646 = vpack.c.b16 %v6604, %v6602
  %v6647 = vpack.c.b16 %v6607, %v6605
  %v6648 = vpack.c.b16 %v6608, %v6606
  %v6649 = vpack.c.b16 %v6611, %v6609
  %v6650 = vpack.c.b16 %v6612, %v6610
  %v6651 = vpack.c.b16 %v6615, %v6613
  %v6652 = vpack.c.b16 %v6616, %v6614
  %v6653 = vpack.c.b16 %v6619, %v6617
  %v6654 = vpack.c.b16 %v6620, %v6618
  %v6655 = vpack.c.b16 %v6623, %v6621
  %v6656 = vpack.c.b16 %v6624, %v6622
  %v6657 = vpack.c.b16 %v6627, %v6625
  %v6658 = vpack.c.b16 %v6628, %v6626
  %v6690 = vsel %vm6436, %v6507, 0
  %6692 = vmatprep.subr.bf16.mxu0 %v6644
  %6693 = vmatpush1.bf16.msra.mxu0 %v6643
  %6694 = vmatprep.subr.bf16.mxu0 %v6642
  %6695 = vmatpush1.bf16.msra.mxu0 %v6641
  %6696 = vmatprep.subr.bf16.mxu0 %v6640
  %6697 = vmatpush1.bf16.msra.mxu0 %v6639
  %6698 = vmatprep.subr.bf16.mxu0 %v6638
  %6699 = vmatpush1.bf16.msra.mxu0 %v6637
  %6700 = vmatprep.subr.bf16.mxu0 %v6636
  %6701 = vmatpush1.bf16.msra.mxu0 %v6635
  %6702 = vmatprep.subr.bf16.mxu0 %v6634
  %6703 = vmatpush1.bf16.msra.mxu0 %v6633
  %6704 = vmatprep.subr.bf16.mxu0 %v6632
  %6705 = vmatpush1.bf16.msra.mxu0 %v6631
  %6706 = vmatprep.subr.bf16.mxu0 %v6630
  %6707 = vmatpush1.bf16.msra.mxu0 %v6629
  %6708 = vmatprep.subr.bf16.mxu0 0
  %6709 = vmatpush2.bf16.msra.mxu0 0
  %6710 = vmatprep.subr.bf16.mxu0 %v6658
  %6711 = vmatpush2.bf16.msra.mxu0 %v6657
  %6712 = vmatprep.subr.bf16.mxu0 %v6656
  %6713 = vmatpush2.bf16.msra.mxu0 %v6655
  %6714 = vmatprep.subr.bf16.mxu0 %v6654
  %6715 = vmatpush2.bf16.msra.mxu0 %v6653
  %6716 = vmatprep.subr.bf16.mxu0 %v6652
  %6717 = vmatpush2.bf16.msra.mxu0 %v6651
  %6718 = vmatprep.subr.bf16.mxu0 %v6650
  %6719 = vmatpush2.bf16.msra.mxu0 %v6649
  %6720 = vmatprep.subr.bf16.mxu0 %v6648
  %6721 = vmatpush2.bf16.msra.mxu0 %v6647
  %6722 = vmatprep.subr.bf16.mxu0 %v6646
  %6723 = vmatpush2.bf16.msra.mxu0 %v6645
  %6724 = vmatprep.mubr.bf16.mxu0 %v6690
  %6725 = vmatmul.mubr.bf16.gmra.mxu0 %v6506
  %v6726 = vpop.f32.mrf.mxu0
  %v6727 = vadd.f32 0.0, %v6726
  %v6728 = vpop.f32.mrf.mxu0
  %v6729 = vadd.f32 0.0, %v6728
  %v6730 = vpop.f32.mrf.mxu0
  %v6731 = vpop.f32.mrf.mxu0
  %6732 = vdwg.mxu0
  %v6733 = vadd.f32 %v6492, %v6727
  %v6734 = vadd.f32 %v6493, %v6729
  %v6735 = vld [vmem:[%s1486] sm:$0xf]
  %v6738 = vunpack.c.l.s4 1983009808
  %v6739 = vunpack.c.0.s8 %v6738
  %v6740 = vlaneseq
  %v6741 = vshrl.u32 %v6740, 7
  %v6742 = vsub.s32 %v6739, %v6741
  %v6743 = vrot.slane %v6735, %v6742
  %v6744 = vcombine.high %v6743, %v6743
  %v6747 = vpack.c.bf16 %v6743, %v6743
  %v6748 = vpack.c.bf16 %v6744, %v6744
  %s6749 = scalar_lea.vmem %s10, 480
  %v6750 = vld [vmem:[%s6749] sm:$0xff]
  %v6751 = vld [vmem:[%s6749 + $0x8] sm:$0xff]
  %v6752 = vld [vmem:[%s6749 + $0x10] sm:$0xff]
  %v6753 = vld [vmem:[%s6749 + $0x18] sm:$0xff]
  %v6754 = vld [vmem:[%s6749 + $0x20] sm:$0xff]
  %v6755 = vld [vmem:[%s6749 + $0x28] sm:$0xff]
  %v6756 = vld [vmem:[%s6749 + $0x30] sm:$0xff]
  %v6757 = vld [vmem:[%s6749 + $0x38] sm:$0xff]
  %v6758 = vld [vmem:[%s6749 + $0x40] sm:$0xff]
  %v6759 = vld [vmem:[%s6749 + $0x48] sm:$0xff]
  %v6760 = vld [vmem:[%s6749 + $0x50] sm:$0xff]
  %v6761 = vld [vmem:[%s6749 + $0x58] sm:$0xff]
  %v6762 = vld [vmem:[%s6749 + $0x60] sm:$0xff]
  %v6763 = vld [vmem:[%s6749 + $0x68] sm:$0xff]
  %v6764 = vld [vmem:[%s6749 + $0x70] sm:$0xff]
  %v6765 = vld [vmem:[%s6749 + $0x78] sm:$0xff]
  %v6766 = vld [vmem:[%s6749 + $0x80] sm:$0xff]
  %v6767 = vld [vmem:[%s6749 + $0x88] sm:$0xff]
  %v6768 = vld [vmem:[%s6749 + $0x90] sm:$0xff]
  %v6769 = vld [vmem:[%s6749 + $0x98] sm:$0xff]
  %v6770 = vld [vmem:[%s6749 + $0xa0] sm:$0xff]
  %v6771 = vld [vmem:[%s6749 + $0xa8] sm:$0xff]
  %v6772 = vld [vmem:[%s6749 + $0xb0] sm:$0xff]
  %v6773 = vld [vmem:[%s6749 + $0xb8] sm:$0xff]
  %v6774 = vld [vmem:[%s6749 + $0xc0] sm:$0xff]
  %v6775 = vld [vmem:[%s6749 + $0xc8] sm:$0xff]
  %v6776 = vld [vmem:[%s6749 + $0xd0] sm:$0xff]
  %v6777 = vld [vmem:[%s6749 + $0xd8] sm:$0xff]
  %v6778 = vld [vmem:[%s6749 + $0xe0] sm:$0xff]
  %v6779 = vld [vmem:[%s6749 + $0xe8] sm:$0xff]
  %v6810 = vunpack.c.l.b16 %v6750
  %v6811 = vunpack.c.h.b16 %v6750
  %v6812 = vunpack.c.l.b16 %v6751
  %v6813 = vunpack.c.h.b16 %v6751
  %v6814 = vunpack.c.l.b16 %v6752
  %v6815 = vunpack.c.h.b16 %v6752
  %v6816 = vunpack.c.l.b16 %v6753
  %v6817 = vunpack.c.h.b16 %v6753
  %v6818 = vunpack.c.l.b16 %v6754
  %v6819 = vunpack.c.h.b16 %v6754
  %v6820 = vunpack.c.l.b16 %v6755
  %v6821 = vunpack.c.h.b16 %v6755
  %v6822 = vunpack.c.l.b16 %v6756
  %v6823 = vunpack.c.h.b16 %v6756
  %v6824 = vunpack.c.l.b16 %v6757
  %v6825 = vunpack.c.h.b16 %v6757
  %v6826 = vunpack.c.l.b16 %v6758
  %v6827 = vunpack.c.h.b16 %v6758
  %v6828 = vunpack.c.l.b16 %v6759
  %v6829 = vunpack.c.h.b16 %v6759
  %v6830 = vunpack.c.l.b16 %v6760
  %v6831 = vunpack.c.h.b16 %v6760
  %v6832 = vunpack.c.l.b16 %v6761
  %v6833 = vunpack.c.h.b16 %v6761
  %v6834 = vunpack.c.l.b16 %v6762
  %v6835 = vunpack.c.h.b16 %v6762
  %v6836 = vunpack.c.l.b16 %v6763
  %v6837 = vunpack.c.h.b16 %v6763
  %v6838 = vunpack.c.l.b16 %v6764
  %v6839 = vunpack.c.h.b16 %v6764
  %v6840 = vunpack.c.l.b16 %v6765
  %v6841 = vunpack.c.h.b16 %v6765
  %v6842 = vunpack.c.l.b16 %v6766
  %v6843 = vunpack.c.h.b16 %v6766
  %v6844 = vunpack.c.l.b16 %v6767
  %v6845 = vunpack.c.h.b16 %v6767
  %v6846 = vunpack.c.l.b16 %v6768
  %v6847 = vunpack.c.h.b16 %v6768
  %v6848 = vunpack.c.l.b16 %v6769
  %v6849 = vunpack.c.h.b16 %v6769
  %v6850 = vunpack.c.l.b16 %v6770
  %v6851 = vunpack.c.h.b16 %v6770
  %v6852 = vunpack.c.l.b16 %v6771
  %v6853 = vunpack.c.h.b16 %v6771
  %v6854 = vunpack.c.l.b16 %v6772
  %v6855 = vunpack.c.h.b16 %v6772
  %v6856 = vunpack.c.l.b16 %v6773
  %v6857 = vunpack.c.h.b16 %v6773
  %v6858 = vunpack.c.l.b16 %v6774
  %v6859 = vunpack.c.h.b16 %v6774
  %v6860 = vunpack.c.l.b16 %v6775
  %v6861 = vunpack.c.h.b16 %v6775
  %v6862 = vunpack.c.l.b16 %v6776
  %v6863 = vunpack.c.h.b16 %v6776
  %v6864 = vunpack.c.l.b16 %v6777
  %v6865 = vunpack.c.h.b16 %v6777
  %v6866 = vunpack.c.l.b16 %v6778
  %v6867 = vunpack.c.h.b16 %v6778
  %v6868 = vunpack.c.l.b16 %v6779
  %v6869 = vunpack.c.h.b16 %v6779
  %v6870 = vpack.c.b16 %v6812, %v6810
  %v6871 = vpack.c.b16 %v6813, %v6811
  %v6872 = vpack.c.b16 %v6816, %v6814
  %v6873 = vpack.c.b16 %v6817, %v6815
  %v6874 = vpack.c.b16 %v6820, %v6818
  %v6875 = vpack.c.b16 %v6821, %v6819
  %v6876 = vpack.c.b16 %v6824, %v6822
  %v6877 = vpack.c.b16 %v6825, %v6823
  %v6878 = vpack.c.b16 %v6828, %v6826
  %v6879 = vpack.c.b16 %v6829, %v6827
  %v6880 = vpack.c.b16 %v6832, %v6830
  %v6881 = vpack.c.b16 %v6833, %v6831
  %v6882 = vpack.c.b16 %v6836, %v6834
  %v6883 = vpack.c.b16 %v6837, %v6835
  %v6884 = vpack.c.b16 %v6840, %v6838
  %v6885 = vpack.c.b16 %v6841, %v6839
  %v6886 = vpack.c.b16 %v6844, %v6842
  %v6887 = vpack.c.b16 %v6845, %v6843
  %v6888 = vpack.c.b16 %v6848, %v6846
  %v6889 = vpack.c.b16 %v6849, %v6847
  %v6890 = vpack.c.b16 %v6852, %v6850
  %v6891 = vpack.c.b16 %v6853, %v6851
  %v6892 = vpack.c.b16 %v6856, %v6854
  %v6893 = vpack.c.b16 %v6857, %v6855
  %v6894 = vpack.c.b16 %v6860, %v6858
  %v6895 = vpack.c.b16 %v6861, %v6859
  %v6896 = vpack.c.b16 %v6864, %v6862
  %v6897 = vpack.c.b16 %v6865, %v6863
  %v6898 = vpack.c.b16 %v6868, %v6866
  %v6899 = vpack.c.b16 %v6869, %v6867
  %v6931 = vsel %vm6436, %v6748, 0
  %6933 = vmatprep.subr.bf16.mxu0 %v6885
  %6934 = vmatpush1.bf16.msra.mxu0 %v6884
  %6935 = vmatprep.subr.bf16.mxu0 %v6883
  %6936 = vmatpush1.bf16.msra.mxu0 %v6882
  %6937 = vmatprep.subr.bf16.mxu0 %v6881
  %6938 = vmatpush1.bf16.msra.mxu0 %v6880
  %6939 = vmatprep.subr.bf16.mxu0 %v6879
  %6940 = vmatpush1.bf16.msra.mxu0 %v6878
  %6941 = vmatprep.subr.bf16.mxu0 %v6877
  %6942 = vmatpush1.bf16.msra.mxu0 %v6876
  %6943 = vmatprep.subr.bf16.mxu0 %v6875
  %6944 = vmatpush1.bf16.msra.mxu0 %v6874
  %6945 = vmatprep.subr.bf16.mxu0 %v6873
  %6946 = vmatpush1.bf16.msra.mxu0 %v6872
  %6947 = vmatprep.subr.bf16.mxu0 %v6871
  %6948 = vmatpush1.bf16.msra.mxu0 %v6870
  %6949 = vmatprep.subr.bf16.mxu0 0
  %6950 = vmatpush2.bf16.msra.mxu0 0
  %6951 = vmatprep.subr.bf16.mxu0 %v6899
  %6952 = vmatpush2.bf16.msra.mxu0 %v6898
  %6953 = vmatprep.subr.bf16.mxu0 %v6897
  %6954 = vmatpush2.bf16.msra.mxu0 %v6896
  %6955 = vmatprep.subr.bf16.mxu0 %v6895
  %6956 = vmatpush2.bf16.msra.mxu0 %v6894
  %6957 = vmatprep.subr.bf16.mxu0 %v6893
  %6958 = vmatpush2.bf16.msra.mxu0 %v6892
  %6959 = vmatprep.subr.bf16.mxu0 %v6891
  %6960 = vmatpush2.bf16.msra.mxu0 %v6890
  %6961 = vmatprep.subr.bf16.mxu0 %v6889
  %6962 = vmatpush2.bf16.msra.mxu0 %v6888
  %6963 = vmatprep.subr.bf16.mxu0 %v6887
  %6964 = vmatpush2.bf16.msra.mxu0 %v6886
  %6965 = vmatprep.mubr.bf16.mxu0 %v6931
  %6966 = vmatmul.mubr.bf16.gmra.mxu0 %v6747
  %v6967 = vpop.f32.mrf.mxu0
  %v6968 = vadd.f32 0.0, %v6967
  %v6969 = vpop.f32.mrf.mxu0
  %v6970 = vadd.f32 0.0, %v6969
  %v6971 = vpop.f32.mrf.mxu0
  %v6972 = vpop.f32.mrf.mxu0
  %6973 = vdwg.mxu0
  %v6974 = vadd.f32 %v6733, %v6968
  %v6975 = vadd.f32 %v6734, %v6970
  %v6976 = vmax.f32 %v6974, 0.0
  %v6977 = vmax.f32 %v6975, 0.0
  %v6978 = vpack.c.bf16 %v6976, %v6976
  %v6979 = vpack.c.bf16 %v6977, %v6977
  %v6980 = vld [vmem:[%s12] sm:$0xf]
  %v6981 = vld [vmem:[%s12 + $0x4] sm:$0xf]
  %v6982 = vld [vmem:[%s12 + $0x8] sm:$0xf]
  %v6983 = vld [vmem:[%s12 + $0xc] sm:$0xf]
  %v6984 = vld [vmem:[%s12 + $0x10] sm:$0xf]
  %v6985 = vld [vmem:[%s12 + $0x14] sm:$0xf]
  %v6986 = vld [vmem:[%s12 + $0x18] sm:$0xf]
  %v6987 = vld [vmem:[%s12 + $0x1c] sm:$0xf]
  %v6988 = vld [vmem:[%s12 + $0x20] sm:$0xf]
  %v6989 = vld [vmem:[%s12 + $0x24] sm:$0xf]
  %v6990 = vld [vmem:[%s12 + $0x28] sm:$0xf]
  %v6991 = vld [vmem:[%s12 + $0x2c] sm:$0xf]
  %v6992 = vld [vmem:[%s12 + $0x30] sm:$0xf]
  %v6993 = vld [vmem:[%s12 + $0x34] sm:$0xf]
  %v6994 = vld [vmem:[%s12 + $0x38] sm:$0xf]
  %v6995 = vld [vmem:[%s12 + $0x3c] sm:$0xf]
  %v6996 = vld [vmem:[%s12 + $0x40] sm:$0xf]
  %v6997 = vld [vmem:[%s12 + $0x44] sm:$0xf]
  %v6998 = vld [vmem:[%s12 + $0x48] sm:$0xf]
  %v6999 = vld [vmem:[%s12 + $0x4c] sm:$0xf]
  %v7000 = vld [vmem:[%s12 + $0x50] sm:$0xf]
  %v7001 = vld [vmem:[%s12 + $0x54] sm:$0xf]
  %v7002 = vld [vmem:[%s12 + $0x58] sm:$0xf]
  %v7003 = vld [vmem:[%s12 + $0x5c] sm:$0xf]
  %v7004 = vld [vmem:[%s12 + $0x60] sm:$0xf]
  %v7005 = vld [vmem:[%s12 + $0x64] sm:$0xf]
  %v7006 = vld [vmem:[%s12 + $0x68] sm:$0xf]
  %v7007 = vld [vmem:[%s12 + $0x6c] sm:$0xf]
  %v7036 = vunpack.c.l.b16 %v6980
  %v7037 = vunpack.c.l.b16 %v6981
  %v7038 = vunpack.c.l.b16 %v6982
  %v7039 = vunpack.c.l.b16 %v6983
  %v7040 = vunpack.c.l.b16 %v6984
  %v7041 = vunpack.c.l.b16 %v6985
  %v7042 = vunpack.c.l.b16 %v6986
  %v7043 = vunpack.c.l.b16 %v6987
  %v7044 = vunpack.c.l.b16 %v6988
  %v7045 = vunpack.c.l.b16 %v6989
  %v7046 = vunpack.c.l.b16 %v6990
  %v7047 = vunpack.c.l.b16 %v6991
  %v7048 = vunpack.c.l.b16 %v6992
  %v7049 = vunpack.c.l.b16 %v6993
  %v7050 = vunpack.c.l.b16 %v6994
  %v7051 = vunpack.c.l.b16 %v6995
  %v7052 = vunpack.c.l.b16 %v6996
  %v7053 = vunpack.c.l.b16 %v6997
  %v7054 = vunpack.c.l.b16 %v6998
  %v7055 = vunpack.c.l.b16 %v6999
  %v7056 = vunpack.c.l.b16 %v7000
  %v7057 = vunpack.c.l.b16 %v7001
  %v7058 = vunpack.c.l.b16 %v7002
  %v7059 = vunpack.c.l.b16 %v7003
  %v7060 = vunpack.c.l.b16 %v7004
  %v7061 = vunpack.c.l.b16 %v7005
  %v7062 = vunpack.c.l.b16 %v7006
  %v7063 = vunpack.c.l.b16 %v7007
  %v7064 = vpack.c.b16 %v7037, %v7036
  %v7065 = vpack.c.b16 %v7039, %v7038
  %v7066 = vpack.c.b16 %v7041, %v7040
  %v7067 = vpack.c.b16 %v7043, %v7042
  %v7068 = vpack.c.b16 %v7045, %v7044
  %v7069 = vpack.c.b16 %v7047, %v7046
  %v7070 = vpack.c.b16 %v7049, %v7048
  %v7071 = vpack.c.b16 %v7051, %v7050
  %v7072 = vpack.c.b16 %v7053, %v7052
  %v7073 = vpack.c.b16 %v7055, %v7054
  %v7074 = vpack.c.b16 %v7057, %v7056
  %v7075 = vpack.c.b16 %v7059, %v7058
  %v7076 = vpack.c.b16 %v7061, %v7060
  %v7077 = vpack.c.b16 %v7063, %v7062
  %v7093 = vsel %vm391, %v6979, 0
  %7095 = vmatprep.subr.bf16.mxu0 0
  %7096 = vmatpush1.bf16.msra.mxu0 %v7071
  %7097 = vmatprep.subr.bf16.mxu0 0
  %7098 = vmatpush1.bf16.msra.mxu0 %v7070
  %7099 = vmatprep.subr.bf16.mxu0 0
  %7100 = vmatpush1.bf16.msra.mxu0 %v7069
  %7101 = vmatprep.subr.bf16.mxu0 0
  %7102 = vmatpush1.bf16.msra.mxu0 %v7068
  %7103 = vmatprep.subr.bf16.mxu0 0
  %7104 = vmatpush1.bf16.msra.mxu0 %v7067
  %7105 = vmatprep.subr.bf16.mxu0 0
  %7106 = vmatpush1.bf16.msra.mxu0 %v7066
  %7107 = vmatprep.subr.bf16.mxu0 0
  %7108 = vmatpush1.bf16.msra.mxu0 %v7065
  %7109 = vmatprep.subr.bf16.mxu0 0
  %7110 = vmatpush1.bf16.msra.mxu0 %v7064
  %7111 = vmatprep.subr.bf16.mxu0 0
  %7112 = vmatpush2.bf16.msra.mxu0 0
  %7113 = vmatprep.subr.bf16.mxu0 0
  %7114 = vmatpush2.bf16.msra.mxu0 0
  %7115 = vmatprep.subr.bf16.mxu0 0
  %7116 = vmatpush2.bf16.msra.mxu0 %v7077
  %7117 = vmatprep.subr.bf16.mxu0 0
  %7118 = vmatpush2.bf16.msra.mxu0 %v7076
  %7119 = vmatprep.subr.bf16.mxu0 0
  %7120 = vmatpush2.bf16.msra.mxu0 %v7075
  %7121 = vmatprep.subr.bf16.mxu0 0
  %7122 = vmatpush2.bf16.msra.mxu0 %v7074
  %7123 = vmatprep.subr.bf16.mxu0 0
  %7124 = vmatpush2.bf16.msra.mxu0 %v7073
  %7125 = vmatprep.subr.bf16.mxu0 0
  %7126 = vmatpush2.bf16.msra.mxu0 %v7072
  %7127 = vmatprep.mubr.bf16.mxu0 %v7093
  %7128 = vmatmul.mubr.bf16.gmra.mxu0 %v6978
  %v7129 = vpop.f32.mrf.mxu0
  %v7130 = vadd.f32 0.0, %v7129
  %v7131 = vpop.f32.mrf.mxu0
  %v7132 = vpop.f32.mrf.mxu0
  %v7133 = vpop.f32.mrf.mxu0
  %7134 = vdwg.mxu0
  %v7135 = vadd.f32 %v6238, %v7130
  %7136 = vmatprep.subr.bf16.mxu0 %v6391
  %7137 = vmatpush1.bf16.msra.mxu0 %v6390
  %7138 = vmatprep.subr.bf16.mxu0 %v6389
  %7139 = vmatpush1.bf16.msra.mxu0 %v6388
  %7140 = vmatprep.subr.bf16.mxu0 %v6387
  %7141 = vmatpush1.bf16.msra.mxu0 %v6386
  %7142 = vmatprep.subr.bf16.mxu0 %v6385
  %7143 = vmatpush1.bf16.msra.mxu0 %v6384
  %7144 = vmatprep.subr.bf16.mxu0 %v6383
  %7145 = vmatpush1.bf16.msra.mxu0 %v6382
  %7146 = vmatprep.subr.bf16.mxu0 %v6381
  %7147 = vmatpush1.bf16.msra.mxu0 %v6380
  %7148 = vmatprep.subr.bf16.mxu0 %v6379
  %7149 = vmatpush1.bf16.msra.mxu0 %v6378
  %7150 = vmatprep.subr.bf16.mxu0 %v6377
  %7151 = vmatpush1.bf16.msra.mxu0 %v6376
  %7152 = vmatprep.subr.bf16.mxu0 0
  %7153 = vmatpush2.bf16.msra.mxu0 0
  %7154 = vmatprep.subr.bf16.mxu0 %v6405
  %7155 = vmatpush2.bf16.msra.mxu0 %v6404
  %7156 = vmatprep.subr.bf16.mxu0 %v6403
  %7157 = vmatpush2.bf16.msra.mxu0 %v6402
  %7158 = vmatprep.subr.bf16.mxu0 %v6401
  %7159 = vmatpush2.bf16.msra.mxu0 %v6400
  %7160 = vmatprep.subr.bf16.mxu0 %v6399
  %7161 = vmatpush2.bf16.msra.mxu0 %v6398
  %7162 = vmatprep.subr.bf16.mxu0 %v6397
  %7163 = vmatpush2.bf16.msra.mxu0 %v6396
  %7164 = vmatprep.subr.bf16.mxu0 %v6395
  %7165 = vmatpush2.bf16.msra.mxu0 %v6394
  %7166 = vmatprep.subr.bf16.mxu0 %v6393
  %7167 = vmatpush2.bf16.msra.mxu0 %v6392
  %7168 = vmatprep.mubr.bf16.mxu0 %v6931
  %7169 = vmatmul.mubr.bf16.gmra.mxu0 %v6747
  %v7170 = vpop.f32.mrf.mxu0
  %v7171 = vadd.f32 0.0, %v7170
  %v7172 = vpop.f32.mrf.mxu0
  %v7173 = vadd.f32 0.0, %v7172
  %v7174 = vpop.f32.mrf.mxu0
  %v7175 = vpop.f32.mrf.mxu0
  %7176 = vdwg.mxu0
  %v7177 = vadd.f32 %v6485, %v7171
  %v7178 = vadd.f32 %v6489, %v7173
  %v7179 = vld [vmem:[%s1875] sm:$0xf]
  %v7182 = vunpack.c.l.s4 1983009808
  %v7183 = vunpack.c.0.s8 %v7182
  %v7184 = vlaneseq
  %v7185 = vshrl.u32 %v7184, 7
  %v7186 = vsub.s32 %v7183, %v7185
  %v7187 = vrot.slane %v7179, %v7186
  %v7188 = vcombine.high %v7187, %v7187
  %v7191 = vpack.c.bf16 %v7187, %v7187
  %v7192 = vpack.c.bf16 %v7188, %v7188
  %v7194 = vsel %vm6436, %v7192, 0
  %7196 = vmatprep.subr.bf16.mxu0 %v6644
  %7197 = vmatpush1.bf16.msra.mxu0 %v6643
  %7198 = vmatprep.subr.bf16.mxu0 %v6642
  %7199 = vmatpush1.bf16.msra.mxu0 %v6641
  %7200 = vmatprep.subr.bf16.mxu0 %v6640
  %7201 = vmatpush1.bf16.msra.mxu0 %v6639
  %7202 = vmatprep.subr.bf16.mxu0 %v6638
  %7203 = vmatpush1.bf16.msra.mxu0 %v6637
  %7204 = vmatprep.subr.bf16.mxu0 %v6636
  %7205 = vmatpush1.bf16.msra.mxu0 %v6635
  %7206 = vmatprep.subr.bf16.mxu0 %v6634
  %7207 = vmatpush1.bf16.msra.mxu0 %v6633
  %7208 = vmatprep.subr.bf16.mxu0 %v6632
  %7209 = vmatpush1.bf16.msra.mxu0 %v6631
  %7210 = vmatprep.subr.bf16.mxu0 %v6630
  %7211 = vmatpush1.bf16.msra.mxu0 %v6629
  %7212 = vmatprep.subr.bf16.mxu0 0
  %7213 = vmatpush2.bf16.msra.mxu0 0
  %7214 = vmatprep.subr.bf16.mxu0 %v6658
  %7215 = vmatpush2.bf16.msra.mxu0 %v6657
  %7216 = vmatprep.subr.bf16.mxu0 %v6656
  %7217 = vmatpush2.bf16.msra.mxu0 %v6655
  %7218 = vmatprep.subr.bf16.mxu0 %v6654
  %7219 = vmatpush2.bf16.msra.mxu0 %v6653
  %7220 = vmatprep.subr.bf16.mxu0 %v6652
  %7221 = vmatpush2.bf16.msra.mxu0 %v6651
  %7222 = vmatprep.subr.bf16.mxu0 %v6650
  %7223 = vmatpush2.bf16.msra.mxu0 %v6649
  %7224 = vmatprep.subr.bf16.mxu0 %v6648
  %7225 = vmatpush2.bf16.msra.mxu0 %v6647
  %7226 = vmatprep.subr.bf16.mxu0 %v6646
  %7227 = vmatpush2.bf16.msra.mxu0 %v6645
  %7228 = vmatprep.mubr.bf16.mxu0 %v7194
  %7229 = vmatmul.mubr.bf16.gmra.mxu0 %v7191
  %v7230 = vpop.f32.mrf.mxu0
  %v7231 = vadd.f32 0.0, %v7230
  %v7232 = vpop.f32.mrf.mxu0
  %v7233 = vadd.f32 0.0, %v7232
  %v7234 = vpop.f32.mrf.mxu0
  %v7235 = vpop.f32.mrf.mxu0
  %7236 = vdwg.mxu0
  %v7237 = vadd.f32 %v7177, %v7231
  %v7238 = vadd.f32 %v7178, %v7233
  %v7239 = vld [vmem:[%s2264] sm:$0xf]
  %v7242 = vunpack.c.l.s4 1983009808
  %v7243 = vunpack.c.0.s8 %v7242
  %v7244 = vlaneseq
  %v7245 = vshrl.u32 %v7244, 7
  %v7246 = vsub.s32 %v7243, %v7245
  %v7247 = vrot.slane %v7239, %v7246
  %v7248 = vcombine.high %v7247, %v7247
  %v7251 = vpack.c.bf16 %v7247, %v7247
  %v7252 = vpack.c.bf16 %v7248, %v7248
  %v7254 = vsel %vm6436, %v7252, 0
  %7256 = vmatprep.subr.bf16.mxu0 %v6885
  %7257 = vmatpush1.bf16.msra.mxu0 %v6884
  %7258 = vmatprep.subr.bf16.mxu0 %v6883
  %7259 = vmatpush1.bf16.msra.mxu0 %v6882
  %7260 = vmatprep.subr.bf16.mxu0 %v6881
  %7261 = vmatpush1.bf16.msra.mxu0 %v6880
  %7262 = vmatprep.subr.bf16.mxu0 %v6879
  %7263 = vmatpush1.bf16.msra.mxu0 %v6878
  %7264 = vmatprep.subr.bf16.mxu0 %v6877
  %7265 = vmatpush1.bf16.msra.mxu0 %v6876
  %7266 = vmatprep.subr.bf16.mxu0 %v6875
  %7267 = vmatpush1.bf16.msra.mxu0 %v6874
  %7268 = vmatprep.subr.bf16.mxu0 %v6873
  %7269 = vmatpush1.bf16.msra.mxu0 %v6872
  %7270 = vmatprep.subr.bf16.mxu0 %v6871
  %7271 = vmatpush1.bf16.msra.mxu0 %v6870
  %7272 = vmatprep.subr.bf16.mxu0 0
  %7273 = vmatpush2.bf16.msra.mxu0 0
  %7274 = vmatprep.subr.bf16.mxu0 %v6899
  %7275 = vmatpush2.bf16.msra.mxu0 %v6898
  %7276 = vmatprep.subr.bf16.mxu0 %v6897
  %7277 = vmatpush2.bf16.msra.mxu0 %v6896
  %7278 = vmatprep.subr.bf16.mxu0 %v6895
  %7279 = vmatpush2.bf16.msra.mxu0 %v6894
  %7280 = vmatprep.subr.bf16.mxu0 %v6893
  %7281 = vmatpush2.bf16.msra.mxu0 %v6892
  %7282 = vmatprep.subr.bf16.mxu0 %v6891
  %7283 = vmatpush2.bf16.msra.mxu0 %v6890
  %7284 = vmatprep.subr.bf16.mxu0 %v6889
  %7285 = vmatpush2.bf16.msra.mxu0 %v6888
  %7286 = vmatprep.subr.bf16.mxu0 %v6887
  %7287 = vmatpush2.bf16.msra.mxu0 %v6886
  %7288 = vmatprep.mubr.bf16.mxu0 %v7254
  %7289 = vmatmul.mubr.bf16.gmra.mxu0 %v7251
  %v7290 = vpop.f32.mrf.mxu0
  %v7291 = vadd.f32 0.0, %v7290
  %v7292 = vpop.f32.mrf.mxu0
  %v7293 = vadd.f32 0.0, %v7292
  %v7294 = vpop.f32.mrf.mxu0
  %v7295 = vpop.f32.mrf.mxu0
  %7296 = vdwg.mxu0
  %v7297 = vadd.f32 %v7237, %v7291
  %v7298 = vadd.f32 %v7238, %v7293
  %v7299 = vmax.f32 %v7297, 0.0
  %v7300 = vmax.f32 %v7298, 0.0
  %v7301 = vpack.c.bf16 %v7299, %v7299
  %v7302 = vpack.c.bf16 %v7300, %v7300
  %s7303 = scalar_lea.vmem %s12, 112
  %v7304 = vld [vmem:[%s7303] sm:$0xf]
  %v7305 = vld [vmem:[%s7303 + $0x4] sm:$0xf]
  %v7306 = vld [vmem:[%s7303 + $0x8] sm:$0xf]
  %v7307 = vld [vmem:[%s7303 + $0xc] sm:$0xf]
  %v7308 = vld [vmem:[%s7303 + $0x10] sm:$0xf]
  %v7309 = vld [vmem:[%s7303 + $0x14] sm:$0xf]
  %v7310 = vld [vmem:[%s7303 + $0x18] sm:$0xf]
  %v7311 = vld [vmem:[%s7303 + $0x1c] sm:$0xf]
  %v7312 = vld [vmem:[%s7303 + $0x20] sm:$0xf]
  %v7313 = vld [vmem:[%s7303 + $0x24] sm:$0xf]
  %v7314 = vld [vmem:[%s7303 + $0x28] sm:$0xf]
  %v7315 = vld [vmem:[%s7303 + $0x2c] sm:$0xf]
  %v7316 = vld [vmem:[%s7303 + $0x30] sm:$0xf]
  %v7317 = vld [vmem:[%s7303 + $0x34] sm:$0xf]
  %v7318 = vld [vmem:[%s7303 + $0x38] sm:$0xf]
  %v7319 = vld [vmem:[%s7303 + $0x3c] sm:$0xf]
  %v7320 = vld [vmem:[%s7303 + $0x40] sm:$0xf]
  %v7321 = vld [vmem:[%s7303 + $0x44] sm:$0xf]
  %v7322 = vld [vmem:[%s7303 + $0x48] sm:$0xf]
  %v7323 = vld [vmem:[%s7303 + $0x4c] sm:$0xf]
  %v7324 = vld [vmem:[%s7303 + $0x50] sm:$0xf]
  %v7325 = vld [vmem:[%s7303 + $0x54] sm:$0xf]
  %v7326 = vld [vmem:[%s7303 + $0x58] sm:$0xf]
  %v7327 = vld [vmem:[%s7303 + $0x5c] sm:$0xf]
  %v7328 = vld [vmem:[%s7303 + $0x60] sm:$0xf]
  %v7329 = vld [vmem:[%s7303 + $0x64] sm:$0xf]
  %v7330 = vld [vmem:[%s7303 + $0x68] sm:$0xf]
  %v7331 = vld [vmem:[%s7303 + $0x6c] sm:$0xf]
  %v7360 = vunpack.c.l.b16 %v7304
  %v7361 = vunpack.c.l.b16 %v7305
  %v7362 = vunpack.c.l.b16 %v7306
  %v7363 = vunpack.c.l.b16 %v7307
  %v7364 = vunpack.c.l.b16 %v7308
  %v7365 = vunpack.c.l.b16 %v7309
  %v7366 = vunpack.c.l.b16 %v7310
  %v7367 = vunpack.c.l.b16 %v7311
  %v7368 = vunpack.c.l.b16 %v7312
  %v7369 = vunpack.c.l.b16 %v7313
  %v7370 = vunpack.c.l.b16 %v7314
  %v7371 = vunpack.c.l.b16 %v7315
  %v7372 = vunpack.c.l.b16 %v7316
  %v7373 = vunpack.c.l.b16 %v7317
  %v7374 = vunpack.c.l.b16 %v7318
  %v7375 = vunpack.c.l.b16 %v7319
  %v7376 = vunpack.c.l.b16 %v7320
  %v7377 = vunpack.c.l.b16 %v7321
  %v7378 = vunpack.c.l.b16 %v7322
  %v7379 = vunpack.c.l.b16 %v7323
  %v7380 = vunpack.c.l.b16 %v7324
  %v7381 = vunpack.c.l.b16 %v7325
  %v7382 = vunpack.c.l.b16 %v7326
  %v7383 = vunpack.c.l.b16 %v7327
  %v7384 = vunpack.c.l.b16 %v7328
  %v7385 = vunpack.c.l.b16 %v7329
  %v7386 = vunpack.c.l.b16 %v7330
  %v7387 = vunpack.c.l.b16 %v7331
  %v7388 = vpack.c.b16 %v7361, %v7360
  %v7389 = vpack.c.b16 %v7363, %v7362
  %v7390 = vpack.c.b16 %v7365, %v7364
  %v7391 = vpack.c.b16 %v7367, %v7366
  %v7392 = vpack.c.b16 %v7369, %v7368
  %v7393 = vpack.c.b16 %v7371, %v7370
  %v7394 = vpack.c.b16 %v7373, %v7372
  %v7395 = vpack.c.b16 %v7375, %v7374
  %v7396 = vpack.c.b16 %v7377, %v7376
  %v7397 = vpack.c.b16 %v7379, %v7378
  %v7398 = vpack.c.b16 %v7381, %v7380
  %v7399 = vpack.c.b16 %v7383, %v7382
  %v7400 = vpack.c.b16 %v7385, %v7384
  %v7401 = vpack.c.b16 %v7387, %v7386
  %v7417 = vsel %vm391, %v7302, 0
  %7419 = vmatprep.subr.bf16.mxu0 0
  %7420 = vmatpush1.bf16.msra.mxu0 %v7395
  %7421 = vmatprep.subr.bf16.mxu0 0
  %7422 = vmatpush1.bf16.msra.mxu0 %v7394
  %7423 = vmatprep.subr.bf16.mxu0 0
  %7424 = vmatpush1.bf16.msra.mxu0 %v7393
  %7425 = vmatprep.subr.bf16.mxu0 0
  %7426 = vmatpush1.bf16.msra.mxu0 %v7392
  %7427 = vmatprep.subr.bf16.mxu0 0
  %7428 = vmatpush1.bf16.msra.mxu0 %v7391
  %7429 = vmatprep.subr.bf16.mxu0 0
  %7430 = vmatpush1.bf16.msra.mxu0 %v7390
  %7431 = vmatprep.subr.bf16.mxu0 0
  %7432 = vmatpush1.bf16.msra.mxu0 %v7389
  %7433 = vmatprep.subr.bf16.mxu0 0
  %7434 = vmatpush1.bf16.msra.mxu0 %v7388
  %7435 = vmatprep.subr.bf16.mxu0 0
  %7436 = vmatpush2.bf16.msra.mxu0 0
  %7437 = vmatprep.subr.bf16.mxu0 0
  %7438 = vmatpush2.bf16.msra.mxu0 0
  %7439 = vmatprep.subr.bf16.mxu0 0
  %7440 = vmatpush2.bf16.msra.mxu0 %v7401
  %7441 = vmatprep.subr.bf16.mxu0 0
  %7442 = vmatpush2.bf16.msra.mxu0 %v7400
  %7443 = vmatprep.subr.bf16.mxu0 0
  %7444 = vmatpush2.bf16.msra.mxu0 %v7399
  %7445 = vmatprep.subr.bf16.mxu0 0
  %7446 = vmatpush2.bf16.msra.mxu0 %v7398
  %7447 = vmatprep.subr.bf16.mxu0 0
  %7448 = vmatpush2.bf16.msra.mxu0 %v7397
  %7449 = vmatprep.subr.bf16.mxu0 0
  %7450 = vmatpush2.bf16.msra.mxu0 %v7396
  %7451 = vmatprep.mubr.bf16.mxu0 %v7417
  %7452 = vmatmul.mubr.bf16.gmra.mxu0 %v7301
  %v7453 = vpop.f32.mrf.mxu0
  %v7454 = vadd.f32 0.0, %v7453
  %v7455 = vpop.f32.mrf.mxu0
  %v7456 = vpop.f32.mrf.mxu0
  %v7457 = vpop.f32.mrf.mxu0
  %7458 = vdwg.mxu0
  %v7459 = vadd.f32 %v7135, %v7454
  %7460 = vmatprep.subr.bf16.mxu0 %v6391
  %7461 = vmatpush1.bf16.msra.mxu0 %v6390
  %7462 = vmatprep.subr.bf16.mxu0 %v6389
  %7463 = vmatpush1.bf16.msra.mxu0 %v6388
  %7464 = vmatprep.subr.bf16.mxu0 %v6387
  %7465 = vmatpush1.bf16.msra.mxu0 %v6386
  %7466 = vmatprep.subr.bf16.mxu0 %v6385
  %7467 = vmatpush1.bf16.msra.mxu0 %v6384
  %7468 = vmatprep.subr.bf16.mxu0 %v6383
  %7469 = vmatpush1.bf16.msra.mxu0 %v6382
  %7470 = vmatprep.subr.bf16.mxu0 %v6381
  %7471 = vmatpush1.bf16.msra.mxu0 %v6380
  %7472 = vmatprep.subr.bf16.mxu0 %v6379
  %7473 = vmatpush1.bf16.msra.mxu0 %v6378
  %7474 = vmatprep.subr.bf16.mxu0 %v6377
  %7475 = vmatpush1.bf16.msra.mxu0 %v6376
  %7476 = vmatprep.subr.bf16.mxu0 0
  %7477 = vmatpush2.bf16.msra.mxu0 0
  %7478 = vmatprep.subr.bf16.mxu0 %v6405
  %7479 = vmatpush2.bf16.msra.mxu0 %v6404
  %7480 = vmatprep.subr.bf16.mxu0 %v6403
  %7481 = vmatpush2.bf16.msra.mxu0 %v6402
  %7482 = vmatprep.subr.bf16.mxu0 %v6401
  %7483 = vmatpush2.bf16.msra.mxu0 %v6400
  %7484 = vmatprep.subr.bf16.mxu0 %v6399
  %7485 = vmatpush2.bf16.msra.mxu0 %v6398
  %7486 = vmatprep.subr.bf16.mxu0 %v6397
  %7487 = vmatpush2.bf16.msra.mxu0 %v6396
  %7488 = vmatprep.subr.bf16.mxu0 %v6395
  %7489 = vmatpush2.bf16.msra.mxu0 %v6394
  %7490 = vmatprep.subr.bf16.mxu0 %v6393
  %7491 = vmatpush2.bf16.msra.mxu0 %v6392
  %7492 = vmatprep.mubr.bf16.mxu0 %v7254
  %7493 = vmatmul.mubr.bf16.gmra.mxu0 %v7251
  %v7494 = vpop.f32.mrf.mxu0
  %v7495 = vadd.f32 0.0, %v7494
  %v7496 = vpop.f32.mrf.mxu0
  %v7497 = vadd.f32 0.0, %v7496
  %v7498 = vpop.f32.mrf.mxu0
  %v7499 = vpop.f32.mrf.mxu0
  %7500 = vdwg.mxu0
  %v7501 = vadd.f32 %v6485, %v7495
  %v7502 = vadd.f32 %v6489, %v7497
  %v7503 = vld [vmem:[%s2653] sm:$0xf]
  %v7506 = vunpack.c.l.s4 1983009808
  %v7507 = vunpack.c.0.s8 %v7506
  %v7508 = vlaneseq
  %v7509 = vshrl.u32 %v7508, 7
  %v7510 = vsub.s32 %v7507, %v7509
  %v7511 = vrot.slane %v7503, %v7510
  %v7512 = vcombine.high %v7511, %v7511
  %v7515 = vpack.c.bf16 %v7511, %v7511
  %v7516 = vpack.c.bf16 %v7512, %v7512
  %v7518 = vsel %vm6436, %v7516, 0
  %7520 = vmatprep.subr.bf16.mxu0 %v6644
  %7521 = vmatpush1.bf16.msra.mxu0 %v6643
  %7522 = vmatprep.subr.bf16.mxu0 %v6642
  %7523 = vmatpush1.bf16.msra.mxu0 %v6641
  %7524 = vmatprep.subr.bf16.mxu0 %v6640
  %7525 = vmatpush1.bf16.msra.mxu0 %v6639
  %7526 = vmatprep.subr.bf16.mxu0 %v6638
  %7527 = vmatpush1.bf16.msra.mxu0 %v6637
  %7528 = vmatprep.subr.bf16.mxu0 %v6636
  %7529 = vmatpush1.bf16.msra.mxu0 %v6635
  %7530 = vmatprep.subr.bf16.mxu0 %v6634
  %7531 = vmatpush1.bf16.msra.mxu0 %v6633
  %7532 = vmatprep.subr.bf16.mxu0 %v6632
  %7533 = vmatpush1.bf16.msra.mxu0 %v6631
  %7534 = vmatprep.subr.bf16.mxu0 %v6630
  %7535 = vmatpush1.bf16.msra.mxu0 %v6629
  %7536 = vmatprep.subr.bf16.mxu0 0
  %7537 = vmatpush2.bf16.msra.mxu0 0
  %7538 = vmatprep.subr.bf16.mxu0 %v6658
  %7539 = vmatpush2.bf16.msra.mxu0 %v6657
  %7540 = vmatprep.subr.bf16.mxu0 %v6656
  %7541 = vmatpush2.bf16.msra.mxu0 %v6655
  %7542 = vmatprep.subr.bf16.mxu0 %v6654
  %7543 = vmatpush2.bf16.msra.mxu0 %v6653
  %7544 = vmatprep.subr.bf16.mxu0 %v6652
  %7545 = vmatpush2.bf16.msra.mxu0 %v6651
  %7546 = vmatprep.subr.bf16.mxu0 %v6650
  %7547 = vmatpush2.bf16.msra.mxu0 %v6649
  %7548 = vmatprep.subr.bf16.mxu0 %v6648
  %7549 = vmatpush2.bf16.msra.mxu0 %v6647
  %7550 = vmatprep.subr.bf16.mxu0 %v6646
  %7551 = vmatpush2.bf16.msra.mxu0 %v6645
  %7552 = vmatprep.mubr.bf16.mxu0 %v7518
  %7553 = vmatmul.mubr.bf16.gmra.mxu0 %v7515
  %v7554 = vpop.f32.mrf.mxu0
  %v7555 = vadd.f32 0.0, %v7554
  %v7556 = vpop.f32.mrf.mxu0
  %v7557 = vadd.f32 0.0, %v7556
  %v7558 = vpop.f32.mrf.mxu0
  %v7559 = vpop.f32.mrf.mxu0
  %7560 = vdwg.mxu0
  %v7561 = vadd.f32 %v7501, %v7555
  %v7562 = vadd.f32 %v7502, %v7557
  %v7563 = vld [vmem:[%s3042] sm:$0xf]
  %v7566 = vunpack.c.l.s4 1983009808
  %v7567 = vunpack.c.0.s8 %v7566
  %v7568 = vlaneseq
  %v7569 = vshrl.u32 %v7568, 7
  %v7570 = vsub.s32 %v7567, %v7569
  %v7571 = vrot.slane %v7563, %v7570
  %v7572 = vcombine.high %v7571, %v7571
  %v7575 = vpack.c.bf16 %v7571, %v7571
  %v7576 = vpack.c.bf16 %v7572, %v7572
  %v7578 = vsel %vm6436, %v7576, 0
  %7580 = vmatprep.subr.bf16.mxu0 %v6885
  %7581 = vmatpush1.bf16.msra.mxu0 %v6884
  %7582 = vmatprep.subr.bf16.mxu0 %v6883
  %7583 = vmatpush1.bf16.msra.mxu0 %v6882
  %7584 = vmatprep.subr.bf16.mxu0 %v6881
  %7585 = vmatpush1.bf16.msra.mxu0 %v6880
  %7586 = vmatprep.subr.bf16.mxu0 %v6879
  %7587 = vmatpush1.bf16.msra.mxu0 %v6878
  %7588 = vmatprep.subr.bf16.mxu0 %v6877
  %7589 = vmatpush1.bf16.msra.mxu0 %v6876
  %7590 = vmatprep.subr.bf16.mxu0 %v6875
  %7591 = vmatpush1.bf16.msra.mxu0 %v6874
  %7592 = vmatprep.subr.bf16.mxu0 %v6873
  %7593 = vmatpush1.bf16.msra.mxu0 %v6872
  %7594 = vmatprep.subr.bf16.mxu0 %v6871
  %7595 = vmatpush1.bf16.msra.mxu0 %v6870
  %7596 = vmatprep.subr.bf16.mxu0 0
  %7597 = vmatpush2.bf16.msra.mxu0 0
  %7598 = vmatprep.subr.bf16.mxu0 %v6899
  %7599 = vmatpush2.bf16.msra.mxu0 %v6898
  %7600 = vmatprep.subr.bf16.mxu0 %v6897
  %7601 = vmatpush2.bf16.msra.mxu0 %v6896
  %7602 = vmatprep.subr.bf16.mxu0 %v6895
  %7603 = vmatpush2.bf16.msra.mxu0 %v6894
  %7604 = vmatprep.subr.bf16.mxu0 %v6893
  %7605 = vmatpush2.bf16.msra.mxu0 %v6892
  %7606 = vmatprep.subr.bf16.mxu0 %v6891
  %7607 = vmatpush2.bf16.msra.mxu0 %v6890
  %7608 = vmatprep.subr.bf16.mxu0 %v6889
  %7609 = vmatpush2.bf16.msra.mxu0 %v6888
  %7610 = vmatprep.subr.bf16.mxu0 %v6887
  %7611 = vmatpush2.bf16.msra.mxu0 %v6886
  %7612 = vmatprep.mubr.bf16.mxu0 %v7578
  %7613 = vmatmul.mubr.bf16.gmra.mxu0 %v7575
  %v7614 = vpop.f32.mrf.mxu0
  %v7615 = vadd.f32 0.0, %v7614
  %v7616 = vpop.f32.mrf.mxu0
  %v7617 = vadd.f32 0.0, %v7616
  %v7618 = vpop.f32.mrf.mxu0
  %v7619 = vpop.f32.mrf.mxu0
  %7620 = vdwg.mxu0
  %v7621 = vadd.f32 %v7561, %v7615
  %v7622 = vadd.f32 %v7562, %v7617
  %v7623 = vmax.f32 %v7621, 0.0
  %v7624 = vmax.f32 %v7622, 0.0
  %v7625 = vpack.c.bf16 %v7623, %v7623
  %v7626 = vpack.c.bf16 %v7624, %v7624
  %s7627 = scalar_lea.vmem %s12, 224
  %v7628 = vld [vmem:[%s7627] sm:$0xf]
  %v7629 = vld [vmem:[%s7627 + $0x4] sm:$0xf]
  %v7630 = vld [vmem:[%s7627 + $0x8] sm:$0xf]
  %v7631 = vld [vmem:[%s7627 + $0xc] sm:$0xf]
  %v7632 = vld [vmem:[%s7627 + $0x10] sm:$0xf]
  %v7633 = vld [vmem:[%s7627 + $0x14] sm:$0xf]
  %v7634 = vld [vmem:[%s7627 + $0x18] sm:$0xf]
  %v7635 = vld [vmem:[%s7627 + $0x1c] sm:$0xf]
  %v7636 = vld [vmem:[%s7627 + $0x20] sm:$0xf]
  %v7637 = vld [vmem:[%s7627 + $0x24] sm:$0xf]
  %v7638 = vld [vmem:[%s7627 + $0x28] sm:$0xf]
  %v7639 = vld [vmem:[%s7627 + $0x2c] sm:$0xf]
  %v7640 = vld [vmem:[%s7627 + $0x30] sm:$0xf]
  %v7641 = vld [vmem:[%s7627 + $0x34] sm:$0xf]
  %v7642 = vld [vmem:[%s7627 + $0x38] sm:$0xf]
  %v7643 = vld [vmem:[%s7627 + $0x3c] sm:$0xf]
  %v7644 = vld [vmem:[%s7627 + $0x40] sm:$0xf]
  %v7645 = vld [vmem:[%s7627 + $0x44] sm:$0xf]
  %v7646 = vld [vmem:[%s7627 + $0x48] sm:$0xf]
  %v7647 = vld [vmem:[%s7627 + $0x4c] sm:$0xf]
  %v7648 = vld [vmem:[%s7627 + $0x50] sm:$0xf]
  %v7649 = vld [vmem:[%s7627 + $0x54] sm:$0xf]
  %v7650 = vld [vmem:[%s7627 + $0x58] sm:$0xf]
  %v7651 = vld [vmem:[%s7627 + $0x5c] sm:$0xf]
  %v7652 = vld [vmem:[%s7627 + $0x60] sm:$0xf]
  %v7653 = vld [vmem:[%s7627 + $0x64] sm:$0xf]
  %v7654 = vld [vmem:[%s7627 + $0x68] sm:$0xf]
  %v7655 = vld [vmem:[%s7627 + $0x6c] sm:$0xf]
  %v7684 = vunpack.c.l.b16 %v7628
  %v7685 = vunpack.c.l.b16 %v7629
  %v7686 = vunpack.c.l.b16 %v7630
  %v7687 = vunpack.c.l.b16 %v7631
  %v7688 = vunpack.c.l.b16 %v7632
  %v7689 = vunpack.c.l.b16 %v7633
  %v7690 = vunpack.c.l.b16 %v7634
  %v7691 = vunpack.c.l.b16 %v7635
  %v7692 = vunpack.c.l.b16 %v7636
  %v7693 = vunpack.c.l.b16 %v7637
  %v7694 = vunpack.c.l.b16 %v7638
  %v7695 = vunpack.c.l.b16 %v7639
  %v7696 = vunpack.c.l.b16 %v7640
  %v7697 = vunpack.c.l.b16 %v7641
  %v7698 = vunpack.c.l.b16 %v7642
  %v7699 = vunpack.c.l.b16 %v7643
  %v7700 = vunpack.c.l.b16 %v7644
  %v7701 = vunpack.c.l.b16 %v7645
  %v7702 = vunpack.c.l.b16 %v7646
  %v7703 = vunpack.c.l.b16 %v7647
  %v7704 = vunpack.c.l.b16 %v7648
  %v7705 = vunpack.c.l.b16 %v7649
  %v7706 = vunpack.c.l.b16 %v7650
  %v7707 = vunpack.c.l.b16 %v7651
  %v7708 = vunpack.c.l.b16 %v7652
  %v7709 = vunpack.c.l.b16 %v7653
  %v7710 = vunpack.c.l.b16 %v7654
  %v7711 = vunpack.c.l.b16 %v7655
  %v7712 = vpack.c.b16 %v7685, %v7684
  %v7713 = vpack.c.b16 %v7687, %v7686
  %v7714 = vpack.c.b16 %v7689, %v7688
  %v7715 = vpack.c.b16 %v7691, %v7690
  %v7716 = vpack.c.b16 %v7693, %v7692
  %v7717 = vpack.c.b16 %v7695, %v7694
  %v7718 = vpack.c.b16 %v7697, %v7696
  %v7719 = vpack.c.b16 %v7699, %v7698
  %v7720 = vpack.c.b16 %v7701, %v7700
  %v7721 = vpack.c.b16 %v7703, %v7702
  %v7722 = vpack.c.b16 %v7705, %v7704
  %v7723 = vpack.c.b16 %v7707, %v7706
  %v7724 = vpack.c.b16 %v7709, %v7708
  %v7725 = vpack.c.b16 %v7711, %v7710
  %v7741 = vsel %vm391, %v7626, 0
  %7743 = vmatprep.subr.bf16.mxu0 0
  %7744 = vmatpush1.bf16.msra.mxu0 %v7719
  %7745 = vmatprep.subr.bf16.mxu0 0
  %7746 = vmatpush1.bf16.msra.mxu0 %v7718
  %7747 = vmatprep.subr.bf16.mxu0 0
  %7748 = vmatpush1.bf16.msra.mxu0 %v7717
  %7749 = vmatprep.subr.bf16.mxu0 0
  %7750 = vmatpush1.bf16.msra.mxu0 %v7716
  %7751 = vmatprep.subr.bf16.mxu0 0
  %7752 = vmatpush1.bf16.msra.mxu0 %v7715
  %7753 = vmatprep.subr.bf16.mxu0 0
  %7754 = vmatpush1.bf16.msra.mxu0 %v7714
  %7755 = vmatprep.subr.bf16.mxu0 0
  %7756 = vmatpush1.bf16.msra.mxu0 %v7713
  %7757 = vmatprep.subr.bf16.mxu0 0
  %7758 = vmatpush1.bf16.msra.mxu0 %v7712
  %7759 = vmatprep.subr.bf16.mxu0 0
  %7760 = vmatpush2.bf16.msra.mxu0 0
  %7761 = vmatprep.subr.bf16.mxu0 0
  %7762 = vmatpush2.bf16.msra.mxu0 0
  %7763 = vmatprep.subr.bf16.mxu0 0
  %7764 = vmatpush2.bf16.msra.mxu0 %v7725
  %7765 = vmatprep.subr.bf16.mxu0 0
  %7766 = vmatpush2.bf16.msra.mxu0 %v7724
  %7767 = vmatprep.subr.bf16.mxu0 0
  %7768 = vmatpush2.bf16.msra.mxu0 %v7723
  %7769 = vmatprep.subr.bf16.mxu0 0
  %7770 = vmatpush2.bf16.msra.mxu0 %v7722
  %7771 = vmatprep.subr.bf16.mxu0 0
  %7772 = vmatpush2.bf16.msra.mxu0 %v7721
  %7773 = vmatprep.subr.bf16.mxu0 0
  %7774 = vmatpush2.bf16.msra.mxu0 %v7720
  %7775 = vmatprep.mubr.bf16.mxu0 %v7741
  %7776 = vmatmul.mubr.bf16.gmra.mxu0 %v7625
  %v7777 = vpop.f32.mrf.mxu0
  %v7778 = vadd.f32 0.0, %v7777
  %v7779 = vpop.f32.mrf.mxu0
  %v7780 = vpop.f32.mrf.mxu0
  %v7781 = vpop.f32.mrf.mxu0
  %7782 = vdwg.mxu0
  %v7783 = vadd.f32 %v7459, %v7778
  %7784 = vmatprep.subr.bf16.mxu0 %v6391
  %7785 = vmatpush1.bf16.msra.mxu0 %v6390
  %7786 = vmatprep.subr.bf16.mxu0 %v6389
  %7787 = vmatpush1.bf16.msra.mxu0 %v6388
  %7788 = vmatprep.subr.bf16.mxu0 %v6387
  %7789 = vmatpush1.bf16.msra.mxu0 %v6386
  %7790 = vmatprep.subr.bf16.mxu0 %v6385
  %7791 = vmatpush1.bf16.msra.mxu0 %v6384
  %7792 = vmatprep.subr.bf16.mxu0 %v6383
  %7793 = vmatpush1.bf16.msra.mxu0 %v6382
  %7794 = vmatprep.subr.bf16.mxu0 %v6381
  %7795 = vmatpush1.bf16.msra.mxu0 %v6380
  %7796 = vmatprep.subr.bf16.mxu0 %v6379
  %7797 = vmatpush1.bf16.msra.mxu0 %v6378
  %7798 = vmatprep.subr.bf16.mxu0 %v6377
  %7799 = vmatpush1.bf16.msra.mxu0 %v6376
  %7800 = vmatprep.subr.bf16.mxu0 0
  %7801 = vmatpush2.bf16.msra.mxu0 0
  %7802 = vmatprep.subr.bf16.mxu0 %v6405
  %7803 = vmatpush2.bf16.msra.mxu0 %v6404
  %7804 = vmatprep.subr.bf16.mxu0 %v6403
  %7805 = vmatpush2.bf16.msra.mxu0 %v6402
  %7806 = vmatprep.subr.bf16.mxu0 %v6401
  %7807 = vmatpush2.bf16.msra.mxu0 %v6400
  %7808 = vmatprep.subr.bf16.mxu0 %v6399
  %7809 = vmatpush2.bf16.msra.mxu0 %v6398
  %7810 = vmatprep.subr.bf16.mxu0 %v6397
  %7811 = vmatpush2.bf16.msra.mxu0 %v6396
  %7812 = vmatprep.subr.bf16.mxu0 %v6395
  %7813 = vmatpush2.bf16.msra.mxu0 %v6394
  %7814 = vmatprep.subr.bf16.mxu0 %v6393
  %7815 = vmatpush2.bf16.msra.mxu0 %v6392
  %7816 = vmatprep.mubr.bf16.mxu0 %v7578
  %7817 = vmatmul.mubr.bf16.gmra.mxu0 %v7575
  %v7818 = vpop.f32.mrf.mxu0
  %v7819 = vadd.f32 0.0, %v7818
  %v7820 = vpop.f32.mrf.mxu0
  %v7821 = vadd.f32 0.0, %v7820
  %v7822 = vpop.f32.mrf.mxu0
  %v7823 = vpop.f32.mrf.mxu0
  %7824 = vdwg.mxu0
  %v7825 = vadd.f32 %v6485, %v7819
  %v7826 = vadd.f32 %v6489, %v7821
  %v7827 = vld [vmem:[%s3431] sm:$0xf]
  %v7830 = vunpack.c.l.s4 1983009808
  %v7831 = vunpack.c.0.s8 %v7830
  %v7832 = vlaneseq
  %v7833 = vshrl.u32 %v7832, 7
  %v7834 = vsub.s32 %v7831, %v7833
  %v7835 = vrot.slane %v7827, %v7834
  %v7836 = vcombine.high %v7835, %v7835
  %v7839 = vpack.c.bf16 %v7835, %v7835
  %v7840 = vpack.c.bf16 %v7836, %v7836
  %v7842 = vsel %vm6436, %v7840, 0
  %7844 = vmatprep.subr.bf16.mxu0 %v6644
  %7845 = vmatpush1.bf16.msra.mxu0 %v6643
  %7846 = vmatprep.subr.bf16.mxu0 %v6642
  %7847 = vmatpush1.bf16.msra.mxu0 %v6641
  %7848 = vmatprep.subr.bf16.mxu0 %v6640
  %7849 = vmatpush1.bf16.msra.mxu0 %v6639
  %7850 = vmatprep.subr.bf16.mxu0 %v6638
  %7851 = vmatpush1.bf16.msra.mxu0 %v6637
  %7852 = vmatprep.subr.bf16.mxu0 %v6636
  %7853 = vmatpush1.bf16.msra.mxu0 %v6635
  %7854 = vmatprep.subr.bf16.mxu0 %v6634
  %7855 = vmatpush1.bf16.msra.mxu0 %v6633
  %7856 = vmatprep.subr.bf16.mxu0 %v6632
  %7857 = vmatpush1.bf16.msra.mxu0 %v6631
  %7858 = vmatprep.subr.bf16.mxu0 %v6630
  %7859 = vmatpush1.bf16.msra.mxu0 %v6629
  %7860 = vmatprep.subr.bf16.mxu0 0
  %7861 = vmatpush2.bf16.msra.mxu0 0
  %7862 = vmatprep.subr.bf16.mxu0 %v6658
  %7863 = vmatpush2.bf16.msra.mxu0 %v6657
  %7864 = vmatprep.subr.bf16.mxu0 %v6656
  %7865 = vmatpush2.bf16.msra.mxu0 %v6655
  %7866 = vmatprep.subr.bf16.mxu0 %v6654
  %7867 = vmatpush2.bf16.msra.mxu0 %v6653
  %7868 = vmatprep.subr.bf16.mxu0 %v6652
  %7869 = vmatpush2.bf16.msra.mxu0 %v6651
  %7870 = vmatprep.subr.bf16.mxu0 %v6650
  %7871 = vmatpush2.bf16.msra.mxu0 %v6649
  %7872 = vmatprep.subr.bf16.mxu0 %v6648
  %7873 = vmatpush2.bf16.msra.mxu0 %v6647
  %7874 = vmatprep.subr.bf16.mxu0 %v6646
  %7875 = vmatpush2.bf16.msra.mxu0 %v6645
  %7876 = vmatprep.mubr.bf16.mxu0 %v7842
  %7877 = vmatmul.mubr.bf16.gmra.mxu0 %v7839
  %v7878 = vpop.f32.mrf.mxu0
  %v7879 = vadd.f32 0.0, %v7878
  %v7880 = vpop.f32.mrf.mxu0
  %v7881 = vadd.f32 0.0, %v7880
  %v7882 = vpop.f32.mrf.mxu0
  %v7883 = vpop.f32.mrf.mxu0
  %7884 = vdwg.mxu0
  %v7885 = vadd.f32 %v7825, %v7879
  %v7886 = vadd.f32 %v7826, %v7881
  %v7887 = vld [vmem:[%s3820] sm:$0xf]
  %v7890 = vunpack.c.l.s4 1983009808
  %v7891 = vunpack.c.0.s8 %v7890
  %v7892 = vlaneseq
  %v7893 = vshrl.u32 %v7892, 7
  %v7894 = vsub.s32 %v7891, %v7893
  %v7895 = vrot.slane %v7887, %v7894
  %v7896 = vcombine.high %v7895, %v7895
  %v7899 = vpack.c.bf16 %v7895, %v7895
  %v7900 = vpack.c.bf16 %v7896, %v7896
  %v7902 = vsel %vm6436, %v7900, 0
  %7904 = vmatprep.subr.bf16.mxu0 %v6885
  %7905 = vmatpush1.bf16.msra.mxu0 %v6884
  %7906 = vmatprep.subr.bf16.mxu0 %v6883
  %7907 = vmatpush1.bf16.msra.mxu0 %v6882
  %7908 = vmatprep.subr.bf16.mxu0 %v6881
  %7909 = vmatpush1.bf16.msra.mxu0 %v6880
  %7910 = vmatprep.subr.bf16.mxu0 %v6879
  %7911 = vmatpush1.bf16.msra.mxu0 %v6878
  %7912 = vmatprep.subr.bf16.mxu0 %v6877
  %7913 = vmatpush1.bf16.msra.mxu0 %v6876
  %7914 = vmatprep.subr.bf16.mxu0 %v6875
  %7915 = vmatpush1.bf16.msra.mxu0 %v6874
  %7916 = vmatprep.subr.bf16.mxu0 %v6873
  %7917 = vmatpush1.bf16.msra.mxu0 %v6872
  %7918 = vmatprep.subr.bf16.mxu0 %v6871
  %7919 = vmatpush1.bf16.msra.mxu0 %v6870
  %7920 = vmatprep.subr.bf16.mxu0 0
  %7921 = vmatpush2.bf16.msra.mxu0 0
  %7922 = vmatprep.subr.bf16.mxu0 %v6899
  %7923 = vmatpush2.bf16.msra.mxu0 %v6898
  %7924 = vmatprep.subr.bf16.mxu0 %v6897
  %7925 = vmatpush2.bf16.msra.mxu0 %v6896
  %7926 = vmatprep.subr.bf16.mxu0 %v6895
  %7927 = vmatpush2.bf16.msra.mxu0 %v6894
  %7928 = vmatprep.subr.bf16.mxu0 %v6893
  %7929 = vmatpush2.bf16.msra.mxu0 %v6892
  %7930 = vmatprep.subr.bf16.mxu0 %v6891
  %7931 = vmatpush2.bf16.msra.mxu0 %v6890
  %7932 = vmatprep.subr.bf16.mxu0 %v6889
  %7933 = vmatpush2.bf16.msra.mxu0 %v6888
  %7934 = vmatprep.subr.bf16.mxu0 %v6887
  %7935 = vmatpush2.bf16.msra.mxu0 %v6886
  %7936 = vmatprep.mubr.bf16.mxu0 %v7902
  %7937 = vmatmul.mubr.bf16.gmra.mxu0 %v7899
  %v7938 = vpop.f32.mrf.mxu0
  %v7939 = vadd.f32 0.0, %v7938
  %v7940 = vpop.f32.mrf.mxu0
  %v7941 = vadd.f32 0.0, %v7940
  %v7942 = vpop.f32.mrf.mxu0
  %v7943 = vpop.f32.mrf.mxu0
  %7944 = vdwg.mxu0
  %v7945 = vadd.f32 %v7885, %v7939
  %v7946 = vadd.f32 %v7886, %v7941
  %v7947 = vmax.f32 %v7945, 0.0
  %v7948 = vmax.f32 %v7946, 0.0
  %v7949 = vpack.c.bf16 %v7947, %v7947
  %v7950 = vpack.c.bf16 %v7948, %v7948
  %s7951 = scalar_lea.vmem %s12, 336
  %v7952 = vld [vmem:[%s7951] sm:$0xf]
  %v7953 = vld [vmem:[%s7951 + $0x4] sm:$0xf]
  %v7954 = vld [vmem:[%s7951 + $0x8] sm:$0xf]
  %v7955 = vld [vmem:[%s7951 + $0xc] sm:$0xf]
  %v7956 = vld [vmem:[%s7951 + $0x10] sm:$0xf]
  %v7957 = vld [vmem:[%s7951 + $0x14] sm:$0xf]
  %v7958 = vld [vmem:[%s7951 + $0x18] sm:$0xf]
  %v7959 = vld [vmem:[%s7951 + $0x1c] sm:$0xf]
  %v7960 = vld [vmem:[%s7951 + $0x20] sm:$0xf]
  %v7961 = vld [vmem:[%s7951 + $0x24] sm:$0xf]
  %v7962 = vld [vmem:[%s7951 + $0x28] sm:$0xf]
  %v7963 = vld [vmem:[%s7951 + $0x2c] sm:$0xf]
  %v7964 = vld [vmem:[%s7951 + $0x30] sm:$0xf]
  %v7965 = vld [vmem:[%s7951 + $0x34] sm:$0xf]
  %v7966 = vld [vmem:[%s7951 + $0x38] sm:$0xf]
  %v7967 = vld [vmem:[%s7951 + $0x3c] sm:$0xf]
  %v7968 = vld [vmem:[%s7951 + $0x40] sm:$0xf]
  %v7969 = vld [vmem:[%s7951 + $0x44] sm:$0xf]
  %v7970 = vld [vmem:[%s7951 + $0x48] sm:$0xf]
  %v7971 = vld [vmem:[%s7951 + $0x4c] sm:$0xf]
  %v7972 = vld [vmem:[%s7951 + $0x50] sm:$0xf]
  %v7973 = vld [vmem:[%s7951 + $0x54] sm:$0xf]
  %v7974 = vld [vmem:[%s7951 + $0x58] sm:$0xf]
  %v7975 = vld [vmem:[%s7951 + $0x5c] sm:$0xf]
  %v7976 = vld [vmem:[%s7951 + $0x60] sm:$0xf]
  %v7977 = vld [vmem:[%s7951 + $0x64] sm:$0xf]
  %v7978 = vld [vmem:[%s7951 + $0x68] sm:$0xf]
  %v7979 = vld [vmem:[%s7951 + $0x6c] sm:$0xf]
  %v8008 = vunpack.c.l.b16 %v7952
  %v8009 = vunpack.c.l.b16 %v7953
  %v8010 = vunpack.c.l.b16 %v7954
  %v8011 = vunpack.c.l.b16 %v7955
  %v8012 = vunpack.c.l.b16 %v7956
  %v8013 = vunpack.c.l.b16 %v7957
  %v8014 = vunpack.c.l.b16 %v7958
  %v8015 = vunpack.c.l.b16 %v7959
  %v8016 = vunpack.c.l.b16 %v7960
  %v8017 = vunpack.c.l.b16 %v7961
  %v8018 = vunpack.c.l.b16 %v7962
  %v8019 = vunpack.c.l.b16 %v7963
  %v8020 = vunpack.c.l.b16 %v7964
  %v8021 = vunpack.c.l.b16 %v7965
  %v8022 = vunpack.c.l.b16 %v7966
  %v8023 = vunpack.c.l.b16 %v7967
  %v8024 = vunpack.c.l.b16 %v7968
  %v8025 = vunpack.c.l.b16 %v7969
  %v8026 = vunpack.c.l.b16 %v7970
  %v8027 = vunpack.c.l.b16 %v7971
  %v8028 = vunpack.c.l.b16 %v7972
  %v8029 = vunpack.c.l.b16 %v7973
  %v8030 = vunpack.c.l.b16 %v7974
  %v8031 = vunpack.c.l.b16 %v7975
  %v8032 = vunpack.c.l.b16 %v7976
  %v8033 = vunpack.c.l.b16 %v7977
  %v8034 = vunpack.c.l.b16 %v7978
  %v8035 = vunpack.c.l.b16 %v7979
  %v8036 = vpack.c.b16 %v8009, %v8008
  %v8037 = vpack.c.b16 %v8011, %v8010
  %v8038 = vpack.c.b16 %v8013, %v8012
  %v8039 = vpack.c.b16 %v8015, %v8014
  %v8040 = vpack.c.b16 %v8017, %v8016
  %v8041 = vpack.c.b16 %v8019, %v8018
  %v8042 = vpack.c.b16 %v8021, %v8020
  %v8043 = vpack.c.b16 %v8023, %v8022
  %v8044 = vpack.c.b16 %v8025, %v8024
  %v8045 = vpack.c.b16 %v8027, %v8026
  %v8046 = vpack.c.b16 %v8029, %v8028
  %v8047 = vpack.c.b16 %v8031, %v8030
  %v8048 = vpack.c.b16 %v8033, %v8032
  %v8049 = vpack.c.b16 %v8035, %v8034
  %v8065 = vsel %vm391, %v7950, 0
  %8067 = vmatprep.subr.bf16.mxu0 0
  %8068 = vmatpush1.bf16.msra.mxu0 %v8043
  %8069 = vmatprep.subr.bf16.mxu0 0
  %8070 = vmatpush1.bf16.msra.mxu0 %v8042
  %8071 = vmatprep.subr.bf16.mxu0 0
  %8072 = vmatpush1.bf16.msra.mxu0 %v8041
  %8073 = vmatprep.subr.bf16.mxu0 0
  %8074 = vmatpush1.bf16.msra.mxu0 %v8040
  %8075 = vmatprep.subr.bf16.mxu0 0
  %8076 = vmatpush1.bf16.msra.mxu0 %v8039
  %8077 = vmatprep.subr.bf16.mxu0 0
  %8078 = vmatpush1.bf16.msra.mxu0 %v8038
  %8079 = vmatprep.subr.bf16.mxu0 0
  %8080 = vmatpush1.bf16.msra.mxu0 %v8037
  %8081 = vmatprep.subr.bf16.mxu0 0
  %8082 = vmatpush1.bf16.msra.mxu0 %v8036
  %8083 = vmatprep.subr.bf16.mxu0 0
  %8084 = vmatpush2.bf16.msra.mxu0 0
  %8085 = vmatprep.subr.bf16.mxu0 0
  %8086 = vmatpush2.bf16.msra.mxu0 0
  %8087 = vmatprep.subr.bf16.mxu0 0
  %8088 = vmatpush2.bf16.msra.mxu0 %v8049
  %8089 = vmatprep.subr.bf16.mxu0 0
  %8090 = vmatpush2.bf16.msra.mxu0 %v8048
  %8091 = vmatprep.subr.bf16.mxu0 0
  %8092 = vmatpush2.bf16.msra.mxu0 %v8047
  %8093 = vmatprep.subr.bf16.mxu0 0
  %8094 = vmatpush2.bf16.msra.mxu0 %v8046
  %8095 = vmatprep.subr.bf16.mxu0 0
  %8096 = vmatpush2.bf16.msra.mxu0 %v8045
  %8097 = vmatprep.subr.bf16.mxu0 0
  %8098 = vmatpush2.bf16.msra.mxu0 %v8044
  %8099 = vmatprep.mubr.bf16.mxu0 %v8065
  %8100 = vmatmul.mubr.bf16.gmra.mxu0 %v7949
  %v8101 = vpop.f32.mrf.mxu0
  %v8102 = vadd.f32 0.0, %v8101
  %v8103 = vpop.f32.mrf.mxu0
  %v8104 = vpop.f32.mrf.mxu0
  %v8105 = vpop.f32.mrf.mxu0
  %8106 = vdwg.mxu0
  %v8107 = vadd.f32 %v7783, %v8102
  %8108 = vmatprep.subr.bf16.mxu0 %v6391
  %8109 = vmatpush1.bf16.msra.mxu0 %v6390
  %8110 = vmatprep.subr.bf16.mxu0 %v6389
  %8111 = vmatpush1.bf16.msra.mxu0 %v6388
  %8112 = vmatprep.subr.bf16.mxu0 %v6387
  %8113 = vmatpush1.bf16.msra.mxu0 %v6386
  %8114 = vmatprep.subr.bf16.mxu0 %v6385
  %8115 = vmatpush1.bf16.msra.mxu0 %v6384
  %8116 = vmatprep.subr.bf16.mxu0 %v6383
  %8117 = vmatpush1.bf16.msra.mxu0 %v6382
  %8118 = vmatprep.subr.bf16.mxu0 %v6381
  %8119 = vmatpush1.bf16.msra.mxu0 %v6380
  %8120 = vmatprep.subr.bf16.mxu0 %v6379
  %8121 = vmatpush1.bf16.msra.mxu0 %v6378
  %8122 = vmatprep.subr.bf16.mxu0 %v6377
  %8123 = vmatpush1.bf16.msra.mxu0 %v6376
  %8124 = vmatprep.subr.bf16.mxu0 0
  %8125 = vmatpush2.bf16.msra.mxu0 0
  %8126 = vmatprep.subr.bf16.mxu0 %v6405
  %8127 = vmatpush2.bf16.msra.mxu0 %v6404
  %8128 = vmatprep.subr.bf16.mxu0 %v6403
  %8129 = vmatpush2.bf16.msra.mxu0 %v6402
  %8130 = vmatprep.subr.bf16.mxu0 %v6401
  %8131 = vmatpush2.bf16.msra.mxu0 %v6400
  %8132 = vmatprep.subr.bf16.mxu0 %v6399
  %8133 = vmatpush2.bf16.msra.mxu0 %v6398
  %8134 = vmatprep.subr.bf16.mxu0 %v6397
  %8135 = vmatpush2.bf16.msra.mxu0 %v6396
  %8136 = vmatprep.subr.bf16.mxu0 %v6395
  %8137 = vmatpush2.bf16.msra.mxu0 %v6394
  %8138 = vmatprep.subr.bf16.mxu0 %v6393
  %8139 = vmatpush2.bf16.msra.mxu0 %v6392
  %8140 = vmatprep.mubr.bf16.mxu0 %v7902
  %8141 = vmatmul.mubr.bf16.gmra.mxu0 %v7899
  %v8142 = vpop.f32.mrf.mxu0
  %v8143 = vadd.f32 0.0, %v8142
  %v8144 = vpop.f32.mrf.mxu0
  %v8145 = vadd.f32 0.0, %v8144
  %v8146 = vpop.f32.mrf.mxu0
  %v8147 = vpop.f32.mrf.mxu0
  %8148 = vdwg.mxu0
  %v8149 = vadd.f32 %v6485, %v8143
  %v8150 = vadd.f32 %v6489, %v8145
  %v8151 = vld [vmem:[%s4209] sm:$0xf]
  %v8154 = vunpack.c.l.s4 1983009808
  %v8155 = vunpack.c.0.s8 %v8154
  %v8156 = vlaneseq
  %v8157 = vshrl.u32 %v8156, 7
  %v8158 = vsub.s32 %v8155, %v8157
  %v8159 = vrot.slane %v8151, %v8158
  %v8160 = vcombine.high %v8159, %v8159
  %v8163 = vpack.c.bf16 %v8159, %v8159
  %v8164 = vpack.c.bf16 %v8160, %v8160
  %v8166 = vsel %vm6436, %v8164, 0
  %8168 = vmatprep.subr.bf16.mxu0 %v6644
  %8169 = vmatpush1.bf16.msra.mxu0 %v6643
  %8170 = vmatprep.subr.bf16.mxu0 %v6642
  %8171 = vmatpush1.bf16.msra.mxu0 %v6641
  %8172 = vmatprep.subr.bf16.mxu0 %v6640
  %8173 = vmatpush1.bf16.msra.mxu0 %v6639
  %8174 = vmatprep.subr.bf16.mxu0 %v6638
  %8175 = vmatpush1.bf16.msra.mxu0 %v6637
  %8176 = vmatprep.subr.bf16.mxu0 %v6636
  %8177 = vmatpush1.bf16.msra.mxu0 %v6635
  %8178 = vmatprep.subr.bf16.mxu0 %v6634
  %8179 = vmatpush1.bf16.msra.mxu0 %v6633
  %8180 = vmatprep.subr.bf16.mxu0 %v6632
  %8181 = vmatpush1.bf16.msra.mxu0 %v6631
  %8182 = vmatprep.subr.bf16.mxu0 %v6630
  %8183 = vmatpush1.bf16.msra.mxu0 %v6629
  %8184 = vmatprep.subr.bf16.mxu0 0
  %8185 = vmatpush2.bf16.msra.mxu0 0
  %8186 = vmatprep.subr.bf16.mxu0 %v6658
  %8187 = vmatpush2.bf16.msra.mxu0 %v6657
  %8188 = vmatprep.subr.bf16.mxu0 %v6656
  %8189 = vmatpush2.bf16.msra.mxu0 %v6655
  %8190 = vmatprep.subr.bf16.mxu0 %v6654
  %8191 = vmatpush2.bf16.msra.mxu0 %v6653
  %8192 = vmatprep.subr.bf16.mxu0 %v6652
  %8193 = vmatpush2.bf16.msra.mxu0 %v6651
  %8194 = vmatprep.subr.bf16.mxu0 %v6650
  %8195 = vmatpush2.bf16.msra.mxu0 %v6649
  %8196 = vmatprep.subr.bf16.mxu0 %v6648
  %8197 = vmatpush2.bf16.msra.mxu0 %v6647
  %8198 = vmatprep.subr.bf16.mxu0 %v6646
  %8199 = vmatpush2.bf16.msra.mxu0 %v6645
  %8200 = vmatprep.mubr.bf16.mxu0 %v8166
  %8201 = vmatmul.mubr.bf16.gmra.mxu0 %v8163
  %v8202 = vpop.f32.mrf.mxu0
  %v8203 = vadd.f32 0.0, %v8202
  %v8204 = vpop.f32.mrf.mxu0
  %v8205 = vadd.f32 0.0, %v8204
  %v8206 = vpop.f32.mrf.mxu0
  %v8207 = vpop.f32.mrf.mxu0
  %8208 = vdwg.mxu0
  %v8209 = vadd.f32 %v8149, %v8203
  %v8210 = vadd.f32 %v8150, %v8205
  %v8211 = vld [vmem:[%s4598] sm:$0xf]
  %v8214 = vunpack.c.l.s4 1983009808
  %v8215 = vunpack.c.0.s8 %v8214
  %v8216 = vlaneseq
  %v8217 = vshrl.u32 %v8216, 7
  %v8218 = vsub.s32 %v8215, %v8217
  %v8219 = vrot.slane %v8211, %v8218
  %v8220 = vcombine.high %v8219, %v8219
  %v8223 = vpack.c.bf16 %v8219, %v8219
  %v8224 = vpack.c.bf16 %v8220, %v8220
  %v8226 = vsel %vm6436, %v8224, 0
  %8228 = vmatprep.subr.bf16.mxu0 %v6885
  %8229 = vmatpush1.bf16.msra.mxu0 %v6884
  %8230 = vmatprep.subr.bf16.mxu0 %v6883
  %8231 = vmatpush1.bf16.msra.mxu0 %v6882
  %8232 = vmatprep.subr.bf16.mxu0 %v6881
  %8233 = vmatpush1.bf16.msra.mxu0 %v6880
  %8234 = vmatprep.subr.bf16.mxu0 %v6879
  %8235 = vmatpush1.bf16.msra.mxu0 %v6878
  %8236 = vmatprep.subr.bf16.mxu0 %v6877
  %8237 = vmatpush1.bf16.msra.mxu0 %v6876
  %8238 = vmatprep.subr.bf16.mxu0 %v6875
  %8239 = vmatpush1.bf16.msra.mxu0 %v6874
  %8240 = vmatprep.subr.bf16.mxu0 %v6873
  %8241 = vmatpush1.bf16.msra.mxu0 %v6872
  %8242 = vmatprep.subr.bf16.mxu0 %v6871
  %8243 = vmatpush1.bf16.msra.mxu0 %v6870
  %8244 = vmatprep.subr.bf16.mxu0 0
  %8245 = vmatpush2.bf16.msra.mxu0 0
  %8246 = vmatprep.subr.bf16.mxu0 %v6899
  %8247 = vmatpush2.bf16.msra.mxu0 %v6898
  %8248 = vmatprep.subr.bf16.mxu0 %v6897
  %8249 = vmatpush2.bf16.msra.mxu0 %v6896
  %8250 = vmatprep.subr.bf16.mxu0 %v6895
  %8251 = vmatpush2.bf16.msra.mxu0 %v6894
  %8252 = vmatprep.subr.bf16.mxu0 %v6893
  %8253 = vmatpush2.bf16.msra.mxu0 %v6892
  %8254 = vmatprep.subr.bf16.mxu0 %v6891
  %8255 = vmatpush2.bf16.msra.mxu0 %v6890
  %8256 = vmatprep.subr.bf16.mxu0 %v6889
  %8257 = vmatpush2.bf16.msra.mxu0 %v6888
  %8258 = vmatprep.subr.bf16.mxu0 %v6887
  %8259 = vmatpush2.bf16.msra.mxu0 %v6886
  %8260 = vmatprep.mubr.bf16.mxu0 %v8226
  %8261 = vmatmul.mubr.bf16.gmra.mxu0 %v8223
  %v8262 = vpop.f32.mrf.mxu0
  %v8263 = vadd.f32 0.0, %v8262
  %v8264 = vpop.f32.mrf.mxu0
  %v8265 = vadd.f32 0.0, %v8264
  %v8266 = vpop.f32.mrf.mxu0
  %v8267 = vpop.f32.mrf.mxu0
  %8268 = vdwg.mxu0
  %v8269 = vadd.f32 %v8209, %v8263
  %v8270 = vadd.f32 %v8210, %v8265
  %v8271 = vmax.f32 %v8269, 0.0
  %v8272 = vmax.f32 %v8270, 0.0
  %v8273 = vpack.c.bf16 %v8271, %v8271
  %v8274 = vpack.c.bf16 %v8272, %v8272
  %s8275 = scalar_lea.vmem %s12, 448
  %v8276 = vld [vmem:[%s8275] sm:$0xf]
  %v8277 = vld [vmem:[%s8275 + $0x4] sm:$0xf]
  %v8278 = vld [vmem:[%s8275 + $0x8] sm:$0xf]
  %v8279 = vld [vmem:[%s8275 + $0xc] sm:$0xf]
  %v8280 = vld [vmem:[%s8275 + $0x10] sm:$0xf]
  %v8281 = vld [vmem:[%s8275 + $0x14] sm:$0xf]
  %v8282 = vld [vmem:[%s8275 + $0x18] sm:$0xf]
  %v8283 = vld [vmem:[%s8275 + $0x1c] sm:$0xf]
  %v8284 = vld [vmem:[%s8275 + $0x20] sm:$0xf]
  %v8285 = vld [vmem:[%s8275 + $0x24] sm:$0xf]
  %v8286 = vld [vmem:[%s8275 + $0x28] sm:$0xf]
  %v8287 = vld [vmem:[%s8275 + $0x2c] sm:$0xf]
  %v8288 = vld [vmem:[%s8275 + $0x30] sm:$0xf]
  %v8289 = vld [vmem:[%s8275 + $0x34] sm:$0xf]
  %v8290 = vld [vmem:[%s8275 + $0x38] sm:$0xf]
  %v8291 = vld [vmem:[%s8275 + $0x3c] sm:$0xf]
  %v8292 = vld [vmem:[%s8275 + $0x40] sm:$0xf]
  %v8293 = vld [vmem:[%s8275 + $0x44] sm:$0xf]
  %v8294 = vld [vmem:[%s8275 + $0x48] sm:$0xf]
  %v8295 = vld [vmem:[%s8275 + $0x4c] sm:$0xf]
  %v8296 = vld [vmem:[%s8275 + $0x50] sm:$0xf]
  %v8297 = vld [vmem:[%s8275 + $0x54] sm:$0xf]
  %v8298 = vld [vmem:[%s8275 + $0x58] sm:$0xf]
  %v8299 = vld [vmem:[%s8275 + $0x5c] sm:$0xf]
  %v8300 = vld [vmem:[%s8275 + $0x60] sm:$0xf]
  %v8301 = vld [vmem:[%s8275 + $0x64] sm:$0xf]
  %v8302 = vld [vmem:[%s8275 + $0x68] sm:$0xf]
  %v8303 = vld [vmem:[%s8275 + $0x6c] sm:$0xf]
  %v8332 = vunpack.c.l.b16 %v8276
  %v8333 = vunpack.c.l.b16 %v8277
  %v8334 = vunpack.c.l.b16 %v8278
  %v8335 = vunpack.c.l.b16 %v8279
  %v8336 = vunpack.c.l.b16 %v8280
  %v8337 = vunpack.c.l.b16 %v8281
  %v8338 = vunpack.c.l.b16 %v8282
  %v8339 = vunpack.c.l.b16 %v8283
  %v8340 = vunpack.c.l.b16 %v8284
  %v8341 = vunpack.c.l.b16 %v8285
  %v8342 = vunpack.c.l.b16 %v8286
  %v8343 = vunpack.c.l.b16 %v8287
  %v8344 = vunpack.c.l.b16 %v8288
  %v8345 = vunpack.c.l.b16 %v8289
  %v8346 = vunpack.c.l.b16 %v8290
  %v8347 = vunpack.c.l.b16 %v8291
  %v8348 = vunpack.c.l.b16 %v8292
  %v8349 = vunpack.c.l.b16 %v8293
  %v8350 = vunpack.c.l.b16 %v8294
  %v8351 = vunpack.c.l.b16 %v8295
  %v8352 = vunpack.c.l.b16 %v8296
  %v8353 = vunpack.c.l.b16 %v8297
  %v8354 = vunpack.c.l.b16 %v8298
  %v8355 = vunpack.c.l.b16 %v8299
  %v8356 = vunpack.c.l.b16 %v8300
  %v8357 = vunpack.c.l.b16 %v8301
  %v8358 = vunpack.c.l.b16 %v8302
  %v8359 = vunpack.c.l.b16 %v8303
  %v8360 = vpack.c.b16 %v8333, %v8332
  %v8361 = vpack.c.b16 %v8335, %v8334
  %v8362 = vpack.c.b16 %v8337, %v8336
  %v8363 = vpack.c.b16 %v8339, %v8338
  %v8364 = vpack.c.b16 %v8341, %v8340
  %v8365 = vpack.c.b16 %v8343, %v8342
  %v8366 = vpack.c.b16 %v8345, %v8344
  %v8367 = vpack.c.b16 %v8347, %v8346
  %v8368 = vpack.c.b16 %v8349, %v8348
  %v8369 = vpack.c.b16 %v8351, %v8350
  %v8370 = vpack.c.b16 %v8353, %v8352
  %v8371 = vpack.c.b16 %v8355, %v8354
  %v8372 = vpack.c.b16 %v8357, %v8356
  %v8373 = vpack.c.b16 %v8359, %v8358
  %v8389 = vsel %vm391, %v8274, 0
  %8391 = vmatprep.subr.bf16.mxu0 0
  %8392 = vmatpush1.bf16.msra.mxu0 %v8367
  %8393 = vmatprep.subr.bf16.mxu0 0
  %8394 = vmatpush1.bf16.msra.mxu0 %v8366
  %8395 = vmatprep.subr.bf16.mxu0 0
  %8396 = vmatpush1.bf16.msra.mxu0 %v8365
  %8397 = vmatprep.subr.bf16.mxu0 0
  %8398 = vmatpush1.bf16.msra.mxu0 %v8364
  %8399 = vmatprep.subr.bf16.mxu0 0
  %8400 = vmatpush1.bf16.msra.mxu0 %v8363
  %8401 = vmatprep.subr.bf16.mxu0 0
  %8402 = vmatpush1.bf16.msra.mxu0 %v8362
  %8403 = vmatprep.subr.bf16.mxu0 0
  %8404 = vmatpush1.bf16.msra.mxu0 %v8361
  %8405 = vmatprep.subr.bf16.mxu0 0
  %8406 = vmatpush1.bf16.msra.mxu0 %v8360
  %8407 = vmatprep.subr.bf16.mxu0 0
  %8408 = vmatpush2.bf16.msra.mxu0 0
  %8409 = vmatprep.subr.bf16.mxu0 0
  %8410 = vmatpush2.bf16.msra.mxu0 0
  %8411 = vmatprep.subr.bf16.mxu0 0
  %8412 = vmatpush2.bf16.msra.mxu0 %v8373
  %8413 = vmatprep.subr.bf16.mxu0 0
  %8414 = vmatpush2.bf16.msra.mxu0 %v8372
  %8415 = vmatprep.subr.bf16.mxu0 0
  %8416 = vmatpush2.bf16.msra.mxu0 %v8371
  %8417 = vmatprep.subr.bf16.mxu0 0
  %8418 = vmatpush2.bf16.msra.mxu0 %v8370
  %8419 = vmatprep.subr.bf16.mxu0 0
  %8420 = vmatpush2.bf16.msra.mxu0 %v8369
  %8421 = vmatprep.subr.bf16.mxu0 0
  %8422 = vmatpush2.bf16.msra.mxu0 %v8368
  %8423 = vmatprep.mubr.bf16.mxu0 %v8389
  %8424 = vmatmul.mubr.bf16.gmra.mxu0 %v8273
  %v8425 = vpop.f32.mrf.mxu0
  %v8426 = vadd.f32 0.0, %v8425
  %v8427 = vpop.f32.mrf.mxu0
  %v8428 = vpop.f32.mrf.mxu0
  %v8429 = vpop.f32.mrf.mxu0
  %8430 = vdwg.mxu0
  %v8431 = vadd.f32 %v8107, %v8426
  %8432 = vmatprep.subr.bf16.mxu0 %v6391
  %8433 = vmatpush1.bf16.msra.mxu0 %v6390
  %8434 = vmatprep.subr.bf16.mxu0 %v6389
  %8435 = vmatpush1.bf16.msra.mxu0 %v6388
  %8436 = vmatprep.subr.bf16.mxu0 %v6387
  %8437 = vmatpush1.bf16.msra.mxu0 %v6386
  %8438 = vmatprep.subr.bf16.mxu0 %v6385
  %8439 = vmatpush1.bf16.msra.mxu0 %v6384
  %8440 = vmatprep.subr.bf16.mxu0 %v6383
  %8441 = vmatpush1.bf16.msra.mxu0 %v6382
  %8442 = vmatprep.subr.bf16.mxu0 %v6381
  %8443 = vmatpush1.bf16.msra.mxu0 %v6380
  %8444 = vmatprep.subr.bf16.mxu0 %v6379
  %8445 = vmatpush1.bf16.msra.mxu0 %v6378
  %8446 = vmatprep.subr.bf16.mxu0 %v6377
  %8447 = vmatpush1.bf16.msra.mxu0 %v6376
  %8448 = vmatprep.subr.bf16.mxu0 0
  %8449 = vmatpush2.bf16.msra.mxu0 0
  %8450 = vmatprep.subr.bf16.mxu0 %v6405
  %8451 = vmatpush2.bf16.msra.mxu0 %v6404
  %8452 = vmatprep.subr.bf16.mxu0 %v6403
  %8453 = vmatpush2.bf16.msra.mxu0 %v6402
  %8454 = vmatprep.subr.bf16.mxu0 %v6401
  %8455 = vmatpush2.bf16.msra.mxu0 %v6400
  %8456 = vmatprep.subr.bf16.mxu0 %v6399
  %8457 = vmatpush2.bf16.msra.mxu0 %v6398
  %8458 = vmatprep.subr.bf16.mxu0 %v6397
  %8459 = vmatpush2.bf16.msra.mxu0 %v6396
  %8460 = vmatprep.subr.bf16.mxu0 %v6395
  %8461 = vmatpush2.bf16.msra.mxu0 %v6394
  %8462 = vmatprep.subr.bf16.mxu0 %v6393
  %8463 = vmatpush2.bf16.msra.mxu0 %v6392
  %8464 = vmatprep.mubr.bf16.mxu0 %v8226
  %8465 = vmatmul.mubr.bf16.gmra.mxu0 %v8223
  %v8466 = vpop.f32.mrf.mxu0
  %v8467 = vadd.f32 0.0, %v8466
  %v8468 = vpop.f32.mrf.mxu0
  %v8469 = vadd.f32 0.0, %v8468
  %v8470 = vpop.f32.mrf.mxu0
  %v8471 = vpop.f32.mrf.mxu0
  %8472 = vdwg.mxu0
  %v8473 = vadd.f32 %v6485, %v8467
  %v8474 = vadd.f32 %v6489, %v8469
  %v8475 = vld [vmem:[%s4987] sm:$0xf]
  %v8478 = vunpack.c.l.s4 1983009808
  %v8479 = vunpack.c.0.s8 %v8478
  %v8480 = vlaneseq
  %v8481 = vshrl.u32 %v8480, 7
  %v8482 = vsub.s32 %v8479, %v8481
  %v8483 = vrot.slane %v8475, %v8482
  %v8484 = vcombine.high %v8483, %v8483
  %v8487 = vpack.c.bf16 %v8483, %v8483
  %v8488 = vpack.c.bf16 %v8484, %v8484
  %v8490 = vsel %vm6436, %v8488, 0
  %8492 = vmatprep.subr.bf16.mxu0 %v6644
  %8493 = vmatpush1.bf16.msra.mxu0 %v6643
  %8494 = vmatprep.subr.bf16.mxu0 %v6642
  %8495 = vmatpush1.bf16.msra.mxu0 %v6641
  %8496 = vmatprep.subr.bf16.mxu0 %v6640
  %8497 = vmatpush1.bf16.msra.mxu0 %v6639
  %8498 = vmatprep.subr.bf16.mxu0 %v6638
  %8499 = vmatpush1.bf16.msra.mxu0 %v6637
  %8500 = vmatprep.subr.bf16.mxu0 %v6636
  %8501 = vmatpush1.bf16.msra.mxu0 %v6635
  %8502 = vmatprep.subr.bf16.mxu0 %v6634
  %8503 = vmatpush1.bf16.msra.mxu0 %v6633
  %8504 = vmatprep.subr.bf16.mxu0 %v6632
  %8505 = vmatpush1.bf16.msra.mxu0 %v6631
  %8506 = vmatprep.subr.bf16.mxu0 %v6630
  %8507 = vmatpush1.bf16.msra.mxu0 %v6629
  %8508 = vmatprep.subr.bf16.mxu0 0
  %8509 = vmatpush2.bf16.msra.mxu0 0
  %8510 = vmatprep.subr.bf16.mxu0 %v6658
  %8511 = vmatpush2.bf16.msra.mxu0 %v6657
  %8512 = vmatprep.subr.bf16.mxu0 %v6656
  %8513 = vmatpush2.bf16.msra.mxu0 %v6655
  %8514 = vmatprep.subr.bf16.mxu0 %v6654
  %8515 = vmatpush2.bf16.msra.mxu0 %v6653
  %8516 = vmatprep.subr.bf16.mxu0 %v6652
  %8517 = vmatpush2.bf16.msra.mxu0 %v6651
  %8518 = vmatprep.subr.bf16.mxu0 %v6650
  %8519 = vmatpush2.bf16.msra.mxu0 %v6649
  %8520 = vmatprep.subr.bf16.mxu0 %v6648
  %8521 = vmatpush2.bf16.msra.mxu0 %v6647
  %8522 = vmatprep.subr.bf16.mxu0 %v6646
  %8523 = vmatpush2.bf16.msra.mxu0 %v6645
  %8524 = vmatprep.mubr.bf16.mxu0 %v8490
  %8525 = vmatmul.mubr.bf16.gmra.mxu0 %v8487
  %v8526 = vpop.f32.mrf.mxu0
  %v8527 = vadd.f32 0.0, %v8526
  %v8528 = vpop.f32.mrf.mxu0
  %v8529 = vadd.f32 0.0, %v8528
  %v8530 = vpop.f32.mrf.mxu0
  %v8531 = vpop.f32.mrf.mxu0
  %8532 = vdwg.mxu0
  %v8533 = vadd.f32 %v8473, %v8527
  %v8534 = vadd.f32 %v8474, %v8529
  %v8535 = vld [vmem:[%s5376] sm:$0xf]
  %v8538 = vunpack.c.l.s4 1983009808
  %v8539 = vunpack.c.0.s8 %v8538
  %v8540 = vlaneseq
  %v8541 = vshrl.u32 %v8540, 7
  %v8542 = vsub.s32 %v8539, %v8541
  %v8543 = vrot.slane %v8535, %v8542
  %v8544 = vcombine.high %v8543, %v8543
  %v8547 = vpack.c.bf16 %v8543, %v8543
  %v8548 = vpack.c.bf16 %v8544, %v8544
  %v8550 = vsel %vm6436, %v8548, 0
  %8552 = vmatprep.subr.bf16.mxu0 %v6885
  %8553 = vmatpush1.bf16.msra.mxu0 %v6884
  %8554 = vmatprep.subr.bf16.mxu0 %v6883
  %8555 = vmatpush1.bf16.msra.mxu0 %v6882
  %8556 = vmatprep.subr.bf16.mxu0 %v6881
  %8557 = vmatpush1.bf16.msra.mxu0 %v6880
  %8558 = vmatprep.subr.bf16.mxu0 %v6879
  %8559 = vmatpush1.bf16.msra.mxu0 %v6878
  %8560 = vmatprep.subr.bf16.mxu0 %v6877
  %8561 = vmatpush1.bf16.msra.mxu0 %v6876
  %8562 = vmatprep.subr.bf16.mxu0 %v6875
  %8563 = vmatpush1.bf16.msra.mxu0 %v6874
  %8564 = vmatprep.subr.bf16.mxu0 %v6873
  %8565 = vmatpush1.bf16.msra.mxu0 %v6872
  %8566 = vmatprep.subr.bf16.mxu0 %v6871
  %8567 = vmatpush1.bf16.msra.mxu0 %v6870
  %8568 = vmatprep.subr.bf16.mxu0 0
  %8569 = vmatpush2.bf16.msra.mxu0 0
  %8570 = vmatprep.subr.bf16.mxu0 %v6899
  %8571 = vmatpush2.bf16.msra.mxu0 %v6898
  %8572 = vmatprep.subr.bf16.mxu0 %v6897
  %8573 = vmatpush2.bf16.msra.mxu0 %v6896
  %8574 = vmatprep.subr.bf16.mxu0 %v6895
  %8575 = vmatpush2.bf16.msra.mxu0 %v6894
  %8576 = vmatprep.subr.bf16.mxu0 %v6893
  %8577 = vmatpush2.bf16.msra.mxu0 %v6892
  %8578 = vmatprep.subr.bf16.mxu0 %v6891
  %8579 = vmatpush2.bf16.msra.mxu0 %v6890
  %8580 = vmatprep.subr.bf16.mxu0 %v6889
  %8581 = vmatpush2.bf16.msra.mxu0 %v6888
  %8582 = vmatprep.subr.bf16.mxu0 %v6887
  %8583 = vmatpush2.bf16.msra.mxu0 %v6886
  %8584 = vmatprep.mubr.bf16.mxu0 %v8550
  %8585 = vmatmul.mubr.bf16.gmra.mxu0 %v8547
  %v8586 = vpop.f32.mrf.mxu0
  %v8587 = vadd.f32 0.0, %v8586
  %v8588 = vpop.f32.mrf.mxu0
  %v8589 = vadd.f32 0.0, %v8588
  %v8590 = vpop.f32.mrf.mxu0
  %v8591 = vpop.f32.mrf.mxu0
  %8592 = vdwg.mxu0
  %v8593 = vadd.f32 %v8533, %v8587
  %v8594 = vadd.f32 %v8534, %v8589
  %v8595 = vmax.f32 %v8593, 0.0
  %v8596 = vmax.f32 %v8594, 0.0
  %v8597 = vpack.c.bf16 %v8595, %v8595
  %v8598 = vpack.c.bf16 %v8596, %v8596
  %s8599 = scalar_lea.vmem %s12, 560
  %v8600 = vld [vmem:[%s8599] sm:$0xf]
  %v8601 = vld [vmem:[%s8599 + $0x4] sm:$0xf]
  %v8602 = vld [vmem:[%s8599 + $0x8] sm:$0xf]
  %v8603 = vld [vmem:[%s8599 + $0xc] sm:$0xf]
  %v8604 = vld [vmem:[%s8599 + $0x10] sm:$0xf]
  %v8605 = vld [vmem:[%s8599 + $0x14] sm:$0xf]
  %v8606 = vld [vmem:[%s8599 + $0x18] sm:$0xf]
  %v8607 = vld [vmem:[%s8599 + $0x1c] sm:$0xf]
  %v8608 = vld [vmem:[%s8599 + $0x20] sm:$0xf]
  %v8609 = vld [vmem:[%s8599 + $0x24] sm:$0xf]
  %v8610 = vld [vmem:[%s8599 + $0x28] sm:$0xf]
  %v8611 = vld [vmem:[%s8599 + $0x2c] sm:$0xf]
  %v8612 = vld [vmem:[%s8599 + $0x30] sm:$0xf]
  %v8613 = vld [vmem:[%s8599 + $0x34] sm:$0xf]
  %v8614 = vld [vmem:[%s8599 + $0x38] sm:$0xf]
  %v8615 = vld [vmem:[%s8599 + $0x3c] sm:$0xf]
  %v8616 = vld [vmem:[%s8599 + $0x40] sm:$0xf]
  %v8617 = vld [vmem:[%s8599 + $0x44] sm:$0xf]
  %v8618 = vld [vmem:[%s8599 + $0x48] sm:$0xf]
  %v8619 = vld [vmem:[%s8599 + $0x4c] sm:$0xf]
  %v8620 = vld [vmem:[%s8599 + $0x50] sm:$0xf]
  %v8621 = vld [vmem:[%s8599 + $0x54] sm:$0xf]
  %v8622 = vld [vmem:[%s8599 + $0x58] sm:$0xf]
  %v8623 = vld [vmem:[%s8599 + $0x5c] sm:$0xf]
  %v8624 = vld [vmem:[%s8599 + $0x60] sm:$0xf]
  %v8625 = vld [vmem:[%s8599 + $0x64] sm:$0xf]
  %v8626 = vld [vmem:[%s8599 + $0x68] sm:$0xf]
  %v8627 = vld [vmem:[%s8599 + $0x6c] sm:$0xf]
  %v8656 = vunpack.c.l.b16 %v8600
  %v8657 = vunpack.c.l.b16 %v8601
  %v8658 = vunpack.c.l.b16 %v8602
  %v8659 = vunpack.c.l.b16 %v8603
  %v8660 = vunpack.c.l.b16 %v8604
  %v8661 = vunpack.c.l.b16 %v8605
  %v8662 = vunpack.c.l.b16 %v8606
  %v8663 = vunpack.c.l.b16 %v8607
  %v8664 = vunpack.c.l.b16 %v8608
  %v8665 = vunpack.c.l.b16 %v8609
  %v8666 = vunpack.c.l.b16 %v8610
  %v8667 = vunpack.c.l.b16 %v8611
  %v8668 = vunpack.c.l.b16 %v8612
  %v8669 = vunpack.c.l.b16 %v8613
  %v8670 = vunpack.c.l.b16 %v8614
  %v8671 = vunpack.c.l.b16 %v8615
  %v8672 = vunpack.c.l.b16 %v8616
  %v8673 = vunpack.c.l.b16 %v8617
  %v8674 = vunpack.c.l.b16 %v8618
  %v8675 = vunpack.c.l.b16 %v8619
  %v8676 = vunpack.c.l.b16 %v8620
  %v8677 = vunpack.c.l.b16 %v8621
  %v8678 = vunpack.c.l.b16 %v8622
  %v8679 = vunpack.c.l.b16 %v8623
  %v8680 = vunpack.c.l.b16 %v8624
  %v8681 = vunpack.c.l.b16 %v8625
  %v8682 = vunpack.c.l.b16 %v8626
  %v8683 = vunpack.c.l.b16 %v8627
  %v8684 = vpack.c.b16 %v8657, %v8656
  %v8685 = vpack.c.b16 %v8659, %v8658
  %v8686 = vpack.c.b16 %v8661, %v8660
  %v8687 = vpack.c.b16 %v8663, %v8662
  %v8688 = vpack.c.b16 %v8665, %v8664
  %v8689 = vpack.c.b16 %v8667, %v8666
  %v8690 = vpack.c.b16 %v8669, %v8668
  %v8691 = vpack.c.b16 %v8671, %v8670
  %v8692 = vpack.c.b16 %v8673, %v8672
  %v8693 = vpack.c.b16 %v8675, %v8674
  %v8694 = vpack.c.b16 %v8677, %v8676
  %v8695 = vpack.c.b16 %v8679, %v8678
  %v8696 = vpack.c.b16 %v8681, %v8680
  %v8697 = vpack.c.b16 %v8683, %v8682
  %v8713 = vsel %vm391, %v8598, 0
  %8715 = vmatprep.subr.bf16.mxu0 0
  %8716 = vmatpush1.bf16.msra.mxu0 %v8691
  %8717 = vmatprep.subr.bf16.mxu0 0
  %8718 = vmatpush1.bf16.msra.mxu0 %v8690
  %8719 = vmatprep.subr.bf16.mxu0 0
  %8720 = vmatpush1.bf16.msra.mxu0 %v8689
  %8721 = vmatprep.subr.bf16.mxu0 0
  %8722 = vmatpush1.bf16.msra.mxu0 %v8688
  %8723 = vmatprep.subr.bf16.mxu0 0
  %8724 = vmatpush1.bf16.msra.mxu0 %v8687
  %8725 = vmatprep.subr.bf16.mxu0 0
  %8726 = vmatpush1.bf16.msra.mxu0 %v8686
  %8727 = vmatprep.subr.bf16.mxu0 0
  %8728 = vmatpush1.bf16.msra.mxu0 %v8685
  %8729 = vmatprep.subr.bf16.mxu0 0
  %8730 = vmatpush1.bf16.msra.mxu0 %v8684
  %8731 = vmatprep.subr.bf16.mxu0 0
  %8732 = vmatpush2.bf16.msra.mxu0 0
  %8733 = vmatprep.subr.bf16.mxu0 0
  %8734 = vmatpush2.bf16.msra.mxu0 0
  %8735 = vmatprep.subr.bf16.mxu0 0
  %8736 = vmatpush2.bf16.msra.mxu0 %v8697
  %8737 = vmatprep.subr.bf16.mxu0 0
  %8738 = vmatpush2.bf16.msra.mxu0 %v8696
  %8739 = vmatprep.subr.bf16.mxu0 0
  %8740 = vmatpush2.bf16.msra.mxu0 %v8695
  %8741 = vmatprep.subr.bf16.mxu0 0
  %8742 = vmatpush2.bf16.msra.mxu0 %v8694
  %8743 = vmatprep.subr.bf16.mxu0 0
  %8744 = vmatpush2.bf16.msra.mxu0 %v8693
  %8745 = vmatprep.subr.bf16.mxu0 0
  %8746 = vmatpush2.bf16.msra.mxu0 %v8692
  %8747 = vmatprep.mubr.bf16.mxu0 %v8713
  %8748 = vmatmul.mubr.bf16.gmra.mxu0 %v8597
  %v8749 = vpop.f32.mrf.mxu0
  %v8750 = vadd.f32 0.0, %v8749
  %v8751 = vpop.f32.mrf.mxu0
  %v8752 = vpop.f32.mrf.mxu0
  %v8753 = vpop.f32.mrf.mxu0
  %8754 = vdwg.mxu0
  %v8755 = vadd.f32 %v8431, %v8750
  %8756 = vmatprep.subr.bf16.mxu0 %v6391
  %8757 = vmatpush1.bf16.msra.mxu0 %v6390
  %8758 = vmatprep.subr.bf16.mxu0 %v6389
  %8759 = vmatpush1.bf16.msra.mxu0 %v6388
  %8760 = vmatprep.subr.bf16.mxu0 %v6387
  %8761 = vmatpush1.bf16.msra.mxu0 %v6386
  %8762 = vmatprep.subr.bf16.mxu0 %v6385
  %8763 = vmatpush1.bf16.msra.mxu0 %v6384
  %8764 = vmatprep.subr.bf16.mxu0 %v6383
  %8765 = vmatpush1.bf16.msra.mxu0 %v6382
  %8766 = vmatprep.subr.bf16.mxu0 %v6381
  %8767 = vmatpush1.bf16.msra.mxu0 %v6380
  %8768 = vmatprep.subr.bf16.mxu0 %v6379
  %8769 = vmatpush1.bf16.msra.mxu0 %v6378
  %8770 = vmatprep.subr.bf16.mxu0 %v6377
  %8771 = vmatpush1.bf16.msra.mxu0 %v6376
  %8772 = vmatprep.subr.bf16.mxu0 0
  %8773 = vmatpush2.bf16.msra.mxu0 0
  %8774 = vmatprep.subr.bf16.mxu0 %v6405
  %8775 = vmatpush2.bf16.msra.mxu0 %v6404
  %8776 = vmatprep.subr.bf16.mxu0 %v6403
  %8777 = vmatpush2.bf16.msra.mxu0 %v6402
  %8778 = vmatprep.subr.bf16.mxu0 %v6401
  %8779 = vmatpush2.bf16.msra.mxu0 %v6400
  %8780 = vmatprep.subr.bf16.mxu0 %v6399
  %8781 = vmatpush2.bf16.msra.mxu0 %v6398
  %8782 = vmatprep.subr.bf16.mxu0 %v6397
  %8783 = vmatpush2.bf16.msra.mxu0 %v6396
  %8784 = vmatprep.subr.bf16.mxu0 %v6395
  %8785 = vmatpush2.bf16.msra.mxu0 %v6394
  %8786 = vmatprep.subr.bf16.mxu0 %v6393
  %8787 = vmatpush2.bf16.msra.mxu0 %v6392
  %8788 = vmatprep.mubr.bf16.mxu0 %v8550
  %8789 = vmatmul.mubr.bf16.gmra.mxu0 %v8547
  %v8790 = vpop.f32.mrf.mxu0
  %v8791 = vadd.f32 0.0, %v8790
  %v8792 = vpop.f32.mrf.mxu0
  %v8793 = vadd.f32 0.0, %v8792
  %v8794 = vpop.f32.mrf.mxu0
  %v8795 = vpop.f32.mrf.mxu0
  %8796 = vdwg.mxu0
  %v8797 = vadd.f32 %v6485, %v8791
  %v8798 = vadd.f32 %v6489, %v8793
  %v8799 = vld [vmem:[%s5765] sm:$0xf]
  %v8802 = vunpack.c.l.s4 1983009808
  %v8803 = vunpack.c.0.s8 %v8802
  %v8804 = vlaneseq
  %v8805 = vshrl.u32 %v8804, 7
  %v8806 = vsub.s32 %v8803, %v8805
  %v8807 = vrot.slane %v8799, %v8806
  %v8808 = vcombine.high %v8807, %v8807
  %v8811 = vpack.c.bf16 %v8807, %v8807
  %v8812 = vpack.c.bf16 %v8808, %v8808
  %v8814 = vsel %vm6436, %v8812, 0
  %8816 = vmatprep.subr.bf16.mxu0 %v6644
  %8817 = vmatpush1.bf16.msra.mxu0 %v6643
  %8818 = vmatprep.subr.bf16.mxu0 %v6642
  %8819 = vmatpush1.bf16.msra.mxu0 %v6641
  %8820 = vmatprep.subr.bf16.mxu0 %v6640
  %8821 = vmatpush1.bf16.msra.mxu0 %v6639
  %8822 = vmatprep.subr.bf16.mxu0 %v6638
  %8823 = vmatpush1.bf16.msra.mxu0 %v6637
  %8824 = vmatprep.subr.bf16.mxu0 %v6636
  %8825 = vmatpush1.bf16.msra.mxu0 %v6635
  %8826 = vmatprep.subr.bf16.mxu0 %v6634
  %8827 = vmatpush1.bf16.msra.mxu0 %v6633
  %8828 = vmatprep.subr.bf16.mxu0 %v6632
  %8829 = vmatpush1.bf16.msra.mxu0 %v6631
  %8830 = vmatprep.subr.bf16.mxu0 %v6630
  %8831 = vmatpush1.bf16.msra.mxu0 %v6629
  %8832 = vmatprep.subr.bf16.mxu0 0
  %8833 = vmatpush2.bf16.msra.mxu0 0
  %8834 = vmatprep.subr.bf16.mxu0 %v6658
  %8835 = vmatpush2.bf16.msra.mxu0 %v6657
  %8836 = vmatprep.subr.bf16.mxu0 %v6656
  %8837 = vmatpush2.bf16.msra.mxu0 %v6655
  %8838 = vmatprep.subr.bf16.mxu0 %v6654
  %8839 = vmatpush2.bf16.msra.mxu0 %v6653
  %8840 = vmatprep.subr.bf16.mxu0 %v6652
  %8841 = vmatpush2.bf16.msra.mxu0 %v6651
  %8842 = vmatprep.subr.bf16.mxu0 %v6650
  %8843 = vmatpush2.bf16.msra.mxu0 %v6649
  %8844 = vmatprep.subr.bf16.mxu0 %v6648
  %8845 = vmatpush2.bf16.msra.mxu0 %v6647
  %8846 = vmatprep.subr.bf16.mxu0 %v6646
  %8847 = vmatpush2.bf16.msra.mxu0 %v6645
  %8848 = vmatprep.mubr.bf16.mxu0 %v8814
  %8849 = vmatmul.mubr.bf16.gmra.mxu0 %v8811
  %v8850 = vpop.f32.mrf.mxu0
  %v8851 = vadd.f32 0.0, %v8850
  %v8852 = vpop.f32.mrf.mxu0
  %v8853 = vadd.f32 0.0, %v8852
  %v8854 = vpop.f32.mrf.mxu0
  %v8855 = vpop.f32.mrf.mxu0
  %8856 = vdwg.mxu0
  %v8857 = vadd.f32 %v8797, %v8851
  %v8858 = vadd.f32 %v8798, %v8853
  %v8859 = vld [vmem:[%s6154] sm:$0xf]
  %v8862 = vunpack.c.l.s4 1983009808
  %v8863 = vunpack.c.0.s8 %v8862
  %v8864 = vlaneseq
  %v8865 = vshrl.u32 %v8864, 7
  %v8866 = vsub.s32 %v8863, %v8865
  %v8867 = vrot.slane %v8859, %v8866
  %v8868 = vcombine.high %v8867, %v8867
  %v8871 = vpack.c.bf16 %v8867, %v8867
  %v8872 = vpack.c.bf16 %v8868, %v8868
  %v8874 = vsel %vm6436, %v8872, 0
  %8876 = vmatprep.subr.bf16.mxu0 %v6885
  %8877 = vmatpush1.bf16.msra.mxu0 %v6884
  %8878 = vmatprep.subr.bf16.mxu0 %v6883
  %8879 = vmatpush1.bf16.msra.mxu0 %v6882
  %8880 = vmatprep.subr.bf16.mxu0 %v6881
  %8881 = vmatpush1.bf16.msra.mxu0 %v6880
  %8882 = vmatprep.subr.bf16.mxu0 %v6879
  %8883 = vmatpush1.bf16.msra.mxu0 %v6878
  %8884 = vmatprep.subr.bf16.mxu0 %v6877
  %8885 = vmatpush1.bf16.msra.mxu0 %v6876
  %8886 = vmatprep.subr.bf16.mxu0 %v6875
  %8887 = vmatpush1.bf16.msra.mxu0 %v6874
  %8888 = vmatprep.subr.bf16.mxu0 %v6873
  %8889 = vmatpush1.bf16.msra.mxu0 %v6872
  %8890 = vmatprep.subr.bf16.mxu0 %v6871
  %8891 = vmatpush1.bf16.msra.mxu0 %v6870
  %8892 = vmatprep.subr.bf16.mxu0 0
  %8893 = vmatpush2.bf16.msra.mxu0 0
  %8894 = vmatprep.subr.bf16.mxu0 %v6899
  %8895 = vmatpush2.bf16.msra.mxu0 %v6898
  %8896 = vmatprep.subr.bf16.mxu0 %v6897
  %8897 = vmatpush2.bf16.msra.mxu0 %v6896
  %8898 = vmatprep.subr.bf16.mxu0 %v6895
  %8899 = vmatpush2.bf16.msra.mxu0 %v6894
  %8900 = vmatprep.subr.bf16.mxu0 %v6893
  %8901 = vmatpush2.bf16.msra.mxu0 %v6892
  %8902 = vmatprep.subr.bf16.mxu0 %v6891
  %8903 = vmatpush2.bf16.msra.mxu0 %v6890
  %8904 = vmatprep.subr.bf16.mxu0 %v6889
  %8905 = vmatpush2.bf16.msra.mxu0 %v6888
  %8906 = vmatprep.subr.bf16.mxu0 %v6887
  %8907 = vmatpush2.bf16.msra.mxu0 %v6886
  %8908 = vmatprep.mubr.bf16.mxu0 %v8874
  %8909 = vmatmul.mubr.bf16.gmra.mxu0 %v8871
  %v8910 = vpop.f32.mrf.mxu0
  %v8911 = vadd.f32 0.0, %v8910
  %v8912 = vpop.f32.mrf.mxu0
  %v8913 = vadd.f32 0.0, %v8912
  %v8914 = vpop.f32.mrf.mxu0
  %v8915 = vpop.f32.mrf.mxu0
  %8916 = vdwg.mxu0
  %v8917 = vadd.f32 %v8857, %v8911
  %v8918 = vadd.f32 %v8858, %v8913
  %v8919 = vmax.f32 %v8917, 0.0
  %v8920 = vmax.f32 %v8918, 0.0
  %v8921 = vpack.c.bf16 %v8919, %v8919
  %v8922 = vpack.c.bf16 %v8920, %v8920
  %s8923 = scalar_lea.vmem %s12, 672
  %v8924 = vld [vmem:[%s8923] sm:$0xf]
  %v8925 = vld [vmem:[%s8923 + $0x4] sm:$0xf]
  %v8926 = vld [vmem:[%s8923 + $0x8] sm:$0xf]
  %v8927 = vld [vmem:[%s8923 + $0xc] sm:$0xf]
  %v8928 = vld [vmem:[%s8923 + $0x10] sm:$0xf]
  %v8929 = vld [vmem:[%s8923 + $0x14] sm:$0xf]
  %v8930 = vld [vmem:[%s8923 + $0x18] sm:$0xf]
  %v8931 = vld [vmem:[%s8923 + $0x1c] sm:$0xf]
  %v8932 = vld [vmem:[%s8923 + $0x20] sm:$0xf]
  %v8933 = vld [vmem:[%s8923 + $0x24] sm:$0xf]
  %v8934 = vld [vmem:[%s8923 + $0x28] sm:$0xf]
  %v8935 = vld [vmem:[%s8923 + $0x2c] sm:$0xf]
  %v8936 = vld [vmem:[%s8923 + $0x30] sm:$0xf]
  %v8937 = vld [vmem:[%s8923 + $0x34] sm:$0xf]
  %v8938 = vld [vmem:[%s8923 + $0x38] sm:$0xf]
  %v8939 = vld [vmem:[%s8923 + $0x3c] sm:$0xf]
  %v8940 = vld [vmem:[%s8923 + $0x40] sm:$0xf]
  %v8941 = vld [vmem:[%s8923 + $0x44] sm:$0xf]
  %v8942 = vld [vmem:[%s8923 + $0x48] sm:$0xf]
  %v8943 = vld [vmem:[%s8923 + $0x4c] sm:$0xf]
  %v8944 = vld [vmem:[%s8923 + $0x50] sm:$0xf]
  %v8945 = vld [vmem:[%s8923 + $0x54] sm:$0xf]
  %v8946 = vld [vmem:[%s8923 + $0x58] sm:$0xf]
  %v8947 = vld [vmem:[%s8923 + $0x5c] sm:$0xf]
  %v8948 = vld [vmem:[%s8923 + $0x60] sm:$0xf]
  %v8949 = vld [vmem:[%s8923 + $0x64] sm:$0xf]
  %v8950 = vld [vmem:[%s8923 + $0x68] sm:$0xf]
  %v8951 = vld [vmem:[%s8923 + $0x6c] sm:$0xf]
  %v8980 = vunpack.c.l.b16 %v8924
  %v8981 = vunpack.c.l.b16 %v8925
  %v8982 = vunpack.c.l.b16 %v8926
  %v8983 = vunpack.c.l.b16 %v8927
  %v8984 = vunpack.c.l.b16 %v8928
  %v8985 = vunpack.c.l.b16 %v8929
  %v8986 = vunpack.c.l.b16 %v8930
  %v8987 = vunpack.c.l.b16 %v8931
  %v8988 = vunpack.c.l.b16 %v8932
  %v8989 = vunpack.c.l.b16 %v8933
  %v8990 = vunpack.c.l.b16 %v8934
  %v8991 = vunpack.c.l.b16 %v8935
  %v8992 = vunpack.c.l.b16 %v8936
  %v8993 = vunpack.c.l.b16 %v8937
  %v8994 = vunpack.c.l.b16 %v8938
  %v8995 = vunpack.c.l.b16 %v8939
  %v8996 = vunpack.c.l.b16 %v8940
  %v8997 = vunpack.c.l.b16 %v8941
  %v8998 = vunpack.c.l.b16 %v8942
  %v8999 = vunpack.c.l.b16 %v8943
  %v9000 = vunpack.c.l.b16 %v8944
  %v9001 = vunpack.c.l.b16 %v8945
  %v9002 = vunpack.c.l.b16 %v8946
  %v9003 = vunpack.c.l.b16 %v8947
  %v9004 = vunpack.c.l.b16 %v8948
  %v9005 = vunpack.c.l.b16 %v8949
  %v9006 = vunpack.c.l.b16 %v8950
  %v9007 = vunpack.c.l.b16 %v8951
  %v9008 = vpack.c.b16 %v8981, %v8980
  %v9009 = vpack.c.b16 %v8983, %v8982
  %v9010 = vpack.c.b16 %v8985, %v8984
  %v9011 = vpack.c.b16 %v8987, %v8986
  %v9012 = vpack.c.b16 %v8989, %v8988
  %v9013 = vpack.c.b16 %v8991, %v8990
  %v9014 = vpack.c.b16 %v8993, %v8992
  %v9015 = vpack.c.b16 %v8995, %v8994
  %v9016 = vpack.c.b16 %v8997, %v8996
  %v9017 = vpack.c.b16 %v8999, %v8998
  %v9018 = vpack.c.b16 %v9001, %v9000
  %v9019 = vpack.c.b16 %v9003, %v9002
  %v9020 = vpack.c.b16 %v9005, %v9004
  %v9021 = vpack.c.b16 %v9007, %v9006
  %v9037 = vsel %vm391, %v8922, 0
  %9039 = vmatprep.subr.bf16.mxu0 0
  %9040 = vmatpush1.bf16.msra.mxu0 %v9015
  %9041 = vmatprep.subr.bf16.mxu0 0
  %9042 = vmatpush1.bf16.msra.mxu0 %v9014
  %9043 = vmatprep.subr.bf16.mxu0 0
  %9044 = vmatpush1.bf16.msra.mxu0 %v9013
  %9045 = vmatprep.subr.bf16.mxu0 0
  %9046 = vmatpush1.bf16.msra.mxu0 %v9012
  %9047 = vmatprep.subr.bf16.mxu0 0
  %9048 = vmatpush1.bf16.msra.mxu0 %v9011
  %9049 = vmatprep.subr.bf16.mxu0 0
  %9050 = vmatpush1.bf16.msra.mxu0 %v9010
  %9051 = vmatprep.subr.bf16.mxu0 0
  %9052 = vmatpush1.bf16.msra.mxu0 %v9009
  %9053 = vmatprep.subr.bf16.mxu0 0
  %9054 = vmatpush1.bf16.msra.mxu0 %v9008
  %9055 = vmatprep.subr.bf16.mxu0 0
  %9056 = vmatpush2.bf16.msra.mxu0 0
  %9057 = vmatprep.subr.bf16.mxu0 0
  %9058 = vmatpush2.bf16.msra.mxu0 0
  %9059 = vmatprep.subr.bf16.mxu0 0
  %9060 = vmatpush2.bf16.msra.mxu0 %v9021
  %9061 = vmatprep.subr.bf16.mxu0 0
  %9062 = vmatpush2.bf16.msra.mxu0 %v9020
  %9063 = vmatprep.subr.bf16.mxu0 0
  %9064 = vmatpush2.bf16.msra.mxu0 %v9019
  %9065 = vmatprep.subr.bf16.mxu0 0
  %9066 = vmatpush2.bf16.msra.mxu0 %v9018
  %9067 = vmatprep.subr.bf16.mxu0 0
  %9068 = vmatpush2.bf16.msra.mxu0 %v9017
  %9069 = vmatprep.subr.bf16.mxu0 0
  %9070 = vmatpush2.bf16.msra.mxu0 %v9016
  %9071 = vmatprep.mubr.bf16.mxu0 %v9037
  %9072 = vmatmul.mubr.bf16.gmra.mxu0 %v8921
  %v9073 = vpop.f32.mrf.mxu0
  %v9074 = vadd.f32 0.0, %v9073
  %v9075 = vpop.f32.mrf.mxu0
  %v9076 = vpop.f32.mrf.mxu0
  %v9077 = vpop.f32.mrf.mxu0
  %9078 = vdwg.mxu0
  %v9079 = vadd.f32 %v8755, %v9074
  %v9080 = vmax.f32 %v9079, 0.0
  %v9081 = vld [vmem:[%s15] sm:$0xff]
  %v9082 = vld [vmem:[%s15 + $0x8] sm:$0xff]
  %v9083 = vld [vmem:[%s15 + $0x10] sm:$0xff]
  %v9084 = vld [vmem:[%s15 + $0x18] sm:$0xff]
  %v9085 = vld [vmem:[%s16] sm:$0xff]
  %v9086 = vld [vmem:[%s16 + $0x8] sm:$0xff]
  %v9087 = vld [vmem:[%s16 + $0x10] sm:$0xff]
  %v9088 = vld [vmem:[%s16 + $0x18] sm:$0xff]
  %v9089 = vld [vmem:[%s16 + $0x20] sm:$0xff]
  %v9090 = vld [vmem:[%s16 + $0x28] sm:$0xff]
  %v9091 = vld [vmem:[%s16 + $0x30] sm:$0xff]
  %v9092 = vld [vmem:[%s16 + $0x38] sm:$0xff]
  %v9094 = vsel %vm241, %v9080, 0
  %9096 = vmatprep.subr.mxu0 0.0
  %9097 = vmatpush1.msra.mxu0 0.0
  %9098 = vmatprep.subr.mxu0 0.0
  %9099 = vmatpush1.msra.mxu0 0.0
  %9100 = vmatprep.subr.mxu0 0.0
  %9101 = vmatpush1.msra.mxu0 0.0
  %9102 = vmatprep.subr.mxu0 0.0
  %9103 = vmatpush1.msra.mxu0 0.0
  %9104 = vmatprep.subr.mxu0 0.0
  %9105 = vmatpush1.msra.mxu0 0.0
  %9106 = vmatprep.subr.mxu0 0.0
  %9107 = vmatpush1.msra.mxu0 0.0
  %9108 = vmatprep.subr.mxu0 0.0
  %9109 = vmatpush1.msra.mxu0 0.0
  %9110 = vmatprep.subr.mxu0 0.0
  %9111 = vmatpush1.msra.mxu0 0.0
  %9112 = vmatprep.subr.mxu0 0.0
  %9113 = vmatpush1.msra.mxu0 %v9092
  %9114 = vmatprep.subr.mxu0 0.0
  %9115 = vmatpush1.msra.mxu0 %v9091
  %9116 = vmatprep.subr.mxu0 0.0
  %9117 = vmatpush1.msra.mxu0 %v9090
  %9118 = vmatprep.subr.mxu0 0.0
  %9119 = vmatpush1.msra.mxu0 %v9089
  %9120 = vmatprep.subr.mxu0 0.0
  %9121 = vmatpush1.msra.mxu0 %v9088
  %9122 = vmatprep.subr.mxu0 0.0
  %9123 = vmatpush1.msra.mxu0 %v9087
  %9124 = vmatprep.subr.mxu0 0.0
  %9125 = vmatpush1.msra.mxu0 %v9086
  %9126 = vmatprep.subr.mxu0 0.0
  %9127 = vmatpush1.msra.mxu0 %v9085
  %9128 = vmatprep.subr.mxu0 0.0
  %9129 = vmatpush2.msra.mxu0 0.0
  %9130 = vmatprep.subr.mxu0 0.0
  %9131 = vmatpush2.msra.mxu0 0.0
  %9132 = vmatprep.subr.mxu0 0.0
  %9133 = vmatpush2.msra.mxu0 0.0
  %9134 = vmatprep.subr.mxu0 0.0
  %9135 = vmatpush2.msra.mxu0 0.0
  %9136 = vmatprep.subr.mxu0 0.0
  %9137 = vmatpush2.msra.mxu0 0.0
  %9138 = vmatprep.subr.mxu0 0.0
  %9139 = vmatpush2.msra.mxu0 0.0
  %9140 = vmatprep.subr.mxu0 0.0
  %9141 = vmatpush2.msra.mxu0 0.0
  %9142 = vmatprep.subr.mxu0 0.0
  %9143 = vmatpush2.msra.mxu0 0.0
  %9144 = vmatprep.subr.mxu0 0.0
  %9145 = vmatpush2.msra.mxu0 0.0
  %9146 = vmatprep.subr.mxu0 0.0
  %9147 = vmatpush2.msra.mxu0 0.0
  %9148 = vmatprep.subr.mxu0 0.0
  %9149 = vmatpush2.msra.mxu0 0.0
  %9150 = vmatprep.subr.mxu0 0.0
  %9151 = vmatpush2.msra.mxu0 0.0
  %9152 = vmatprep.subr.mxu0 0.0
  %9153 = vmatpush2.msra.mxu0 0.0
  %9154 = vmatprep.subr.mxu0 0.0
  %9155 = vmatpush2.msra.mxu0 0.0
  %9156 = vmatprep.subr.mxu0 0.0
  %9157 = vmatpush2.msra.mxu0 0.0
  %9158 = vmatprep.subr.mxu0 0.0
  %9159 = vmatpush2.msra.mxu0 0.0
  %9160 = vmatprep.mubr.f32.mxu0 0.0
  %9161 = vmatmul.mubr.f32.gmra.mxu0 %v9094
  %v9162 = vpop.f32.mrf.mxu0
  %v9163 = vadd.f32 0.0, %v9162
  %v9164 = vpop.f32.mrf.mxu0
  %9165 = vdwg.mxu0
  %vm9166 = vcmask 261120
  %v9168 = vsel %vm9166, %v315, 0
  %9170 = vmatprep.subr.mxu0 0.0
  %9171 = vmatpush1.msra.mxu0 0.0
  %9172 = vmatprep.subr.mxu0 0.0
  %9173 = vmatpush1.msra.mxu0 0.0
  %9174 = vmatprep.subr.mxu0 0.0
  %9175 = vmatpush1.msra.mxu0 0.0
  %9176 = vmatprep.subr.mxu0 0.0
  %9177 = vmatpush1.msra.mxu0 0.0
  %9178 = vmatprep.subr.mxu0 0.0
  %9179 = vmatpush1.msra.mxu0 0.0
  %9180 = vmatprep.subr.mxu0 0.0
  %9181 = vmatpush1.msra.mxu0 0.0
  %9182 = vmatprep.subr.mxu0 0.0
  %9183 = vmatpush1.msra.mxu0 0.0
  %9184 = vmatprep.subr.mxu0 0.0
  %9185 = vmatpush1.msra.mxu0 0.0
  %9186 = vmatprep.subr.mxu0 0.0
  %9187 = vmatpush1.msra.mxu0 0.0
  %9188 = vmatprep.subr.mxu0 0.0
  %9189 = vmatpush1.msra.mxu0 0.0
  %9190 = vmatprep.subr.mxu0 0.0
  %9191 = vmatpush1.msra.mxu0 0.0
  %9192 = vmatprep.subr.mxu0 0.0
  %9193 = vmatpush1.msra.mxu0 0.0
  %9194 = vmatprep.subr.mxu0 0.0
  %9195 = vmatpush1.msra.mxu0 %v9084
  %9196 = vmatprep.subr.mxu0 0.0
  %9197 = vmatpush1.msra.mxu0 %v9083
  %9198 = vmatprep.subr.mxu0 0.0
  %9199 = vmatpush1.msra.mxu0 %v9082
  %9200 = vmatprep.subr.mxu0 0.0
  %9201 = vmatpush1.msra.mxu0 %v9081
  %9202 = vmatprep.subr.mxu0 0.0
  %9203 = vmatpush2.msra.mxu0 0.0
  %9204 = vmatprep.subr.mxu0 0.0
  %9205 = vmatpush2.msra.mxu0 0.0
  %9206 = vmatprep.subr.mxu0 0.0
  %9207 = vmatpush2.msra.mxu0 0.0
  %9208 = vmatprep.subr.mxu0 0.0
  %9209 = vmatpush2.msra.mxu0 0.0
  %9210 = vmatprep.subr.mxu0 0.0
  %9211 = vmatpush2.msra.mxu0 0.0
  %9212 = vmatprep.subr.mxu0 0.0
  %9213 = vmatpush2.msra.mxu0 0.0
  %9214 = vmatprep.subr.mxu0 0.0
  %9215 = vmatpush2.msra.mxu0 0.0
  %9216 = vmatprep.subr.mxu0 0.0
  %9217 = vmatpush2.msra.mxu0 0.0
  %9218 = vmatprep.subr.mxu0 0.0
  %9219 = vmatpush2.msra.mxu0 0.0
  %9220 = vmatprep.subr.mxu0 0.0
  %9221 = vmatpush2.msra.mxu0 0.0
  %9222 = vmatprep.subr.mxu0 0.0
  %9223 = vmatpush2.msra.mxu0 0.0
  %9224 = vmatprep.subr.mxu0 0.0
  %9225 = vmatpush2.msra.mxu0 0.0
  %9226 = vmatprep.subr.mxu0 0.0
  %9227 = vmatpush2.msra.mxu0 0.0
  %9228 = vmatprep.subr.mxu0 0.0
  %9229 = vmatpush2.msra.mxu0 0.0
  %9230 = vmatprep.subr.mxu0 0.0
  %9231 = vmatpush2.msra.mxu0 0.0
  %9232 = vmatprep.subr.mxu0 0.0
  %9233 = vmatpush2.msra.mxu0 0.0
  %9234 = vmatprep.mubr.f32.mxu0 0.0
  %9235 = vmatmul.mubr.f32.gmra.mxu0 %v9168
  %v9236 = vpop.f32.mrf.mxu0
  %v9237 = vadd.f32 %v9163, %v9236
  %v9238 = vpop.f32.mrf.mxu0
  %9239 = vdwg.mxu0
  %v9240 = vld [vmem:[%s17] sm:$0x1]
  %v9242 = vlaneseq
  %v9243 = vshrl.u32 %v9242, 7
  %v9244 = vsub.s32 0, %v9243
  %v9245 = vrot.slane %v9240, %v9244
  %v9247 = vadd.f32 %v9237, %v9245
  %vm9248 = vcmask 9216
  %9249 = vst.msk [vmem:[%s18] sm:$0x3] %vm9248, %v9247
  // Predicated region
  $region74: #{multi_critic_forward.1} parent=0 // pred_check
    _
  $region75: #{multi_critic_forward.1} parent=0 // pred_check_branch
    %9251 = sbr.rel (0) target = $region77
  $region76: #{multi_critic_forward.1} parent=0 // pred_region
    _
  $region77: #{multi_critic_forward.1} parent=0 // pred_fallthru
    _
  // Predicated region
  $region78: #{multi_critic_forward.1} parent=0 // pred_check
    _
  $region79: #{multi_critic_forward.1} parent=0 // pred_check_branch
    %9253 = sbr.rel (0) target = $region81
  $region80: #{multi_critic_forward.1} parent=0 // pred_region
    _
  $region81: #{multi_critic_forward.1} parent=0 // pred_fallthru
    _

</llo_original>
